<compile_context>
chip_gen: v7x
topology: tpu7x:2x2x1
jax: 0.10.0
libtpu: 0.0.40
codegen_flags: <defaults>
</compile_context>

<pallas_src>
import functools

import jax
import jax.numpy as jnp
from jax.experimental import pallas as pl
from jax.experimental.pallas import tpu as pltpu

LANE = 128
MXU_DTYPE = jnp.bfloat16     # MXU operand dtype; accumulation is always f32


def _round_up(x, m):
    return (x + m - 1) // m * m


# --------------------------------------------------------------------------
# Fused conv (valid, stride 1) + bias + ReLU + 2x2 maxpool
# --------------------------------------------------------------------------
def _conv_pool_kernel(p_ref, w_ref, b_ref, o_ref, *, bm):
    """p_ref: (1, 4*bm, Kp) im2col patches, the four pool-window corners
              stacked along M (corner-major, then image, then spatial).
       w_ref: (Kp, Cp) dense-K, lane-padded-N weights (bf16).
       b_ref: (1, Cp)  lane-padded bias (f32).
       o_ref: (1, bm, Cp) pooled output rows ordered (image, hp, wp)."""
    acc = jnp.dot(p_ref[0], w_ref[...], preferred_element_type=jnp.float32)
    # bm is a multiple of 8, so the corner slices stay sublane-aligned.
    m = jnp.maximum(jnp.maximum(acc[0 * bm:1 * bm], acc[1 * bm:2 * bm]),
                    jnp.maximum(acc[2 * bm:3 * bm], acc[3 * bm:4 * bm]))
    # shared bias + monotone ReLU: relu(max_c acc_c + b) == max_c relu(acc_c + b)
    o_ref[0] = jnp.maximum(m + b_ref[...], 0.0).astype(o_ref.dtype)


def conv2d_relu_pool(x_nhwc, w_oihw, b, k, *, imgs_per_step=8):
    """'valid' conv (stride 1) + bias + ReLU + 2x2 maxpool, fused in Pallas.

    x_nhwc carries only the REAL input channels (no lane padding); returns
    (N, Hp, Wp, cout) with only real output channels."""
    N, H, W, cin = x_nhwc.shape
    cout = w_oihw.shape[0]
    assert w_oihw.shape[1] == cin
    Ho, Wo = H - k + 1, W - k + 1
    assert Ho % 2 == 0 and Wo % 2 == 0   # true for the 32x32 LeNet shapes
    Hp, Wp = Ho // 2, Wo // 2
    Mp = Hp * Wp
    K = k * k * cin                      # dense contraction: real channels only
    Kp = _round_up(K, LANE)
    Cp = _round_up(cout, LANE)

    # images per grid step; B*Mp must be sublane-aligned for the corner slices
    B = imgs_per_step
    while (B * Mp) % 8 != 0:
        B *= 2
    Np = _round_up(N, B)
    steps = Np // B
    BM = B * Mp

    x = x_nhwc.astype(MXU_DTYPE)         # keep the im2col glue bf16 in HBM
    if Np != N:
        x = jnp.pad(x, ((0, Np - N), (0, 0), (0, 0), (0, 0)))

    # corner-wise im2col: corner c feature index = (dy*k+dx)*cin + ci
    corners = []
    for ph in range(2):
        for pw in range(2):
            feats = []
            for dy in range(k):
                for dx in range(k):
                    feats.append(x[:, ph + dy: ph + dy + 2 * Hp: 2,
                                     pw + dx: pw + dx + 2 * Wp: 2, :])
            corners.append(jnp.concatenate(feats, axis=-1).reshape(Np, Mp, K))
    # (4, Np, Mp, K) -> (steps, 4, B, Mp, K) -> (steps, 4*B*Mp, Kp)
    patches = jnp.stack(corners, axis=0).reshape(4, steps, B, Mp, K)
    patches = jnp.transpose(patches, (1, 0, 2, 3, 4)).reshape(steps, 4 * BM, K)
    if Kp != K:
        patches = jnp.pad(patches, ((0, 0), (0, 0), (0, Kp - K)))

    # torch weight (Cout,Cin,kh,kw) -> (kh,kw,cin,cout) -> (K,cout) -> (Kp,Cp)
    w = jnp.transpose(w_oihw, (2, 3, 1, 0)).reshape(K, cout)
    w = jnp.pad(w, ((0, Kp - K), (0, Cp - cout))).astype(MXU_DTYPE)
    b_pad = jnp.pad(b, (0, Cp - cout)).reshape(1, Cp).astype(jnp.float32)

    out = pl.pallas_call(
        functools.partial(_conv_pool_kernel, bm=BM),
        out_shape=jax.ShapeDtypeStruct((steps, BM, Cp), MXU_DTYPE),
        grid=(steps,),
        in_specs=[pl.BlockSpec((1, 4 * BM, Kp), lambda i: (i, 0, 0)),
                  pl.BlockSpec((Kp, Cp), lambda i: (0, 0)),
                  pl.BlockSpec((1, Cp), lambda i: (0, 0))],
        out_specs=pl.BlockSpec((1, BM, Cp), lambda i: (i, 0, 0)),
        compiler_params=pltpu.CompilerParams(
            dimension_semantics=("parallel",),
            vmem_limit_bytes=32 * 1024 * 1024),
    )(patches, w, b_pad)

    # drop batch / channel padding: the next stage contracts real channels only
    return out.reshape(Np, Hp, Wp, Cp)[:N, :, :, :cout]


# --------------------------------------------------------------------------
# Fused fc1 + ReLU + fc2 + ReLU + fc3, row-blocked, weights VMEM-resident
# --------------------------------------------------------------------------
def _fc_stack_kernel(x_ref, w1_ref, b1_ref, w2_ref, b2_ref, w3_ref, b3_ref,
                     o_ref):
    h = jnp.dot(x_ref[...], w1_ref[...], preferred_element_type=jnp.float32)
    h = jnp.maximum(h + b1_ref[...], 0.0)
    h = jnp.dot(h.astype(w2_ref.dtype), w2_ref[...],
                preferred_element_type=jnp.float32)
    h = jnp.maximum(h + b2_ref[...], 0.0)
    h = jnp.dot(h.astype(w3_ref.dtype), w3_ref[...],
                preferred_element_type=jnp.float32)
    o_ref[...] = (h + b3_ref[...]).astype(o_ref.dtype)


def fc_stack(flat, params, *, rows_per_step=256):
    """flat: (N, 400) conv2 activation flattened in (h, w, c) order (dense K).
    Applies fc1/fc2/fc3 (torch layouts) in a single fused, row-blocked call."""
    N, K = flat.shape                    # K = 16*5*5 = 400
    Kp = _round_up(K, LANE)              # 512
    n1 = params["fc1_w"].shape[0]        # 120
    n2 = params["fc2_w"].shape[0]        # 84
    n3 = params["fc3_w"].shape[0]        # 10
    n1p, n2p, n3p = (_round_up(n, LANE) for n in (n1, n2, n3))

    cin, hp, wp = 16, 5, 5
    # torch's view(-1, 400) flattens (c, h, w); our activation is (h, w, c):
    # fold the permutation into the fc1 weight instead of transposing data.
    w1 = params["fc1_w"].reshape(n1, cin, hp, wp)
    w1 = jnp.transpose(w1, (2, 3, 1, 0)).reshape(K, n1)          # (h,w,c)->out
    w1 = jnp.pad(w1, ((0, Kp - K), (0, n1p - n1))).astype(MXU_DTYPE)
    w2 = jnp.pad(params["fc2_w"].T,
                 ((0, n1p - n1), (0, n2p - n2))).astype(MXU_DTYPE)
    w3 = jnp.pad(params["fc3_w"].T,
                 ((0, n2p - n2), (0, n3p - n3))).astype(MXU_DTYPE)
    b1 = jnp.pad(params["fc1_b"], (0, n1p - n1)).reshape(1, n1p).astype(jnp.float32)
    b2 = jnp.pad(params["fc2_b"], (0, n2p - n2)).reshape(1, n2p).astype(jnp.float32)
    b3 = jnp.pad(params["fc3_b"], (0, n3p - n3)).reshape(1, n3p).astype(jnp.float32)

    TB = min(rows_per_step, _round_up(N, 8))
    Np = _round_up(N, TB)
    steps = Np // TB
    x = jnp.pad(flat.astype(MXU_DTYPE), ((0, Np - N), (0, Kp - K)))

    inv = lambda i: (0, 0)               # grid-invariant weight/bias blocks
    out = pl.pallas_call(
        _fc_stack_kernel,
        out_shape=jax.ShapeDtypeStruct((Np, n3p), jnp.float32),
        grid=(steps,),
        in_specs=[pl.BlockSpec((TB, Kp), lambda i: (i, 0)),
                  pl.BlockSpec((Kp, n1p), inv),
                  pl.BlockSpec((1, n1p), inv),
                  pl.BlockSpec((n1p, n2p), inv),
                  pl.BlockSpec((1, n2p), inv),
                  pl.BlockSpec((n2p, n3p), inv),
                  pl.BlockSpec((1, n3p), inv)],
        out_specs=pl.BlockSpec((TB, n3p), lambda i: (i, 0)),
        compiler_params=pltpu.CompilerParams(
            dimension_semantics=("parallel",)),
    )(x, w1, b1, w2, b2, w3, b3)
    return out[:N, :n3]


# --------------------------------------------------------------------------
# Network
# --------------------------------------------------------------------------
def init_params(key):
    ks = jax.random.split(key, 10)
    s = 0.1
    f32 = jnp.float32
    return {
        "conv1_w": s * jax.random.normal(ks[0], (6, 3, 5, 5), f32),
        "conv1_b": s * jax.random.normal(ks[1], (6,), f32),
        "conv2_w": s * jax.random.normal(ks[2], (16, 6, 5, 5), f32),
        "conv2_b": s * jax.random.normal(ks[3], (16,), f32),
        "fc1_w": s * jax.random.normal(ks[4], (120, 16 * 5 * 5), f32),
        "fc1_b": s * jax.random.normal(ks[5], (120,), f32),
        "fc2_w": s * jax.random.normal(ks[6], (84, 120), f32),
        "fc2_b": s * jax.random.normal(ks[7], (84,), f32),
        "fc3_w": s * jax.random.normal(ks[8], (10, 84), f32),
        "fc3_b": s * jax.random.normal(ks[9], (10,), f32),
    }


def net_forward(x_nchw, params):
    N = x_nchw.shape[0]
    x = jnp.transpose(x_nchw, (0, 2, 3, 1))                          # -> NHWC

    y = conv2d_relu_pool(x, params["conv1_w"], params["conv1_b"], 5)  # (N,14,14,6)
    y = conv2d_relu_pool(y, params["conv2_w"], params["conv2_b"], 5)  # (N,5,5,16)

    # torch's view(-1, 400) permutation is folded into the fc1 weight, so the
    # activation is flattened as-is in (h, w, c) order — dense K=400.
    flat = y.reshape(N, 5 * 5 * 16)
    return fc_stack(flat, params)                                     # (N,10)


def net_forward_ref(x_nchw, params):
    """Pure-JAX f32 reference matching the PyTorch module."""
    def conv(x, w, b):
        y = jax.lax.conv_general_dilated(
            x, w, (1, 1), "VALID",
            dimension_numbers=("NCHW", "OIHW", "NCHW"))
        return jax.nn.relu(y + b[None, :, None, None])

    def pool(x):
        return jax.lax.reduce_window(x, -jnp.inf, jax.lax.max,
                                     (1, 1, 2, 2), (1, 1, 2, 2), "VALID")

    y = pool(conv(x_nchw, params["conv1_w"], params["conv1_b"]))
    y = pool(conv(y, params["conv2_w"], params["conv2_b"]))
    f = y.reshape(y.shape[0], -1)
    f = jax.nn.relu(f @ params["fc1_w"].T + params["fc1_b"])
    f = jax.nn.relu(f @ params["fc2_w"].T + params["fc2_b"])
    return f @ params["fc3_w"].T + params["fc3_b"]


if __name__ == "__main__":
    key = jax.random.PRNGKey(0)
    k_x, k_p = jax.random.split(key)
    # batch=2; channels/spatial fixed by the module (3, 32, 32 -> 16*5*5).
    x = jax.random.normal(k_x, (2, 3, 32, 32), jnp.float32)
    params = init_params(k_p)

    out = jax.jit(net_forward)(x, params)
    out = jax.block_until_ready(out)

    assert out.shape == (2, 10), out.shape
    assert bool(jnp.all(jnp.isfinite(out)))

    # loose tolerance: MXU operands are bf16 (f32 accumulation)
    ref = net_forward_ref(x, params)
    err = float(jnp.max(jnp.abs(out - ref)))
    scale = float(jnp.max(jnp.abs(ref))) + 1e-6
    assert err <= 0.1 * scale + 0.1, (err, scale)

    print("KERNEL_OK")
</pallas_src>

<mosaic_0001>
module attributes {stable_mosaic.version = 11 : i64} {
  func.func @_conv_pool_kernel(%arg0: i32, %arg1: memref<1x6272x128xbf16, #tpu.memory_space<vmem>>, %arg2: memref<128x128xbf16, #tpu.memory_space<vmem>>, %arg3: memref<1x128xf32, #tpu.memory_space<vmem>>, %arg4: memref<1x1568x128xbf16, #tpu.memory_space<vmem>>) attributes {dimension_semantics = [#tpu.dimension_semantics<parallel>], iteration_bounds = array<i64: 1>, scalar_prefetch = 0 : i64, scratch_operands = 0 : i64, tpu.core_type = #tpu.core_type<tc>, window_params = [{transform_indices = @transform_0, window_bounds = array<i64: 1, 6272, 128>}, {pipeline_mode = #tpu.pipeline_mode<synchronous>, transform_indices = @transform_1, window_bounds = array<i64: 128, 128>}, {pipeline_mode = #tpu.pipeline_mode<synchronous>, transform_indices = @transform_2, window_bounds = array<i64: 1, 128>}, {transform_indices = @transform_3, window_bounds = array<i64: 1, 1568, 128>}]} {
    %c0 = arith.constant 0 : index
    %c0_0 = arith.constant 0 : index
    %c0_1 = arith.constant 0 : index
    %0 = vector.load %arg1[%c0, %c0_0, %c0_1] : memref<1x6272x128xbf16, #tpu.memory_space<vmem>>, vector<1x6272x128xbf16>
    %1 = vector.shape_cast %0 : vector<1x6272x128xbf16> to vector<6272x128xbf16>
    %c0_2 = arith.constant 0 : index
    %c0_3 = arith.constant 0 : index
    %2 = vector.load %arg2[%c0_2, %c0_3] : memref<128x128xbf16, #tpu.memory_space<vmem>>, vector<128x128xbf16>
    %cst = arith.constant dense<0.000000e+00> : vector<6272x128xf32>
    %3 = tpu.matmul %1, %2, %cst {dimension_numbers = #tpu.dot_dimension_numbers<[1], [0], [0], [1], [0, 0, 1, 1], [], []>} : vector<6272x128xbf16>, vector<128x128xbf16>, vector<6272x128xf32> -> vector<6272x128xf32>
    %4 = vector.extract_strided_slice %3 {offsets = [0, 0], sizes = [1568, 128], strides = [1, 1]} : vector<6272x128xf32> to vector<1568x128xf32>
    %5 = vector.extract_strided_slice %3 {offsets = [1568, 0], sizes = [1568, 128], strides = [1, 1]} : vector<6272x128xf32> to vector<1568x128xf32>
    %6 = arith.maximumf %4, %5 : vector<1568x128xf32>
    %7 = vector.extract_strided_slice %3 {offsets = [3136, 0], sizes = [1568, 128], strides = [1, 1]} : vector<6272x128xf32> to vector<1568x128xf32>
    %8 = vector.extract_strided_slice %3 {offsets = [4704, 0], sizes = [1568, 128], strides = [1, 1]} : vector<6272x128xf32> to vector<1568x128xf32>
    %9 = arith.maximumf %7, %8 : vector<1568x128xf32>
    %10 = arith.maximumf %6, %9 : vector<1568x128xf32>
    %c0_4 = arith.constant 0 : index
    %c0_5 = arith.constant 0 : index
    %11 = vector.load %arg3[%c0_4, %c0_5] : memref<1x128xf32, #tpu.memory_space<vmem>>, vector<1x128xf32>
    %12 = vector.broadcast %11 : vector<1x128xf32> to vector<1568x128xf32>
    %13 = arith.addf %10, %12 : vector<1568x128xf32>
    %cst_6 = arith.constant 0.000000e+00 : f32
    %14 = vector.broadcast %cst_6 : f32 to vector<1568x128xf32>
    %15 = arith.maximumf %13, %14 : vector<1568x128xf32>
    %16 = arith.truncf %15 : vector<1568x128xf32> to vector<1568x128xbf16>
    %c0_7 = arith.constant 0 : index
    %c0_8 = arith.constant 0 : index
    %c0_9 = arith.constant 0 : index
    %17 = vector.load %arg4[%c0_7, %c0_8, %c0_9] : memref<1x1568x128xbf16, #tpu.memory_space<vmem>>, vector<1x1568x128xbf16>
    %18 = vector.shape_cast %17 : vector<1x1568x128xbf16> to vector<1568x128xbf16>
    %19 = vector.shape_cast %16 : vector<1568x128xbf16> to vector<1x1568x128xbf16>
    tpu.vector_store %arg4[%c0_7, %c0_8, %c0_9], %19 {strides = array<i32>} : memref<1x1568x128xbf16, #tpu.memory_space<vmem>>, vector<1x1568x128xbf16>,
    return
  }
  func.func @transform_0(%arg0: i32) -> (i32, i32, i32) {
    %c0_i32 = arith.constant 0 : i32
    %c0_i32_0 = arith.constant 0 : i32
    %c0_i32_1 = arith.constant 0 : i32
    return %arg0, %c0_i32, %c0_i32_0 : i32, i32, i32
  }
  func.func @transform_1(%arg0: i32) -> (i32, i32) {
    %c0_i32 = arith.constant 0 : i32
    %c0_i32_0 = arith.constant 0 : i32
    %c0_i32_1 = arith.constant 0 : i32
    return %c0_i32, %c0_i32_0 : i32, i32
  }
  func.func @transform_2(%arg0: i32) -> (i32, i32) {
    %c0_i32 = arith.constant 0 : i32
    %c0_i32_0 = arith.constant 0 : i32
    %c0_i32_1 = arith.constant 0 : i32
    return %c0_i32, %c0_i32_0 : i32, i32
  }
  func.func @transform_3(%arg0: i32) -> (i32, i32, i32) {
    %c0_i32 = arith.constant 0 : i32
    %c0_i32_0 = arith.constant 0 : i32
    %c0_i32_1 = arith.constant 0 : i32
    return %arg0, %c0_i32, %c0_i32_0 : i32, i32, i32
  }
}

module attributes {stable_mosaic.version = 11 : i64} {
  func.func @_conv_pool_kernel(%arg0: i32, %arg1: memref<1x800x256xbf16, #tpu.memory_space<vmem>>, %arg2: memref<256x128xbf16, #tpu.memory_space<vmem>>, %arg3: memref<1x128xf32, #tpu.memory_space<vmem>>, %arg4: memref<1x200x128xbf16, #tpu.memory_space<vmem>>) attributes {dimension_semantics = [#tpu.dimension_semantics<parallel>], iteration_bounds = array<i64: 1>, scalar_prefetch = 0 : i64, scratch_operands = 0 : i64, tpu.core_type = #tpu.core_type<tc>, window_params = [{transform_indices = @transform_0, window_bounds = array<i64: 1, 800, 256>}, {pipeline_mode = #tpu.pipeline_mode<synchronous>, transform_indices = @transform_1, window_bounds = array<i64: 256, 128>}, {pipeline_mode = #tpu.pipeline_mode<synchronous>, transform_indices = @transform_2, window_bounds = array<i64: 1, 128>}, {transform_indices = @transform_3, window_bounds = array<i64: 1, 200, 128>}]} {
    %c0 = arith.constant 0 : index
    %c0_0 = arith.constant 0 : index
    %c0_1 = arith.constant 0 : index
    %0 = vector.load %arg1[%c0, %c0_0, %c0_1] : memref<1x800x256xbf16, #tpu.memory_space<vmem>>, vector<1x800x256xbf16>
    %1 = vector.shape_cast %0 : vector<1x800x256xbf16> to vector<800x256xbf16>
    %c0_2 = arith.constant 0 : index
    %c0_3 = arith.constant 0 : index
    %2 = vector.load %arg2[%c0_2, %c0_3] : memref<256x128xbf16, #tpu.memory_space<vmem>>, vector<256x128xbf16>
    %cst = arith.constant dense<0.000000e+00> : vector<800x128xf32>
    %3 = tpu.matmul %1, %2, %cst {dimension_numbers = #tpu.dot_dimension_numbers<[1], [0], [0], [1], [0, 0, 1, 1], [], []>} : vector<800x256xbf16>, vector<256x128xbf16>, vector<800x128xf32> -> vector<800x128xf32>
    %4 = vector.extract_strided_slice %3 {offsets = [0, 0], sizes = [200, 128], strides = [1, 1]} : vector<800x128xf32> to vector<200x128xf32>
    %5 = vector.extract_strided_slice %3 {offsets = [200, 0], sizes = [200, 128], strides = [1, 1]} : vector<800x128xf32> to vector<200x128xf32>
    %6 = arith.maximumf %4, %5 : vector<200x128xf32>
    %7 = vector.extract_strided_slice %3 {offsets = [400, 0], sizes = [200, 128], strides = [1, 1]} : vector<800x128xf32> to vector<200x128xf32>
    %8 = vector.extract_strided_slice %3 {offsets = [600, 0], sizes = [200, 128], strides = [1, 1]} : vector<800x128xf32> to vector<200x128xf32>
    %9 = arith.maximumf %7, %8 : vector<200x128xf32>
    %10 = arith.maximumf %6, %9 : vector<200x128xf32>
    %c0_4 = arith.constant 0 : index
    %c0_5 = arith.constant 0 : index
    %11 = vector.load %arg3[%c0_4, %c0_5] : memref<1x128xf32, #tpu.memory_space<vmem>>, vector<1x128xf32>
    %12 = vector.broadcast %11 : vector<1x128xf32> to vector<200x128xf32>
    %13 = arith.addf %10, %12 : vector<200x128xf32>
    %cst_6 = arith.constant 0.000000e+00 : f32
    %14 = vector.broadcast %cst_6 : f32 to vector<200x128xf32>
    %15 = arith.maximumf %13, %14 : vector<200x128xf32>
    %16 = arith.truncf %15 : vector<200x128xf32> to vector<200x128xbf16>
    %c0_7 = arith.constant 0 : index
    %c0_8 = arith.constant 0 : index
    %c0_9 = arith.constant 0 : index
    %17 = vector.load %arg4[%c0_7, %c0_8, %c0_9] : memref<1x200x128xbf16, #tpu.memory_space<vmem>>, vector<1x200x128xbf16>
    %18 = vector.shape_cast %17 : vector<1x200x128xbf16> to vector<200x128xbf16>
    %19 = vector.shape_cast %16 : vector<200x128xbf16> to vector<1x200x128xbf16>
    tpu.vector_store %arg4[%c0_7, %c0_8, %c0_9], %19 {strides = array<i32>} : memref<1x200x128xbf16, #tpu.memory_space<vmem>>, vector<1x200x128xbf16>,
    return
  }
  func.func @transform_0(%arg0: i32) -> (i32, i32, i32) {
    %c0_i32 = arith.constant 0 : i32
    %c0_i32_0 = arith.constant 0 : i32
    %c0_i32_1 = arith.constant 0 : i32
    return %arg0, %c0_i32, %c0_i32_0 : i32, i32, i32
  }
  func.func @transform_1(%arg0: i32) -> (i32, i32) {
    %c0_i32 = arith.constant 0 : i32
    %c0_i32_0 = arith.constant 0 : i32
    %c0_i32_1 = arith.constant 0 : i32
    return %c0_i32, %c0_i32_0 : i32, i32
  }
  func.func @transform_2(%arg0: i32) -> (i32, i32) {
    %c0_i32 = arith.constant 0 : i32
    %c0_i32_0 = arith.constant 0 : i32
    %c0_i32_1 = arith.constant 0 : i32
    return %c0_i32, %c0_i32_0 : i32, i32
  }
  func.func @transform_3(%arg0: i32) -> (i32, i32, i32) {
    %c0_i32 = arith.constant 0 : i32
    %c0_i32_0 = arith.constant 0 : i32
    %c0_i32_1 = arith.constant 0 : i32
    return %arg0, %c0_i32, %c0_i32_0 : i32, i32, i32
  }
}

module attributes {stable_mosaic.version = 11 : i64} {
  func.func @_fc_stack_kernel(%arg0: i32, %arg1: memref<8x512xbf16, #tpu.memory_space<vmem>>, %arg2: memref<512x128xbf16, #tpu.memory_space<vmem>>, %arg3: memref<1x128xf32, #tpu.memory_space<vmem>>, %arg4: memref<128x128xbf16, #tpu.memory_space<vmem>>, %arg5: memref<1x128xf32, #tpu.memory_space<vmem>>, %arg6: memref<128x128xbf16, #tpu.memory_space<vmem>>, %arg7: memref<1x128xf32, #tpu.memory_space<vmem>>, %arg8: memref<8x128xf32, #tpu.memory_space<vmem>>) attributes {dimension_semantics = [#tpu.dimension_semantics<parallel>], iteration_bounds = array<i64: 1>, scalar_prefetch = 0 : i64, scratch_operands = 0 : i64, tpu.core_type = #tpu.core_type<tc>, window_params = [{transform_indices = @transform_0, window_bounds = array<i64: 8, 512>}, {pipeline_mode = #tpu.pipeline_mode<synchronous>, transform_indices = @transform_1, window_bounds = array<i64: 512, 128>}, {pipeline_mode = #tpu.pipeline_mode<synchronous>, transform_indices = @transform_2, window_bounds = array<i64: 1, 128>}, {pipeline_mode = #tpu.pipeline_mode<synchronous>, transform_indices = @transform_3, window_bounds = array<i64: 128, 128>}, {pipeline_mode = #tpu.pipeline_mode<synchronous>, transform_indices = @transform_4, window_bounds = array<i64: 1, 128>}, {pipeline_mode = #tpu.pipeline_mode<synchronous>, transform_indices = @transform_5, window_bounds = array<i64: 128, 128>}, {pipeline_mode = #tpu.pipeline_mode<synchronous>, transform_indices = @transform_6, window_bounds = array<i64: 1, 128>}, {transform_indices = @transform_7, window_bounds = array<i64: 8, 128>}]} {
    %c0 = arith.constant 0 : index
    %c0_0 = arith.constant 0 : index
    %0 = vector.load %arg1[%c0, %c0_0] : memref<8x512xbf16, #tpu.memory_space<vmem>>, vector<8x512xbf16>
    %c0_1 = arith.constant 0 : index
    %c0_2 = arith.constant 0 : index
    %1 = vector.load %arg2[%c0_1, %c0_2] : memref<512x128xbf16, #tpu.memory_space<vmem>>, vector<512x128xbf16>
    %cst = arith.constant dense<0.000000e+00> : vector<8x128xf32>
    %2 = tpu.matmul %0, %1, %cst {dimension_numbers = #tpu.dot_dimension_numbers<[1], [0], [0], [1], [0, 0, 1, 1], [], []>} : vector<8x512xbf16>, vector<512x128xbf16>, vector<8x128xf32> -> vector<8x128xf32>
    %c0_3 = arith.constant 0 : index
    %c0_4 = arith.constant 0 : index
    %3 = vector.load %arg3[%c0_3, %c0_4] : memref<1x128xf32, #tpu.memory_space<vmem>>, vector<1x128xf32>
    %4 = vector.broadcast %3 : vector<1x128xf32> to vector<8x128xf32>
    %5 = arith.addf %2, %4 : vector<8x128xf32>
    %cst_5 = arith.constant 0.000000e+00 : f32
    %6 = vector.broadcast %cst_5 : f32 to vector<8x128xf32>
    %7 = arith.maximumf %5, %6 : vector<8x128xf32>
    %8 = arith.truncf %7 : vector<8x128xf32> to vector<8x128xbf16>
    %c0_6 = arith.constant 0 : index
    %c0_7 = arith.constant 0 : index
    %9 = vector.load %arg4[%c0_6, %c0_7] : memref<128x128xbf16, #tpu.memory_space<vmem>>, vector<128x128xbf16>
    %cst_8 = arith.constant dense<0.000000e+00> : vector<8x128xf32>
    %10 = tpu.matmul %8, %9, %cst_8 {dimension_numbers = #tpu.dot_dimension_numbers<[1], [0], [0], [1], [0, 0, 1, 1], [], []>} : vector<8x128xbf16>, vector<128x128xbf16>, vector<8x128xf32> -> vector<8x128xf32>
    %c0_9 = arith.constant 0 : index
    %c0_10 = arith.constant 0 : index
    %11 = vector.load %arg5[%c0_9, %c0_10] : memref<1x128xf32, #tpu.memory_space<vmem>>, vector<1x128xf32>
    %12 = vector.broadcast %11 : vector<1x128xf32> to vector<8x128xf32>
    %13 = arith.addf %10, %12 : vector<8x128xf32>
    %cst_11 = arith.constant 0.000000e+00 : f32
    %14 = vector.broadcast %cst_11 : f32 to vector<8x128xf32>
    %15 = arith.maximumf %13, %14 : vector<8x128xf32>
    %16 = arith.truncf %15 : vector<8x128xf32> to vector<8x128xbf16>
    %c0_12 = arith.constant 0 : index
    %c0_13 = arith.constant 0 : index
    %17 = vector.load %arg6[%c0_12, %c0_13] : memref<128x128xbf16, #tpu.memory_space<vmem>>, vector<128x128xbf16>
    %cst_14 = arith.constant dense<0.000000e+00> : vector<8x128xf32>
    %18 = tpu.matmul %16, %17, %cst_14 {dimension_numbers = #tpu.dot_dimension_numbers<[1], [0], [0], [1], [0, 0, 1, 1], [], []>} : vector<8x128xbf16>, vector<128x128xbf16>, vector<8x128xf32> -> vector<8x128xf32>
    %c0_15 = arith.constant 0 : index
    %c0_16 = arith.constant 0 : index
    %19 = vector.load %arg7[%c0_15, %c0_16] : memref<1x128xf32, #tpu.memory_space<vmem>>, vector<1x128xf32>
    %20 = vector.broadcast %19 : vector<1x128xf32> to vector<8x128xf32>
    %21 = arith.addf %18, %20 : vector<8x128xf32>
    %c0_17 = arith.constant 0 : index
    %c0_18 = arith.constant 0 : index
    %22 = vector.load %arg8[%c0_17, %c0_18] : memref<8x128xf32, #tpu.memory_space<vmem>>, vector<8x128xf32>
    tpu.vector_store %arg8[%c0_17, %c0_18], %21 {strides = array<i32>} : memref<8x128xf32, #tpu.memory_space<vmem>>, vector<8x128xf32>,
    return
  }
  func.func @transform_0(%arg0: i32) -> (i32, i32) {
    %c0_i32 = arith.constant 0 : i32
    %c0_i32_0 = arith.constant 0 : i32
    return %arg0, %c0_i32 : i32, i32
  }
  func.func @transform_1(%arg0: i32) -> (i32, i32) {
    %c0_i32 = arith.constant 0 : i32
    %c0_i32_0 = arith.constant 0 : i32
    %c0_i32_1 = arith.constant 0 : i32
    return %c0_i32, %c0_i32_0 : i32, i32
  }
  func.func @transform_2(%arg0: i32) -> (i32, i32) {
    %c0_i32 = arith.constant 0 : i32
    %c0_i32_0 = arith.constant 0 : i32
    %c0_i32_1 = arith.constant 0 : i32
    return %c0_i32, %c0_i32_0 : i32, i32
  }
  func.func @transform_3(%arg0: i32) -> (i32, i32) {
    %c0_i32 = arith.constant 0 : i32
    %c0_i32_0 = arith.constant 0 : i32
    %c0_i32_1 = arith.constant 0 : i32
    return %c0_i32, %c0_i32_0 : i32, i32
  }
  func.func @transform_4(%arg0: i32) -> (i32, i32) {
    %c0_i32 = arith.constant 0 : i32
    %c0_i32_0 = arith.constant 0 : i32
    %c0_i32_1 = arith.constant 0 : i32
    return %c0_i32, %c0_i32_0 : i32, i32
  }
  func.func @transform_5(%arg0: i32) -> (i32, i32) {
    %c0_i32 = arith.constant 0 : i32
    %c0_i32_0 = arith.constant 0 : i32
    %c0_i32_1 = arith.constant 0 : i32
    return %c0_i32, %c0_i32_0 : i32, i32
  }
  func.func @transform_6(%arg0: i32) -> (i32, i32) {
    %c0_i32 = arith.constant 0 : i32
    %c0_i32_0 = arith.constant 0 : i32
    %c0_i32_1 = arith.constant 0 : i32
    return %c0_i32, %c0_i32_0 : i32, i32
  }
  func.func @transform_7(%arg0: i32) -> (i32, i32) {
    %c0_i32 = arith.constant 0 : i32
    %c0_i32_0 = arith.constant 0 : i32
    return %arg0, %c0_i32 : i32, i32
  }
}

</mosaic_0001>

<llo_original>
// kernel: net_forward.3
$region0: #{net_forward.3}
  #allocation0 [shape = 'u32[]', space=smem, size = 0x4, offset = 0x4, fixed_abs, tag = 'smem constant byte address 0x4 - core index']
  #allocation1 [shape = 'u32[144,128]{1,0:T(1,128)}', space=vmem, size = 0x12000, scoped, tag = 'internal scratch']
  %s0 = inlined_call_operand.vmem [shape: bf16[1,6272,128], index: 0, kind: input, shape index: {}]
  %s1 = inlined_call_operand.vmem [shape: bf16[128,128], index: 1, kind: input, shape index: {}]
  %s2 = inlined_call_operand.vmem [shape: f32[1,128], index: 2, kind: input, shape index: {}]
  %s3 = inlined_call_operand.vmem [shape: bf16[1,1568,128], index: 3, kind: output, shape index: {}]
  %s4 = sld [smem:[#allocation0]]
  $region22: #{net_forward.3} parent=0
    _
  %s6 = ssub.s32 1, %s4
  %s7 = scalar_select 0, %s6, %s4
  // Predicated region
  $region2: #{net_forward.3} parent=0 // pred_check
    _
  $region3: #{net_forward.3} parent=0 // pred_check_branch
    %9 = sbr.rel (0) target = $region5
  $region4: #{net_forward.3} parent=0 // pred_region
    _
  $region5: #{net_forward.3} parent=0 // pred_fallthru
    _
  // Predicated region
  $region6: #{net_forward.3} parent=0 // pred_check
    _
  $region7: #{net_forward.3} parent=0 // pred_check_branch
    %11 = sbr.rel (0) target = $region9
  $region8: #{net_forward.3} parent=0 // pred_region
    _
  $region9: #{net_forward.3} parent=0 // pred_fallthru
    _
  // Predicated region
  $region10: #{net_forward.3} parent=0 // pred_check
    _
  $region11: #{net_forward.3} parent=0 // pred_check_branch
    %13 = sbr.rel (0) target = $region13
  $region12: #{net_forward.3} parent=0 // pred_region
    _
  $region13: #{net_forward.3} parent=0 // pred_fallthru
    _
  %v15 = vld [vmem:[%s0] sm:$0xf]
  %v16 = vld [vmem:[%s0 + $0x4] sm:$0xf]
  %v17 = vld [vmem:[%s0 + $0x8] sm:$0xf]
  %v18 = vld [vmem:[%s0 + $0xc] sm:$0xf]
  %v19 = vld [vmem:[%s0 + $0x10] sm:$0xf]
  %v20 = vld [vmem:[%s0 + $0x14] sm:$0xf]
  %v21 = vld [vmem:[%s0 + $0x18] sm:$0xf]
  %v22 = vld [vmem:[%s0 + $0x1c] sm:$0xf]
  %v23 = vld [vmem:[%s0 + $0x20] sm:$0xf]
  %v24 = vld [vmem:[%s0 + $0x24] sm:$0xf]
  %v25 = vld [vmem:[%s0 + $0x28] sm:$0xf]
  %v26 = vld [vmem:[%s0 + $0x2c] sm:$0xf]
  %v27 = vld [vmem:[%s0 + $0x30] sm:$0xf]
  %v28 = vld [vmem:[%s0 + $0x34] sm:$0xf]
  %v29 = vld [vmem:[%s0 + $0x38] sm:$0xf]
  %v30 = vld [vmem:[%s0 + $0x3c] sm:$0xf]
  %v31 = vld [vmem:[%s0 + $0x40] sm:$0xf]
  %v32 = vld [vmem:[%s0 + $0x44] sm:$0xf]
  %v33 = vld [vmem:[%s0 + $0x48] sm:$0xf]
  %v34 = vld [vmem:[%s0 + $0x4c] sm:$0xf]
  %v35 = vld [vmem:[%s0 + $0x50] sm:$0xf]
  %v36 = vld [vmem:[%s0 + $0x54] sm:$0xf]
  %v37 = vld [vmem:[%s0 + $0x58] sm:$0xf]
  %v38 = vld [vmem:[%s0 + $0x5c] sm:$0xf]
  %v39 = vld [vmem:[%s0 + $0x60] sm:$0xf]
  %v40 = vld [vmem:[%s0 + $0x64] sm:$0xf]
  %v41 = vld [vmem:[%s0 + $0x68] sm:$0xf]
  %v42 = vld [vmem:[%s0 + $0x6c] sm:$0xf]
  %v43 = vld [vmem:[%s0 + $0x70] sm:$0xf]
  %v44 = vld [vmem:[%s0 + $0x74] sm:$0xf]
  %v45 = vld [vmem:[%s0 + $0x78] sm:$0xf]
  %v46 = vld [vmem:[%s0 + $0x7c] sm:$0xf]
  %v47 = vld [vmem:[%s0 + $0x80] sm:$0xf]
  %v48 = vld [vmem:[%s0 + $0x84] sm:$0xf]
  %v49 = vld [vmem:[%s0 + $0x88] sm:$0xf]
  %v50 = vld [vmem:[%s0 + $0x8c] sm:$0xf]
  %v51 = vld [vmem:[%s0 + $0x90] sm:$0xf]
  %v52 = vld [vmem:[%s0 + $0x94] sm:$0xf]
  %v53 = vld [vmem:[%s0 + $0x98] sm:$0xf]
  %v54 = vld [vmem:[%s0 + $0x9c] sm:$0xf]
  %v55 = vld [vmem:[%s0 + $0xa0] sm:$0xf]
  %v56 = vld [vmem:[%s0 + $0xa4] sm:$0xf]
  %v57 = vld [vmem:[%s0 + $0xa8] sm:$0xf]
  %v58 = vld [vmem:[%s0 + $0xac] sm:$0xf]
  %v59 = vld [vmem:[%s0 + $0xb0] sm:$0xf]
  %v60 = vld [vmem:[%s0 + $0xb4] sm:$0xf]
  %v61 = vld [vmem:[%s0 + $0xb8] sm:$0xf]
  %v62 = vld [vmem:[%s0 + $0xbc] sm:$0xf]
  %v63 = vld [vmem:[%s0 + $0xc0] sm:$0xf]
  %v64 = vld [vmem:[%s0 + $0xc4] sm:$0xf]
  %v65 = vld [vmem:[%s0 + $0xc8] sm:$0xf]
  %v66 = vld [vmem:[%s0 + $0xcc] sm:$0xf]
  %v67 = vld [vmem:[%s0 + $0xd0] sm:$0xf]
  %v68 = vld [vmem:[%s0 + $0xd4] sm:$0xf]
  %v69 = vld [vmem:[%s0 + $0xd8] sm:$0xf]
  %v70 = vld [vmem:[%s0 + $0xdc] sm:$0xf]
  %v71 = vld [vmem:[%s0 + $0xe0] sm:$0xf]
  %v72 = vld [vmem:[%s0 + $0xe4] sm:$0xf]
  %v73 = vld [vmem:[%s0 + $0xe8] sm:$0xf]
  %v74 = vld [vmem:[%s0 + $0xec] sm:$0xf]
  %v75 = vld [vmem:[%s0 + $0xf0] sm:$0xf]
  %v76 = vld [vmem:[%s0 + $0xf4] sm:$0xf]
  %v77 = vld [vmem:[%s0 + $0xf8] sm:$0xf]
  %v78 = vld [vmem:[%s0 + $0xfc] sm:$0xf]
  %v79 = vld [vmem:[%s0 + $0x100] sm:$0xf]
  %v80 = vld [vmem:[%s0 + $0x104] sm:$0xf]
  %v81 = vld [vmem:[%s0 + $0x108] sm:$0xf]
  %v82 = vld [vmem:[%s0 + $0x10c] sm:$0xf]
  %v83 = vld [vmem:[%s0 + $0x110] sm:$0xf]
  %v84 = vld [vmem:[%s0 + $0x114] sm:$0xf]
  %v85 = vld [vmem:[%s0 + $0x118] sm:$0xf]
  %v86 = vld [vmem:[%s0 + $0x11c] sm:$0xf]
  %v87 = vld [vmem:[%s0 + $0x120] sm:$0xf]
  %v88 = vld [vmem:[%s0 + $0x124] sm:$0xf]
  %v89 = vld [vmem:[%s0 + $0x128] sm:$0xf]
  %v90 = vld [vmem:[%s0 + $0x12c] sm:$0xf]
  %v91 = vld [vmem:[%s0 + $0x130] sm:$0xf]
  %v92 = vld [vmem:[%s0 + $0x134] sm:$0xf]
  %v93 = vld [vmem:[%s0 + $0x138] sm:$0xf]
  %v94 = vld [vmem:[%s0 + $0x13c] sm:$0xf]
  %v95 = vld [vmem:[%s0 + $0x140] sm:$0xf]
  %v96 = vld [vmem:[%s0 + $0x144] sm:$0xf]
  %v97 = vld [vmem:[%s0 + $0x148] sm:$0xf]
  %v98 = vld [vmem:[%s0 + $0x14c] sm:$0xf]
  %v99 = vld [vmem:[%s0 + $0x150] sm:$0xf]
  %v100 = vld [vmem:[%s0 + $0x154] sm:$0xf]
  %v101 = vld [vmem:[%s0 + $0x158] sm:$0xf]
  %v102 = vld [vmem:[%s0 + $0x15c] sm:$0xf]
  %v103 = vld [vmem:[%s0 + $0x160] sm:$0xf]
  %v104 = vld [vmem:[%s0 + $0x164] sm:$0xf]
  %v105 = vld [vmem:[%s0 + $0x168] sm:$0xf]
  %v106 = vld [vmem:[%s0 + $0x16c] sm:$0xf]
  %v107 = vld [vmem:[%s0 + $0x170] sm:$0xf]
  %v108 = vld [vmem:[%s0 + $0x174] sm:$0xf]
  %v109 = vld [vmem:[%s0 + $0x178] sm:$0xf]
  %v110 = vld [vmem:[%s0 + $0x17c] sm:$0xf]
  %v111 = vld [vmem:[%s0 + $0x180] sm:$0xf]
  %v112 = vld [vmem:[%s0 + $0x184] sm:$0xf]
  %v113 = vld [vmem:[%s0 + $0x188] sm:$0xf]
  %v114 = vld [vmem:[%s0 + $0x18c] sm:$0xf]
  %v115 = vld [vmem:[%s0 + $0x190] sm:$0xf]
  %v116 = vld [vmem:[%s0 + $0x194] sm:$0xf]
  %v117 = vld [vmem:[%s0 + $0x198] sm:$0xf]
  %v118 = vld [vmem:[%s0 + $0x19c] sm:$0xf]
  %v119 = vld [vmem:[%s0 + $0x1a0] sm:$0xf]
  %v120 = vld [vmem:[%s0 + $0x1a4] sm:$0xf]
  %v121 = vld [vmem:[%s0 + $0x1a8] sm:$0xf]
  %v122 = vld [vmem:[%s0 + $0x1ac] sm:$0xf]
  %v123 = vld [vmem:[%s0 + $0x1b0] sm:$0xf]
  %v124 = vld [vmem:[%s0 + $0x1b4] sm:$0xf]
  %v125 = vld [vmem:[%s0 + $0x1b8] sm:$0xf]
  %v126 = vld [vmem:[%s0 + $0x1bc] sm:$0xf]
  %v127 = vld [vmem:[%s0 + $0x1c0] sm:$0xf]
  %v128 = vld [vmem:[%s0 + $0x1c4] sm:$0xf]
  %v129 = vld [vmem:[%s0 + $0x1c8] sm:$0xf]
  %v130 = vld [vmem:[%s0 + $0x1cc] sm:$0xf]
  %v131 = vld [vmem:[%s0 + $0x1d0] sm:$0xf]
  %v132 = vld [vmem:[%s0 + $0x1d4] sm:$0xf]
  %v133 = vld [vmem:[%s0 + $0x1d8] sm:$0xf]
  %v134 = vld [vmem:[%s0 + $0x1dc] sm:$0xf]
  %v135 = vld [vmem:[%s0 + $0x1e0] sm:$0xf]
  %v136 = vld [vmem:[%s0 + $0x1e4] sm:$0xf]
  %v137 = vld [vmem:[%s0 + $0x1e8] sm:$0xf]
  %v138 = vld [vmem:[%s0 + $0x1ec] sm:$0xf]
  %v139 = vld [vmem:[%s0 + $0x1f0] sm:$0xf]
  %v140 = vld [vmem:[%s0 + $0x1f4] sm:$0xf]
  %v141 = vld [vmem:[%s0 + $0x1f8] sm:$0xf]
  %v142 = vld [vmem:[%s0 + $0x1fc] sm:$0xf]
  %v143 = vld [vmem:[%s0 + $0x200] sm:$0xf]
  %v144 = vld [vmem:[%s0 + $0x204] sm:$0xf]
  %v145 = vld [vmem:[%s0 + $0x208] sm:$0xf]
  %v146 = vld [vmem:[%s0 + $0x20c] sm:$0xf]
  %v147 = vld [vmem:[%s0 + $0x210] sm:$0xf]
  %v148 = vld [vmem:[%s0 + $0x214] sm:$0xf]
  %v149 = vld [vmem:[%s0 + $0x218] sm:$0xf]
  %v150 = vld [vmem:[%s0 + $0x21c] sm:$0xf]
  %v151 = vld [vmem:[%s0 + $0x220] sm:$0xf]
  %v152 = vld [vmem:[%s0 + $0x224] sm:$0xf]
  %v153 = vld [vmem:[%s0 + $0x228] sm:$0xf]
  %v154 = vld [vmem:[%s0 + $0x22c] sm:$0xf]
  %v155 = vld [vmem:[%s0 + $0x230] sm:$0xf]
  %v156 = vld [vmem:[%s0 + $0x234] sm:$0xf]
  %v157 = vld [vmem:[%s0 + $0x238] sm:$0xf]
  %v158 = vld [vmem:[%s0 + $0x23c] sm:$0xf]
  %v159 = vld [vmem:[%s0 + $0x240] sm:$0xf]
  %v160 = vld [vmem:[%s0 + $0x244] sm:$0xf]
  %v161 = vld [vmem:[%s0 + $0x248] sm:$0xf]
  %v162 = vld [vmem:[%s0 + $0x24c] sm:$0xf]
  %v163 = vld [vmem:[%s0 + $0x250] sm:$0xf]
  %v164 = vld [vmem:[%s0 + $0x254] sm:$0xf]
  %v165 = vld [vmem:[%s0 + $0x258] sm:$0xf]
  %v166 = vld [vmem:[%s0 + $0x25c] sm:$0xf]
  %v167 = vld [vmem:[%s0 + $0x260] sm:$0xf]
  %v168 = vld [vmem:[%s0 + $0x264] sm:$0xf]
  %v169 = vld [vmem:[%s0 + $0x268] sm:$0xf]
  %v170 = vld [vmem:[%s0 + $0x26c] sm:$0xf]
  %v171 = vld [vmem:[%s0 + $0x270] sm:$0xf]
  %v172 = vld [vmem:[%s0 + $0x274] sm:$0xf]
  %v173 = vld [vmem:[%s0 + $0x278] sm:$0xf]
  %v174 = vld [vmem:[%s0 + $0x27c] sm:$0xf]
  %v175 = vld [vmem:[%s0 + $0x280] sm:$0xf]
  %v176 = vld [vmem:[%s0 + $0x284] sm:$0xf]
  %v177 = vld [vmem:[%s0 + $0x288] sm:$0xf]
  %v178 = vld [vmem:[%s0 + $0x28c] sm:$0xf]
  %v179 = vld [vmem:[%s0 + $0x290] sm:$0xf]
  %v180 = vld [vmem:[%s0 + $0x294] sm:$0xf]
  %v181 = vld [vmem:[%s0 + $0x298] sm:$0xf]
  %v182 = vld [vmem:[%s0 + $0x29c] sm:$0xf]
  %v183 = vld [vmem:[%s0 + $0x2a0] sm:$0xf]
  %v184 = vld [vmem:[%s0 + $0x2a4] sm:$0xf]
  %v185 = vld [vmem:[%s0 + $0x2a8] sm:$0xf]
  %v186 = vld [vmem:[%s0 + $0x2ac] sm:$0xf]
  %v187 = vld [vmem:[%s0 + $0x2b0] sm:$0xf]
  %v188 = vld [vmem:[%s0 + $0x2b4] sm:$0xf]
  %v189 = vld [vmem:[%s0 + $0x2b8] sm:$0xf]
  %v190 = vld [vmem:[%s0 + $0x2bc] sm:$0xf]
  %v191 = vld [vmem:[%s0 + $0x2c0] sm:$0xf]
  %v192 = vld [vmem:[%s0 + $0x2c4] sm:$0xf]
  %v193 = vld [vmem:[%s0 + $0x2c8] sm:$0xf]
  %v194 = vld [vmem:[%s0 + $0x2cc] sm:$0xf]
  %v195 = vld [vmem:[%s0 + $0x2d0] sm:$0xf]
  %v196 = vld [vmem:[%s0 + $0x2d4] sm:$0xf]
  %v197 = vld [vmem:[%s0 + $0x2d8] sm:$0xf]
  %v198 = vld [vmem:[%s0 + $0x2dc] sm:$0xf]
  %v199 = vld [vmem:[%s0 + $0x2e0] sm:$0xf]
  %v200 = vld [vmem:[%s0 + $0x2e4] sm:$0xf]
  %v201 = vld [vmem:[%s0 + $0x2e8] sm:$0xf]
  %v202 = vld [vmem:[%s0 + $0x2ec] sm:$0xf]
  %v203 = vld [vmem:[%s0 + $0x2f0] sm:$0xf]
  %v204 = vld [vmem:[%s0 + $0x2f4] sm:$0xf]
  %v205 = vld [vmem:[%s0 + $0x2f8] sm:$0xf]
  %v206 = vld [vmem:[%s0 + $0x2fc] sm:$0xf]
  %v207 = vld [vmem:[%s0 + $0x300] sm:$0xf]
  %v208 = vld [vmem:[%s0 + $0x304] sm:$0xf]
  %v209 = vld [vmem:[%s0 + $0x308] sm:$0xf]
  %v210 = vld [vmem:[%s0 + $0x30c] sm:$0xf]
  %v211 = vld [vmem:[%s0 + $0x310] sm:$0xf]
  %v212 = vld [vmem:[%s0 + $0x314] sm:$0xf]
  %v213 = vld [vmem:[%s0 + $0x318] sm:$0xf]
  %v214 = vld [vmem:[%s0 + $0x31c] sm:$0xf]
  %v215 = vld [vmem:[%s0 + $0x320] sm:$0xf]
  %v216 = vld [vmem:[%s0 + $0x324] sm:$0xf]
  %v217 = vld [vmem:[%s0 + $0x328] sm:$0xf]
  %v218 = vld [vmem:[%s0 + $0x32c] sm:$0xf]
  %v219 = vld [vmem:[%s0 + $0x330] sm:$0xf]
  %v220 = vld [vmem:[%s0 + $0x334] sm:$0xf]
  %v221 = vld [vmem:[%s0 + $0x338] sm:$0xf]
  %v222 = vld [vmem:[%s0 + $0x33c] sm:$0xf]
  %v223 = vld [vmem:[%s0 + $0x340] sm:$0xf]
  %v224 = vld [vmem:[%s0 + $0x344] sm:$0xf]
  %v225 = vld [vmem:[%s0 + $0x348] sm:$0xf]
  %v226 = vld [vmem:[%s0 + $0x34c] sm:$0xf]
  %v227 = vld [vmem:[%s0 + $0x350] sm:$0xf]
  %v228 = vld [vmem:[%s0 + $0x354] sm:$0xf]
  %v229 = vld [vmem:[%s0 + $0x358] sm:$0xf]
  %v230 = vld [vmem:[%s0 + $0x35c] sm:$0xf]
  %v231 = vld [vmem:[%s0 + $0x360] sm:$0xf]
  %v232 = vld [vmem:[%s0 + $0x364] sm:$0xf]
  %v233 = vld [vmem:[%s0 + $0x368] sm:$0xf]
  %v234 = vld [vmem:[%s0 + $0x36c] sm:$0xf]
  %v235 = vld [vmem:[%s0 + $0x370] sm:$0xf]
  %v236 = vld [vmem:[%s0 + $0x374] sm:$0xf]
  %v237 = vld [vmem:[%s0 + $0x378] sm:$0xf]
  %v238 = vld [vmem:[%s0 + $0x37c] sm:$0xf]
  %v239 = vld [vmem:[%s0 + $0x380] sm:$0xf]
  %v240 = vld [vmem:[%s0 + $0x384] sm:$0xf]
  %v241 = vld [vmem:[%s0 + $0x388] sm:$0xf]
  %v242 = vld [vmem:[%s0 + $0x38c] sm:$0xf]
  %v243 = vld [vmem:[%s0 + $0x390] sm:$0xf]
  %v244 = vld [vmem:[%s0 + $0x394] sm:$0xf]
  %v245 = vld [vmem:[%s0 + $0x398] sm:$0xf]
  %v246 = vld [vmem:[%s0 + $0x39c] sm:$0xf]
  %v247 = vld [vmem:[%s0 + $0x3a0] sm:$0xf]
  %v248 = vld [vmem:[%s0 + $0x3a4] sm:$0xf]
  %v249 = vld [vmem:[%s0 + $0x3a8] sm:$0xf]
  %v250 = vld [vmem:[%s0 + $0x3ac] sm:$0xf]
  %v251 = vld [vmem:[%s0 + $0x3b0] sm:$0xf]
  %v252 = vld [vmem:[%s0 + $0x3b4] sm:$0xf]
  %v253 = vld [vmem:[%s0 + $0x3b8] sm:$0xf]
  %v254 = vld [vmem:[%s0 + $0x3bc] sm:$0xf]
  %v255 = vld [vmem:[%s0 + $0x3c0] sm:$0xf]
  %v256 = vld [vmem:[%s0 + $0x3c4] sm:$0xf]
  %v257 = vld [vmem:[%s0 + $0x3c8] sm:$0xf]
  %v258 = vld [vmem:[%s0 + $0x3cc] sm:$0xf]
  %v259 = vld [vmem:[%s0 + $0x3d0] sm:$0xf]
  %v260 = vld [vmem:[%s0 + $0x3d4] sm:$0xf]
  %v261 = vld [vmem:[%s0 + $0x3d8] sm:$0xf]
  %v262 = vld [vmem:[%s0 + $0x3dc] sm:$0xf]
  %v263 = vld [vmem:[%s0 + $0x3e0] sm:$0xf]
  %v264 = vld [vmem:[%s0 + $0x3e4] sm:$0xf]
  %v265 = vld [vmem:[%s0 + $0x3e8] sm:$0xf]
  %v266 = vld [vmem:[%s0 + $0x3ec] sm:$0xf]
  %v267 = vld [vmem:[%s0 + $0x3f0] sm:$0xf]
  %v268 = vld [vmem:[%s0 + $0x3f4] sm:$0xf]
  %v269 = vld [vmem:[%s0 + $0x3f8] sm:$0xf]
  %v270 = vld [vmem:[%s0 + $0x3fc] sm:$0xf]
  %v271 = vld [vmem:[%s0 + $0x400] sm:$0xf]
  %v272 = vld [vmem:[%s0 + $0x404] sm:$0xf]
  %v273 = vld [vmem:[%s0 + $0x408] sm:$0xf]
  %v274 = vld [vmem:[%s0 + $0x40c] sm:$0xf]
  %v275 = vld [vmem:[%s0 + $0x410] sm:$0xf]
  %v276 = vld [vmem:[%s0 + $0x414] sm:$0xf]
  %v277 = vld [vmem:[%s0 + $0x418] sm:$0xf]
  %v278 = vld [vmem:[%s0 + $0x41c] sm:$0xf]
  %v279 = vld [vmem:[%s0 + $0x420] sm:$0xf]
  %v280 = vld [vmem:[%s0 + $0x424] sm:$0xf]
  %v281 = vld [vmem:[%s0 + $0x428] sm:$0xf]
  %v282 = vld [vmem:[%s0 + $0x42c] sm:$0xf]
  %v283 = vld [vmem:[%s0 + $0x430] sm:$0xf]
  %v284 = vld [vmem:[%s0 + $0x434] sm:$0xf]
  %v285 = vld [vmem:[%s0 + $0x438] sm:$0xf]
  %v286 = vld [vmem:[%s0 + $0x43c] sm:$0xf]
  %v287 = vld [vmem:[%s0 + $0x440] sm:$0xf]
  %v288 = vld [vmem:[%s0 + $0x444] sm:$0xf]
  %v289 = vld [vmem:[%s0 + $0x448] sm:$0xf]
  %v290 = vld [vmem:[%s0 + $0x44c] sm:$0xf]
  %v291 = vld [vmem:[%s0 + $0x450] sm:$0xf]
  %v292 = vld [vmem:[%s0 + $0x454] sm:$0xf]
  %v293 = vld [vmem:[%s0 + $0x458] sm:$0xf]
  %v294 = vld [vmem:[%s0 + $0x45c] sm:$0xf]
  %v295 = vld [vmem:[%s0 + $0x460] sm:$0xf]
  %v296 = vld [vmem:[%s0 + $0x464] sm:$0xf]
  %v297 = vld [vmem:[%s0 + $0x468] sm:$0xf]
  %v298 = vld [vmem:[%s0 + $0x46c] sm:$0xf]
  %v299 = vld [vmem:[%s0 + $0x470] sm:$0xf]
  %v300 = vld [vmem:[%s0 + $0x474] sm:$0xf]
  %v301 = vld [vmem:[%s0 + $0x478] sm:$0xf]
  %v302 = vld [vmem:[%s0 + $0x47c] sm:$0xf]
  %v303 = vld [vmem:[%s0 + $0x480] sm:$0xf]
  %v304 = vld [vmem:[%s0 + $0x484] sm:$0xf]
  %v305 = vld [vmem:[%s0 + $0x488] sm:$0xf]
  %v306 = vld [vmem:[%s0 + $0x48c] sm:$0xf]
  %v307 = vld [vmem:[%s0 + $0x490] sm:$0xf]
  %v308 = vld [vmem:[%s0 + $0x494] sm:$0xf]
  %v309 = vld [vmem:[%s0 + $0x498] sm:$0xf]
  %v310 = vld [vmem:[%s0 + $0x49c] sm:$0xf]
  %v311 = vld [vmem:[%s0 + $0x4a0] sm:$0xf]
  %v312 = vld [vmem:[%s0 + $0x4a4] sm:$0xf]
  %v313 = vld [vmem:[%s0 + $0x4a8] sm:$0xf]
  %v314 = vld [vmem:[%s0 + $0x4ac] sm:$0xf]
  %v315 = vld [vmem:[%s0 + $0x4b0] sm:$0xf]
  %v316 = vld [vmem:[%s0 + $0x4b4] sm:$0xf]
  %v317 = vld [vmem:[%s0 + $0x4b8] sm:$0xf]
  %v318 = vld [vmem:[%s0 + $0x4bc] sm:$0xf]
  %v319 = vld [vmem:[%s0 + $0x4c0] sm:$0xf]
  %v320 = vld [vmem:[%s0 + $0x4c4] sm:$0xf]
  %v321 = vld [vmem:[%s0 + $0x4c8] sm:$0xf]
  %v322 = vld [vmem:[%s0 + $0x4cc] sm:$0xf]
  %v323 = vld [vmem:[%s0 + $0x4d0] sm:$0xf]
  %v324 = vld [vmem:[%s0 + $0x4d4] sm:$0xf]
  %v325 = vld [vmem:[%s0 + $0x4d8] sm:$0xf]
  %v326 = vld [vmem:[%s0 + $0x4dc] sm:$0xf]
  %v327 = vld [vmem:[%s0 + $0x4e0] sm:$0xf]
  %v328 = vld [vmem:[%s0 + $0x4e4] sm:$0xf]
  %v329 = vld [vmem:[%s0 + $0x4e8] sm:$0xf]
  %v330 = vld [vmem:[%s0 + $0x4ec] sm:$0xf]
  %v331 = vld [vmem:[%s0 + $0x4f0] sm:$0xf]
  %v332 = vld [vmem:[%s0 + $0x4f4] sm:$0xf]
  %v333 = vld [vmem:[%s0 + $0x4f8] sm:$0xf]
  %v334 = vld [vmem:[%s0 + $0x4fc] sm:$0xf]
  %v335 = vld [vmem:[%s0 + $0x500] sm:$0xf]
  %v336 = vld [vmem:[%s0 + $0x504] sm:$0xf]
  %v337 = vld [vmem:[%s0 + $0x508] sm:$0xf]
  %v338 = vld [vmem:[%s0 + $0x50c] sm:$0xf]
  %v339 = vld [vmem:[%s0 + $0x510] sm:$0xf]
  %v340 = vld [vmem:[%s0 + $0x514] sm:$0xf]
  %v341 = vld [vmem:[%s0 + $0x518] sm:$0xf]
  %v342 = vld [vmem:[%s0 + $0x51c] sm:$0xf]
  %v343 = vld [vmem:[%s0 + $0x520] sm:$0xf]
  %v344 = vld [vmem:[%s0 + $0x524] sm:$0xf]
  %v345 = vld [vmem:[%s0 + $0x528] sm:$0xf]
  %v346 = vld [vmem:[%s0 + $0x52c] sm:$0xf]
  %v347 = vld [vmem:[%s0 + $0x530] sm:$0xf]
  %v348 = vld [vmem:[%s0 + $0x534] sm:$0xf]
  %v349 = vld [vmem:[%s0 + $0x538] sm:$0xf]
  %v350 = vld [vmem:[%s0 + $0x53c] sm:$0xf]
  %v351 = vld [vmem:[%s0 + $0x540] sm:$0xf]
  %v352 = vld [vmem:[%s0 + $0x544] sm:$0xf]
  %v353 = vld [vmem:[%s0 + $0x548] sm:$0xf]
  %v354 = vld [vmem:[%s0 + $0x54c] sm:$0xf]
  %v355 = vld [vmem:[%s0 + $0x550] sm:$0xf]
  %v356 = vld [vmem:[%s0 + $0x554] sm:$0xf]
  %v357 = vld [vmem:[%s0 + $0x558] sm:$0xf]
  %v358 = vld [vmem:[%s0 + $0x55c] sm:$0xf]
  %v359 = vld [vmem:[%s0 + $0x560] sm:$0xf]
  %v360 = vld [vmem:[%s0 + $0x564] sm:$0xf]
  %v361 = vld [vmem:[%s0 + $0x568] sm:$0xf]
  %v362 = vld [vmem:[%s0 + $0x56c] sm:$0xf]
  %v363 = vld [vmem:[%s0 + $0x570] sm:$0xf]
  %v364 = vld [vmem:[%s0 + $0x574] sm:$0xf]
  %v365 = vld [vmem:[%s0 + $0x578] sm:$0xf]
  %v366 = vld [vmem:[%s0 + $0x57c] sm:$0xf]
  %v367 = vld [vmem:[%s0 + $0x580] sm:$0xf]
  %v368 = vld [vmem:[%s0 + $0x584] sm:$0xf]
  %v369 = vld [vmem:[%s0 + $0x588] sm:$0xf]
  %v370 = vld [vmem:[%s0 + $0x58c] sm:$0xf]
  %v371 = vld [vmem:[%s0 + $0x590] sm:$0xf]
  %v372 = vld [vmem:[%s0 + $0x594] sm:$0xf]
  %v373 = vld [vmem:[%s0 + $0x598] sm:$0xf]
  %v374 = vld [vmem:[%s0 + $0x59c] sm:$0xf]
  %v375 = vld [vmem:[%s0 + $0x5a0] sm:$0xf]
  %v376 = vld [vmem:[%s0 + $0x5a4] sm:$0xf]
  %v377 = vld [vmem:[%s0 + $0x5a8] sm:$0xf]
  %v378 = vld [vmem:[%s0 + $0x5ac] sm:$0xf]
  %v379 = vld [vmem:[%s0 + $0x5b0] sm:$0xf]
  %v380 = vld [vmem:[%s0 + $0x5b4] sm:$0xf]
  %v381 = vld [vmem:[%s0 + $0x5b8] sm:$0xf]
  %v382 = vld [vmem:[%s0 + $0x5bc] sm:$0xf]
  %v383 = vld [vmem:[%s0 + $0x5c0] sm:$0xf]
  %v384 = vld [vmem:[%s0 + $0x5c4] sm:$0xf]
  %v385 = vld [vmem:[%s0 + $0x5c8] sm:$0xf]
  %v386 = vld [vmem:[%s0 + $0x5cc] sm:$0xf]
  %v387 = vld [vmem:[%s0 + $0x5d0] sm:$0xf]
  %v388 = vld [vmem:[%s0 + $0x5d4] sm:$0xf]
  %v389 = vld [vmem:[%s0 + $0x5d8] sm:$0xf]
  %v390 = vld [vmem:[%s0 + $0x5dc] sm:$0xf]
  %v391 = vld [vmem:[%s0 + $0x5e0] sm:$0xf]
  %v392 = vld [vmem:[%s0 + $0x5e4] sm:$0xf]
  %v393 = vld [vmem:[%s0 + $0x5e8] sm:$0xf]
  %v394 = vld [vmem:[%s0 + $0x5ec] sm:$0xf]
  %v395 = vld [vmem:[%s0 + $0x5f0] sm:$0xf]
  %v396 = vld [vmem:[%s0 + $0x5f4] sm:$0xf]
  %v397 = vld [vmem:[%s0 + $0x5f8] sm:$0xf]
  %v398 = vld [vmem:[%s0 + $0x5fc] sm:$0xf]
  %v399 = vld [vmem:[%s0 + $0x600] sm:$0xf]
  %v400 = vld [vmem:[%s0 + $0x604] sm:$0xf]
  %v401 = vld [vmem:[%s0 + $0x608] sm:$0xf]
  %v402 = vld [vmem:[%s0 + $0x60c] sm:$0xf]
  %v403 = vld [vmem:[%s0 + $0x610] sm:$0xf]
  %v404 = vld [vmem:[%s0 + $0x614] sm:$0xf]
  %v405 = vld [vmem:[%s0 + $0x618] sm:$0xf]
  %v406 = vld [vmem:[%s0 + $0x61c] sm:$0xf]
  %v407 = vld [vmem:[%s0 + $0x620] sm:$0xf]
  %v408 = vld [vmem:[%s0 + $0x624] sm:$0xf]
  %v409 = vld [vmem:[%s0 + $0x628] sm:$0xf]
  %v410 = vld [vmem:[%s0 + $0x62c] sm:$0xf]
  %v411 = vld [vmem:[%s0 + $0x630] sm:$0xf]
  %v412 = vld [vmem:[%s0 + $0x634] sm:$0xf]
  %v413 = vld [vmem:[%s0 + $0x638] sm:$0xf]
  %v414 = vld [vmem:[%s0 + $0x63c] sm:$0xf]
  %v415 = vld [vmem:[%s0 + $0x640] sm:$0xf]
  %v416 = vld [vmem:[%s0 + $0x644] sm:$0xf]
  %v417 = vld [vmem:[%s0 + $0x648] sm:$0xf]
  %v418 = vld [vmem:[%s0 + $0x64c] sm:$0xf]
  %v419 = vld [vmem:[%s0 + $0x650] sm:$0xf]
  %v420 = vld [vmem:[%s0 + $0x654] sm:$0xf]
  %v421 = vld [vmem:[%s0 + $0x658] sm:$0xf]
  %v422 = vld [vmem:[%s0 + $0x65c] sm:$0xf]
  %v423 = vld [vmem:[%s0 + $0x660] sm:$0xf]
  %v424 = vld [vmem:[%s0 + $0x664] sm:$0xf]
  %v425 = vld [vmem:[%s0 + $0x668] sm:$0xf]
  %v426 = vld [vmem:[%s0 + $0x66c] sm:$0xf]
  %v427 = vld [vmem:[%s0 + $0x670] sm:$0xf]
  %v428 = vld [vmem:[%s0 + $0x674] sm:$0xf]
  %v429 = vld [vmem:[%s0 + $0x678] sm:$0xf]
  %v430 = vld [vmem:[%s0 + $0x67c] sm:$0xf]
  %v431 = vld [vmem:[%s0 + $0x680] sm:$0xf]
  %v432 = vld [vmem:[%s0 + $0x684] sm:$0xf]
  %v433 = vld [vmem:[%s0 + $0x688] sm:$0xf]
  %v434 = vld [vmem:[%s0 + $0x68c] sm:$0xf]
  %v435 = vld [vmem:[%s0 + $0x690] sm:$0xf]
  %v436 = vld [vmem:[%s0 + $0x694] sm:$0xf]
  %v437 = vld [vmem:[%s0 + $0x698] sm:$0xf]
  %v438 = vld [vmem:[%s0 + $0x69c] sm:$0xf]
  %v439 = vld [vmem:[%s0 + $0x6a0] sm:$0xf]
  %v440 = vld [vmem:[%s0 + $0x6a4] sm:$0xf]
  %v441 = vld [vmem:[%s0 + $0x6a8] sm:$0xf]
  %v442 = vld [vmem:[%s0 + $0x6ac] sm:$0xf]
  %v443 = vld [vmem:[%s0 + $0x6b0] sm:$0xf]
  %v444 = vld [vmem:[%s0 + $0x6b4] sm:$0xf]
  %v445 = vld [vmem:[%s0 + $0x6b8] sm:$0xf]
  %v446 = vld [vmem:[%s0 + $0x6bc] sm:$0xf]
  %v447 = vld [vmem:[%s0 + $0x6c0] sm:$0xf]
  %v448 = vld [vmem:[%s0 + $0x6c4] sm:$0xf]
  %v449 = vld [vmem:[%s0 + $0x6c8] sm:$0xf]
  %v450 = vld [vmem:[%s0 + $0x6cc] sm:$0xf]
  %v451 = vld [vmem:[%s0 + $0x6d0] sm:$0xf]
  %v452 = vld [vmem:[%s0 + $0x6d4] sm:$0xf]
  %v453 = vld [vmem:[%s0 + $0x6d8] sm:$0xf]
  %v454 = vld [vmem:[%s0 + $0x6dc] sm:$0xf]
  %v455 = vld [vmem:[%s0 + $0x6e0] sm:$0xf]
  %v456 = vld [vmem:[%s0 + $0x6e4] sm:$0xf]
  %v457 = vld [vmem:[%s0 + $0x6e8] sm:$0xf]
  %v458 = vld [vmem:[%s0 + $0x6ec] sm:$0xf]
  %v459 = vld [vmem:[%s0 + $0x6f0] sm:$0xf]
  %v460 = vld [vmem:[%s0 + $0x6f4] sm:$0xf]
  %v461 = vld [vmem:[%s0 + $0x6f8] sm:$0xf]
  %v462 = vld [vmem:[%s0 + $0x6fc] sm:$0xf]
  %v463 = vld [vmem:[%s0 + $0x700] sm:$0xf]
  %v464 = vld [vmem:[%s0 + $0x704] sm:$0xf]
  %v465 = vld [vmem:[%s0 + $0x708] sm:$0xf]
  %v466 = vld [vmem:[%s0 + $0x70c] sm:$0xf]
  %v467 = vld [vmem:[%s0 + $0x710] sm:$0xf]
  %v468 = vld [vmem:[%s0 + $0x714] sm:$0xf]
  %v469 = vld [vmem:[%s0 + $0x718] sm:$0xf]
  %v470 = vld [vmem:[%s0 + $0x71c] sm:$0xf]
  %v471 = vld [vmem:[%s0 + $0x720] sm:$0xf]
  %v472 = vld [vmem:[%s0 + $0x724] sm:$0xf]
  %v473 = vld [vmem:[%s0 + $0x728] sm:$0xf]
  %v474 = vld [vmem:[%s0 + $0x72c] sm:$0xf]
  %v475 = vld [vmem:[%s0 + $0x730] sm:$0xf]
  %v476 = vld [vmem:[%s0 + $0x734] sm:$0xf]
  %v477 = vld [vmem:[%s0 + $0x738] sm:$0xf]
  %v478 = vld [vmem:[%s0 + $0x73c] sm:$0xf]
  %v479 = vld [vmem:[%s0 + $0x740] sm:$0xf]
  %v480 = vld [vmem:[%s0 + $0x744] sm:$0xf]
  %v481 = vld [vmem:[%s0 + $0x748] sm:$0xf]
  %v482 = vld [vmem:[%s0 + $0x74c] sm:$0xf]
  %v483 = vld [vmem:[%s0 + $0x750] sm:$0xf]
  %v484 = vld [vmem:[%s0 + $0x754] sm:$0xf]
  %v485 = vld [vmem:[%s0 + $0x758] sm:$0xf]
  %v486 = vld [vmem:[%s0 + $0x75c] sm:$0xf]
  %v487 = vld [vmem:[%s0 + $0x760] sm:$0xf]
  %v488 = vld [vmem:[%s0 + $0x764] sm:$0xf]
  %v489 = vld [vmem:[%s0 + $0x768] sm:$0xf]
  %v490 = vld [vmem:[%s0 + $0x76c] sm:$0xf]
  %v491 = vld [vmem:[%s0 + $0x770] sm:$0xf]
  %v492 = vld [vmem:[%s0 + $0x774] sm:$0xf]
  %v493 = vld [vmem:[%s0 + $0x778] sm:$0xf]
  %v494 = vld [vmem:[%s0 + $0x77c] sm:$0xf]
  %v495 = vld [vmem:[%s0 + $0x780] sm:$0xf]
  %v496 = vld [vmem:[%s0 + $0x784] sm:$0xf]
  %v497 = vld [vmem:[%s0 + $0x788] sm:$0xf]
  %v498 = vld [vmem:[%s0 + $0x78c] sm:$0xf]
  %v499 = vld [vmem:[%s0 + $0x790] sm:$0xf]
  %v500 = vld [vmem:[%s0 + $0x794] sm:$0xf]
  %v501 = vld [vmem:[%s0 + $0x798] sm:$0xf]
  %v502 = vld [vmem:[%s0 + $0x79c] sm:$0xf]
  %v503 = vld [vmem:[%s0 + $0x7a0] sm:$0xf]
  %v504 = vld [vmem:[%s0 + $0x7a4] sm:$0xf]
  %v505 = vld [vmem:[%s0 + $0x7a8] sm:$0xf]
  %v506 = vld [vmem:[%s0 + $0x7ac] sm:$0xf]
  %v507 = vld [vmem:[%s0 + $0x7b0] sm:$0xf]
  %v508 = vld [vmem:[%s0 + $0x7b4] sm:$0xf]
  %v509 = vld [vmem:[%s0 + $0x7b8] sm:$0xf]
  %v510 = vld [vmem:[%s0 + $0x7bc] sm:$0xf]
  %v511 = vld [vmem:[%s0 + $0x7c0] sm:$0xf]
  %v512 = vld [vmem:[%s0 + $0x7c4] sm:$0xf]
  %v513 = vld [vmem:[%s0 + $0x7c8] sm:$0xf]
  %v514 = vld [vmem:[%s0 + $0x7cc] sm:$0xf]
  %v515 = vld [vmem:[%s0 + $0x7d0] sm:$0xf]
  %v516 = vld [vmem:[%s0 + $0x7d4] sm:$0xf]
  %v517 = vld [vmem:[%s0 + $0x7d8] sm:$0xf]
  %v518 = vld [vmem:[%s0 + $0x7dc] sm:$0xf]
  %v519 = vld [vmem:[%s0 + $0x7e0] sm:$0xf]
  %v520 = vld [vmem:[%s0 + $0x7e4] sm:$0xf]
  %v521 = vld [vmem:[%s0 + $0x7e8] sm:$0xf]
  %v522 = vld [vmem:[%s0 + $0x7ec] sm:$0xf]
  %v523 = vld [vmem:[%s0 + $0x7f0] sm:$0xf]
  %v524 = vld [vmem:[%s0 + $0x7f4] sm:$0xf]
  %v525 = vld [vmem:[%s0 + $0x7f8] sm:$0xf]
  %v526 = vld [vmem:[%s0 + $0x7fc] sm:$0xf]
  %v527 = vld [vmem:[%s0 + $0x800] sm:$0xf]
  %v528 = vld [vmem:[%s0 + $0x804] sm:$0xf]
  %v529 = vld [vmem:[%s0 + $0x808] sm:$0xf]
  %v530 = vld [vmem:[%s0 + $0x80c] sm:$0xf]
  %v531 = vld [vmem:[%s0 + $0x810] sm:$0xf]
  %v532 = vld [vmem:[%s0 + $0x814] sm:$0xf]
  %v533 = vld [vmem:[%s0 + $0x818] sm:$0xf]
  %v534 = vld [vmem:[%s0 + $0x81c] sm:$0xf]
  %v535 = vld [vmem:[%s0 + $0x820] sm:$0xf]
  %v536 = vld [vmem:[%s0 + $0x824] sm:$0xf]
  %v537 = vld [vmem:[%s0 + $0x828] sm:$0xf]
  %v538 = vld [vmem:[%s0 + $0x82c] sm:$0xf]
  %v539 = vld [vmem:[%s0 + $0x830] sm:$0xf]
  %v540 = vld [vmem:[%s0 + $0x834] sm:$0xf]
  %v541 = vld [vmem:[%s0 + $0x838] sm:$0xf]
  %v542 = vld [vmem:[%s0 + $0x83c] sm:$0xf]
  %v543 = vld [vmem:[%s0 + $0x840] sm:$0xf]
  %v544 = vld [vmem:[%s0 + $0x844] sm:$0xf]
  %v545 = vld [vmem:[%s0 + $0x848] sm:$0xf]
  %v546 = vld [vmem:[%s0 + $0x84c] sm:$0xf]
  %v547 = vld [vmem:[%s0 + $0x850] sm:$0xf]
  %v548 = vld [vmem:[%s0 + $0x854] sm:$0xf]
  %v549 = vld [vmem:[%s0 + $0x858] sm:$0xf]
  %v550 = vld [vmem:[%s0 + $0x85c] sm:$0xf]
  %v551 = vld [vmem:[%s0 + $0x860] sm:$0xf]
  %v552 = vld [vmem:[%s0 + $0x864] sm:$0xf]
  %v553 = vld [vmem:[%s0 + $0x868] sm:$0xf]
  %v554 = vld [vmem:[%s0 + $0x86c] sm:$0xf]
  %v555 = vld [vmem:[%s0 + $0x870] sm:$0xf]
  %v556 = vld [vmem:[%s0 + $0x874] sm:$0xf]
  %v557 = vld [vmem:[%s0 + $0x878] sm:$0xf]
  %v558 = vld [vmem:[%s0 + $0x87c] sm:$0xf]
  %v559 = vld [vmem:[%s0 + $0x880] sm:$0xf]
  %v560 = vld [vmem:[%s0 + $0x884] sm:$0xf]
  %v561 = vld [vmem:[%s0 + $0x888] sm:$0xf]
  %v562 = vld [vmem:[%s0 + $0x88c] sm:$0xf]
  %v563 = vld [vmem:[%s0 + $0x890] sm:$0xf]
  %v564 = vld [vmem:[%s0 + $0x894] sm:$0xf]
  %v565 = vld [vmem:[%s0 + $0x898] sm:$0xf]
  %v566 = vld [vmem:[%s0 + $0x89c] sm:$0xf]
  %v567 = vld [vmem:[%s0 + $0x8a0] sm:$0xf]
  %v568 = vld [vmem:[%s0 + $0x8a4] sm:$0xf]
  %v569 = vld [vmem:[%s0 + $0x8a8] sm:$0xf]
  %v570 = vld [vmem:[%s0 + $0x8ac] sm:$0xf]
  %v571 = vld [vmem:[%s0 + $0x8b0] sm:$0xf]
  %v572 = vld [vmem:[%s0 + $0x8b4] sm:$0xf]
  %v573 = vld [vmem:[%s0 + $0x8b8] sm:$0xf]
  %v574 = vld [vmem:[%s0 + $0x8bc] sm:$0xf]
  %v575 = vld [vmem:[%s0 + $0x8c0] sm:$0xf]
  %v576 = vld [vmem:[%s0 + $0x8c4] sm:$0xf]
  %v577 = vld [vmem:[%s0 + $0x8c8] sm:$0xf]
  %v578 = vld [vmem:[%s0 + $0x8cc] sm:$0xf]
  %v579 = vld [vmem:[%s0 + $0x8d0] sm:$0xf]
  %v580 = vld [vmem:[%s0 + $0x8d4] sm:$0xf]
  %v581 = vld [vmem:[%s0 + $0x8d8] sm:$0xf]
  %v582 = vld [vmem:[%s0 + $0x8dc] sm:$0xf]
  %v583 = vld [vmem:[%s0 + $0x8e0] sm:$0xf]
  %v584 = vld [vmem:[%s0 + $0x8e4] sm:$0xf]
  %v585 = vld [vmem:[%s0 + $0x8e8] sm:$0xf]
  %v586 = vld [vmem:[%s0 + $0x8ec] sm:$0xf]
  %v587 = vld [vmem:[%s0 + $0x8f0] sm:$0xf]
  %v588 = vld [vmem:[%s0 + $0x8f4] sm:$0xf]
  %v589 = vld [vmem:[%s0 + $0x8f8] sm:$0xf]
  %v590 = vld [vmem:[%s0 + $0x8fc] sm:$0xf]
  %v591 = vld [vmem:[%s0 + $0x900] sm:$0xf]
  %v592 = vld [vmem:[%s0 + $0x904] sm:$0xf]
  %v593 = vld [vmem:[%s0 + $0x908] sm:$0xf]
  %v594 = vld [vmem:[%s0 + $0x90c] sm:$0xf]
  %v595 = vld [vmem:[%s0 + $0x910] sm:$0xf]
  %v596 = vld [vmem:[%s0 + $0x914] sm:$0xf]
  %v597 = vld [vmem:[%s0 + $0x918] sm:$0xf]
  %v598 = vld [vmem:[%s0 + $0x91c] sm:$0xf]
  %v599 = vld [vmem:[%s0 + $0x920] sm:$0xf]
  %v600 = vld [vmem:[%s0 + $0x924] sm:$0xf]
  %v601 = vld [vmem:[%s0 + $0x928] sm:$0xf]
  %v602 = vld [vmem:[%s0 + $0x92c] sm:$0xf]
  %v603 = vld [vmem:[%s0 + $0x930] sm:$0xf]
  %v604 = vld [vmem:[%s0 + $0x934] sm:$0xf]
  %v605 = vld [vmem:[%s0 + $0x938] sm:$0xf]
  %v606 = vld [vmem:[%s0 + $0x93c] sm:$0xf]
  %v607 = vld [vmem:[%s0 + $0x940] sm:$0xf]
  %v608 = vld [vmem:[%s0 + $0x944] sm:$0xf]
  %v609 = vld [vmem:[%s0 + $0x948] sm:$0xf]
  %v610 = vld [vmem:[%s0 + $0x94c] sm:$0xf]
  %v611 = vld [vmem:[%s0 + $0x950] sm:$0xf]
  %v612 = vld [vmem:[%s0 + $0x954] sm:$0xf]
  %v613 = vld [vmem:[%s0 + $0x958] sm:$0xf]
  %v614 = vld [vmem:[%s0 + $0x95c] sm:$0xf]
  %v615 = vld [vmem:[%s0 + $0x960] sm:$0xf]
  %v616 = vld [vmem:[%s0 + $0x964] sm:$0xf]
  %v617 = vld [vmem:[%s0 + $0x968] sm:$0xf]
  %v618 = vld [vmem:[%s0 + $0x96c] sm:$0xf]
  %v619 = vld [vmem:[%s0 + $0x970] sm:$0xf]
  %v620 = vld [vmem:[%s0 + $0x974] sm:$0xf]
  %v621 = vld [vmem:[%s0 + $0x978] sm:$0xf]
  %v622 = vld [vmem:[%s0 + $0x97c] sm:$0xf]
  %v623 = vld [vmem:[%s0 + $0x980] sm:$0xf]
  %v624 = vld [vmem:[%s0 + $0x984] sm:$0xf]
  %v625 = vld [vmem:[%s0 + $0x988] sm:$0xf]
  %v626 = vld [vmem:[%s0 + $0x98c] sm:$0xf]
  %v627 = vld [vmem:[%s0 + $0x990] sm:$0xf]
  %v628 = vld [vmem:[%s0 + $0x994] sm:$0xf]
  %v629 = vld [vmem:[%s0 + $0x998] sm:$0xf]
  %v630 = vld [vmem:[%s0 + $0x99c] sm:$0xf]
  %v631 = vld [vmem:[%s0 + $0x9a0] sm:$0xf]
  %v632 = vld [vmem:[%s0 + $0x9a4] sm:$0xf]
  %v633 = vld [vmem:[%s0 + $0x9a8] sm:$0xf]
  %v634 = vld [vmem:[%s0 + $0x9ac] sm:$0xf]
  %v635 = vld [vmem:[%s0 + $0x9b0] sm:$0xf]
  %v636 = vld [vmem:[%s0 + $0x9b4] sm:$0xf]
  %v637 = vld [vmem:[%s0 + $0x9b8] sm:$0xf]
  %v638 = vld [vmem:[%s0 + $0x9bc] sm:$0xf]
  %v639 = vld [vmem:[%s0 + $0x9c0] sm:$0xf]
  %v640 = vld [vmem:[%s0 + $0x9c4] sm:$0xf]
  %v641 = vld [vmem:[%s0 + $0x9c8] sm:$0xf]
  %v642 = vld [vmem:[%s0 + $0x9cc] sm:$0xf]
  %v643 = vld [vmem:[%s0 + $0x9d0] sm:$0xf]
  %v644 = vld [vmem:[%s0 + $0x9d4] sm:$0xf]
  %v645 = vld [vmem:[%s0 + $0x9d8] sm:$0xf]
  %v646 = vld [vmem:[%s0 + $0x9dc] sm:$0xf]
  %v647 = vld [vmem:[%s0 + $0x9e0] sm:$0xf]
  %v648 = vld [vmem:[%s0 + $0x9e4] sm:$0xf]
  %v649 = vld [vmem:[%s0 + $0x9e8] sm:$0xf]
  %v650 = vld [vmem:[%s0 + $0x9ec] sm:$0xf]
  %v651 = vld [vmem:[%s0 + $0x9f0] sm:$0xf]
  %v652 = vld [vmem:[%s0 + $0x9f4] sm:$0xf]
  %v653 = vld [vmem:[%s0 + $0x9f8] sm:$0xf]
  %v654 = vld [vmem:[%s0 + $0x9fc] sm:$0xf]
  %v655 = vld [vmem:[%s0 + $0xa00] sm:$0xf]
  %v656 = vld [vmem:[%s0 + $0xa04] sm:$0xf]
  %v657 = vld [vmem:[%s0 + $0xa08] sm:$0xf]
  %v658 = vld [vmem:[%s0 + $0xa0c] sm:$0xf]
  %v659 = vld [vmem:[%s0 + $0xa10] sm:$0xf]
  %v660 = vld [vmem:[%s0 + $0xa14] sm:$0xf]
  %v661 = vld [vmem:[%s0 + $0xa18] sm:$0xf]
  %v662 = vld [vmem:[%s0 + $0xa1c] sm:$0xf]
  %v663 = vld [vmem:[%s0 + $0xa20] sm:$0xf]
  %v664 = vld [vmem:[%s0 + $0xa24] sm:$0xf]
  %v665 = vld [vmem:[%s0 + $0xa28] sm:$0xf]
  %v666 = vld [vmem:[%s0 + $0xa2c] sm:$0xf]
  %v667 = vld [vmem:[%s0 + $0xa30] sm:$0xf]
  %v668 = vld [vmem:[%s0 + $0xa34] sm:$0xf]
  %v669 = vld [vmem:[%s0 + $0xa38] sm:$0xf]
  %v670 = vld [vmem:[%s0 + $0xa3c] sm:$0xf]
  %v671 = vld [vmem:[%s0 + $0xa40] sm:$0xf]
  %v672 = vld [vmem:[%s0 + $0xa44] sm:$0xf]
  %v673 = vld [vmem:[%s0 + $0xa48] sm:$0xf]
  %v674 = vld [vmem:[%s0 + $0xa4c] sm:$0xf]
  %v675 = vld [vmem:[%s0 + $0xa50] sm:$0xf]
  %v676 = vld [vmem:[%s0 + $0xa54] sm:$0xf]
  %v677 = vld [vmem:[%s0 + $0xa58] sm:$0xf]
  %v678 = vld [vmem:[%s0 + $0xa5c] sm:$0xf]
  %v679 = vld [vmem:[%s0 + $0xa60] sm:$0xf]
  %v680 = vld [vmem:[%s0 + $0xa64] sm:$0xf]
  %v681 = vld [vmem:[%s0 + $0xa68] sm:$0xf]
  %v682 = vld [vmem:[%s0 + $0xa6c] sm:$0xf]
  %v683 = vld [vmem:[%s0 + $0xa70] sm:$0xf]
  %v684 = vld [vmem:[%s0 + $0xa74] sm:$0xf]
  %v685 = vld [vmem:[%s0 + $0xa78] sm:$0xf]
  %v686 = vld [vmem:[%s0 + $0xa7c] sm:$0xf]
  %v687 = vld [vmem:[%s0 + $0xa80] sm:$0xf]
  %v688 = vld [vmem:[%s0 + $0xa84] sm:$0xf]
  %v689 = vld [vmem:[%s0 + $0xa88] sm:$0xf]
  %v690 = vld [vmem:[%s0 + $0xa8c] sm:$0xf]
  %v691 = vld [vmem:[%s0 + $0xa90] sm:$0xf]
  %v692 = vld [vmem:[%s0 + $0xa94] sm:$0xf]
  %v693 = vld [vmem:[%s0 + $0xa98] sm:$0xf]
  %v694 = vld [vmem:[%s0 + $0xa9c] sm:$0xf]
  %v695 = vld [vmem:[%s0 + $0xaa0] sm:$0xf]
  %v696 = vld [vmem:[%s0 + $0xaa4] sm:$0xf]
  %v697 = vld [vmem:[%s0 + $0xaa8] sm:$0xf]
  %v698 = vld [vmem:[%s0 + $0xaac] sm:$0xf]
  %v699 = vld [vmem:[%s0 + $0xab0] sm:$0xf]
  %v700 = vld [vmem:[%s0 + $0xab4] sm:$0xf]
  %v701 = vld [vmem:[%s0 + $0xab8] sm:$0xf]
  %v702 = vld [vmem:[%s0 + $0xabc] sm:$0xf]
  %v703 = vld [vmem:[%s0 + $0xac0] sm:$0xf]
  %v704 = vld [vmem:[%s0 + $0xac4] sm:$0xf]
  %v705 = vld [vmem:[%s0 + $0xac8] sm:$0xf]
  %v706 = vld [vmem:[%s0 + $0xacc] sm:$0xf]
  %v707 = vld [vmem:[%s0 + $0xad0] sm:$0xf]
  %v708 = vld [vmem:[%s0 + $0xad4] sm:$0xf]
  %v709 = vld [vmem:[%s0 + $0xad8] sm:$0xf]
  %v710 = vld [vmem:[%s0 + $0xadc] sm:$0xf]
  %v711 = vld [vmem:[%s0 + $0xae0] sm:$0xf]
  %v712 = vld [vmem:[%s0 + $0xae4] sm:$0xf]
  %v713 = vld [vmem:[%s0 + $0xae8] sm:$0xf]
  %v714 = vld [vmem:[%s0 + $0xaec] sm:$0xf]
  %v715 = vld [vmem:[%s0 + $0xaf0] sm:$0xf]
  %v716 = vld [vmem:[%s0 + $0xaf4] sm:$0xf]
  %v717 = vld [vmem:[%s0 + $0xaf8] sm:$0xf]
  %v718 = vld [vmem:[%s0 + $0xafc] sm:$0xf]
  %v719 = vld [vmem:[%s0 + $0xb00] sm:$0xf]
  %v720 = vld [vmem:[%s0 + $0xb04] sm:$0xf]
  %v721 = vld [vmem:[%s0 + $0xb08] sm:$0xf]
  %v722 = vld [vmem:[%s0 + $0xb0c] sm:$0xf]
  %v723 = vld [vmem:[%s0 + $0xb10] sm:$0xf]
  %v724 = vld [vmem:[%s0 + $0xb14] sm:$0xf]
  %v725 = vld [vmem:[%s0 + $0xb18] sm:$0xf]
  %v726 = vld [vmem:[%s0 + $0xb1c] sm:$0xf]
  %v727 = vld [vmem:[%s0 + $0xb20] sm:$0xf]
  %v728 = vld [vmem:[%s0 + $0xb24] sm:$0xf]
  %v729 = vld [vmem:[%s0 + $0xb28] sm:$0xf]
  %v730 = vld [vmem:[%s0 + $0xb2c] sm:$0xf]
  %v731 = vld [vmem:[%s0 + $0xb30] sm:$0xf]
  %v732 = vld [vmem:[%s0 + $0xb34] sm:$0xf]
  %v733 = vld [vmem:[%s0 + $0xb38] sm:$0xf]
  %v734 = vld [vmem:[%s0 + $0xb3c] sm:$0xf]
  %v735 = vld [vmem:[%s0 + $0xb40] sm:$0xf]
  %v736 = vld [vmem:[%s0 + $0xb44] sm:$0xf]
  %v737 = vld [vmem:[%s0 + $0xb48] sm:$0xf]
  %v738 = vld [vmem:[%s0 + $0xb4c] sm:$0xf]
  %v739 = vld [vmem:[%s0 + $0xb50] sm:$0xf]
  %v740 = vld [vmem:[%s0 + $0xb54] sm:$0xf]
  %v741 = vld [vmem:[%s0 + $0xb58] sm:$0xf]
  %v742 = vld [vmem:[%s0 + $0xb5c] sm:$0xf]
  %v743 = vld [vmem:[%s0 + $0xb60] sm:$0xf]
  %v744 = vld [vmem:[%s0 + $0xb64] sm:$0xf]
  %v745 = vld [vmem:[%s0 + $0xb68] sm:$0xf]
  %v746 = vld [vmem:[%s0 + $0xb6c] sm:$0xf]
  %v747 = vld [vmem:[%s0 + $0xb70] sm:$0xf]
  %v748 = vld [vmem:[%s0 + $0xb74] sm:$0xf]
  %v749 = vld [vmem:[%s0 + $0xb78] sm:$0xf]
  %v750 = vld [vmem:[%s0 + $0xb7c] sm:$0xf]
  %v751 = vld [vmem:[%s0 + $0xb80] sm:$0xf]
  %v752 = vld [vmem:[%s0 + $0xb84] sm:$0xf]
  %v753 = vld [vmem:[%s0 + $0xb88] sm:$0xf]
  %v754 = vld [vmem:[%s0 + $0xb8c] sm:$0xf]
  %v755 = vld [vmem:[%s0 + $0xb90] sm:$0xf]
  %v756 = vld [vmem:[%s0 + $0xb94] sm:$0xf]
  %v757 = vld [vmem:[%s0 + $0xb98] sm:$0xf]
  %v758 = vld [vmem:[%s0 + $0xb9c] sm:$0xf]
  %v759 = vld [vmem:[%s0 + $0xba0] sm:$0xf]
  %v760 = vld [vmem:[%s0 + $0xba4] sm:$0xf]
  %v761 = vld [vmem:[%s0 + $0xba8] sm:$0xf]
  %v762 = vld [vmem:[%s0 + $0xbac] sm:$0xf]
  %v763 = vld [vmem:[%s0 + $0xbb0] sm:$0xf]
  %v764 = vld [vmem:[%s0 + $0xbb4] sm:$0xf]
  %v765 = vld [vmem:[%s0 + $0xbb8] sm:$0xf]
  %v766 = vld [vmem:[%s0 + $0xbbc] sm:$0xf]
  %v767 = vld [vmem:[%s0 + $0xbc0] sm:$0xf]
  %v768 = vld [vmem:[%s0 + $0xbc4] sm:$0xf]
  %v769 = vld [vmem:[%s0 + $0xbc8] sm:$0xf]
  %v770 = vld [vmem:[%s0 + $0xbcc] sm:$0xf]
  %v771 = vld [vmem:[%s0 + $0xbd0] sm:$0xf]
  %v772 = vld [vmem:[%s0 + $0xbd4] sm:$0xf]
  %v773 = vld [vmem:[%s0 + $0xbd8] sm:$0xf]
  %v774 = vld [vmem:[%s0 + $0xbdc] sm:$0xf]
  %v775 = vld [vmem:[%s0 + $0xbe0] sm:$0xf]
  %v776 = vld [vmem:[%s0 + $0xbe4] sm:$0xf]
  %v777 = vld [vmem:[%s0 + $0xbe8] sm:$0xf]
  %v778 = vld [vmem:[%s0 + $0xbec] sm:$0xf]
  %v779 = vld [vmem:[%s0 + $0xbf0] sm:$0xf]
  %v780 = vld [vmem:[%s0 + $0xbf4] sm:$0xf]
  %v781 = vld [vmem:[%s0 + $0xbf8] sm:$0xf]
  %v782 = vld [vmem:[%s0 + $0xbfc] sm:$0xf]
  %v783 = vld [vmem:[%s0 + $0xc00] sm:$0xf]
  %v784 = vld [vmem:[%s0 + $0xc04] sm:$0xf]
  %v785 = vld [vmem:[%s0 + $0xc08] sm:$0xf]
  %v786 = vld [vmem:[%s0 + $0xc0c] sm:$0xf]
  %v787 = vld [vmem:[%s0 + $0xc10] sm:$0xf]
  %v788 = vld [vmem:[%s0 + $0xc14] sm:$0xf]
  %v789 = vld [vmem:[%s0 + $0xc18] sm:$0xf]
  %v790 = vld [vmem:[%s0 + $0xc1c] sm:$0xf]
  %v791 = vld [vmem:[%s0 + $0xc20] sm:$0xf]
  %v792 = vld [vmem:[%s0 + $0xc24] sm:$0xf]
  %v793 = vld [vmem:[%s0 + $0xc28] sm:$0xf]
  %v794 = vld [vmem:[%s0 + $0xc2c] sm:$0xf]
  %v795 = vld [vmem:[%s0 + $0xc30] sm:$0xf]
  %v796 = vld [vmem:[%s0 + $0xc34] sm:$0xf]
  %v797 = vld [vmem:[%s0 + $0xc38] sm:$0xf]
  %v798 = vld [vmem:[%s0 + $0xc3c] sm:$0xf]
  %v799 = vld [vmem:[%s1] sm:$0xf]
  %v800 = vld [vmem:[%s1 + $0x4] sm:$0xf]
  %v801 = vld [vmem:[%s1 + $0x8] sm:$0xf]
  %v802 = vld [vmem:[%s1 + $0xc] sm:$0xf]
  %v803 = vld [vmem:[%s1 + $0x10] sm:$0xf]
  %v804 = vld [vmem:[%s1 + $0x14] sm:$0xf]
  %v805 = vld [vmem:[%s1 + $0x18] sm:$0xf]
  %v806 = vld [vmem:[%s1 + $0x1c] sm:$0xf]
  %v807 = vld [vmem:[%s1 + $0x20] sm:$0xf]
  %v808 = vld [vmem:[%s1 + $0x24] sm:$0xf]
  %v809 = vld [vmem:[%s1 + $0x28] sm:$0xf]
  %v810 = vld [vmem:[%s1 + $0x2c] sm:$0xf]
  %v811 = vld [vmem:[%s1 + $0x30] sm:$0xf]
  %v812 = vld [vmem:[%s1 + $0x34] sm:$0xf]
  %v813 = vld [vmem:[%s1 + $0x38] sm:$0xf]
  %v814 = vld [vmem:[%s1 + $0x3c] sm:$0xf]
  %v1599 = vunpack.c.l.b16 %v15
  %v1600 = vunpack.c.l.b16 %v16
  %v1601 = vunpack.c.l.b16 %v17
  %v1602 = vunpack.c.l.b16 %v18
  %v1603 = vunpack.c.l.b16 %v19
  %v1604 = vunpack.c.l.b16 %v20
  %v1605 = vunpack.c.l.b16 %v21
  %v1606 = vunpack.c.l.b16 %v22
  %v1607 = vunpack.c.l.b16 %v23
  %v1608 = vunpack.c.l.b16 %v24
  %v1609 = vunpack.c.l.b16 %v25
  %v1610 = vunpack.c.l.b16 %v26
  %v1611 = vunpack.c.l.b16 %v27
  %v1612 = vunpack.c.l.b16 %v28
  %v1613 = vunpack.c.l.b16 %v29
  %v1614 = vunpack.c.l.b16 %v30
  %v1615 = vunpack.c.l.b16 %v31
  %v1616 = vunpack.c.l.b16 %v32
  %v1617 = vunpack.c.l.b16 %v33
  %v1618 = vunpack.c.l.b16 %v34
  %v1619 = vunpack.c.l.b16 %v35
  %v1620 = vunpack.c.l.b16 %v36
  %v1621 = vunpack.c.l.b16 %v37
  %v1622 = vunpack.c.l.b16 %v38
  %v1623 = vunpack.c.l.b16 %v39
  %v1624 = vunpack.c.l.b16 %v40
  %v1625 = vunpack.c.l.b16 %v41
  %v1626 = vunpack.c.l.b16 %v42
  %v1627 = vunpack.c.l.b16 %v43
  %v1628 = vunpack.c.l.b16 %v44
  %v1629 = vunpack.c.l.b16 %v45
  %v1630 = vunpack.c.l.b16 %v46
  %v1631 = vunpack.c.l.b16 %v47
  %v1632 = vunpack.c.l.b16 %v48
  %v1633 = vunpack.c.l.b16 %v49
  %v1634 = vunpack.c.l.b16 %v50
  %v1635 = vunpack.c.l.b16 %v51
  %v1636 = vunpack.c.l.b16 %v52
  %v1637 = vunpack.c.l.b16 %v53
  %v1638 = vunpack.c.l.b16 %v54
  %v1639 = vunpack.c.l.b16 %v55
  %v1640 = vunpack.c.l.b16 %v56
  %v1641 = vunpack.c.l.b16 %v57
  %v1642 = vunpack.c.l.b16 %v58
  %v1643 = vunpack.c.l.b16 %v59
  %v1644 = vunpack.c.l.b16 %v60
  %v1645 = vunpack.c.l.b16 %v61
  %v1646 = vunpack.c.l.b16 %v62
  %v1647 = vunpack.c.l.b16 %v63
  %v1648 = vunpack.c.l.b16 %v64
  %v1649 = vunpack.c.l.b16 %v65
  %v1650 = vunpack.c.l.b16 %v66
  %v1651 = vunpack.c.l.b16 %v67
  %v1652 = vunpack.c.l.b16 %v68
  %v1653 = vunpack.c.l.b16 %v69
  %v1654 = vunpack.c.l.b16 %v70
  %v1655 = vunpack.c.l.b16 %v71
  %v1656 = vunpack.c.l.b16 %v72
  %v1657 = vunpack.c.l.b16 %v73
  %v1658 = vunpack.c.l.b16 %v74
  %v1659 = vunpack.c.l.b16 %v75
  %v1660 = vunpack.c.l.b16 %v76
  %v1661 = vunpack.c.l.b16 %v77
  %v1662 = vunpack.c.l.b16 %v78
  %v1663 = vunpack.c.l.b16 %v79
  %v1664 = vunpack.c.l.b16 %v80
  %v1665 = vunpack.c.l.b16 %v81
  %v1666 = vunpack.c.l.b16 %v82
  %v1667 = vunpack.c.l.b16 %v83
  %v1668 = vunpack.c.l.b16 %v84
  %v1669 = vunpack.c.l.b16 %v85
  %v1670 = vunpack.c.l.b16 %v86
  %v1671 = vunpack.c.l.b16 %v87
  %v1672 = vunpack.c.l.b16 %v88
  %v1673 = vunpack.c.l.b16 %v89
  %v1674 = vunpack.c.l.b16 %v90
  %v1675 = vunpack.c.l.b16 %v91
  %v1676 = vunpack.c.l.b16 %v92
  %v1677 = vunpack.c.l.b16 %v93
  %v1678 = vunpack.c.l.b16 %v94
  %v1679 = vunpack.c.l.b16 %v95
  %v1680 = vunpack.c.l.b16 %v96
  %v1681 = vunpack.c.l.b16 %v97
  %v1682 = vunpack.c.l.b16 %v98
  %v1683 = vunpack.c.l.b16 %v99
  %v1684 = vunpack.c.l.b16 %v100
  %v1685 = vunpack.c.l.b16 %v101
  %v1686 = vunpack.c.l.b16 %v102
  %v1687 = vunpack.c.l.b16 %v103
  %v1688 = vunpack.c.l.b16 %v104
  %v1689 = vunpack.c.l.b16 %v105
  %v1690 = vunpack.c.l.b16 %v106
  %v1691 = vunpack.c.l.b16 %v107
  %v1692 = vunpack.c.l.b16 %v108
  %v1693 = vunpack.c.l.b16 %v109
  %v1694 = vunpack.c.l.b16 %v110
  %v1695 = vunpack.c.l.b16 %v111
  %v1696 = vunpack.c.l.b16 %v112
  %v1697 = vunpack.c.l.b16 %v113
  %v1698 = vunpack.c.l.b16 %v114
  %v1699 = vunpack.c.l.b16 %v115
  %v1700 = vunpack.c.l.b16 %v116
  %v1701 = vunpack.c.l.b16 %v117
  %v1702 = vunpack.c.l.b16 %v118
  %v1703 = vunpack.c.l.b16 %v119
  %v1704 = vunpack.c.l.b16 %v120
  %v1705 = vunpack.c.l.b16 %v121
  %v1706 = vunpack.c.l.b16 %v122
  %v1707 = vunpack.c.l.b16 %v123
  %v1708 = vunpack.c.l.b16 %v124
  %v1709 = vunpack.c.l.b16 %v125
  %v1710 = vunpack.c.l.b16 %v126
  %v1711 = vunpack.c.l.b16 %v127
  %v1712 = vunpack.c.l.b16 %v128
  %v1713 = vunpack.c.l.b16 %v129
  %v1714 = vunpack.c.l.b16 %v130
  %v1715 = vunpack.c.l.b16 %v131
  %v1716 = vunpack.c.l.b16 %v132
  %v1717 = vunpack.c.l.b16 %v133
  %v1718 = vunpack.c.l.b16 %v134
  %v1719 = vunpack.c.l.b16 %v135
  %v1720 = vunpack.c.l.b16 %v136
  %v1721 = vunpack.c.l.b16 %v137
  %v1722 = vunpack.c.l.b16 %v138
  %v1723 = vunpack.c.l.b16 %v139
  %v1724 = vunpack.c.l.b16 %v140
  %v1725 = vunpack.c.l.b16 %v141
  %v1726 = vunpack.c.l.b16 %v142
  %v1727 = vunpack.c.l.b16 %v143
  %v1728 = vunpack.c.l.b16 %v144
  %v1729 = vunpack.c.l.b16 %v145
  %v1730 = vunpack.c.l.b16 %v146
  %v1731 = vunpack.c.l.b16 %v147
  %v1732 = vunpack.c.l.b16 %v148
  %v1733 = vunpack.c.l.b16 %v149
  %v1734 = vunpack.c.l.b16 %v150
  %v1735 = vunpack.c.l.b16 %v151
  %v1736 = vunpack.c.l.b16 %v152
  %v1737 = vunpack.c.l.b16 %v153
  %v1738 = vunpack.c.l.b16 %v154
  %v1739 = vunpack.c.l.b16 %v155
  %v1740 = vunpack.c.l.b16 %v156
  %v1741 = vunpack.c.l.b16 %v157
  %v1742 = vunpack.c.l.b16 %v158
  %v1743 = vunpack.c.l.b16 %v159
  %v1744 = vunpack.c.l.b16 %v160
  %v1745 = vunpack.c.l.b16 %v161
  %v1746 = vunpack.c.l.b16 %v162
  %v1747 = vunpack.c.l.b16 %v163
  %v1748 = vunpack.c.l.b16 %v164
  %v1749 = vunpack.c.l.b16 %v165
  %v1750 = vunpack.c.l.b16 %v166
  %v1751 = vunpack.c.l.b16 %v167
  %v1752 = vunpack.c.l.b16 %v168
  %v1753 = vunpack.c.l.b16 %v169
  %v1754 = vunpack.c.l.b16 %v170
  %v1755 = vunpack.c.l.b16 %v171
  %v1756 = vunpack.c.l.b16 %v172
  %v1757 = vunpack.c.l.b16 %v173
  %v1758 = vunpack.c.l.b16 %v174
  %v1759 = vunpack.c.l.b16 %v175
  %v1760 = vunpack.c.l.b16 %v176
  %v1761 = vunpack.c.l.b16 %v177
  %v1762 = vunpack.c.l.b16 %v178
  %v1763 = vunpack.c.l.b16 %v179
  %v1764 = vunpack.c.l.b16 %v180
  %v1765 = vunpack.c.l.b16 %v181
  %v1766 = vunpack.c.l.b16 %v182
  %v1767 = vunpack.c.l.b16 %v183
  %v1768 = vunpack.c.l.b16 %v184
  %v1769 = vunpack.c.l.b16 %v185
  %v1770 = vunpack.c.l.b16 %v186
  %v1771 = vunpack.c.l.b16 %v187
  %v1772 = vunpack.c.l.b16 %v188
  %v1773 = vunpack.c.l.b16 %v189
  %v1774 = vunpack.c.l.b16 %v190
  %v1775 = vunpack.c.l.b16 %v191
  %v1776 = vunpack.c.l.b16 %v192
  %v1777 = vunpack.c.l.b16 %v193
  %v1778 = vunpack.c.l.b16 %v194
  %v1779 = vunpack.c.l.b16 %v195
  %v1780 = vunpack.c.l.b16 %v196
  %v1781 = vunpack.c.l.b16 %v197
  %v1782 = vunpack.c.l.b16 %v198
  %v1783 = vunpack.c.l.b16 %v199
  %v1784 = vunpack.c.l.b16 %v200
  %v1785 = vunpack.c.l.b16 %v201
  %v1786 = vunpack.c.l.b16 %v202
  %v1787 = vunpack.c.l.b16 %v203
  %v1788 = vunpack.c.l.b16 %v204
  %v1789 = vunpack.c.l.b16 %v205
  %v1790 = vunpack.c.l.b16 %v206
  %v1791 = vunpack.c.l.b16 %v207
  %v1792 = vunpack.c.l.b16 %v208
  %v1793 = vunpack.c.l.b16 %v209
  %v1794 = vunpack.c.l.b16 %v210
  %v1795 = vunpack.c.l.b16 %v211
  %v1796 = vunpack.c.l.b16 %v212
  %v1797 = vunpack.c.l.b16 %v213
  %v1798 = vunpack.c.l.b16 %v214
  %v1799 = vunpack.c.l.b16 %v215
  %v1800 = vunpack.c.l.b16 %v216
  %v1801 = vunpack.c.l.b16 %v217
  %v1802 = vunpack.c.l.b16 %v218
  %v1803 = vunpack.c.l.b16 %v219
  %v1804 = vunpack.c.l.b16 %v220
  %v1805 = vunpack.c.l.b16 %v221
  %v1806 = vunpack.c.l.b16 %v222
  %v1807 = vunpack.c.l.b16 %v223
  %v1808 = vunpack.c.l.b16 %v224
  %v1809 = vunpack.c.l.b16 %v225
  %v1810 = vunpack.c.l.b16 %v226
  %v1811 = vunpack.c.l.b16 %v227
  %v1812 = vunpack.c.l.b16 %v228
  %v1813 = vunpack.c.l.b16 %v229
  %v1814 = vunpack.c.l.b16 %v230
  %v1815 = vunpack.c.l.b16 %v231
  %v1816 = vunpack.c.l.b16 %v232
  %v1817 = vunpack.c.l.b16 %v233
  %v1818 = vunpack.c.l.b16 %v234
  %v1819 = vunpack.c.l.b16 %v235
  %v1820 = vunpack.c.l.b16 %v236
  %v1821 = vunpack.c.l.b16 %v237
  %v1822 = vunpack.c.l.b16 %v238
  %v1823 = vunpack.c.l.b16 %v239
  %v1824 = vunpack.c.l.b16 %v240
  %v1825 = vunpack.c.l.b16 %v241
  %v1826 = vunpack.c.l.b16 %v242
  %v1827 = vunpack.c.l.b16 %v243
  %v1828 = vunpack.c.l.b16 %v244
  %v1829 = vunpack.c.l.b16 %v245
  %v1830 = vunpack.c.l.b16 %v246
  %v1831 = vunpack.c.l.b16 %v247
  %v1832 = vunpack.c.l.b16 %v248
  %v1833 = vunpack.c.l.b16 %v249
  %v1834 = vunpack.c.l.b16 %v250
  %v1835 = vunpack.c.l.b16 %v251
  %v1836 = vunpack.c.l.b16 %v252
  %v1837 = vunpack.c.l.b16 %v253
  %v1838 = vunpack.c.l.b16 %v254
  %v1839 = vunpack.c.l.b16 %v255
  %v1840 = vunpack.c.l.b16 %v256
  %v1841 = vunpack.c.l.b16 %v257
  %v1842 = vunpack.c.l.b16 %v258
  %v1843 = vunpack.c.l.b16 %v259
  %v1844 = vunpack.c.l.b16 %v260
  %v1845 = vunpack.c.l.b16 %v261
  %v1846 = vunpack.c.l.b16 %v262
  %v1847 = vunpack.c.l.b16 %v263
  %v1848 = vunpack.c.l.b16 %v264
  %v1849 = vunpack.c.l.b16 %v265
  %v1850 = vunpack.c.l.b16 %v266
  %v1851 = vunpack.c.l.b16 %v267
  %v1852 = vunpack.c.l.b16 %v268
  %v1853 = vunpack.c.l.b16 %v269
  %v1854 = vunpack.c.l.b16 %v270
  %v1855 = vunpack.c.l.b16 %v271
  %v1856 = vunpack.c.l.b16 %v272
  %v1857 = vunpack.c.l.b16 %v273
  %v1858 = vunpack.c.l.b16 %v274
  %v1859 = vunpack.c.l.b16 %v275
  %v1860 = vunpack.c.l.b16 %v276
  %v1861 = vunpack.c.l.b16 %v277
  %v1862 = vunpack.c.l.b16 %v278
  %v1863 = vunpack.c.l.b16 %v279
  %v1864 = vunpack.c.l.b16 %v280
  %v1865 = vunpack.c.l.b16 %v281
  %v1866 = vunpack.c.l.b16 %v282
  %v1867 = vunpack.c.l.b16 %v283
  %v1868 = vunpack.c.l.b16 %v284
  %v1869 = vunpack.c.l.b16 %v285
  %v1870 = vunpack.c.l.b16 %v286
  %v1871 = vunpack.c.l.b16 %v287
  %v1872 = vunpack.c.l.b16 %v288
  %v1873 = vunpack.c.l.b16 %v289
  %v1874 = vunpack.c.l.b16 %v290
  %v1875 = vunpack.c.l.b16 %v291
  %v1876 = vunpack.c.l.b16 %v292
  %v1877 = vunpack.c.l.b16 %v293
  %v1878 = vunpack.c.l.b16 %v294
  %v1879 = vunpack.c.l.b16 %v295
  %v1880 = vunpack.c.l.b16 %v296
  %v1881 = vunpack.c.l.b16 %v297
  %v1882 = vunpack.c.l.b16 %v298
  %v1883 = vunpack.c.l.b16 %v299
  %v1884 = vunpack.c.l.b16 %v300
  %v1885 = vunpack.c.l.b16 %v301
  %v1886 = vunpack.c.l.b16 %v302
  %v1887 = vunpack.c.l.b16 %v303
  %v1888 = vunpack.c.l.b16 %v304
  %v1889 = vunpack.c.l.b16 %v305
  %v1890 = vunpack.c.l.b16 %v306
  %v1891 = vunpack.c.l.b16 %v307
  %v1892 = vunpack.c.l.b16 %v308
  %v1893 = vunpack.c.l.b16 %v309
  %v1894 = vunpack.c.l.b16 %v310
  %v1895 = vunpack.c.l.b16 %v311
  %v1896 = vunpack.c.l.b16 %v312
  %v1897 = vunpack.c.l.b16 %v313
  %v1898 = vunpack.c.l.b16 %v314
  %v1899 = vunpack.c.l.b16 %v315
  %v1900 = vunpack.c.l.b16 %v316
  %v1901 = vunpack.c.l.b16 %v317
  %v1902 = vunpack.c.l.b16 %v318
  %v1903 = vunpack.c.l.b16 %v319
  %v1904 = vunpack.c.l.b16 %v320
  %v1905 = vunpack.c.l.b16 %v321
  %v1906 = vunpack.c.l.b16 %v322
  %v1907 = vunpack.c.l.b16 %v323
  %v1908 = vunpack.c.l.b16 %v324
  %v1909 = vunpack.c.l.b16 %v325
  %v1910 = vunpack.c.l.b16 %v326
  %v1911 = vunpack.c.l.b16 %v327
  %v1912 = vunpack.c.l.b16 %v328
  %v1913 = vunpack.c.l.b16 %v329
  %v1914 = vunpack.c.l.b16 %v330
  %v1915 = vunpack.c.l.b16 %v331
  %v1916 = vunpack.c.l.b16 %v332
  %v1917 = vunpack.c.l.b16 %v333
  %v1918 = vunpack.c.l.b16 %v334
  %v1919 = vunpack.c.l.b16 %v335
  %v1920 = vunpack.c.l.b16 %v336
  %v1921 = vunpack.c.l.b16 %v337
  %v1922 = vunpack.c.l.b16 %v338
  %v1923 = vunpack.c.l.b16 %v339
  %v1924 = vunpack.c.l.b16 %v340
  %v1925 = vunpack.c.l.b16 %v341
  %v1926 = vunpack.c.l.b16 %v342
  %v1927 = vunpack.c.l.b16 %v343
  %v1928 = vunpack.c.l.b16 %v344
  %v1929 = vunpack.c.l.b16 %v345
  %v1930 = vunpack.c.l.b16 %v346
  %v1931 = vunpack.c.l.b16 %v347
  %v1932 = vunpack.c.l.b16 %v348
  %v1933 = vunpack.c.l.b16 %v349
  %v1934 = vunpack.c.l.b16 %v350
  %v1935 = vunpack.c.l.b16 %v351
  %v1936 = vunpack.c.l.b16 %v352
  %v1937 = vunpack.c.l.b16 %v353
  %v1938 = vunpack.c.l.b16 %v354
  %v1939 = vunpack.c.l.b16 %v355
  %v1940 = vunpack.c.l.b16 %v356
  %v1941 = vunpack.c.l.b16 %v357
  %v1942 = vunpack.c.l.b16 %v358
  %v1943 = vunpack.c.l.b16 %v359
  %v1944 = vunpack.c.l.b16 %v360
  %v1945 = vunpack.c.l.b16 %v361
  %v1946 = vunpack.c.l.b16 %v362
  %v1947 = vunpack.c.l.b16 %v363
  %v1948 = vunpack.c.l.b16 %v364
  %v1949 = vunpack.c.l.b16 %v365
  %v1950 = vunpack.c.l.b16 %v366
  %v1951 = vunpack.c.l.b16 %v367
  %v1952 = vunpack.c.l.b16 %v368
  %v1953 = vunpack.c.l.b16 %v369
  %v1954 = vunpack.c.l.b16 %v370
  %v1955 = vunpack.c.l.b16 %v371
  %v1956 = vunpack.c.l.b16 %v372
  %v1957 = vunpack.c.l.b16 %v373
  %v1958 = vunpack.c.l.b16 %v374
  %v1959 = vunpack.c.l.b16 %v375
  %v1960 = vunpack.c.l.b16 %v376
  %v1961 = vunpack.c.l.b16 %v377
  %v1962 = vunpack.c.l.b16 %v378
  %v1963 = vunpack.c.l.b16 %v379
  %v1964 = vunpack.c.l.b16 %v380
  %v1965 = vunpack.c.l.b16 %v381
  %v1966 = vunpack.c.l.b16 %v382
  %v1967 = vunpack.c.l.b16 %v383
  %v1968 = vunpack.c.l.b16 %v384
  %v1969 = vunpack.c.l.b16 %v385
  %v1970 = vunpack.c.l.b16 %v386
  %v1971 = vunpack.c.l.b16 %v387
  %v1972 = vunpack.c.l.b16 %v388
  %v1973 = vunpack.c.l.b16 %v389
  %v1974 = vunpack.c.l.b16 %v390
  %v1975 = vunpack.c.l.b16 %v391
  %v1976 = vunpack.c.l.b16 %v392
  %v1977 = vunpack.c.l.b16 %v393
  %v1978 = vunpack.c.l.b16 %v394
  %v1979 = vunpack.c.l.b16 %v395
  %v1980 = vunpack.c.l.b16 %v396
  %v1981 = vunpack.c.l.b16 %v397
  %v1982 = vunpack.c.l.b16 %v398
  %v1983 = vunpack.c.l.b16 %v399
  %v1984 = vunpack.c.l.b16 %v400
  %v1985 = vunpack.c.l.b16 %v401
  %v1986 = vunpack.c.l.b16 %v402
  %v1987 = vunpack.c.l.b16 %v403
  %v1988 = vunpack.c.l.b16 %v404
  %v1989 = vunpack.c.l.b16 %v405
  %v1990 = vunpack.c.l.b16 %v406
  %v1991 = vunpack.c.l.b16 %v407
  %v1992 = vunpack.c.l.b16 %v408
  %v1993 = vunpack.c.l.b16 %v409
  %v1994 = vunpack.c.l.b16 %v410
  %v1995 = vunpack.c.l.b16 %v411
  %v1996 = vunpack.c.l.b16 %v412
  %v1997 = vunpack.c.l.b16 %v413
  %v1998 = vunpack.c.l.b16 %v414
  %v1999 = vunpack.c.l.b16 %v415
  %v2000 = vunpack.c.l.b16 %v416
  %v2001 = vunpack.c.l.b16 %v417
  %v2002 = vunpack.c.l.b16 %v418
  %v2003 = vunpack.c.l.b16 %v419
  %v2004 = vunpack.c.l.b16 %v420
  %v2005 = vunpack.c.l.b16 %v421
  %v2006 = vunpack.c.l.b16 %v422
  %v2007 = vunpack.c.l.b16 %v423
  %v2008 = vunpack.c.l.b16 %v424
  %v2009 = vunpack.c.l.b16 %v425
  %v2010 = vunpack.c.l.b16 %v426
  %v2011 = vunpack.c.l.b16 %v427
  %v2012 = vunpack.c.l.b16 %v428
  %v2013 = vunpack.c.l.b16 %v429
  %v2014 = vunpack.c.l.b16 %v430
  %v2015 = vunpack.c.l.b16 %v431
  %v2016 = vunpack.c.l.b16 %v432
  %v2017 = vunpack.c.l.b16 %v433
  %v2018 = vunpack.c.l.b16 %v434
  %v2019 = vunpack.c.l.b16 %v435
  %v2020 = vunpack.c.l.b16 %v436
  %v2021 = vunpack.c.l.b16 %v437
  %v2022 = vunpack.c.l.b16 %v438
  %v2023 = vunpack.c.l.b16 %v439
  %v2024 = vunpack.c.l.b16 %v440
  %v2025 = vunpack.c.l.b16 %v441
  %v2026 = vunpack.c.l.b16 %v442
  %v2027 = vunpack.c.l.b16 %v443
  %v2028 = vunpack.c.l.b16 %v444
  %v2029 = vunpack.c.l.b16 %v445
  %v2030 = vunpack.c.l.b16 %v446
  %v2031 = vunpack.c.l.b16 %v447
  %v2032 = vunpack.c.l.b16 %v448
  %v2033 = vunpack.c.l.b16 %v449
  %v2034 = vunpack.c.l.b16 %v450
  %v2035 = vunpack.c.l.b16 %v451
  %v2036 = vunpack.c.l.b16 %v452
  %v2037 = vunpack.c.l.b16 %v453
  %v2038 = vunpack.c.l.b16 %v454
  %v2039 = vunpack.c.l.b16 %v455
  %v2040 = vunpack.c.l.b16 %v456
  %v2041 = vunpack.c.l.b16 %v457
  %v2042 = vunpack.c.l.b16 %v458
  %v2043 = vunpack.c.l.b16 %v459
  %v2044 = vunpack.c.l.b16 %v460
  %v2045 = vunpack.c.l.b16 %v461
  %v2046 = vunpack.c.l.b16 %v462
  %v2047 = vunpack.c.l.b16 %v463
  %v2048 = vunpack.c.l.b16 %v464
  %v2049 = vunpack.c.l.b16 %v465
  %v2050 = vunpack.c.l.b16 %v466
  %v2051 = vunpack.c.l.b16 %v467
  %v2052 = vunpack.c.l.b16 %v468
  %v2053 = vunpack.c.l.b16 %v469
  %v2054 = vunpack.c.l.b16 %v470
  %v2055 = vunpack.c.l.b16 %v471
  %v2056 = vunpack.c.l.b16 %v472
  %v2057 = vunpack.c.l.b16 %v473
  %v2058 = vunpack.c.l.b16 %v474
  %v2059 = vunpack.c.l.b16 %v475
  %v2060 = vunpack.c.l.b16 %v476
  %v2061 = vunpack.c.l.b16 %v477
  %v2062 = vunpack.c.l.b16 %v478
  %v2063 = vunpack.c.l.b16 %v479
  %v2064 = vunpack.c.l.b16 %v480
  %v2065 = vunpack.c.l.b16 %v481
  %v2066 = vunpack.c.l.b16 %v482
  %v2067 = vunpack.c.l.b16 %v483
  %v2068 = vunpack.c.l.b16 %v484
  %v2069 = vunpack.c.l.b16 %v485
  %v2070 = vunpack.c.l.b16 %v486
  %v2071 = vunpack.c.l.b16 %v487
  %v2072 = vunpack.c.l.b16 %v488
  %v2073 = vunpack.c.l.b16 %v489
  %v2074 = vunpack.c.l.b16 %v490
  %v2075 = vunpack.c.l.b16 %v491
  %v2076 = vunpack.c.l.b16 %v492
  %v2077 = vunpack.c.l.b16 %v493
  %v2078 = vunpack.c.l.b16 %v494
  %v2079 = vunpack.c.l.b16 %v495
  %v2080 = vunpack.c.l.b16 %v496
  %v2081 = vunpack.c.l.b16 %v497
  %v2082 = vunpack.c.l.b16 %v498
  %v2083 = vunpack.c.l.b16 %v499
  %v2084 = vunpack.c.l.b16 %v500
  %v2085 = vunpack.c.l.b16 %v501
  %v2086 = vunpack.c.l.b16 %v502
  %v2087 = vunpack.c.l.b16 %v503
  %v2088 = vunpack.c.l.b16 %v504
  %v2089 = vunpack.c.l.b16 %v505
  %v2090 = vunpack.c.l.b16 %v506
  %v2091 = vunpack.c.l.b16 %v507
  %v2092 = vunpack.c.l.b16 %v508
  %v2093 = vunpack.c.l.b16 %v509
  %v2094 = vunpack.c.l.b16 %v510
  %v2095 = vunpack.c.l.b16 %v511
  %v2096 = vunpack.c.l.b16 %v512
  %v2097 = vunpack.c.l.b16 %v513
  %v2098 = vunpack.c.l.b16 %v514
  %v2099 = vunpack.c.l.b16 %v515
  %v2100 = vunpack.c.l.b16 %v516
  %v2101 = vunpack.c.l.b16 %v517
  %v2102 = vunpack.c.l.b16 %v518
  %v2103 = vunpack.c.l.b16 %v519
  %v2104 = vunpack.c.l.b16 %v520
  %v2105 = vunpack.c.l.b16 %v521
  %v2106 = vunpack.c.l.b16 %v522
  %v2107 = vunpack.c.l.b16 %v523
  %v2108 = vunpack.c.l.b16 %v524
  %v2109 = vunpack.c.l.b16 %v525
  %v2110 = vunpack.c.l.b16 %v526
  %v2111 = vunpack.c.l.b16 %v527
  %v2112 = vunpack.c.l.b16 %v528
  %v2113 = vunpack.c.l.b16 %v529
  %v2114 = vunpack.c.l.b16 %v530
  %v2115 = vunpack.c.l.b16 %v531
  %v2116 = vunpack.c.l.b16 %v532
  %v2117 = vunpack.c.l.b16 %v533
  %v2118 = vunpack.c.l.b16 %v534
  %v2119 = vunpack.c.l.b16 %v535
  %v2120 = vunpack.c.l.b16 %v536
  %v2121 = vunpack.c.l.b16 %v537
  %v2122 = vunpack.c.l.b16 %v538
  %v2123 = vunpack.c.l.b16 %v539
  %v2124 = vunpack.c.l.b16 %v540
  %v2125 = vunpack.c.l.b16 %v541
  %v2126 = vunpack.c.l.b16 %v542
  %v2127 = vunpack.c.l.b16 %v543
  %v2128 = vunpack.c.l.b16 %v544
  %v2129 = vunpack.c.l.b16 %v545
  %v2130 = vunpack.c.l.b16 %v546
  %v2131 = vunpack.c.l.b16 %v547
  %v2132 = vunpack.c.l.b16 %v548
  %v2133 = vunpack.c.l.b16 %v549
  %v2134 = vunpack.c.l.b16 %v550
  %v2135 = vunpack.c.l.b16 %v551
  %v2136 = vunpack.c.l.b16 %v552
  %v2137 = vunpack.c.l.b16 %v553
  %v2138 = vunpack.c.l.b16 %v554
  %v2139 = vunpack.c.l.b16 %v555
  %v2140 = vunpack.c.l.b16 %v556
  %v2141 = vunpack.c.l.b16 %v557
  %v2142 = vunpack.c.l.b16 %v558
  %v2143 = vunpack.c.l.b16 %v559
  %v2144 = vunpack.c.l.b16 %v560
  %v2145 = vunpack.c.l.b16 %v561
  %v2146 = vunpack.c.l.b16 %v562
  %v2147 = vunpack.c.l.b16 %v563
  %v2148 = vunpack.c.l.b16 %v564
  %v2149 = vunpack.c.l.b16 %v565
  %v2150 = vunpack.c.l.b16 %v566
  %v2151 = vunpack.c.l.b16 %v567
  %v2152 = vunpack.c.l.b16 %v568
  %v2153 = vunpack.c.l.b16 %v569
  %v2154 = vunpack.c.l.b16 %v570
  %v2155 = vunpack.c.l.b16 %v571
  %v2156 = vunpack.c.l.b16 %v572
  %v2157 = vunpack.c.l.b16 %v573
  %v2158 = vunpack.c.l.b16 %v574
  %v2159 = vunpack.c.l.b16 %v575
  %v2160 = vunpack.c.l.b16 %v576
  %v2161 = vunpack.c.l.b16 %v577
  %v2162 = vunpack.c.l.b16 %v578
  %v2163 = vunpack.c.l.b16 %v579
  %v2164 = vunpack.c.l.b16 %v580
  %v2165 = vunpack.c.l.b16 %v581
  %v2166 = vunpack.c.l.b16 %v582
  %v2167 = vunpack.c.l.b16 %v583
  %v2168 = vunpack.c.l.b16 %v584
  %v2169 = vunpack.c.l.b16 %v585
  %v2170 = vunpack.c.l.b16 %v586
  %v2171 = vunpack.c.l.b16 %v587
  %v2172 = vunpack.c.l.b16 %v588
  %v2173 = vunpack.c.l.b16 %v589
  %v2174 = vunpack.c.l.b16 %v590
  %v2175 = vunpack.c.l.b16 %v591
  %v2176 = vunpack.c.l.b16 %v592
  %v2177 = vunpack.c.l.b16 %v593
  %v2178 = vunpack.c.l.b16 %v594
  %v2179 = vunpack.c.l.b16 %v595
  %v2180 = vunpack.c.l.b16 %v596
  %v2181 = vunpack.c.l.b16 %v597
  %v2182 = vunpack.c.l.b16 %v598
  %v2183 = vunpack.c.l.b16 %v599
  %v2184 = vunpack.c.l.b16 %v600
  %v2185 = vunpack.c.l.b16 %v601
  %v2186 = vunpack.c.l.b16 %v602
  %v2187 = vunpack.c.l.b16 %v603
  %v2188 = vunpack.c.l.b16 %v604
  %v2189 = vunpack.c.l.b16 %v605
  %v2190 = vunpack.c.l.b16 %v606
  %v2191 = vunpack.c.l.b16 %v607
  %v2192 = vunpack.c.l.b16 %v608
  %v2193 = vunpack.c.l.b16 %v609
  %v2194 = vunpack.c.l.b16 %v610
  %v2195 = vunpack.c.l.b16 %v611
  %v2196 = vunpack.c.l.b16 %v612
  %v2197 = vunpack.c.l.b16 %v613
  %v2198 = vunpack.c.l.b16 %v614
  %v2199 = vunpack.c.l.b16 %v615
  %v2200 = vunpack.c.l.b16 %v616
  %v2201 = vunpack.c.l.b16 %v617
  %v2202 = vunpack.c.l.b16 %v618
  %v2203 = vunpack.c.l.b16 %v619
  %v2204 = vunpack.c.l.b16 %v620
  %v2205 = vunpack.c.l.b16 %v621
  %v2206 = vunpack.c.l.b16 %v622
  %v2207 = vunpack.c.l.b16 %v623
  %v2208 = vunpack.c.l.b16 %v624
  %v2209 = vunpack.c.l.b16 %v625
  %v2210 = vunpack.c.l.b16 %v626
  %v2211 = vunpack.c.l.b16 %v627
  %v2212 = vunpack.c.l.b16 %v628
  %v2213 = vunpack.c.l.b16 %v629
  %v2214 = vunpack.c.l.b16 %v630
  %v2215 = vunpack.c.l.b16 %v631
  %v2216 = vunpack.c.l.b16 %v632
  %v2217 = vunpack.c.l.b16 %v633
  %v2218 = vunpack.c.l.b16 %v634
  %v2219 = vunpack.c.l.b16 %v635
  %v2220 = vunpack.c.l.b16 %v636
  %v2221 = vunpack.c.l.b16 %v637
  %v2222 = vunpack.c.l.b16 %v638
  %v2223 = vunpack.c.l.b16 %v639
  %v2224 = vunpack.c.l.b16 %v640
  %v2225 = vunpack.c.l.b16 %v641
  %v2226 = vunpack.c.l.b16 %v642
  %v2227 = vunpack.c.l.b16 %v643
  %v2228 = vunpack.c.l.b16 %v644
  %v2229 = vunpack.c.l.b16 %v645
  %v2230 = vunpack.c.l.b16 %v646
  %v2231 = vunpack.c.l.b16 %v647
  %v2232 = vunpack.c.l.b16 %v648
  %v2233 = vunpack.c.l.b16 %v649
  %v2234 = vunpack.c.l.b16 %v650
  %v2235 = vunpack.c.l.b16 %v651
  %v2236 = vunpack.c.l.b16 %v652
  %v2237 = vunpack.c.l.b16 %v653
  %v2238 = vunpack.c.l.b16 %v654
  %v2239 = vunpack.c.l.b16 %v655
  %v2240 = vunpack.c.l.b16 %v656
  %v2241 = vunpack.c.l.b16 %v657
  %v2242 = vunpack.c.l.b16 %v658
  %v2243 = vunpack.c.l.b16 %v659
  %v2244 = vunpack.c.l.b16 %v660
  %v2245 = vunpack.c.l.b16 %v661
  %v2246 = vunpack.c.l.b16 %v662
  %v2247 = vunpack.c.l.b16 %v663
  %v2248 = vunpack.c.l.b16 %v664
  %v2249 = vunpack.c.l.b16 %v665
  %v2250 = vunpack.c.l.b16 %v666
  %v2251 = vunpack.c.l.b16 %v667
  %v2252 = vunpack.c.l.b16 %v668
  %v2253 = vunpack.c.l.b16 %v669
  %v2254 = vunpack.c.l.b16 %v670
  %v2255 = vunpack.c.l.b16 %v671
  %v2256 = vunpack.c.l.b16 %v672
  %v2257 = vunpack.c.l.b16 %v673
  %v2258 = vunpack.c.l.b16 %v674
  %v2259 = vunpack.c.l.b16 %v675
  %v2260 = vunpack.c.l.b16 %v676
  %v2261 = vunpack.c.l.b16 %v677
  %v2262 = vunpack.c.l.b16 %v678
  %v2263 = vunpack.c.l.b16 %v679
  %v2264 = vunpack.c.l.b16 %v680
  %v2265 = vunpack.c.l.b16 %v681
  %v2266 = vunpack.c.l.b16 %v682
  %v2267 = vunpack.c.l.b16 %v683
  %v2268 = vunpack.c.l.b16 %v684
  %v2269 = vunpack.c.l.b16 %v685
  %v2270 = vunpack.c.l.b16 %v686
  %v2271 = vunpack.c.l.b16 %v687
  %v2272 = vunpack.c.l.b16 %v688
  %v2273 = vunpack.c.l.b16 %v689
  %v2274 = vunpack.c.l.b16 %v690
  %v2275 = vunpack.c.l.b16 %v691
  %v2276 = vunpack.c.l.b16 %v692
  %v2277 = vunpack.c.l.b16 %v693
  %v2278 = vunpack.c.l.b16 %v694
  %v2279 = vunpack.c.l.b16 %v695
  %v2280 = vunpack.c.l.b16 %v696
  %v2281 = vunpack.c.l.b16 %v697
  %v2282 = vunpack.c.l.b16 %v698
  %v2283 = vunpack.c.l.b16 %v699
  %v2284 = vunpack.c.l.b16 %v700
  %v2285 = vunpack.c.l.b16 %v701
  %v2286 = vunpack.c.l.b16 %v702
  %v2287 = vunpack.c.l.b16 %v703
  %v2288 = vunpack.c.l.b16 %v704
  %v2289 = vunpack.c.l.b16 %v705
  %v2290 = vunpack.c.l.b16 %v706
  %v2291 = vunpack.c.l.b16 %v707
  %v2292 = vunpack.c.l.b16 %v708
  %v2293 = vunpack.c.l.b16 %v709
  %v2294 = vunpack.c.l.b16 %v710
  %v2295 = vunpack.c.l.b16 %v711
  %v2296 = vunpack.c.l.b16 %v712
  %v2297 = vunpack.c.l.b16 %v713
  %v2298 = vunpack.c.l.b16 %v714
  %v2299 = vunpack.c.l.b16 %v715
  %v2300 = vunpack.c.l.b16 %v716
  %v2301 = vunpack.c.l.b16 %v717
  %v2302 = vunpack.c.l.b16 %v718
  %v2303 = vunpack.c.l.b16 %v719
  %v2304 = vunpack.c.l.b16 %v720
  %v2305 = vunpack.c.l.b16 %v721
  %v2306 = vunpack.c.l.b16 %v722
  %v2307 = vunpack.c.l.b16 %v723
  %v2308 = vunpack.c.l.b16 %v724
  %v2309 = vunpack.c.l.b16 %v725
  %v2310 = vunpack.c.l.b16 %v726
  %v2311 = vunpack.c.l.b16 %v727
  %v2312 = vunpack.c.l.b16 %v728
  %v2313 = vunpack.c.l.b16 %v729
  %v2314 = vunpack.c.l.b16 %v730
  %v2315 = vunpack.c.l.b16 %v731
  %v2316 = vunpack.c.l.b16 %v732
  %v2317 = vunpack.c.l.b16 %v733
  %v2318 = vunpack.c.l.b16 %v734
  %v2319 = vunpack.c.l.b16 %v735
  %v2320 = vunpack.c.l.b16 %v736
  %v2321 = vunpack.c.l.b16 %v737
  %v2322 = vunpack.c.l.b16 %v738
  %v2323 = vunpack.c.l.b16 %v739
  %v2324 = vunpack.c.l.b16 %v740
  %v2325 = vunpack.c.l.b16 %v741
  %v2326 = vunpack.c.l.b16 %v742
  %v2327 = vunpack.c.l.b16 %v743
  %v2328 = vunpack.c.l.b16 %v744
  %v2329 = vunpack.c.l.b16 %v745
  %v2330 = vunpack.c.l.b16 %v746
  %v2331 = vunpack.c.l.b16 %v747
  %v2332 = vunpack.c.l.b16 %v748
  %v2333 = vunpack.c.l.b16 %v749
  %v2334 = vunpack.c.l.b16 %v750
  %v2335 = vunpack.c.l.b16 %v751
  %v2336 = vunpack.c.l.b16 %v752
  %v2337 = vunpack.c.l.b16 %v753
  %v2338 = vunpack.c.l.b16 %v754
  %v2339 = vunpack.c.l.b16 %v755
  %v2340 = vunpack.c.l.b16 %v756
  %v2341 = vunpack.c.l.b16 %v757
  %v2342 = vunpack.c.l.b16 %v758
  %v2343 = vunpack.c.l.b16 %v759
  %v2344 = vunpack.c.l.b16 %v760
  %v2345 = vunpack.c.l.b16 %v761
  %v2346 = vunpack.c.l.b16 %v762
  %v2347 = vunpack.c.l.b16 %v763
  %v2348 = vunpack.c.l.b16 %v764
  %v2349 = vunpack.c.l.b16 %v765
  %v2350 = vunpack.c.l.b16 %v766
  %v2351 = vunpack.c.l.b16 %v767
  %v2352 = vunpack.c.l.b16 %v768
  %v2353 = vunpack.c.l.b16 %v769
  %v2354 = vunpack.c.l.b16 %v770
  %v2355 = vunpack.c.l.b16 %v771
  %v2356 = vunpack.c.l.b16 %v772
  %v2357 = vunpack.c.l.b16 %v773
  %v2358 = vunpack.c.l.b16 %v774
  %v2359 = vunpack.c.l.b16 %v775
  %v2360 = vunpack.c.l.b16 %v776
  %v2361 = vunpack.c.l.b16 %v777
  %v2362 = vunpack.c.l.b16 %v778
  %v2363 = vunpack.c.l.b16 %v779
  %v2364 = vunpack.c.l.b16 %v780
  %v2365 = vunpack.c.l.b16 %v781
  %v2366 = vunpack.c.l.b16 %v782
  %v2367 = vunpack.c.l.b16 %v783
  %v2368 = vunpack.c.l.b16 %v784
  %v2369 = vunpack.c.l.b16 %v785
  %v2370 = vunpack.c.l.b16 %v786
  %v2371 = vunpack.c.l.b16 %v787
  %v2372 = vunpack.c.l.b16 %v788
  %v2373 = vunpack.c.l.b16 %v789
  %v2374 = vunpack.c.l.b16 %v790
  %v2375 = vunpack.c.l.b16 %v791
  %v2376 = vunpack.c.l.b16 %v792
  %v2377 = vunpack.c.l.b16 %v793
  %v2378 = vunpack.c.l.b16 %v794
  %v2379 = vunpack.c.l.b16 %v795
  %v2380 = vunpack.c.l.b16 %v796
  %v2381 = vunpack.c.l.b16 %v797
  %v2382 = vunpack.c.l.b16 %v798
  %v2383 = vpack.c.b16 %v1600, %v1599
  %v2384 = vpack.c.b16 %v1602, %v1601
  %v2385 = vpack.c.b16 %v1604, %v1603
  %v2386 = vpack.c.b16 %v1606, %v1605
  %v2387 = vpack.c.b16 %v1608, %v1607
  %v2388 = vpack.c.b16 %v1610, %v1609
  %v2389 = vpack.c.b16 %v1612, %v1611
  %v2390 = vpack.c.b16 %v1614, %v1613
  %v2391 = vpack.c.b16 %v1616, %v1615
  %v2392 = vpack.c.b16 %v1618, %v1617
  %v2393 = vpack.c.b16 %v1620, %v1619
  %v2394 = vpack.c.b16 %v1622, %v1621
  %v2395 = vpack.c.b16 %v1624, %v1623
  %v2396 = vpack.c.b16 %v1626, %v1625
  %v2397 = vpack.c.b16 %v1628, %v1627
  %v2398 = vpack.c.b16 %v1630, %v1629
  %v2399 = vpack.c.b16 %v1632, %v1631
  %v2400 = vpack.c.b16 %v1634, %v1633
  %v2401 = vpack.c.b16 %v1636, %v1635
  %v2402 = vpack.c.b16 %v1638, %v1637
  %v2403 = vpack.c.b16 %v1640, %v1639
  %v2404 = vpack.c.b16 %v1642, %v1641
  %v2405 = vpack.c.b16 %v1644, %v1643
  %v2406 = vpack.c.b16 %v1646, %v1645
  %v2407 = vpack.c.b16 %v1648, %v1647
  %v2408 = vpack.c.b16 %v1650, %v1649
  %v2409 = vpack.c.b16 %v1652, %v1651
  %v2410 = vpack.c.b16 %v1654, %v1653
  %v2411 = vpack.c.b16 %v1656, %v1655
  %v2412 = vpack.c.b16 %v1658, %v1657
  %v2413 = vpack.c.b16 %v1660, %v1659
  %v2414 = vpack.c.b16 %v1662, %v1661
  %v2415 = vpack.c.b16 %v1664, %v1663
  %v2416 = vpack.c.b16 %v1666, %v1665
  %v2417 = vpack.c.b16 %v1668, %v1667
  %v2418 = vpack.c.b16 %v1670, %v1669
  %v2419 = vpack.c.b16 %v1672, %v1671
  %v2420 = vpack.c.b16 %v1674, %v1673
  %v2421 = vpack.c.b16 %v1676, %v1675
  %v2422 = vpack.c.b16 %v1678, %v1677
  %v2423 = vpack.c.b16 %v1680, %v1679
  %v2424 = vpack.c.b16 %v1682, %v1681
  %v2425 = vpack.c.b16 %v1684, %v1683
  %v2426 = vpack.c.b16 %v1686, %v1685
  %v2427 = vpack.c.b16 %v1688, %v1687
  %v2428 = vpack.c.b16 %v1690, %v1689
  %v2429 = vpack.c.b16 %v1692, %v1691
  %v2430 = vpack.c.b16 %v1694, %v1693
  %v2431 = vpack.c.b16 %v1696, %v1695
  %v2432 = vpack.c.b16 %v1698, %v1697
  %v2433 = vpack.c.b16 %v1700, %v1699
  %v2434 = vpack.c.b16 %v1702, %v1701
  %v2435 = vpack.c.b16 %v1704, %v1703
  %v2436 = vpack.c.b16 %v1706, %v1705
  %v2437 = vpack.c.b16 %v1708, %v1707
  %v2438 = vpack.c.b16 %v1710, %v1709
  %v2439 = vpack.c.b16 %v1712, %v1711
  %v2440 = vpack.c.b16 %v1714, %v1713
  %v2441 = vpack.c.b16 %v1716, %v1715
  %v2442 = vpack.c.b16 %v1718, %v1717
  %v2443 = vpack.c.b16 %v1720, %v1719
  %v2444 = vpack.c.b16 %v1722, %v1721
  %v2445 = vpack.c.b16 %v1724, %v1723
  %v2446 = vpack.c.b16 %v1726, %v1725
  %v2447 = vpack.c.b16 %v1728, %v1727
  %v2448 = vpack.c.b16 %v1730, %v1729
  %v2449 = vpack.c.b16 %v1732, %v1731
  %v2450 = vpack.c.b16 %v1734, %v1733
  %v2451 = vpack.c.b16 %v1736, %v1735
  %v2452 = vpack.c.b16 %v1738, %v1737
  %v2453 = vpack.c.b16 %v1740, %v1739
  %v2454 = vpack.c.b16 %v1742, %v1741
  %v2455 = vpack.c.b16 %v1744, %v1743
  %v2456 = vpack.c.b16 %v1746, %v1745
  %v2457 = vpack.c.b16 %v1748, %v1747
  %v2458 = vpack.c.b16 %v1750, %v1749
  %v2459 = vpack.c.b16 %v1752, %v1751
  %v2460 = vpack.c.b16 %v1754, %v1753
  %v2461 = vpack.c.b16 %v1756, %v1755
  %v2462 = vpack.c.b16 %v1758, %v1757
  %v2463 = vpack.c.b16 %v1760, %v1759
  %v2464 = vpack.c.b16 %v1762, %v1761
  %v2465 = vpack.c.b16 %v1764, %v1763
  %v2466 = vpack.c.b16 %v1766, %v1765
  %v2467 = vpack.c.b16 %v1768, %v1767
  %v2468 = vpack.c.b16 %v1770, %v1769
  %v2469 = vpack.c.b16 %v1772, %v1771
  %v2470 = vpack.c.b16 %v1774, %v1773
  %v2471 = vpack.c.b16 %v1776, %v1775
  %v2472 = vpack.c.b16 %v1778, %v1777
  %v2473 = vpack.c.b16 %v1780, %v1779
  %v2474 = vpack.c.b16 %v1782, %v1781
  %v2475 = vpack.c.b16 %v1784, %v1783
  %v2476 = vpack.c.b16 %v1786, %v1785
  %v2477 = vpack.c.b16 %v1788, %v1787
  %v2478 = vpack.c.b16 %v1790, %v1789
  %v2479 = vpack.c.b16 %v1792, %v1791
  %v2480 = vpack.c.b16 %v1794, %v1793
  %v2481 = vpack.c.b16 %v1796, %v1795
  %v2482 = vpack.c.b16 %v1798, %v1797
  %v2483 = vpack.c.b16 %v1800, %v1799
  %v2484 = vpack.c.b16 %v1802, %v1801
  %v2485 = vpack.c.b16 %v1804, %v1803
  %v2486 = vpack.c.b16 %v1806, %v1805
  %v2487 = vpack.c.b16 %v1808, %v1807
  %v2488 = vpack.c.b16 %v1810, %v1809
  %v2489 = vpack.c.b16 %v1812, %v1811
  %v2490 = vpack.c.b16 %v1814, %v1813
  %v2491 = vpack.c.b16 %v1816, %v1815
  %v2492 = vpack.c.b16 %v1818, %v1817
  %v2493 = vpack.c.b16 %v1820, %v1819
  %v2494 = vpack.c.b16 %v1822, %v1821
  %v2495 = vpack.c.b16 %v1824, %v1823
  %v2496 = vpack.c.b16 %v1826, %v1825
  %v2497 = vpack.c.b16 %v1828, %v1827
  %v2498 = vpack.c.b16 %v1830, %v1829
  %v2499 = vpack.c.b16 %v1832, %v1831
  %v2500 = vpack.c.b16 %v1834, %v1833
  %v2501 = vpack.c.b16 %v1836, %v1835
  %v2502 = vpack.c.b16 %v1838, %v1837
  %v2503 = vpack.c.b16 %v1840, %v1839
  %v2504 = vpack.c.b16 %v1842, %v1841
  %v2505 = vpack.c.b16 %v1844, %v1843
  %v2506 = vpack.c.b16 %v1846, %v1845
  %v2507 = vpack.c.b16 %v1848, %v1847
  %v2508 = vpack.c.b16 %v1850, %v1849
  %v2509 = vpack.c.b16 %v1852, %v1851
  %v2510 = vpack.c.b16 %v1854, %v1853
  %v2511 = vpack.c.b16 %v1856, %v1855
  %v2512 = vpack.c.b16 %v1858, %v1857
  %v2513 = vpack.c.b16 %v1860, %v1859
  %v2514 = vpack.c.b16 %v1862, %v1861
  %v2515 = vpack.c.b16 %v1864, %v1863
  %v2516 = vpack.c.b16 %v1866, %v1865
  %v2517 = vpack.c.b16 %v1868, %v1867
  %v2518 = vpack.c.b16 %v1870, %v1869
  %v2519 = vpack.c.b16 %v1872, %v1871
  %v2520 = vpack.c.b16 %v1874, %v1873
  %v2521 = vpack.c.b16 %v1876, %v1875
  %v2522 = vpack.c.b16 %v1878, %v1877
  %v2523 = vpack.c.b16 %v1880, %v1879
  %v2524 = vpack.c.b16 %v1882, %v1881
  %v2525 = vpack.c.b16 %v1884, %v1883
  %v2526 = vpack.c.b16 %v1886, %v1885
  %v2527 = vpack.c.b16 %v1888, %v1887
  %v2528 = vpack.c.b16 %v1890, %v1889
  %v2529 = vpack.c.b16 %v1892, %v1891
  %v2530 = vpack.c.b16 %v1894, %v1893
  %v2531 = vpack.c.b16 %v1896, %v1895
  %v2532 = vpack.c.b16 %v1898, %v1897
  %v2533 = vpack.c.b16 %v1900, %v1899
  %v2534 = vpack.c.b16 %v1902, %v1901
  %v2535 = vpack.c.b16 %v1904, %v1903
  %v2536 = vpack.c.b16 %v1906, %v1905
  %v2537 = vpack.c.b16 %v1908, %v1907
  %v2538 = vpack.c.b16 %v1910, %v1909
  %v2539 = vpack.c.b16 %v1912, %v1911
  %v2540 = vpack.c.b16 %v1914, %v1913
  %v2541 = vpack.c.b16 %v1916, %v1915
  %v2542 = vpack.c.b16 %v1918, %v1917
  %v2543 = vpack.c.b16 %v1920, %v1919
  %v2544 = vpack.c.b16 %v1922, %v1921
  %v2545 = vpack.c.b16 %v1924, %v1923
  %v2546 = vpack.c.b16 %v1926, %v1925
  %v2547 = vpack.c.b16 %v1928, %v1927
  %v2548 = vpack.c.b16 %v1930, %v1929
  %v2549 = vpack.c.b16 %v1932, %v1931
  %v2550 = vpack.c.b16 %v1934, %v1933
  %v2551 = vpack.c.b16 %v1936, %v1935
  %v2552 = vpack.c.b16 %v1938, %v1937
  %v2553 = vpack.c.b16 %v1940, %v1939
  %v2554 = vpack.c.b16 %v1942, %v1941
  %v2555 = vpack.c.b16 %v1944, %v1943
  %v2556 = vpack.c.b16 %v1946, %v1945
  %v2557 = vpack.c.b16 %v1948, %v1947
  %v2558 = vpack.c.b16 %v1950, %v1949
  %v2559 = vpack.c.b16 %v1952, %v1951
  %v2560 = vpack.c.b16 %v1954, %v1953
  %v2561 = vpack.c.b16 %v1956, %v1955
  %v2562 = vpack.c.b16 %v1958, %v1957
  %v2563 = vpack.c.b16 %v1960, %v1959
  %v2564 = vpack.c.b16 %v1962, %v1961
  %v2565 = vpack.c.b16 %v1964, %v1963
  %v2566 = vpack.c.b16 %v1966, %v1965
  %v2567 = vpack.c.b16 %v1968, %v1967
  %v2568 = vpack.c.b16 %v1970, %v1969
  %v2569 = vpack.c.b16 %v1972, %v1971
  %v2570 = vpack.c.b16 %v1974, %v1973
  %v2571 = vpack.c.b16 %v1976, %v1975
  %v2572 = vpack.c.b16 %v1978, %v1977
  %v2573 = vpack.c.b16 %v1980, %v1979
  %v2574 = vpack.c.b16 %v1982, %v1981
  %v2575 = vpack.c.b16 %v1984, %v1983
  %v2576 = vpack.c.b16 %v1986, %v1985
  %v2577 = vpack.c.b16 %v1988, %v1987
  %v2578 = vpack.c.b16 %v1990, %v1989
  %v2579 = vpack.c.b16 %v1992, %v1991
  %v2580 = vpack.c.b16 %v1994, %v1993
  %v2581 = vpack.c.b16 %v1996, %v1995
  %v2582 = vpack.c.b16 %v1998, %v1997
  %v2583 = vpack.c.b16 %v2000, %v1999
  %v2584 = vpack.c.b16 %v2002, %v2001
  %v2585 = vpack.c.b16 %v2004, %v2003
  %v2586 = vpack.c.b16 %v2006, %v2005
  %v2587 = vpack.c.b16 %v2008, %v2007
  %v2588 = vpack.c.b16 %v2010, %v2009
  %v2589 = vpack.c.b16 %v2012, %v2011
  %v2590 = vpack.c.b16 %v2014, %v2013
  %v2591 = vpack.c.b16 %v2016, %v2015
  %v2592 = vpack.c.b16 %v2018, %v2017
  %v2593 = vpack.c.b16 %v2020, %v2019
  %v2594 = vpack.c.b16 %v2022, %v2021
  %v2595 = vpack.c.b16 %v2024, %v2023
  %v2596 = vpack.c.b16 %v2026, %v2025
  %v2597 = vpack.c.b16 %v2028, %v2027
  %v2598 = vpack.c.b16 %v2030, %v2029
  %v2599 = vpack.c.b16 %v2032, %v2031
  %v2600 = vpack.c.b16 %v2034, %v2033
  %v2601 = vpack.c.b16 %v2036, %v2035
  %v2602 = vpack.c.b16 %v2038, %v2037
  %v2603 = vpack.c.b16 %v2040, %v2039
  %v2604 = vpack.c.b16 %v2042, %v2041
  %v2605 = vpack.c.b16 %v2044, %v2043
  %v2606 = vpack.c.b16 %v2046, %v2045
  %v2607 = vpack.c.b16 %v2048, %v2047
  %v2608 = vpack.c.b16 %v2050, %v2049
  %v2609 = vpack.c.b16 %v2052, %v2051
  %v2610 = vpack.c.b16 %v2054, %v2053
  %v2611 = vpack.c.b16 %v2056, %v2055
  %v2612 = vpack.c.b16 %v2058, %v2057
  %v2613 = vpack.c.b16 %v2060, %v2059
  %v2614 = vpack.c.b16 %v2062, %v2061
  %v2615 = vpack.c.b16 %v2064, %v2063
  %v2616 = vpack.c.b16 %v2066, %v2065
  %v2617 = vpack.c.b16 %v2068, %v2067
  %v2618 = vpack.c.b16 %v2070, %v2069
  %v2619 = vpack.c.b16 %v2072, %v2071
  %v2620 = vpack.c.b16 %v2074, %v2073
  %v2621 = vpack.c.b16 %v2076, %v2075
  %v2622 = vpack.c.b16 %v2078, %v2077
  %v2623 = vpack.c.b16 %v2080, %v2079
  %v2624 = vpack.c.b16 %v2082, %v2081
  %v2625 = vpack.c.b16 %v2084, %v2083
  %v2626 = vpack.c.b16 %v2086, %v2085
  %v2627 = vpack.c.b16 %v2088, %v2087
  %v2628 = vpack.c.b16 %v2090, %v2089
  %v2629 = vpack.c.b16 %v2092, %v2091
  %v2630 = vpack.c.b16 %v2094, %v2093
  %v2631 = vpack.c.b16 %v2096, %v2095
  %v2632 = vpack.c.b16 %v2098, %v2097
  %v2633 = vpack.c.b16 %v2100, %v2099
  %v2634 = vpack.c.b16 %v2102, %v2101
  %v2635 = vpack.c.b16 %v2104, %v2103
  %v2636 = vpack.c.b16 %v2106, %v2105
  %v2637 = vpack.c.b16 %v2108, %v2107
  %v2638 = vpack.c.b16 %v2110, %v2109
  %v2639 = vpack.c.b16 %v2112, %v2111
  %v2640 = vpack.c.b16 %v2114, %v2113
  %v2641 = vpack.c.b16 %v2116, %v2115
  %v2642 = vpack.c.b16 %v2118, %v2117
  %v2643 = vpack.c.b16 %v2120, %v2119
  %v2644 = vpack.c.b16 %v2122, %v2121
  %v2645 = vpack.c.b16 %v2124, %v2123
  %v2646 = vpack.c.b16 %v2126, %v2125
  %v2647 = vpack.c.b16 %v2128, %v2127
  %v2648 = vpack.c.b16 %v2130, %v2129
  %v2649 = vpack.c.b16 %v2132, %v2131
  %v2650 = vpack.c.b16 %v2134, %v2133
  %v2651 = vpack.c.b16 %v2136, %v2135
  %v2652 = vpack.c.b16 %v2138, %v2137
  %v2653 = vpack.c.b16 %v2140, %v2139
  %v2654 = vpack.c.b16 %v2142, %v2141
  %v2655 = vpack.c.b16 %v2144, %v2143
  %v2656 = vpack.c.b16 %v2146, %v2145
  %v2657 = vpack.c.b16 %v2148, %v2147
  %v2658 = vpack.c.b16 %v2150, %v2149
  %v2659 = vpack.c.b16 %v2152, %v2151
  %v2660 = vpack.c.b16 %v2154, %v2153
  %v2661 = vpack.c.b16 %v2156, %v2155
  %v2662 = vpack.c.b16 %v2158, %v2157
  %v2663 = vpack.c.b16 %v2160, %v2159
  %v2664 = vpack.c.b16 %v2162, %v2161
  %v2665 = vpack.c.b16 %v2164, %v2163
  %v2666 = vpack.c.b16 %v2166, %v2165
  %v2667 = vpack.c.b16 %v2168, %v2167
  %v2668 = vpack.c.b16 %v2170, %v2169
  %v2669 = vpack.c.b16 %v2172, %v2171
  %v2670 = vpack.c.b16 %v2174, %v2173
  %v2671 = vpack.c.b16 %v2176, %v2175
  %v2672 = vpack.c.b16 %v2178, %v2177
  %v2673 = vpack.c.b16 %v2180, %v2179
  %v2674 = vpack.c.b16 %v2182, %v2181
  %v2675 = vpack.c.b16 %v2184, %v2183
  %v2676 = vpack.c.b16 %v2186, %v2185
  %v2677 = vpack.c.b16 %v2188, %v2187
  %v2678 = vpack.c.b16 %v2190, %v2189
  %v2679 = vpack.c.b16 %v2192, %v2191
  %v2680 = vpack.c.b16 %v2194, %v2193
  %v2681 = vpack.c.b16 %v2196, %v2195
  %v2682 = vpack.c.b16 %v2198, %v2197
  %v2683 = vpack.c.b16 %v2200, %v2199
  %v2684 = vpack.c.b16 %v2202, %v2201
  %v2685 = vpack.c.b16 %v2204, %v2203
  %v2686 = vpack.c.b16 %v2206, %v2205
  %v2687 = vpack.c.b16 %v2208, %v2207
  %v2688 = vpack.c.b16 %v2210, %v2209
  %v2689 = vpack.c.b16 %v2212, %v2211
  %v2690 = vpack.c.b16 %v2214, %v2213
  %v2691 = vpack.c.b16 %v2216, %v2215
  %v2692 = vpack.c.b16 %v2218, %v2217
  %v2693 = vpack.c.b16 %v2220, %v2219
  %v2694 = vpack.c.b16 %v2222, %v2221
  %v2695 = vpack.c.b16 %v2224, %v2223
  %v2696 = vpack.c.b16 %v2226, %v2225
  %v2697 = vpack.c.b16 %v2228, %v2227
  %v2698 = vpack.c.b16 %v2230, %v2229
  %v2699 = vpack.c.b16 %v2232, %v2231
  %v2700 = vpack.c.b16 %v2234, %v2233
  %v2701 = vpack.c.b16 %v2236, %v2235
  %v2702 = vpack.c.b16 %v2238, %v2237
  %v2703 = vpack.c.b16 %v2240, %v2239
  %v2704 = vpack.c.b16 %v2242, %v2241
  %v2705 = vpack.c.b16 %v2244, %v2243
  %v2706 = vpack.c.b16 %v2246, %v2245
  %v2707 = vpack.c.b16 %v2248, %v2247
  %v2708 = vpack.c.b16 %v2250, %v2249
  %v2709 = vpack.c.b16 %v2252, %v2251
  %v2710 = vpack.c.b16 %v2254, %v2253
  %v2711 = vpack.c.b16 %v2256, %v2255
  %v2712 = vpack.c.b16 %v2258, %v2257
  %v2713 = vpack.c.b16 %v2260, %v2259
  %v2714 = vpack.c.b16 %v2262, %v2261
  %v2715 = vpack.c.b16 %v2264, %v2263
  %v2716 = vpack.c.b16 %v2266, %v2265
  %v2717 = vpack.c.b16 %v2268, %v2267
  %v2718 = vpack.c.b16 %v2270, %v2269
  %v2719 = vpack.c.b16 %v2272, %v2271
  %v2720 = vpack.c.b16 %v2274, %v2273
  %v2721 = vpack.c.b16 %v2276, %v2275
  %v2722 = vpack.c.b16 %v2278, %v2277
  %v2723 = vpack.c.b16 %v2280, %v2279
  %v2724 = vpack.c.b16 %v2282, %v2281
  %v2725 = vpack.c.b16 %v2284, %v2283
  %v2726 = vpack.c.b16 %v2286, %v2285
  %v2727 = vpack.c.b16 %v2288, %v2287
  %v2728 = vpack.c.b16 %v2290, %v2289
  %v2729 = vpack.c.b16 %v2292, %v2291
  %v2730 = vpack.c.b16 %v2294, %v2293
  %v2731 = vpack.c.b16 %v2296, %v2295
  %v2732 = vpack.c.b16 %v2298, %v2297
  %v2733 = vpack.c.b16 %v2300, %v2299
  %v2734 = vpack.c.b16 %v2302, %v2301
  %v2735 = vpack.c.b16 %v2304, %v2303
  %v2736 = vpack.c.b16 %v2306, %v2305
  %v2737 = vpack.c.b16 %v2308, %v2307
  %v2738 = vpack.c.b16 %v2310, %v2309
  %v2739 = vpack.c.b16 %v2312, %v2311
  %v2740 = vpack.c.b16 %v2314, %v2313
  %v2741 = vpack.c.b16 %v2316, %v2315
  %v2742 = vpack.c.b16 %v2318, %v2317
  %v2743 = vpack.c.b16 %v2320, %v2319
  %v2744 = vpack.c.b16 %v2322, %v2321
  %v2745 = vpack.c.b16 %v2324, %v2323
  %v2746 = vpack.c.b16 %v2326, %v2325
  %v2747 = vpack.c.b16 %v2328, %v2327
  %v2748 = vpack.c.b16 %v2330, %v2329
  %v2749 = vpack.c.b16 %v2332, %v2331
  %v2750 = vpack.c.b16 %v2334, %v2333
  %v2751 = vpack.c.b16 %v2336, %v2335
  %v2752 = vpack.c.b16 %v2338, %v2337
  %v2753 = vpack.c.b16 %v2340, %v2339
  %v2754 = vpack.c.b16 %v2342, %v2341
  %v2755 = vpack.c.b16 %v2344, %v2343
  %v2756 = vpack.c.b16 %v2346, %v2345
  %v2757 = vpack.c.b16 %v2348, %v2347
  %v2758 = vpack.c.b16 %v2350, %v2349
  %v2759 = vpack.c.b16 %v2352, %v2351
  %v2760 = vpack.c.b16 %v2354, %v2353
  %v2761 = vpack.c.b16 %v2356, %v2355
  %v2762 = vpack.c.b16 %v2358, %v2357
  %v2763 = vpack.c.b16 %v2360, %v2359
  %v2764 = vpack.c.b16 %v2362, %v2361
  %v2765 = vpack.c.b16 %v2364, %v2363
  %v2766 = vpack.c.b16 %v2366, %v2365
  %v2767 = vpack.c.b16 %v2368, %v2367
  %v2768 = vpack.c.b16 %v2370, %v2369
  %v2769 = vpack.c.b16 %v2372, %v2371
  %v2770 = vpack.c.b16 %v2374, %v2373
  %v2771 = vpack.c.b16 %v2376, %v2375
  %v2772 = vpack.c.b16 %v2378, %v2377
  %v2773 = vpack.c.b16 %v2380, %v2379
  %v2774 = vpack.c.b16 %v2382, %v2381
  %v3183 = vunpack.c.l.b16 %v799
  %v3184 = vunpack.c.l.b16 %v800
  %v3185 = vunpack.c.l.b16 %v801
  %v3186 = vunpack.c.l.b16 %v802
  %v3187 = vunpack.c.l.b16 %v803
  %v3188 = vunpack.c.l.b16 %v804
  %v3189 = vunpack.c.l.b16 %v805
  %v3190 = vunpack.c.l.b16 %v806
  %v3191 = vunpack.c.l.b16 %v807
  %v3192 = vunpack.c.l.b16 %v808
  %v3193 = vunpack.c.l.b16 %v809
  %v3194 = vunpack.c.l.b16 %v810
  %v3195 = vunpack.c.l.b16 %v811
  %v3196 = vunpack.c.l.b16 %v812
  %v3197 = vunpack.c.l.b16 %v813
  %v3198 = vunpack.c.l.b16 %v814
  %v3199 = vpack.c.b16 %v3184, %v3183
  %v3200 = vpack.c.b16 %v3186, %v3185
  %v3201 = vpack.c.b16 %v3188, %v3187
  %v3202 = vpack.c.b16 %v3190, %v3189
  %v3203 = vpack.c.b16 %v3192, %v3191
  %v3204 = vpack.c.b16 %v3194, %v3193
  %v3205 = vpack.c.b16 %v3196, %v3195
  %v3206 = vpack.c.b16 %v3198, %v3197
  %3215 = vmatprep.subr.bf16.mxu0 0
  %3216 = vmatpush1.bf16.msra.mxu0 %v3199
  %3217 = vmatprep.subr.bf16.mxu0 0
  %3218 = vmatpush1.bf16.msra.mxu0 %v3200
  %3219 = vmatprep.subr.bf16.mxu0 0
  %3220 = vmatpush1.bf16.msra.mxu0 %v3201
  %3221 = vmatprep.subr.bf16.mxu0 0
  %3222 = vmatpush1.bf16.msra.mxu0 %v3202
  %3223 = vmatprep.subr.bf16.mxu0 0
  %3224 = vmatpush1.bf16.msra.mxu0 %v3203
  %3225 = vmatprep.subr.bf16.mxu0 0
  %3226 = vmatpush1.bf16.msra.mxu0 %v3204
  %3227 = vmatprep.subr.bf16.mxu0 0
  %3228 = vmatpush1.bf16.msra.mxu0 %v3205
  %3229 = vmatprep.subr.bf16.mxu0 0
  %3230 = vmatpush1.bf16.msra.mxu0 %v3206
  %3231 = vmatprep.subr.bf16.mxu0 0
  %3232 = vmatpush1.bf16.msra.mxu0 0
  %3233 = vmatprep.subr.bf16.mxu0 0
  %3234 = vmatpush1.bf16.msra.mxu0 0
  %3235 = vmatprep.subr.bf16.mxu0 0
  %3236 = vmatpush1.bf16.msra.mxu0 0
  %3237 = vmatprep.subr.bf16.mxu0 0
  %3238 = vmatpush1.bf16.msra.mxu0 0
  %3239 = vmatprep.subr.bf16.mxu0 0
  %3240 = vmatpush1.bf16.msra.mxu0 0
  %3241 = vmatprep.subr.bf16.mxu0 0
  %3242 = vmatpush1.bf16.msra.mxu0 0
  %3243 = vmatprep.subr.bf16.mxu0 0
  %3244 = vmatpush1.bf16.msra.mxu0 0
  %3245 = vmatprep.subr.bf16.mxu0 0
  %3246 = vmatpush1.bf16.msra.mxu0 0
  %3247 = vmatprep.mubr.bf16.mxu0 0
  %3248 = vmatmul.mubr.bf16.gmra.mrb[0].mxu0 %v2383
  %v3249 = vpop.f32.mrb[0].mxu0
  %v3250 = vadd.f32 0.0, %v3249
  %v3251 = vpop.f32.mrb[0].mxu0
  %v3252 = vpop.f32.mrb[0].mxu0
  %v3253 = vadd.f32 0.0, %v3252
  %v3254 = vpop.f32.mrb[0].mxu0
  %3255 = vmatprep.mubr.bf16.mxu0 0
  %3256 = vmatmul.mubr.bf16.gmra.mrb[0].mxu0 %v2384
  %v3257 = vpop.f32.mrb[0].mxu0
  %v3258 = vadd.f32 0.0, %v3257
  %v3259 = vpop.f32.mrb[0].mxu0
  %v3260 = vpop.f32.mrb[0].mxu0
  %v3261 = vadd.f32 0.0, %v3260
  %v3262 = vpop.f32.mrb[0].mxu0
  %3263 = vmatprep.mubr.bf16.mxu0 0
  %3264 = vmatmul.mubr.bf16.gmra.mrb[0].mxu0 %v2385
  %v3265 = vpop.f32.mrb[0].mxu0
  %v3266 = vadd.f32 0.0, %v3265
  %v3267 = vpop.f32.mrb[0].mxu0
  %v3268 = vpop.f32.mrb[0].mxu0
  %v3269 = vadd.f32 0.0, %v3268
  %v3270 = vpop.f32.mrb[0].mxu0
  %3271 = vmatprep.mubr.bf16.mxu0 0
  %3272 = vmatmul.mubr.bf16.gmra.mrb[0].mxu0 %v2386
  %v3273 = vpop.f32.mrb[0].mxu0
  %v3274 = vadd.f32 0.0, %v3273
  %v3275 = vpop.f32.mrb[0].mxu0
  %v3276 = vpop.f32.mrb[0].mxu0
  %v3277 = vadd.f32 0.0, %v3276
  %v3278 = vpop.f32.mrb[0].mxu0
  %3279 = vmatprep.mubr.bf16.mxu0 0
  %3280 = vmatmul.mubr.bf16.gmra.mrb[0].mxu0 %v2387
  %v3281 = vpop.f32.mrb[0].mxu0
  %v3282 = vadd.f32 0.0, %v3281
  %v3283 = vpop.f32.mrb[0].mxu0
  %v3284 = vpop.f32.mrb[0].mxu0
  %v3285 = vadd.f32 0.0, %v3284
  %v3286 = vpop.f32.mrb[0].mxu0
  %3287 = vmatprep.mubr.bf16.mxu0 0
  %3288 = vmatmul.mubr.bf16.gmra.mrb[0].mxu0 %v2388
  %v3289 = vpop.f32.mrb[0].mxu0
  %v3290 = vadd.f32 0.0, %v3289
  %v3291 = vpop.f32.mrb[0].mxu0
  %v3292 = vpop.f32.mrb[0].mxu0
  %v3293 = vadd.f32 0.0, %v3292
  %v3294 = vpop.f32.mrb[0].mxu0
  %3295 = vmatprep.mubr.bf16.mxu0 0
  %3296 = vmatmul.mubr.bf16.gmra.mrb[0].mxu0 %v2389
  %v3297 = vpop.f32.mrb[0].mxu0
  %v3298 = vadd.f32 0.0, %v3297
  %v3299 = vpop.f32.mrb[0].mxu0
  %v3300 = vpop.f32.mrb[0].mxu0
  %v3301 = vadd.f32 0.0, %v3300
  %v3302 = vpop.f32.mrb[0].mxu0
  %3303 = vmatprep.mubr.bf16.mxu0 0
  %3304 = vmatmul.mubr.bf16.gmra.mrb[0].mxu0 %v2390
  %v3305 = vpop.f32.mrb[0].mxu0
  %v3306 = vadd.f32 0.0, %v3305
  %v3307 = vpop.f32.mrb[0].mxu0
  %v3308 = vpop.f32.mrb[0].mxu0
  %v3309 = vadd.f32 0.0, %v3308
  %v3310 = vpop.f32.mrb[0].mxu0
  %3311 = vmatprep.mubr.bf16.mxu0 0
  %3312 = vmatmul.mubr.bf16.gmra.mrb[0].mxu0 %v2391
  %v3313 = vpop.f32.mrb[0].mxu0
  %v3314 = vadd.f32 0.0, %v3313
  %v3315 = vpop.f32.mrb[0].mxu0
  %v3316 = vpop.f32.mrb[0].mxu0
  %v3317 = vadd.f32 0.0, %v3316
  %v3318 = vpop.f32.mrb[0].mxu0
  %3319 = vmatprep.mubr.bf16.mxu0 0
  %3320 = vmatmul.mubr.bf16.gmra.mrb[0].mxu0 %v2392
  %v3321 = vpop.f32.mrb[0].mxu0
  %v3322 = vadd.f32 0.0, %v3321
  %v3323 = vpop.f32.mrb[0].mxu0
  %v3324 = vpop.f32.mrb[0].mxu0
  %v3325 = vadd.f32 0.0, %v3324
  %v3326 = vpop.f32.mrb[0].mxu0
  %3327 = vmatprep.mubr.bf16.mxu0 0
  %3328 = vmatmul.mubr.bf16.gmra.mrb[0].mxu0 %v2393
  %v3329 = vpop.f32.mrb[0].mxu0
  %v3330 = vadd.f32 0.0, %v3329
  %v3331 = vpop.f32.mrb[0].mxu0
  %v3332 = vpop.f32.mrb[0].mxu0
  %v3333 = vadd.f32 0.0, %v3332
  %v3334 = vpop.f32.mrb[0].mxu0
  %3335 = vmatprep.mubr.bf16.mxu0 0
  %3336 = vmatmul.mubr.bf16.gmra.mrb[0].mxu0 %v2394
  %v3337 = vpop.f32.mrb[0].mxu0
  %v3338 = vadd.f32 0.0, %v3337
  %v3339 = vpop.f32.mrb[0].mxu0
  %v3340 = vpop.f32.mrb[0].mxu0
  %v3341 = vadd.f32 0.0, %v3340
  %v3342 = vpop.f32.mrb[0].mxu0
  %3343 = vmatprep.mubr.bf16.mxu0 0
  %3344 = vmatmul.mubr.bf16.gmra.mrb[0].mxu0 %v2395
  %v3345 = vpop.f32.mrb[0].mxu0
  %v3346 = vadd.f32 0.0, %v3345
  %v3347 = vpop.f32.mrb[0].mxu0
  %v3348 = vpop.f32.mrb[0].mxu0
  %v3349 = vadd.f32 0.0, %v3348
  %v3350 = vpop.f32.mrb[0].mxu0
  %3351 = vmatprep.mubr.bf16.mxu0 0
  %3352 = vmatmul.mubr.bf16.gmra.mrb[0].mxu0 %v2396
  %v3353 = vpop.f32.mrb[0].mxu0
  %v3354 = vadd.f32 0.0, %v3353
  %v3355 = vpop.f32.mrb[0].mxu0
  %v3356 = vpop.f32.mrb[0].mxu0
  %v3357 = vadd.f32 0.0, %v3356
  %v3358 = vpop.f32.mrb[0].mxu0
  %3359 = vmatprep.mubr.bf16.mxu0 0
  %3360 = vmatmul.mubr.bf16.gmra.mrb[0].mxu0 %v2397
  %v3361 = vpop.f32.mrb[0].mxu0
  %v3362 = vadd.f32 0.0, %v3361
  %v3363 = vpop.f32.mrb[0].mxu0
  %v3364 = vpop.f32.mrb[0].mxu0
  %v3365 = vadd.f32 0.0, %v3364
  %v3366 = vpop.f32.mrb[0].mxu0
  %3367 = vmatprep.mubr.bf16.mxu0 0
  %3368 = vmatmul.mubr.bf16.gmra.mrb[0].mxu0 %v2398
  %v3369 = vpop.f32.mrb[0].mxu0
  %v3370 = vadd.f32 0.0, %v3369
  %v3371 = vpop.f32.mrb[0].mxu0
  %v3372 = vpop.f32.mrb[0].mxu0
  %v3373 = vadd.f32 0.0, %v3372
  %v3374 = vpop.f32.mrb[0].mxu0
  %3375 = vmatprep.mubr.bf16.mxu0 0
  %3376 = vmatmul.mubr.bf16.gmra.mrb[0].mxu0 %v2399
  %v3377 = vpop.f32.mrb[0].mxu0
  %v3378 = vadd.f32 0.0, %v3377
  %v3379 = vpop.f32.mrb[0].mxu0
  %v3380 = vpop.f32.mrb[0].mxu0
  %v3381 = vadd.f32 0.0, %v3380
  %v3382 = vpop.f32.mrb[0].mxu0
  %3383 = vmatprep.mubr.bf16.mxu0 0
  %3384 = vmatmul.mubr.bf16.gmra.mrb[0].mxu0 %v2400
  %v3385 = vpop.f32.mrb[0].mxu0
  %v3386 = vadd.f32 0.0, %v3385
  %v3387 = vpop.f32.mrb[0].mxu0
  %v3388 = vpop.f32.mrb[0].mxu0
  %v3389 = vadd.f32 0.0, %v3388
  %v3390 = vpop.f32.mrb[0].mxu0
  %3391 = vmatprep.mubr.bf16.mxu0 0
  %3392 = vmatmul.mubr.bf16.gmra.mrb[0].mxu0 %v2401
  %v3393 = vpop.f32.mrb[0].mxu0
  %v3394 = vadd.f32 0.0, %v3393
  %v3395 = vpop.f32.mrb[0].mxu0
  %v3396 = vpop.f32.mrb[0].mxu0
  %v3397 = vadd.f32 0.0, %v3396
  %v3398 = vpop.f32.mrb[0].mxu0
  %3399 = vmatprep.mubr.bf16.mxu0 0
  %3400 = vmatmul.mubr.bf16.gmra.mrb[0].mxu0 %v2402
  %v3401 = vpop.f32.mrb[0].mxu0
  %v3402 = vadd.f32 0.0, %v3401
  %v3403 = vpop.f32.mrb[0].mxu0
  %v3404 = vpop.f32.mrb[0].mxu0
  %v3405 = vadd.f32 0.0, %v3404
  %v3406 = vpop.f32.mrb[0].mxu0
  %3407 = vmatprep.mubr.bf16.mxu0 0
  %3408 = vmatmul.mubr.bf16.gmra.mrb[0].mxu0 %v2403
  %v3409 = vpop.f32.mrb[0].mxu0
  %v3410 = vadd.f32 0.0, %v3409
  %v3411 = vpop.f32.mrb[0].mxu0
  %v3412 = vpop.f32.mrb[0].mxu0
  %v3413 = vadd.f32 0.0, %v3412
  %v3414 = vpop.f32.mrb[0].mxu0
  %3415 = vmatprep.mubr.bf16.mxu0 0
  %3416 = vmatmul.mubr.bf16.gmra.mrb[0].mxu0 %v2404
  %v3417 = vpop.f32.mrb[0].mxu0
  %v3418 = vadd.f32 0.0, %v3417
  %v3419 = vpop.f32.mrb[0].mxu0
  %v3420 = vpop.f32.mrb[0].mxu0
  %v3421 = vadd.f32 0.0, %v3420
  %v3422 = vpop.f32.mrb[0].mxu0
  %3423 = vmatprep.mubr.bf16.mxu0 0
  %3424 = vmatmul.mubr.bf16.gmra.mrb[0].mxu0 %v2405
  %v3425 = vpop.f32.mrb[0].mxu0
  %v3426 = vadd.f32 0.0, %v3425
  %v3427 = vpop.f32.mrb[0].mxu0
  %v3428 = vpop.f32.mrb[0].mxu0
  %v3429 = vadd.f32 0.0, %v3428
  %v3430 = vpop.f32.mrb[0].mxu0
  %3431 = vmatprep.mubr.bf16.mxu0 0
  %3432 = vmatmul.mubr.bf16.gmra.mrb[0].mxu0 %v2406
  %v3433 = vpop.f32.mrb[0].mxu0
  %v3434 = vadd.f32 0.0, %v3433
  %v3435 = vpop.f32.mrb[0].mxu0
  %v3436 = vpop.f32.mrb[0].mxu0
  %v3437 = vadd.f32 0.0, %v3436
  %v3438 = vpop.f32.mrb[0].mxu0
  %3439 = vmatprep.mubr.bf16.mxu0 0
  %3440 = vmatmul.mubr.bf16.gmra.mrb[0].mxu0 %v2407
  %v3441 = vpop.f32.mrb[0].mxu0
  %v3442 = vadd.f32 0.0, %v3441
  %v3443 = vpop.f32.mrb[0].mxu0
  %v3444 = vpop.f32.mrb[0].mxu0
  %v3445 = vadd.f32 0.0, %v3444
  %v3446 = vpop.f32.mrb[0].mxu0
  %3447 = vmatprep.mubr.bf16.mxu0 0
  %3448 = vmatmul.mubr.bf16.gmra.mrb[0].mxu0 %v2408
  %v3449 = vpop.f32.mrb[0].mxu0
  %v3450 = vadd.f32 0.0, %v3449
  %v3451 = vpop.f32.mrb[0].mxu0
  %v3452 = vpop.f32.mrb[0].mxu0
  %v3453 = vadd.f32 0.0, %v3452
  %v3454 = vpop.f32.mrb[0].mxu0
  %3455 = vmatprep.mubr.bf16.mxu0 0
  %3456 = vmatmul.mubr.bf16.gmra.mrb[0].mxu0 %v2409
  %v3457 = vpop.f32.mrb[0].mxu0
  %v3458 = vadd.f32 0.0, %v3457
  %v3459 = vpop.f32.mrb[0].mxu0
  %v3460 = vpop.f32.mrb[0].mxu0
  %v3461 = vadd.f32 0.0, %v3460
  %v3462 = vpop.f32.mrb[0].mxu0
  %3463 = vmatprep.mubr.bf16.mxu0 0
  %3464 = vmatmul.mubr.bf16.gmra.mrb[0].mxu0 %v2410
  %v3465 = vpop.f32.mrb[0].mxu0
  %v3466 = vadd.f32 0.0, %v3465
  %v3467 = vpop.f32.mrb[0].mxu0
  %v3468 = vpop.f32.mrb[0].mxu0
  %v3469 = vadd.f32 0.0, %v3468
  %v3470 = vpop.f32.mrb[0].mxu0
  %3471 = vmatprep.mubr.bf16.mxu0 0
  %3472 = vmatmul.mubr.bf16.gmra.mrb[0].mxu0 %v2411
  %v3473 = vpop.f32.mrb[0].mxu0
  %v3474 = vadd.f32 0.0, %v3473
  %v3475 = vpop.f32.mrb[0].mxu0
  %v3476 = vpop.f32.mrb[0].mxu0
  %v3477 = vadd.f32 0.0, %v3476
  %v3478 = vpop.f32.mrb[0].mxu0
  %3479 = vmatprep.mubr.bf16.mxu0 0
  %3480 = vmatmul.mubr.bf16.gmra.mrb[0].mxu0 %v2412
  %v3481 = vpop.f32.mrb[0].mxu0
  %v3482 = vadd.f32 0.0, %v3481
  %v3483 = vpop.f32.mrb[0].mxu0
  %v3484 = vpop.f32.mrb[0].mxu0
  %v3485 = vadd.f32 0.0, %v3484
  %v3486 = vpop.f32.mrb[0].mxu0
  %3487 = vmatprep.mubr.bf16.mxu0 0
  %3488 = vmatmul.mubr.bf16.gmra.mrb[0].mxu0 %v2413
  %v3489 = vpop.f32.mrb[0].mxu0
  %v3490 = vadd.f32 0.0, %v3489
  %v3491 = vpop.f32.mrb[0].mxu0
  %v3492 = vpop.f32.mrb[0].mxu0
  %v3493 = vadd.f32 0.0, %v3492
  %v3494 = vpop.f32.mrb[0].mxu0
  %3495 = vmatprep.mubr.bf16.mxu0 0
  %3496 = vmatmul.mubr.bf16.gmra.mrb[0].mxu0 %v2414
  %v3497 = vpop.f32.mrb[0].mxu0
  %v3498 = vadd.f32 0.0, %v3497
  %v3499 = vpop.f32.mrb[0].mxu0
  %v3500 = vpop.f32.mrb[0].mxu0
  %v3501 = vadd.f32 0.0, %v3500
  %v3502 = vpop.f32.mrb[0].mxu0
  %3503 = vmatprep.mubr.bf16.mxu0 0
  %3504 = vmatmul.mubr.bf16.gmra.mrb[0].mxu0 %v2415
  %v3505 = vpop.f32.mrb[0].mxu0
  %v3506 = vadd.f32 0.0, %v3505
  %v3507 = vpop.f32.mrb[0].mxu0
  %v3508 = vpop.f32.mrb[0].mxu0
  %v3509 = vadd.f32 0.0, %v3508
  %v3510 = vpop.f32.mrb[0].mxu0
  %3511 = vmatprep.mubr.bf16.mxu0 0
  %3512 = vmatmul.mubr.bf16.gmra.mrb[0].mxu0 %v2416
  %v3513 = vpop.f32.mrb[0].mxu0
  %v3514 = vadd.f32 0.0, %v3513
  %v3515 = vpop.f32.mrb[0].mxu0
  %v3516 = vpop.f32.mrb[0].mxu0
  %v3517 = vadd.f32 0.0, %v3516
  %v3518 = vpop.f32.mrb[0].mxu0
  %3519 = vmatprep.mubr.bf16.mxu0 0
  %3520 = vmatmul.mubr.bf16.gmra.mrb[0].mxu0 %v2417
  %v3521 = vpop.f32.mrb[0].mxu0
  %v3522 = vadd.f32 0.0, %v3521
  %v3523 = vpop.f32.mrb[0].mxu0
  %v3524 = vpop.f32.mrb[0].mxu0
  %v3525 = vadd.f32 0.0, %v3524
  %v3526 = vpop.f32.mrb[0].mxu0
  %3527 = vmatprep.mubr.bf16.mxu0 0
  %3528 = vmatmul.mubr.bf16.gmra.mrb[0].mxu0 %v2418
  %v3529 = vpop.f32.mrb[0].mxu0
  %v3530 = vadd.f32 0.0, %v3529
  %v3531 = vpop.f32.mrb[0].mxu0
  %v3532 = vpop.f32.mrb[0].mxu0
  %v3533 = vadd.f32 0.0, %v3532
  %v3534 = vpop.f32.mrb[0].mxu0
  %3535 = vmatprep.mubr.bf16.mxu0 0
  %3536 = vmatmul.mubr.bf16.gmra.mrb[0].mxu0 %v2419
  %v3537 = vpop.f32.mrb[0].mxu0
  %v3538 = vadd.f32 0.0, %v3537
  %v3539 = vpop.f32.mrb[0].mxu0
  %v3540 = vpop.f32.mrb[0].mxu0
  %v3541 = vadd.f32 0.0, %v3540
  %v3542 = vpop.f32.mrb[0].mxu0
  %3543 = vmatprep.mubr.bf16.mxu0 0
  %3544 = vmatmul.mubr.bf16.gmra.mrb[0].mxu0 %v2420
  %v3545 = vpop.f32.mrb[0].mxu0
  %v3546 = vadd.f32 0.0, %v3545
  %v3547 = vpop.f32.mrb[0].mxu0
  %v3548 = vpop.f32.mrb[0].mxu0
  %v3549 = vadd.f32 0.0, %v3548
  %v3550 = vpop.f32.mrb[0].mxu0
  %3551 = vmatprep.mubr.bf16.mxu0 0
  %3552 = vmatmul.mubr.bf16.gmra.mrb[0].mxu0 %v2421
  %v3553 = vpop.f32.mrb[0].mxu0
  %v3554 = vadd.f32 0.0, %v3553
  %v3555 = vpop.f32.mrb[0].mxu0
  %v3556 = vpop.f32.mrb[0].mxu0
  %v3557 = vadd.f32 0.0, %v3556
  %v3558 = vpop.f32.mrb[0].mxu0
  %3559 = vmatprep.mubr.bf16.mxu0 0
  %3560 = vmatmul.mubr.bf16.gmra.mrb[0].mxu0 %v2422
  %v3561 = vpop.f32.mrb[0].mxu0
  %v3562 = vadd.f32 0.0, %v3561
  %v3563 = vpop.f32.mrb[0].mxu0
  %v3564 = vpop.f32.mrb[0].mxu0
  %v3565 = vadd.f32 0.0, %v3564
  %v3566 = vpop.f32.mrb[0].mxu0
  %3567 = vmatprep.mubr.bf16.mxu0 0
  %3568 = vmatmul.mubr.bf16.gmra.mrb[0].mxu0 %v2423
  %v3569 = vpop.f32.mrb[0].mxu0
  %v3570 = vadd.f32 0.0, %v3569
  %v3571 = vpop.f32.mrb[0].mxu0
  %v3572 = vpop.f32.mrb[0].mxu0
  %v3573 = vadd.f32 0.0, %v3572
  %v3574 = vpop.f32.mrb[0].mxu0
  %3575 = vmatprep.mubr.bf16.mxu0 0
  %3576 = vmatmul.mubr.bf16.gmra.mrb[0].mxu0 %v2424
  %v3577 = vpop.f32.mrb[0].mxu0
  %v3578 = vadd.f32 0.0, %v3577
  %v3579 = vpop.f32.mrb[0].mxu0
  %v3580 = vpop.f32.mrb[0].mxu0
  %v3581 = vadd.f32 0.0, %v3580
  %v3582 = vpop.f32.mrb[0].mxu0
  %3583 = vmatprep.mubr.bf16.mxu0 0
  %3584 = vmatmul.mubr.bf16.gmra.mrb[0].mxu0 %v2425
  %v3585 = vpop.f32.mrb[0].mxu0
  %v3586 = vadd.f32 0.0, %v3585
  %v3587 = vpop.f32.mrb[0].mxu0
  %v3588 = vpop.f32.mrb[0].mxu0
  %v3589 = vadd.f32 0.0, %v3588
  %v3590 = vpop.f32.mrb[0].mxu0
  %3591 = vmatprep.mubr.bf16.mxu0 0
  %3592 = vmatmul.mubr.bf16.gmra.mrb[0].mxu0 %v2426
  %v3593 = vpop.f32.mrb[0].mxu0
  %v3594 = vadd.f32 0.0, %v3593
  %v3595 = vpop.f32.mrb[0].mxu0
  %v3596 = vpop.f32.mrb[0].mxu0
  %v3597 = vadd.f32 0.0, %v3596
  %v3598 = vpop.f32.mrb[0].mxu0
  %3599 = vmatprep.mubr.bf16.mxu0 0
  %3600 = vmatmul.mubr.bf16.gmra.mrb[0].mxu0 %v2427
  %v3601 = vpop.f32.mrb[0].mxu0
  %v3602 = vadd.f32 0.0, %v3601
  %v3603 = vpop.f32.mrb[0].mxu0
  %v3604 = vpop.f32.mrb[0].mxu0
  %v3605 = vadd.f32 0.0, %v3604
  %v3606 = vpop.f32.mrb[0].mxu0
  %3607 = vmatprep.mubr.bf16.mxu0 0
  %3608 = vmatmul.mubr.bf16.gmra.mrb[0].mxu0 %v2428
  %v3609 = vpop.f32.mrb[0].mxu0
  %v3610 = vadd.f32 0.0, %v3609
  %v3611 = vpop.f32.mrb[0].mxu0
  %v3612 = vpop.f32.mrb[0].mxu0
  %v3613 = vadd.f32 0.0, %v3612
  %v3614 = vpop.f32.mrb[0].mxu0
  %3615 = vmatprep.mubr.bf16.mxu0 0
  %3616 = vmatmul.mubr.bf16.gmra.mrb[0].mxu0 %v2429
  %v3617 = vpop.f32.mrb[0].mxu0
  %v3618 = vadd.f32 0.0, %v3617
  %v3619 = vpop.f32.mrb[0].mxu0
  %v3620 = vpop.f32.mrb[0].mxu0
  %v3621 = vadd.f32 0.0, %v3620
  %v3622 = vpop.f32.mrb[0].mxu0
  %3623 = vmatprep.mubr.bf16.mxu0 0
  %3624 = vmatmul.mubr.bf16.gmra.mrb[0].mxu0 %v2430
  %v3625 = vpop.f32.mrb[0].mxu0
  %v3626 = vadd.f32 0.0, %v3625
  %v3627 = vpop.f32.mrb[0].mxu0
  %v3628 = vpop.f32.mrb[0].mxu0
  %v3629 = vadd.f32 0.0, %v3628
  %v3630 = vpop.f32.mrb[0].mxu0
  %3631 = vmatprep.mubr.bf16.mxu0 0
  %3632 = vmatmul.mubr.bf16.gmra.mrb[0].mxu0 %v2431
  %v3633 = vpop.f32.mrb[0].mxu0
  %v3634 = vadd.f32 0.0, %v3633
  %v3635 = vpop.f32.mrb[0].mxu0
  %v3636 = vpop.f32.mrb[0].mxu0
  %v3637 = vadd.f32 0.0, %v3636
  %v3638 = vpop.f32.mrb[0].mxu0
  %3639 = vmatprep.mubr.bf16.mxu0 0
  %3640 = vmatmul.mubr.bf16.gmra.mrb[0].mxu0 %v2432
  %v3641 = vpop.f32.mrb[0].mxu0
  %v3642 = vadd.f32 0.0, %v3641
  %v3643 = vpop.f32.mrb[0].mxu0
  %v3644 = vpop.f32.mrb[0].mxu0
  %v3645 = vadd.f32 0.0, %v3644
  %v3646 = vpop.f32.mrb[0].mxu0
  %3647 = vmatprep.mubr.bf16.mxu0 0
  %3648 = vmatmul.mubr.bf16.gmra.mrb[0].mxu0 %v2433
  %v3649 = vpop.f32.mrb[0].mxu0
  %v3650 = vadd.f32 0.0, %v3649
  %v3651 = vpop.f32.mrb[0].mxu0
  %v3652 = vpop.f32.mrb[0].mxu0
  %v3653 = vadd.f32 0.0, %v3652
  %v3654 = vpop.f32.mrb[0].mxu0
  %3655 = vmatprep.mubr.bf16.mxu0 0
  %3656 = vmatmul.mubr.bf16.gmra.mrb[0].mxu0 %v2434
  %v3657 = vpop.f32.mrb[0].mxu0
  %v3658 = vadd.f32 0.0, %v3657
  %v3659 = vpop.f32.mrb[0].mxu0
  %v3660 = vpop.f32.mrb[0].mxu0
  %v3661 = vadd.f32 0.0, %v3660
  %v3662 = vpop.f32.mrb[0].mxu0
  %3663 = vmatprep.mubr.bf16.mxu0 0
  %3664 = vmatmul.mubr.bf16.gmra.mrb[0].mxu0 %v2435
  %v3665 = vpop.f32.mrb[0].mxu0
  %v3666 = vadd.f32 0.0, %v3665
  %v3667 = vpop.f32.mrb[0].mxu0
  %v3668 = vpop.f32.mrb[0].mxu0
  %v3669 = vadd.f32 0.0, %v3668
  %v3670 = vpop.f32.mrb[0].mxu0
  %3671 = vmatprep.mubr.bf16.mxu0 0
  %3672 = vmatmul.mubr.bf16.gmra.mrb[0].mxu0 %v2436
  %v3673 = vpop.f32.mrb[0].mxu0
  %v3674 = vadd.f32 0.0, %v3673
  %v3675 = vpop.f32.mrb[0].mxu0
  %v3676 = vpop.f32.mrb[0].mxu0
  %v3677 = vadd.f32 0.0, %v3676
  %v3678 = vpop.f32.mrb[0].mxu0
  %3679 = vmatprep.mubr.bf16.mxu0 0
  %3680 = vmatmul.mubr.bf16.gmra.mrb[0].mxu0 %v2437
  %v3681 = vpop.f32.mrb[0].mxu0
  %v3682 = vadd.f32 0.0, %v3681
  %v3683 = vpop.f32.mrb[0].mxu0
  %v3684 = vpop.f32.mrb[0].mxu0
  %v3685 = vadd.f32 0.0, %v3684
  %v3686 = vpop.f32.mrb[0].mxu0
  %3687 = vmatprep.mubr.bf16.mxu0 0
  %3688 = vmatmul.mubr.bf16.gmra.mrb[0].mxu0 %v2438
  %v3689 = vpop.f32.mrb[0].mxu0
  %v3690 = vadd.f32 0.0, %v3689
  %v3691 = vpop.f32.mrb[0].mxu0
  %v3692 = vpop.f32.mrb[0].mxu0
  %v3693 = vadd.f32 0.0, %v3692
  %v3694 = vpop.f32.mrb[0].mxu0
  %3695 = vmatprep.mubr.bf16.mxu0 0
  %3696 = vmatmul.mubr.bf16.gmra.mrb[0].mxu0 %v2439
  %v3697 = vpop.f32.mrb[0].mxu0
  %v3698 = vadd.f32 0.0, %v3697
  %v3699 = vpop.f32.mrb[0].mxu0
  %v3700 = vpop.f32.mrb[0].mxu0
  %v3701 = vadd.f32 0.0, %v3700
  %v3702 = vpop.f32.mrb[0].mxu0
  %3703 = vmatprep.mubr.bf16.mxu0 0
  %3704 = vmatmul.mubr.bf16.gmra.mrb[0].mxu0 %v2440
  %v3705 = vpop.f32.mrb[0].mxu0
  %v3706 = vadd.f32 0.0, %v3705
  %v3707 = vpop.f32.mrb[0].mxu0
  %v3708 = vpop.f32.mrb[0].mxu0
  %v3709 = vadd.f32 0.0, %v3708
  %v3710 = vpop.f32.mrb[0].mxu0
  %3711 = vmatprep.mubr.bf16.mxu0 0
  %3712 = vmatmul.mubr.bf16.gmra.mrb[0].mxu0 %v2441
  %v3713 = vpop.f32.mrb[0].mxu0
  %v3714 = vadd.f32 0.0, %v3713
  %v3715 = vpop.f32.mrb[0].mxu0
  %v3716 = vpop.f32.mrb[0].mxu0
  %v3717 = vadd.f32 0.0, %v3716
  %v3718 = vpop.f32.mrb[0].mxu0
  %3719 = vmatprep.mubr.bf16.mxu0 0
  %3720 = vmatmul.mubr.bf16.gmra.mrb[0].mxu0 %v2442
  %v3721 = vpop.f32.mrb[0].mxu0
  %v3722 = vadd.f32 0.0, %v3721
  %v3723 = vpop.f32.mrb[0].mxu0
  %v3724 = vpop.f32.mrb[0].mxu0
  %v3725 = vadd.f32 0.0, %v3724
  %v3726 = vpop.f32.mrb[0].mxu0
  %3727 = vmatprep.mubr.bf16.mxu0 0
  %3728 = vmatmul.mubr.bf16.gmra.mrb[0].mxu0 %v2443
  %v3729 = vpop.f32.mrb[0].mxu0
  %v3730 = vadd.f32 0.0, %v3729
  %v3731 = vpop.f32.mrb[0].mxu0
  %v3732 = vpop.f32.mrb[0].mxu0
  %v3733 = vadd.f32 0.0, %v3732
  %v3734 = vpop.f32.mrb[0].mxu0
  %3735 = vmatprep.mubr.bf16.mxu0 0
  %3736 = vmatmul.mubr.bf16.gmra.mrb[0].mxu0 %v2444
  %v3737 = vpop.f32.mrb[0].mxu0
  %v3738 = vadd.f32 0.0, %v3737
  %v3739 = vpop.f32.mrb[0].mxu0
  %v3740 = vpop.f32.mrb[0].mxu0
  %v3741 = vadd.f32 0.0, %v3740
  %v3742 = vpop.f32.mrb[0].mxu0
  %3743 = vmatprep.mubr.bf16.mxu0 0
  %3744 = vmatmul.mubr.bf16.gmra.mrb[0].mxu0 %v2445
  %v3745 = vpop.f32.mrb[0].mxu0
  %v3746 = vadd.f32 0.0, %v3745
  %v3747 = vpop.f32.mrb[0].mxu0
  %v3748 = vpop.f32.mrb[0].mxu0
  %v3749 = vadd.f32 0.0, %v3748
  %v3750 = vpop.f32.mrb[0].mxu0
  %3751 = vmatprep.mubr.bf16.mxu0 0
  %3752 = vmatmul.mubr.bf16.gmra.mrb[0].mxu0 %v2446
  %v3753 = vpop.f32.mrb[0].mxu0
  %v3754 = vadd.f32 0.0, %v3753
  %v3755 = vpop.f32.mrb[0].mxu0
  %v3756 = vpop.f32.mrb[0].mxu0
  %v3757 = vadd.f32 0.0, %v3756
  %v3758 = vpop.f32.mrb[0].mxu0
  %3759 = vmatprep.mubr.bf16.mxu0 0
  %3760 = vmatmul.mubr.bf16.gmra.mrb[0].mxu0 %v2447
  %v3761 = vpop.f32.mrb[0].mxu0
  %v3762 = vadd.f32 0.0, %v3761
  %v3763 = vpop.f32.mrb[0].mxu0
  %v3764 = vpop.f32.mrb[0].mxu0
  %v3765 = vadd.f32 0.0, %v3764
  %v3766 = vpop.f32.mrb[0].mxu0
  %3767 = vmatprep.mubr.bf16.mxu0 0
  %3768 = vmatmul.mubr.bf16.gmra.mrb[0].mxu0 %v2448
  %v3769 = vpop.f32.mrb[0].mxu0
  %v3770 = vadd.f32 0.0, %v3769
  %v3771 = vpop.f32.mrb[0].mxu0
  %v3772 = vpop.f32.mrb[0].mxu0
  %v3773 = vadd.f32 0.0, %v3772
  %v3774 = vpop.f32.mrb[0].mxu0
  %3775 = vmatprep.mubr.bf16.mxu0 0
  %3776 = vmatmul.mubr.bf16.gmra.mrb[0].mxu0 %v2449
  %v3777 = vpop.f32.mrb[0].mxu0
  %v3778 = vadd.f32 0.0, %v3777
  %v3779 = vpop.f32.mrb[0].mxu0
  %v3780 = vpop.f32.mrb[0].mxu0
  %v3781 = vadd.f32 0.0, %v3780
  %v3782 = vpop.f32.mrb[0].mxu0
  %3783 = vmatprep.mubr.bf16.mxu0 0
  %3784 = vmatmul.mubr.bf16.gmra.mrb[0].mxu0 %v2450
  %v3785 = vpop.f32.mrb[0].mxu0
  %v3786 = vadd.f32 0.0, %v3785
  %v3787 = vpop.f32.mrb[0].mxu0
  %v3788 = vpop.f32.mrb[0].mxu0
  %v3789 = vadd.f32 0.0, %v3788
  %v3790 = vpop.f32.mrb[0].mxu0
  %3791 = vmatprep.mubr.bf16.mxu0 0
  %3792 = vmatmul.mubr.bf16.gmra.mrb[0].mxu0 %v2451
  %v3793 = vpop.f32.mrb[0].mxu0
  %v3794 = vadd.f32 0.0, %v3793
  %v3795 = vpop.f32.mrb[0].mxu0
  %v3796 = vpop.f32.mrb[0].mxu0
  %v3797 = vadd.f32 0.0, %v3796
  %v3798 = vpop.f32.mrb[0].mxu0
  %3799 = vmatprep.mubr.bf16.mxu0 0
  %3800 = vmatmul.mubr.bf16.gmra.mrb[0].mxu0 %v2452
  %v3801 = vpop.f32.mrb[0].mxu0
  %v3802 = vadd.f32 0.0, %v3801
  %v3803 = vpop.f32.mrb[0].mxu0
  %v3804 = vpop.f32.mrb[0].mxu0
  %v3805 = vadd.f32 0.0, %v3804
  %v3806 = vpop.f32.mrb[0].mxu0
  %3807 = vmatprep.mubr.bf16.mxu0 0
  %3808 = vmatmul.mubr.bf16.gmra.mrb[0].mxu0 %v2453
  %v3809 = vpop.f32.mrb[0].mxu0
  %v3810 = vadd.f32 0.0, %v3809
  %v3811 = vpop.f32.mrb[0].mxu0
  %v3812 = vpop.f32.mrb[0].mxu0
  %v3813 = vadd.f32 0.0, %v3812
  %v3814 = vpop.f32.mrb[0].mxu0
  %3815 = vmatprep.mubr.bf16.mxu0 0
  %3816 = vmatmul.mubr.bf16.gmra.mrb[0].mxu0 %v2454
  %v3817 = vpop.f32.mrb[0].mxu0
  %v3818 = vadd.f32 0.0, %v3817
  %v3819 = vpop.f32.mrb[0].mxu0
  %v3820 = vpop.f32.mrb[0].mxu0
  %v3821 = vadd.f32 0.0, %v3820
  %v3822 = vpop.f32.mrb[0].mxu0
  %3823 = vmatprep.mubr.bf16.mxu0 0
  %3824 = vmatmul.mubr.bf16.gmra.mrb[0].mxu0 %v2455
  %v3825 = vpop.f32.mrb[0].mxu0
  %v3826 = vadd.f32 0.0, %v3825
  %v3827 = vpop.f32.mrb[0].mxu0
  %v3828 = vpop.f32.mrb[0].mxu0
  %v3829 = vadd.f32 0.0, %v3828
  %v3830 = vpop.f32.mrb[0].mxu0
  %3831 = vmatprep.mubr.bf16.mxu0 0
  %3832 = vmatmul.mubr.bf16.gmra.mrb[0].mxu0 %v2456
  %v3833 = vpop.f32.mrb[0].mxu0
  %v3834 = vadd.f32 0.0, %v3833
  %v3835 = vpop.f32.mrb[0].mxu0
  %v3836 = vpop.f32.mrb[0].mxu0
  %v3837 = vadd.f32 0.0, %v3836
  %v3838 = vpop.f32.mrb[0].mxu0
  %3839 = vmatprep.mubr.bf16.mxu0 0
  %3840 = vmatmul.mubr.bf16.gmra.mrb[0].mxu0 %v2457
  %v3841 = vpop.f32.mrb[0].mxu0
  %v3842 = vadd.f32 0.0, %v3841
  %v3843 = vpop.f32.mrb[0].mxu0
  %v3844 = vpop.f32.mrb[0].mxu0
  %v3845 = vadd.f32 0.0, %v3844
  %v3846 = vpop.f32.mrb[0].mxu0
  %3847 = vmatprep.mubr.bf16.mxu0 0
  %3848 = vmatmul.mubr.bf16.gmra.mrb[0].mxu0 %v2458
  %v3849 = vpop.f32.mrb[0].mxu0
  %v3850 = vadd.f32 0.0, %v3849
  %v3851 = vpop.f32.mrb[0].mxu0
  %v3852 = vpop.f32.mrb[0].mxu0
  %v3853 = vadd.f32 0.0, %v3852
  %v3854 = vpop.f32.mrb[0].mxu0
  %3855 = vmatprep.mubr.bf16.mxu0 0
  %3856 = vmatmul.mubr.bf16.gmra.mrb[0].mxu0 %v2459
  %v3857 = vpop.f32.mrb[0].mxu0
  %v3858 = vadd.f32 0.0, %v3857
  %v3859 = vpop.f32.mrb[0].mxu0
  %v3860 = vpop.f32.mrb[0].mxu0
  %v3861 = vadd.f32 0.0, %v3860
  %v3862 = vpop.f32.mrb[0].mxu0
  %3863 = vmatprep.mubr.bf16.mxu0 0
  %3864 = vmatmul.mubr.bf16.gmra.mrb[0].mxu0 %v2460
  %v3865 = vpop.f32.mrb[0].mxu0
  %v3866 = vadd.f32 0.0, %v3865
  %v3867 = vpop.f32.mrb[0].mxu0
  %v3868 = vpop.f32.mrb[0].mxu0
  %v3869 = vadd.f32 0.0, %v3868
  %v3870 = vpop.f32.mrb[0].mxu0
  %3871 = vmatprep.mubr.bf16.mxu0 0
  %3872 = vmatmul.mubr.bf16.gmra.mrb[0].mxu0 %v2461
  %v3873 = vpop.f32.mrb[0].mxu0
  %v3874 = vadd.f32 0.0, %v3873
  %v3875 = vpop.f32.mrb[0].mxu0
  %v3876 = vpop.f32.mrb[0].mxu0
  %v3877 = vadd.f32 0.0, %v3876
  %v3878 = vpop.f32.mrb[0].mxu0
  %3879 = vmatprep.mubr.bf16.mxu0 0
  %3880 = vmatmul.mubr.bf16.gmra.mrb[0].mxu0 %v2462
  %v3881 = vpop.f32.mrb[0].mxu0
  %v3882 = vadd.f32 0.0, %v3881
  %v3883 = vpop.f32.mrb[0].mxu0
  %v3884 = vpop.f32.mrb[0].mxu0
  %v3885 = vadd.f32 0.0, %v3884
  %v3886 = vpop.f32.mrb[0].mxu0
  %3887 = vmatprep.mubr.bf16.mxu0 0
  %3888 = vmatmul.mubr.bf16.gmra.mrb[0].mxu0 %v2463
  %v3889 = vpop.f32.mrb[0].mxu0
  %v3890 = vadd.f32 0.0, %v3889
  %v3891 = vpop.f32.mrb[0].mxu0
  %v3892 = vpop.f32.mrb[0].mxu0
  %v3893 = vadd.f32 0.0, %v3892
  %v3894 = vpop.f32.mrb[0].mxu0
  %3895 = vmatprep.mubr.bf16.mxu0 0
  %3896 = vmatmul.mubr.bf16.gmra.mrb[0].mxu0 %v2464
  %v3897 = vpop.f32.mrb[0].mxu0
  %v3898 = vadd.f32 0.0, %v3897
  %v3899 = vpop.f32.mrb[0].mxu0
  %v3900 = vpop.f32.mrb[0].mxu0
  %v3901 = vadd.f32 0.0, %v3900
  %v3902 = vpop.f32.mrb[0].mxu0
  %3903 = vmatprep.mubr.bf16.mxu0 0
  %3904 = vmatmul.mubr.bf16.gmra.mrb[0].mxu0 %v2465
  %v3905 = vpop.f32.mrb[0].mxu0
  %v3906 = vadd.f32 0.0, %v3905
  %v3907 = vpop.f32.mrb[0].mxu0
  %v3908 = vpop.f32.mrb[0].mxu0
  %v3909 = vadd.f32 0.0, %v3908
  %v3910 = vpop.f32.mrb[0].mxu0
  %3911 = vmatprep.mubr.bf16.mxu0 0
  %3912 = vmatmul.mubr.bf16.gmra.mrb[0].mxu0 %v2466
  %v3913 = vpop.f32.mrb[0].mxu0
  %v3914 = vadd.f32 0.0, %v3913
  %v3915 = vpop.f32.mrb[0].mxu0
  %v3916 = vpop.f32.mrb[0].mxu0
  %v3917 = vadd.f32 0.0, %v3916
  %v3918 = vpop.f32.mrb[0].mxu0
  %3919 = vmatprep.mubr.bf16.mxu0 0
  %3920 = vmatmul.mubr.bf16.gmra.mrb[0].mxu0 %v2467
  %v3921 = vpop.f32.mrb[0].mxu0
  %v3922 = vadd.f32 0.0, %v3921
  %v3923 = vpop.f32.mrb[0].mxu0
  %v3924 = vpop.f32.mrb[0].mxu0
  %v3925 = vadd.f32 0.0, %v3924
  %v3926 = vpop.f32.mrb[0].mxu0
  %3927 = vmatprep.mubr.bf16.mxu0 0
  %3928 = vmatmul.mubr.bf16.gmra.mrb[0].mxu0 %v2468
  %v3929 = vpop.f32.mrb[0].mxu0
  %v3930 = vadd.f32 0.0, %v3929
  %v3931 = vpop.f32.mrb[0].mxu0
  %v3932 = vpop.f32.mrb[0].mxu0
  %v3933 = vadd.f32 0.0, %v3932
  %v3934 = vpop.f32.mrb[0].mxu0
  %3935 = vmatprep.mubr.bf16.mxu0 0
  %3936 = vmatmul.mubr.bf16.gmra.mrb[0].mxu0 %v2469
  %v3937 = vpop.f32.mrb[0].mxu0
  %v3938 = vadd.f32 0.0, %v3937
  %v3939 = vpop.f32.mrb[0].mxu0
  %v3940 = vpop.f32.mrb[0].mxu0
  %v3941 = vadd.f32 0.0, %v3940
  %v3942 = vpop.f32.mrb[0].mxu0
  %3943 = vmatprep.mubr.bf16.mxu0 0
  %3944 = vmatmul.mubr.bf16.gmra.mrb[0].mxu0 %v2470
  %v3945 = vpop.f32.mrb[0].mxu0
  %v3946 = vadd.f32 0.0, %v3945
  %v3947 = vpop.f32.mrb[0].mxu0
  %v3948 = vpop.f32.mrb[0].mxu0
  %v3949 = vadd.f32 0.0, %v3948
  %v3950 = vpop.f32.mrb[0].mxu0
  %3951 = vmatprep.mubr.bf16.mxu0 0
  %3952 = vmatmul.mubr.bf16.gmra.mrb[0].mxu0 %v2471
  %v3953 = vpop.f32.mrb[0].mxu0
  %v3954 = vadd.f32 0.0, %v3953
  %v3955 = vpop.f32.mrb[0].mxu0
  %v3956 = vpop.f32.mrb[0].mxu0
  %v3957 = vadd.f32 0.0, %v3956
  %v3958 = vpop.f32.mrb[0].mxu0
  %3959 = vmatprep.mubr.bf16.mxu0 0
  %3960 = vmatmul.mubr.bf16.gmra.mrb[0].mxu0 %v2472
  %v3961 = vpop.f32.mrb[0].mxu0
  %v3962 = vadd.f32 0.0, %v3961
  %v3963 = vpop.f32.mrb[0].mxu0
  %v3964 = vpop.f32.mrb[0].mxu0
  %v3965 = vadd.f32 0.0, %v3964
  %v3966 = vpop.f32.mrb[0].mxu0
  %3967 = vmatprep.mubr.bf16.mxu0 0
  %3968 = vmatmul.mubr.bf16.gmra.mrb[0].mxu0 %v2473
  %v3969 = vpop.f32.mrb[0].mxu0
  %v3970 = vadd.f32 0.0, %v3969
  %v3971 = vpop.f32.mrb[0].mxu0
  %v3972 = vpop.f32.mrb[0].mxu0
  %v3973 = vadd.f32 0.0, %v3972
  %v3974 = vpop.f32.mrb[0].mxu0
  %3975 = vmatprep.mubr.bf16.mxu0 0
  %3976 = vmatmul.mubr.bf16.gmra.mrb[0].mxu0 %v2474
  %v3977 = vpop.f32.mrb[0].mxu0
  %v3978 = vadd.f32 0.0, %v3977
  %v3979 = vpop.f32.mrb[0].mxu0
  %v3980 = vpop.f32.mrb[0].mxu0
  %v3981 = vadd.f32 0.0, %v3980
  %v3982 = vpop.f32.mrb[0].mxu0
  %3983 = vmatprep.mubr.bf16.mxu0 0
  %3984 = vmatmul.mubr.bf16.gmra.mrb[0].mxu0 %v2475
  %v3985 = vpop.f32.mrb[0].mxu0
  %v3986 = vadd.f32 0.0, %v3985
  %v3987 = vpop.f32.mrb[0].mxu0
  %v3988 = vpop.f32.mrb[0].mxu0
  %v3989 = vadd.f32 0.0, %v3988
  %v3990 = vpop.f32.mrb[0].mxu0
  %3991 = vmatprep.mubr.bf16.mxu0 0
  %3992 = vmatmul.mubr.bf16.gmra.mrb[0].mxu0 %v2476
  %v3993 = vpop.f32.mrb[0].mxu0
  %v3994 = vadd.f32 0.0, %v3993
  %v3995 = vpop.f32.mrb[0].mxu0
  %v3996 = vpop.f32.mrb[0].mxu0
  %v3997 = vadd.f32 0.0, %v3996
  %v3998 = vpop.f32.mrb[0].mxu0
  %3999 = vmatprep.mubr.bf16.mxu0 0
  %4000 = vmatmul.mubr.bf16.gmra.mrb[0].mxu0 %v2477
  %v4001 = vpop.f32.mrb[0].mxu0
  %v4002 = vadd.f32 0.0, %v4001
  %v4003 = vpop.f32.mrb[0].mxu0
  %v4004 = vpop.f32.mrb[0].mxu0
  %v4005 = vadd.f32 0.0, %v4004
  %v4006 = vpop.f32.mrb[0].mxu0
  %4007 = vmatprep.mubr.bf16.mxu0 0
  %4008 = vmatmul.mubr.bf16.gmra.mrb[0].mxu0 %v2478
  %v4009 = vpop.f32.mrb[0].mxu0
  %v4010 = vadd.f32 0.0, %v4009
  %v4011 = vpop.f32.mrb[0].mxu0
  %v4012 = vpop.f32.mrb[0].mxu0
  %v4013 = vadd.f32 0.0, %v4012
  %v4014 = vpop.f32.mrb[0].mxu0
  %4015 = vmatprep.mubr.bf16.mxu0 0
  %4016 = vmatmul.mubr.bf16.gmra.mrb[0].mxu0 %v2479
  %v4017 = vpop.f32.mrb[0].mxu0
  %v4018 = vadd.f32 0.0, %v4017
  %v4019 = vpop.f32.mrb[0].mxu0
  %v4020 = vpop.f32.mrb[0].mxu0
  %v4021 = vadd.f32 0.0, %v4020
  %v4022 = vpop.f32.mrb[0].mxu0
  %4023 = vmatprep.mubr.bf16.mxu0 0
  %4024 = vmatmul.mubr.bf16.gmra.mrb[0].mxu0 %v2480
  %v4025 = vpop.f32.mrb[0].mxu0
  %v4026 = vadd.f32 0.0, %v4025
  %v4027 = vpop.f32.mrb[0].mxu0
  %v4028 = vpop.f32.mrb[0].mxu0
  %v4029 = vadd.f32 0.0, %v4028
  %v4030 = vpop.f32.mrb[0].mxu0
  %4031 = vmatprep.mubr.bf16.mxu0 0
  %4032 = vmatmul.mubr.bf16.gmra.mrb[0].mxu0 %v2481
  %v4033 = vpop.f32.mrb[0].mxu0
  %v4034 = vadd.f32 0.0, %v4033
  %v4035 = vpop.f32.mrb[0].mxu0
  %v4036 = vpop.f32.mrb[0].mxu0
  %v4037 = vadd.f32 0.0, %v4036
  %v4038 = vpop.f32.mrb[0].mxu0
  %4039 = vmatprep.mubr.bf16.mxu0 0
  %4040 = vmatmul.mubr.bf16.gmra.mrb[0].mxu0 %v2482
  %v4041 = vpop.f32.mrb[0].mxu0
  %v4042 = vadd.f32 0.0, %v4041
  %v4043 = vpop.f32.mrb[0].mxu0
  %v4044 = vpop.f32.mrb[0].mxu0
  %v4045 = vadd.f32 0.0, %v4044
  %v4046 = vpop.f32.mrb[0].mxu0
  %4047 = vmatprep.mubr.bf16.mxu0 0
  %4048 = vmatmul.mubr.bf16.gmra.mrb[0].mxu0 %v2483
  %v4049 = vpop.f32.mrb[0].mxu0
  %v4050 = vadd.f32 0.0, %v4049
  %v4051 = vpop.f32.mrb[0].mxu0
  %v4052 = vpop.f32.mrb[0].mxu0
  %v4053 = vadd.f32 0.0, %v4052
  %v4054 = vpop.f32.mrb[0].mxu0
  %4055 = vmatprep.mubr.bf16.mxu0 0
  %4056 = vmatmul.mubr.bf16.gmra.mrb[0].mxu0 %v2484
  %v4057 = vpop.f32.mrb[0].mxu0
  %v4058 = vadd.f32 0.0, %v4057
  %v4059 = vpop.f32.mrb[0].mxu0
  %v4060 = vpop.f32.mrb[0].mxu0
  %v4061 = vadd.f32 0.0, %v4060
  %v4062 = vpop.f32.mrb[0].mxu0
  %4063 = vmatprep.mubr.bf16.mxu0 0
  %4064 = vmatmul.mubr.bf16.gmra.mrb[0].mxu0 %v2485
  %v4065 = vpop.f32.mrb[0].mxu0
  %v4066 = vadd.f32 0.0, %v4065
  %v4067 = vpop.f32.mrb[0].mxu0
  %v4068 = vpop.f32.mrb[0].mxu0
  %v4069 = vadd.f32 0.0, %v4068
  %v4070 = vpop.f32.mrb[0].mxu0
  %4071 = vmatprep.mubr.bf16.mxu0 0
  %4072 = vmatmul.mubr.bf16.gmra.mrb[0].mxu0 %v2486
  %v4073 = vpop.f32.mrb[0].mxu0
  %v4074 = vadd.f32 0.0, %v4073
  %v4075 = vpop.f32.mrb[0].mxu0
  %v4076 = vpop.f32.mrb[0].mxu0
  %v4077 = vadd.f32 0.0, %v4076
  %v4078 = vpop.f32.mrb[0].mxu0
  %4079 = vmatprep.mubr.bf16.mxu0 0
  %4080 = vmatmul.mubr.bf16.gmra.mrb[0].mxu0 %v2487
  %v4081 = vpop.f32.mrb[0].mxu0
  %v4082 = vadd.f32 0.0, %v4081
  %v4083 = vpop.f32.mrb[0].mxu0
  %v4084 = vpop.f32.mrb[0].mxu0
  %v4085 = vadd.f32 0.0, %v4084
  %v4086 = vpop.f32.mrb[0].mxu0
  %4087 = vmatprep.mubr.bf16.mxu0 0
  %4088 = vmatmul.mubr.bf16.gmra.mrb[0].mxu0 %v2488
  %v4089 = vpop.f32.mrb[0].mxu0
  %v4090 = vadd.f32 0.0, %v4089
  %v4091 = vpop.f32.mrb[0].mxu0
  %v4092 = vpop.f32.mrb[0].mxu0
  %v4093 = vadd.f32 0.0, %v4092
  %v4094 = vpop.f32.mrb[0].mxu0
  %4095 = vmatprep.mubr.bf16.mxu0 0
  %4096 = vmatmul.mubr.bf16.gmra.mrb[0].mxu0 %v2489
  %v4097 = vpop.f32.mrb[0].mxu0
  %v4098 = vadd.f32 0.0, %v4097
  %v4099 = vpop.f32.mrb[0].mxu0
  %v4100 = vpop.f32.mrb[0].mxu0
  %v4101 = vadd.f32 0.0, %v4100
  %v4102 = vpop.f32.mrb[0].mxu0
  %4103 = vmatprep.mubr.bf16.mxu0 0
  %4104 = vmatmul.mubr.bf16.gmra.mrb[0].mxu0 %v2490
  %v4105 = vpop.f32.mrb[0].mxu0
  %v4106 = vadd.f32 0.0, %v4105
  %v4107 = vpop.f32.mrb[0].mxu0
  %v4108 = vpop.f32.mrb[0].mxu0
  %v4109 = vadd.f32 0.0, %v4108
  %v4110 = vpop.f32.mrb[0].mxu0
  %4111 = vmatprep.mubr.bf16.mxu0 0
  %4112 = vmatmul.mubr.bf16.gmra.mrb[0].mxu0 %v2491
  %v4113 = vpop.f32.mrb[0].mxu0
  %v4114 = vadd.f32 0.0, %v4113
  %v4115 = vpop.f32.mrb[0].mxu0
  %v4116 = vpop.f32.mrb[0].mxu0
  %v4117 = vadd.f32 0.0, %v4116
  %v4118 = vpop.f32.mrb[0].mxu0
  %4119 = vmatprep.mubr.bf16.mxu0 0
  %4120 = vmatmul.mubr.bf16.gmra.mrb[0].mxu0 %v2492
  %v4121 = vpop.f32.mrb[0].mxu0
  %v4122 = vadd.f32 0.0, %v4121
  %v4123 = vpop.f32.mrb[0].mxu0
  %v4124 = vpop.f32.mrb[0].mxu0
  %v4125 = vadd.f32 0.0, %v4124
  %v4126 = vpop.f32.mrb[0].mxu0
  %4127 = vmatprep.mubr.bf16.mxu0 0
  %4128 = vmatmul.mubr.bf16.gmra.mrb[0].mxu0 %v2493
  %v4129 = vpop.f32.mrb[0].mxu0
  %v4130 = vadd.f32 0.0, %v4129
  %v4131 = vpop.f32.mrb[0].mxu0
  %v4132 = vpop.f32.mrb[0].mxu0
  %v4133 = vadd.f32 0.0, %v4132
  %v4134 = vpop.f32.mrb[0].mxu0
  %4135 = vmatprep.mubr.bf16.mxu0 0
  %4136 = vmatmul.mubr.bf16.gmra.mrb[0].mxu0 %v2494
  %v4137 = vpop.f32.mrb[0].mxu0
  %v4138 = vadd.f32 0.0, %v4137
  %v4139 = vpop.f32.mrb[0].mxu0
  %v4140 = vpop.f32.mrb[0].mxu0
  %v4141 = vadd.f32 0.0, %v4140
  %v4142 = vpop.f32.mrb[0].mxu0
  %4143 = vmatprep.mubr.bf16.mxu0 0
  %4144 = vmatmul.mubr.bf16.gmra.mrb[0].mxu0 %v2495
  %v4145 = vpop.f32.mrb[0].mxu0
  %v4146 = vadd.f32 0.0, %v4145
  %v4147 = vpop.f32.mrb[0].mxu0
  %v4148 = vpop.f32.mrb[0].mxu0
  %v4149 = vadd.f32 0.0, %v4148
  %v4150 = vpop.f32.mrb[0].mxu0
  %4151 = vmatprep.mubr.bf16.mxu0 0
  %4152 = vmatmul.mubr.bf16.gmra.mrb[0].mxu0 %v2496
  %v4153 = vpop.f32.mrb[0].mxu0
  %v4154 = vadd.f32 0.0, %v4153
  %v4155 = vpop.f32.mrb[0].mxu0
  %v4156 = vpop.f32.mrb[0].mxu0
  %v4157 = vadd.f32 0.0, %v4156
  %v4158 = vpop.f32.mrb[0].mxu0
  %4159 = vmatprep.mubr.bf16.mxu0 0
  %4160 = vmatmul.mubr.bf16.gmra.mrb[0].mxu0 %v2497
  %v4161 = vpop.f32.mrb[0].mxu0
  %v4162 = vadd.f32 0.0, %v4161
  %v4163 = vpop.f32.mrb[0].mxu0
  %v4164 = vpop.f32.mrb[0].mxu0
  %v4165 = vadd.f32 0.0, %v4164
  %v4166 = vpop.f32.mrb[0].mxu0
  %4167 = vmatprep.mubr.bf16.mxu0 0
  %4168 = vmatmul.mubr.bf16.gmra.mrb[0].mxu0 %v2498
  %v4169 = vpop.f32.mrb[0].mxu0
  %v4170 = vadd.f32 0.0, %v4169
  %v4171 = vpop.f32.mrb[0].mxu0
  %v4172 = vpop.f32.mrb[0].mxu0
  %v4173 = vadd.f32 0.0, %v4172
  %v4174 = vpop.f32.mrb[0].mxu0
  %4175 = vmatprep.mubr.bf16.mxu0 0
  %4176 = vmatmul.mubr.bf16.gmra.mrb[0].mxu0 %v2499
  %v4177 = vpop.f32.mrb[0].mxu0
  %v4178 = vadd.f32 0.0, %v4177
  %v4179 = vpop.f32.mrb[0].mxu0
  %v4180 = vpop.f32.mrb[0].mxu0
  %v4181 = vadd.f32 0.0, %v4180
  %v4182 = vpop.f32.mrb[0].mxu0
  %4183 = vmatprep.mubr.bf16.mxu0 0
  %4184 = vmatmul.mubr.bf16.gmra.mrb[0].mxu0 %v2500
  %v4185 = vpop.f32.mrb[0].mxu0
  %v4186 = vadd.f32 0.0, %v4185
  %v4187 = vpop.f32.mrb[0].mxu0
  %v4188 = vpop.f32.mrb[0].mxu0
  %v4189 = vadd.f32 0.0, %v4188
  %v4190 = vpop.f32.mrb[0].mxu0
  %4191 = vmatprep.mubr.bf16.mxu0 0
  %4192 = vmatmul.mubr.bf16.gmra.mrb[0].mxu0 %v2501
  %v4193 = vpop.f32.mrb[0].mxu0
  %v4194 = vadd.f32 0.0, %v4193
  %v4195 = vpop.f32.mrb[0].mxu0
  %v4196 = vpop.f32.mrb[0].mxu0
  %v4197 = vadd.f32 0.0, %v4196
  %v4198 = vpop.f32.mrb[0].mxu0
  %4199 = vmatprep.mubr.bf16.mxu0 0
  %4200 = vmatmul.mubr.bf16.gmra.mrb[0].mxu0 %v2502
  %v4201 = vpop.f32.mrb[0].mxu0
  %v4202 = vadd.f32 0.0, %v4201
  %v4203 = vpop.f32.mrb[0].mxu0
  %v4204 = vpop.f32.mrb[0].mxu0
  %v4205 = vadd.f32 0.0, %v4204
  %v4206 = vpop.f32.mrb[0].mxu0
  %4207 = vmatprep.mubr.bf16.mxu0 0
  %4208 = vmatmul.mubr.bf16.gmra.mrb[0].mxu0 %v2503
  %v4209 = vpop.f32.mrb[0].mxu0
  %v4210 = vadd.f32 0.0, %v4209
  %v4211 = vpop.f32.mrb[0].mxu0
  %v4212 = vpop.f32.mrb[0].mxu0
  %v4213 = vadd.f32 0.0, %v4212
  %v4214 = vpop.f32.mrb[0].mxu0
  %4215 = vmatprep.mubr.bf16.mxu0 0
  %4216 = vmatmul.mubr.bf16.gmra.mrb[0].mxu0 %v2504
  %v4217 = vpop.f32.mrb[0].mxu0
  %v4218 = vadd.f32 0.0, %v4217
  %v4219 = vpop.f32.mrb[0].mxu0
  %v4220 = vpop.f32.mrb[0].mxu0
  %v4221 = vadd.f32 0.0, %v4220
  %v4222 = vpop.f32.mrb[0].mxu0
  %4223 = vmatprep.mubr.bf16.mxu0 0
  %4224 = vmatmul.mubr.bf16.gmra.mrb[0].mxu0 %v2505
  %v4225 = vpop.f32.mrb[0].mxu0
  %v4226 = vadd.f32 0.0, %v4225
  %v4227 = vpop.f32.mrb[0].mxu0
  %v4228 = vpop.f32.mrb[0].mxu0
  %v4229 = vadd.f32 0.0, %v4228
  %v4230 = vpop.f32.mrb[0].mxu0
  %4231 = vmatprep.mubr.bf16.mxu0 0
  %4232 = vmatmul.mubr.bf16.gmra.mrb[0].mxu0 %v2506
  %v4233 = vpop.f32.mrb[0].mxu0
  %v4234 = vadd.f32 0.0, %v4233
  %v4235 = vpop.f32.mrb[0].mxu0
  %v4236 = vpop.f32.mrb[0].mxu0
  %v4237 = vadd.f32 0.0, %v4236
  %v4238 = vpop.f32.mrb[0].mxu0
  %4239 = vmatprep.mubr.bf16.mxu0 0
  %4240 = vmatmul.mubr.bf16.gmra.mrb[0].mxu0 %v2507
  %v4241 = vpop.f32.mrb[0].mxu0
  %v4242 = vadd.f32 0.0, %v4241
  %v4243 = vpop.f32.mrb[0].mxu0
  %v4244 = vpop.f32.mrb[0].mxu0
  %v4245 = vadd.f32 0.0, %v4244
  %v4246 = vpop.f32.mrb[0].mxu0
  %4247 = vmatprep.mubr.bf16.mxu0 0
  %4248 = vmatmul.mubr.bf16.gmra.mrb[0].mxu0 %v2508
  %v4249 = vpop.f32.mrb[0].mxu0
  %v4250 = vadd.f32 0.0, %v4249
  %v4251 = vpop.f32.mrb[0].mxu0
  %v4252 = vpop.f32.mrb[0].mxu0
  %v4253 = vadd.f32 0.0, %v4252
  %v4254 = vpop.f32.mrb[0].mxu0
  %4255 = vmatprep.mubr.bf16.mxu0 0
  %4256 = vmatmul.mubr.bf16.gmra.mrb[0].mxu0 %v2509
  %v4257 = vpop.f32.mrb[0].mxu0
  %v4258 = vadd.f32 0.0, %v4257
  %v4259 = vpop.f32.mrb[0].mxu0
  %v4260 = vpop.f32.mrb[0].mxu0
  %v4261 = vadd.f32 0.0, %v4260
  %v4262 = vpop.f32.mrb[0].mxu0
  %4263 = vmatprep.mubr.bf16.mxu0 0
  %4264 = vmatmul.mubr.bf16.gmra.mrb[0].mxu0 %v2510
  %v4265 = vpop.f32.mrb[0].mxu0
  %v4266 = vadd.f32 0.0, %v4265
  %v4267 = vpop.f32.mrb[0].mxu0
  %v4268 = vpop.f32.mrb[0].mxu0
  %v4269 = vadd.f32 0.0, %v4268
  %v4270 = vpop.f32.mrb[0].mxu0
  %4271 = vmatprep.mubr.bf16.mxu0 0
  %4272 = vmatmul.mubr.bf16.gmra.mrb[0].mxu0 %v2511
  %v4273 = vpop.f32.mrb[0].mxu0
  %v4274 = vadd.f32 0.0, %v4273
  %v4275 = vpop.f32.mrb[0].mxu0
  %v4276 = vpop.f32.mrb[0].mxu0
  %v4277 = vadd.f32 0.0, %v4276
  %v4278 = vpop.f32.mrb[0].mxu0
  %4279 = vmatprep.mubr.bf16.mxu0 0
  %4280 = vmatmul.mubr.bf16.gmra.mrb[0].mxu0 %v2512
  %v4281 = vpop.f32.mrb[0].mxu0
  %v4282 = vadd.f32 0.0, %v4281
  %v4283 = vpop.f32.mrb[0].mxu0
  %v4284 = vpop.f32.mrb[0].mxu0
  %v4285 = vadd.f32 0.0, %v4284
  %v4286 = vpop.f32.mrb[0].mxu0
  %4287 = vmatprep.mubr.bf16.mxu0 0
  %4288 = vmatmul.mubr.bf16.gmra.mrb[0].mxu0 %v2513
  %v4289 = vpop.f32.mrb[0].mxu0
  %v4290 = vadd.f32 0.0, %v4289
  %v4291 = vpop.f32.mrb[0].mxu0
  %v4292 = vpop.f32.mrb[0].mxu0
  %v4293 = vadd.f32 0.0, %v4292
  %v4294 = vpop.f32.mrb[0].mxu0
  %4295 = vmatprep.mubr.bf16.mxu0 0
  %4296 = vmatmul.mubr.bf16.gmra.mrb[0].mxu0 %v2514
  %v4297 = vpop.f32.mrb[0].mxu0
  %v4298 = vadd.f32 0.0, %v4297
  %v4299 = vpop.f32.mrb[0].mxu0
  %v4300 = vpop.f32.mrb[0].mxu0
  %v4301 = vadd.f32 0.0, %v4300
  %v4302 = vpop.f32.mrb[0].mxu0
  %4303 = vmatprep.mubr.bf16.mxu0 0
  %4304 = vmatmul.mubr.bf16.gmra.mrb[0].mxu0 %v2515
  %v4305 = vpop.f32.mrb[0].mxu0
  %v4306 = vadd.f32 0.0, %v4305
  %v4307 = vpop.f32.mrb[0].mxu0
  %v4308 = vpop.f32.mrb[0].mxu0
  %v4309 = vadd.f32 0.0, %v4308
  %v4310 = vpop.f32.mrb[0].mxu0
  %4311 = vmatprep.mubr.bf16.mxu0 0
  %4312 = vmatmul.mubr.bf16.gmra.mrb[0].mxu0 %v2516
  %v4313 = vpop.f32.mrb[0].mxu0
  %v4314 = vadd.f32 0.0, %v4313
  %v4315 = vpop.f32.mrb[0].mxu0
  %v4316 = vpop.f32.mrb[0].mxu0
  %v4317 = vadd.f32 0.0, %v4316
  %v4318 = vpop.f32.mrb[0].mxu0
  %4319 = vmatprep.mubr.bf16.mxu0 0
  %4320 = vmatmul.mubr.bf16.gmra.mrb[0].mxu0 %v2517
  %v4321 = vpop.f32.mrb[0].mxu0
  %v4322 = vadd.f32 0.0, %v4321
  %v4323 = vpop.f32.mrb[0].mxu0
  %v4324 = vpop.f32.mrb[0].mxu0
  %v4325 = vadd.f32 0.0, %v4324
  %v4326 = vpop.f32.mrb[0].mxu0
  %4327 = vmatprep.mubr.bf16.mxu0 0
  %4328 = vmatmul.mubr.bf16.gmra.mrb[0].mxu0 %v2518
  %v4329 = vpop.f32.mrb[0].mxu0
  %v4330 = vadd.f32 0.0, %v4329
  %v4331 = vpop.f32.mrb[0].mxu0
  %v4332 = vpop.f32.mrb[0].mxu0
  %v4333 = vadd.f32 0.0, %v4332
  %v4334 = vpop.f32.mrb[0].mxu0
  %4335 = vmatprep.mubr.bf16.mxu0 0
  %4336 = vmatmul.mubr.bf16.gmra.mrb[0].mxu0 %v2519
  %v4337 = vpop.f32.mrb[0].mxu0
  %v4338 = vadd.f32 0.0, %v4337
  %v4339 = vpop.f32.mrb[0].mxu0
  %v4340 = vpop.f32.mrb[0].mxu0
  %v4341 = vadd.f32 0.0, %v4340
  %v4342 = vpop.f32.mrb[0].mxu0
  %4343 = vmatprep.mubr.bf16.mxu0 0
  %4344 = vmatmul.mubr.bf16.gmra.mrb[0].mxu0 %v2520
  %v4345 = vpop.f32.mrb[0].mxu0
  %v4346 = vadd.f32 0.0, %v4345
  %v4347 = vpop.f32.mrb[0].mxu0
  %v4348 = vpop.f32.mrb[0].mxu0
  %v4349 = vadd.f32 0.0, %v4348
  %v4350 = vpop.f32.mrb[0].mxu0
  %4351 = vmatprep.mubr.bf16.mxu0 0
  %4352 = vmatmul.mubr.bf16.gmra.mrb[0].mxu0 %v2521
  %v4353 = vpop.f32.mrb[0].mxu0
  %v4354 = vadd.f32 0.0, %v4353
  %v4355 = vpop.f32.mrb[0].mxu0
  %v4356 = vpop.f32.mrb[0].mxu0
  %v4357 = vadd.f32 0.0, %v4356
  %v4358 = vpop.f32.mrb[0].mxu0
  %4359 = vmatprep.mubr.bf16.mxu0 0
  %4360 = vmatmul.mubr.bf16.gmra.mrb[0].mxu0 %v2522
  %v4361 = vpop.f32.mrb[0].mxu0
  %v4362 = vadd.f32 0.0, %v4361
  %v4363 = vpop.f32.mrb[0].mxu0
  %v4364 = vpop.f32.mrb[0].mxu0
  %v4365 = vadd.f32 0.0, %v4364
  %v4366 = vpop.f32.mrb[0].mxu0
  %4367 = vmatprep.mubr.bf16.mxu0 0
  %4368 = vmatmul.mubr.bf16.gmra.mrb[0].mxu0 %v2523
  %v4369 = vpop.f32.mrb[0].mxu0
  %v4370 = vadd.f32 0.0, %v4369
  %v4371 = vpop.f32.mrb[0].mxu0
  %v4372 = vpop.f32.mrb[0].mxu0
  %v4373 = vadd.f32 0.0, %v4372
  %v4374 = vpop.f32.mrb[0].mxu0
  %4375 = vmatprep.mubr.bf16.mxu0 0
  %4376 = vmatmul.mubr.bf16.gmra.mrb[0].mxu0 %v2524
  %v4377 = vpop.f32.mrb[0].mxu0
  %v4378 = vadd.f32 0.0, %v4377
  %v4379 = vpop.f32.mrb[0].mxu0
  %v4380 = vpop.f32.mrb[0].mxu0
  %v4381 = vadd.f32 0.0, %v4380
  %v4382 = vpop.f32.mrb[0].mxu0
  %4383 = vmatprep.mubr.bf16.mxu0 0
  %4384 = vmatmul.mubr.bf16.gmra.mrb[0].mxu0 %v2525
  %v4385 = vpop.f32.mrb[0].mxu0
  %v4386 = vadd.f32 0.0, %v4385
  %v4387 = vpop.f32.mrb[0].mxu0
  %v4388 = vpop.f32.mrb[0].mxu0
  %v4389 = vadd.f32 0.0, %v4388
  %v4390 = vpop.f32.mrb[0].mxu0
  %4391 = vmatprep.mubr.bf16.mxu0 0
  %4392 = vmatmul.mubr.bf16.gmra.mrb[0].mxu0 %v2526
  %v4393 = vpop.f32.mrb[0].mxu0
  %v4394 = vadd.f32 0.0, %v4393
  %v4395 = vpop.f32.mrb[0].mxu0
  %v4396 = vpop.f32.mrb[0].mxu0
  %v4397 = vadd.f32 0.0, %v4396
  %v4398 = vpop.f32.mrb[0].mxu0
  %4399 = vmatprep.mubr.bf16.mxu0 0
  %4400 = vmatmul.mubr.bf16.gmra.mrb[0].mxu0 %v2527
  %v4401 = vpop.f32.mrb[0].mxu0
  %v4402 = vadd.f32 0.0, %v4401
  %v4403 = vpop.f32.mrb[0].mxu0
  %v4404 = vpop.f32.mrb[0].mxu0
  %v4405 = vadd.f32 0.0, %v4404
  %v4406 = vpop.f32.mrb[0].mxu0
  %4407 = vmatprep.mubr.bf16.mxu0 0
  %4408 = vmatmul.mubr.bf16.gmra.mrb[0].mxu0 %v2528
  %v4409 = vpop.f32.mrb[0].mxu0
  %v4410 = vadd.f32 0.0, %v4409
  %v4411 = vpop.f32.mrb[0].mxu0
  %v4412 = vpop.f32.mrb[0].mxu0
  %v4413 = vadd.f32 0.0, %v4412
  %v4414 = vpop.f32.mrb[0].mxu0
  %4415 = vmatprep.mubr.bf16.mxu0 0
  %4416 = vmatmul.mubr.bf16.gmra.mrb[0].mxu0 %v2529
  %v4417 = vpop.f32.mrb[0].mxu0
  %v4418 = vadd.f32 0.0, %v4417
  %v4419 = vpop.f32.mrb[0].mxu0
  %v4420 = vpop.f32.mrb[0].mxu0
  %v4421 = vadd.f32 0.0, %v4420
  %v4422 = vpop.f32.mrb[0].mxu0
  %4423 = vmatprep.mubr.bf16.mxu0 0
  %4424 = vmatmul.mubr.bf16.gmra.mrb[0].mxu0 %v2530
  %v4425 = vpop.f32.mrb[0].mxu0
  %v4426 = vadd.f32 0.0, %v4425
  %v4427 = vpop.f32.mrb[0].mxu0
  %v4428 = vpop.f32.mrb[0].mxu0
  %v4429 = vadd.f32 0.0, %v4428
  %v4430 = vpop.f32.mrb[0].mxu0
  %4431 = vmatprep.mubr.bf16.mxu0 0
  %4432 = vmatmul.mubr.bf16.gmra.mrb[0].mxu0 %v2531
  %v4433 = vpop.f32.mrb[0].mxu0
  %v4434 = vadd.f32 0.0, %v4433
  %v4435 = vpop.f32.mrb[0].mxu0
  %v4436 = vpop.f32.mrb[0].mxu0
  %v4437 = vadd.f32 0.0, %v4436
  %v4438 = vpop.f32.mrb[0].mxu0
  %4439 = vmatprep.mubr.bf16.mxu0 0
  %4440 = vmatmul.mubr.bf16.gmra.mrb[0].mxu0 %v2532
  %v4441 = vpop.f32.mrb[0].mxu0
  %v4442 = vadd.f32 0.0, %v4441
  %v4443 = vpop.f32.mrb[0].mxu0
  %v4444 = vpop.f32.mrb[0].mxu0
  %v4445 = vadd.f32 0.0, %v4444
  %v4446 = vpop.f32.mrb[0].mxu0
  %4447 = vmatprep.mubr.bf16.mxu0 0
  %4448 = vmatmul.mubr.bf16.gmra.mrb[0].mxu0 %v2533
  %v4449 = vpop.f32.mrb[0].mxu0
  %v4450 = vadd.f32 0.0, %v4449
  %v4451 = vpop.f32.mrb[0].mxu0
  %v4452 = vpop.f32.mrb[0].mxu0
  %v4453 = vadd.f32 0.0, %v4452
  %v4454 = vpop.f32.mrb[0].mxu0
  %4455 = vmatprep.mubr.bf16.mxu0 0
  %4456 = vmatmul.mubr.bf16.gmra.mrb[0].mxu0 %v2534
  %v4457 = vpop.f32.mrb[0].mxu0
  %v4458 = vadd.f32 0.0, %v4457
  %v4459 = vpop.f32.mrb[0].mxu0
  %v4460 = vpop.f32.mrb[0].mxu0
  %v4461 = vadd.f32 0.0, %v4460
  %v4462 = vpop.f32.mrb[0].mxu0
  %4463 = vmatprep.mubr.bf16.mxu0 0
  %4464 = vmatmul.mubr.bf16.gmra.mrb[0].mxu0 %v2535
  %v4465 = vpop.f32.mrb[0].mxu0
  %v4466 = vadd.f32 0.0, %v4465
  %v4467 = vpop.f32.mrb[0].mxu0
  %v4468 = vpop.f32.mrb[0].mxu0
  %v4469 = vadd.f32 0.0, %v4468
  %v4470 = vpop.f32.mrb[0].mxu0
  %4471 = vmatprep.mubr.bf16.mxu0 0
  %4472 = vmatmul.mubr.bf16.gmra.mrb[0].mxu0 %v2536
  %v4473 = vpop.f32.mrb[0].mxu0
  %v4474 = vadd.f32 0.0, %v4473
  %v4475 = vpop.f32.mrb[0].mxu0
  %v4476 = vpop.f32.mrb[0].mxu0
  %v4477 = vadd.f32 0.0, %v4476
  %v4478 = vpop.f32.mrb[0].mxu0
  %4479 = vmatprep.mubr.bf16.mxu0 0
  %4480 = vmatmul.mubr.bf16.gmra.mrb[0].mxu0 %v2537
  %v4481 = vpop.f32.mrb[0].mxu0
  %v4482 = vadd.f32 0.0, %v4481
  %v4483 = vpop.f32.mrb[0].mxu0
  %v4484 = vpop.f32.mrb[0].mxu0
  %v4485 = vadd.f32 0.0, %v4484
  %v4486 = vpop.f32.mrb[0].mxu0
  %4487 = vmatprep.mubr.bf16.mxu0 0
  %4488 = vmatmul.mubr.bf16.gmra.mrb[0].mxu0 %v2538
  %v4489 = vpop.f32.mrb[0].mxu0
  %v4490 = vadd.f32 0.0, %v4489
  %v4491 = vpop.f32.mrb[0].mxu0
  %v4492 = vpop.f32.mrb[0].mxu0
  %v4493 = vadd.f32 0.0, %v4492
  %v4494 = vpop.f32.mrb[0].mxu0
  %4495 = vmatprep.mubr.bf16.mxu0 0
  %4496 = vmatmul.mubr.bf16.gmra.mrb[0].mxu0 %v2539
  %v4497 = vpop.f32.mrb[0].mxu0
  %v4498 = vadd.f32 0.0, %v4497
  %v4499 = vpop.f32.mrb[0].mxu0
  %v4500 = vpop.f32.mrb[0].mxu0
  %v4501 = vadd.f32 0.0, %v4500
  %v4502 = vpop.f32.mrb[0].mxu0
  %4503 = vmatprep.mubr.bf16.mxu0 0
  %4504 = vmatmul.mubr.bf16.gmra.mrb[0].mxu0 %v2540
  %v4505 = vpop.f32.mrb[0].mxu0
  %v4506 = vadd.f32 0.0, %v4505
  %v4507 = vpop.f32.mrb[0].mxu0
  %v4508 = vpop.f32.mrb[0].mxu0
  %v4509 = vadd.f32 0.0, %v4508
  %v4510 = vpop.f32.mrb[0].mxu0
  %4511 = vmatprep.mubr.bf16.mxu0 0
  %4512 = vmatmul.mubr.bf16.gmra.mrb[0].mxu0 %v2541
  %v4513 = vpop.f32.mrb[0].mxu0
  %v4514 = vadd.f32 0.0, %v4513
  %v4515 = vpop.f32.mrb[0].mxu0
  %v4516 = vpop.f32.mrb[0].mxu0
  %v4517 = vadd.f32 0.0, %v4516
  %v4518 = vpop.f32.mrb[0].mxu0
  %4519 = vmatprep.mubr.bf16.mxu0 0
  %4520 = vmatmul.mubr.bf16.gmra.mrb[0].mxu0 %v2542
  %v4521 = vpop.f32.mrb[0].mxu0
  %v4522 = vadd.f32 0.0, %v4521
  %v4523 = vpop.f32.mrb[0].mxu0
  %v4524 = vpop.f32.mrb[0].mxu0
  %v4525 = vadd.f32 0.0, %v4524
  %v4526 = vpop.f32.mrb[0].mxu0
  %4527 = vmatprep.mubr.bf16.mxu0 0
  %4528 = vmatmul.mubr.bf16.gmra.mrb[0].mxu0 %v2543
  %v4529 = vpop.f32.mrb[0].mxu0
  %v4530 = vadd.f32 0.0, %v4529
  %v4531 = vpop.f32.mrb[0].mxu0
  %v4532 = vpop.f32.mrb[0].mxu0
  %v4533 = vadd.f32 0.0, %v4532
  %v4534 = vpop.f32.mrb[0].mxu0
  %4535 = vmatprep.mubr.bf16.mxu0 0
  %4536 = vmatmul.mubr.bf16.gmra.mrb[0].mxu0 %v2544
  %v4537 = vpop.f32.mrb[0].mxu0
  %v4538 = vadd.f32 0.0, %v4537
  %v4539 = vpop.f32.mrb[0].mxu0
  %v4540 = vpop.f32.mrb[0].mxu0
  %v4541 = vadd.f32 0.0, %v4540
  %v4542 = vpop.f32.mrb[0].mxu0
  %4543 = vmatprep.mubr.bf16.mxu0 0
  %4544 = vmatmul.mubr.bf16.gmra.mrb[0].mxu0 %v2545
  %v4545 = vpop.f32.mrb[0].mxu0
  %v4546 = vadd.f32 0.0, %v4545
  %v4547 = vpop.f32.mrb[0].mxu0
  %v4548 = vpop.f32.mrb[0].mxu0
  %v4549 = vadd.f32 0.0, %v4548
  %v4550 = vpop.f32.mrb[0].mxu0
  %4551 = vmatprep.mubr.bf16.mxu0 0
  %4552 = vmatmul.mubr.bf16.gmra.mrb[0].mxu0 %v2546
  %v4553 = vpop.f32.mrb[0].mxu0
  %v4554 = vadd.f32 0.0, %v4553
  %v4555 = vpop.f32.mrb[0].mxu0
  %v4556 = vpop.f32.mrb[0].mxu0
  %v4557 = vadd.f32 0.0, %v4556
  %v4558 = vpop.f32.mrb[0].mxu0
  %4559 = vmatprep.mubr.bf16.mxu0 0
  %4560 = vmatmul.mubr.bf16.gmra.mrb[0].mxu0 %v2547
  %v4561 = vpop.f32.mrb[0].mxu0
  %v4562 = vadd.f32 0.0, %v4561
  %v4563 = vpop.f32.mrb[0].mxu0
  %v4564 = vpop.f32.mrb[0].mxu0
  %v4565 = vadd.f32 0.0, %v4564
  %v4566 = vpop.f32.mrb[0].mxu0
  %4567 = vmatprep.mubr.bf16.mxu0 0
  %4568 = vmatmul.mubr.bf16.gmra.mrb[0].mxu0 %v2548
  %v4569 = vpop.f32.mrb[0].mxu0
  %v4570 = vadd.f32 0.0, %v4569
  %v4571 = vpop.f32.mrb[0].mxu0
  %v4572 = vpop.f32.mrb[0].mxu0
  %v4573 = vadd.f32 0.0, %v4572
  %v4574 = vpop.f32.mrb[0].mxu0
  %4575 = vmatprep.mubr.bf16.mxu0 0
  %4576 = vmatmul.mubr.bf16.gmra.mrb[0].mxu0 %v2549
  %v4577 = vpop.f32.mrb[0].mxu0
  %v4578 = vadd.f32 0.0, %v4577
  %v4579 = vpop.f32.mrb[0].mxu0
  %v4580 = vpop.f32.mrb[0].mxu0
  %v4581 = vadd.f32 0.0, %v4580
  %v4582 = vpop.f32.mrb[0].mxu0
  %4583 = vmatprep.mubr.bf16.mxu0 0
  %4584 = vmatmul.mubr.bf16.gmra.mrb[0].mxu0 %v2550
  %v4585 = vpop.f32.mrb[0].mxu0
  %v4586 = vadd.f32 0.0, %v4585
  %v4587 = vpop.f32.mrb[0].mxu0
  %v4588 = vpop.f32.mrb[0].mxu0
  %v4589 = vadd.f32 0.0, %v4588
  %v4590 = vpop.f32.mrb[0].mxu0
  %4591 = vmatprep.mubr.bf16.mxu0 0
  %4592 = vmatmul.mubr.bf16.gmra.mrb[0].mxu0 %v2551
  %v4593 = vpop.f32.mrb[0].mxu0
  %v4594 = vadd.f32 0.0, %v4593
  %v4595 = vpop.f32.mrb[0].mxu0
  %v4596 = vpop.f32.mrb[0].mxu0
  %v4597 = vadd.f32 0.0, %v4596
  %v4598 = vpop.f32.mrb[0].mxu0
  %4599 = vmatprep.mubr.bf16.mxu0 0
  %4600 = vmatmul.mubr.bf16.gmra.mrb[0].mxu0 %v2552
  %v4601 = vpop.f32.mrb[0].mxu0
  %v4602 = vadd.f32 0.0, %v4601
  %v4603 = vpop.f32.mrb[0].mxu0
  %v4604 = vpop.f32.mrb[0].mxu0
  %v4605 = vadd.f32 0.0, %v4604
  %v4606 = vpop.f32.mrb[0].mxu0
  %4607 = vmatprep.mubr.bf16.mxu0 0
  %4608 = vmatmul.mubr.bf16.gmra.mrb[0].mxu0 %v2553
  %v4609 = vpop.f32.mrb[0].mxu0
  %v4610 = vadd.f32 0.0, %v4609
  %v4611 = vpop.f32.mrb[0].mxu0
  %v4612 = vpop.f32.mrb[0].mxu0
  %v4613 = vadd.f32 0.0, %v4612
  %v4614 = vpop.f32.mrb[0].mxu0
  %4615 = vmatprep.mubr.bf16.mxu0 0
  %4616 = vmatmul.mubr.bf16.gmra.mrb[0].mxu0 %v2554
  %v4617 = vpop.f32.mrb[0].mxu0
  %v4618 = vadd.f32 0.0, %v4617
  %v4619 = vpop.f32.mrb[0].mxu0
  %v4620 = vpop.f32.mrb[0].mxu0
  %v4621 = vadd.f32 0.0, %v4620
  %v4622 = vpop.f32.mrb[0].mxu0
  %4623 = vmatprep.mubr.bf16.mxu0 0
  %4624 = vmatmul.mubr.bf16.gmra.mrb[0].mxu0 %v2555
  %v4625 = vpop.f32.mrb[0].mxu0
  %v4626 = vadd.f32 0.0, %v4625
  %v4627 = vpop.f32.mrb[0].mxu0
  %v4628 = vpop.f32.mrb[0].mxu0
  %v4629 = vadd.f32 0.0, %v4628
  %v4630 = vpop.f32.mrb[0].mxu0
  %4631 = vmatprep.mubr.bf16.mxu0 0
  %4632 = vmatmul.mubr.bf16.gmra.mrb[0].mxu0 %v2556
  %v4633 = vpop.f32.mrb[0].mxu0
  %v4634 = vadd.f32 0.0, %v4633
  %v4635 = vpop.f32.mrb[0].mxu0
  %v4636 = vpop.f32.mrb[0].mxu0
  %v4637 = vadd.f32 0.0, %v4636
  %v4638 = vpop.f32.mrb[0].mxu0
  %4639 = vmatprep.mubr.bf16.mxu0 0
  %4640 = vmatmul.mubr.bf16.gmra.mrb[0].mxu0 %v2557
  %v4641 = vpop.f32.mrb[0].mxu0
  %v4642 = vadd.f32 0.0, %v4641
  %v4643 = vpop.f32.mrb[0].mxu0
  %v4644 = vpop.f32.mrb[0].mxu0
  %v4645 = vadd.f32 0.0, %v4644
  %v4646 = vpop.f32.mrb[0].mxu0
  %4647 = vmatprep.mubr.bf16.mxu0 0
  %4648 = vmatmul.mubr.bf16.gmra.mrb[0].mxu0 %v2558
  %v4649 = vpop.f32.mrb[0].mxu0
  %v4650 = vadd.f32 0.0, %v4649
  %v4651 = vpop.f32.mrb[0].mxu0
  %v4652 = vpop.f32.mrb[0].mxu0
  %v4653 = vadd.f32 0.0, %v4652
  %v4654 = vpop.f32.mrb[0].mxu0
  %4655 = vmatprep.mubr.bf16.mxu0 0
  %4656 = vmatmul.mubr.bf16.gmra.mrb[0].mxu0 %v2559
  %v4657 = vpop.f32.mrb[0].mxu0
  %v4658 = vadd.f32 0.0, %v4657
  %v4659 = vpop.f32.mrb[0].mxu0
  %v4660 = vpop.f32.mrb[0].mxu0
  %v4661 = vadd.f32 0.0, %v4660
  %v4662 = vpop.f32.mrb[0].mxu0
  %4663 = vmatprep.mubr.bf16.mxu0 0
  %4664 = vmatmul.mubr.bf16.gmra.mrb[0].mxu0 %v2560
  %v4665 = vpop.f32.mrb[0].mxu0
  %v4666 = vadd.f32 0.0, %v4665
  %v4667 = vpop.f32.mrb[0].mxu0
  %v4668 = vpop.f32.mrb[0].mxu0
  %v4669 = vadd.f32 0.0, %v4668
  %v4670 = vpop.f32.mrb[0].mxu0
  %4671 = vmatprep.mubr.bf16.mxu0 0
  %4672 = vmatmul.mubr.bf16.gmra.mrb[0].mxu0 %v2561
  %v4673 = vpop.f32.mrb[0].mxu0
  %v4674 = vadd.f32 0.0, %v4673
  %v4675 = vpop.f32.mrb[0].mxu0
  %v4676 = vpop.f32.mrb[0].mxu0
  %v4677 = vadd.f32 0.0, %v4676
  %v4678 = vpop.f32.mrb[0].mxu0
  %4679 = vmatprep.mubr.bf16.mxu0 0
  %4680 = vmatmul.mubr.bf16.gmra.mrb[0].mxu0 %v2562
  %v4681 = vpop.f32.mrb[0].mxu0
  %v4682 = vadd.f32 0.0, %v4681
  %v4683 = vpop.f32.mrb[0].mxu0
  %v4684 = vpop.f32.mrb[0].mxu0
  %v4685 = vadd.f32 0.0, %v4684
  %v4686 = vpop.f32.mrb[0].mxu0
  %4687 = vmatprep.mubr.bf16.mxu0 0
  %4688 = vmatmul.mubr.bf16.gmra.mrb[0].mxu0 %v2563
  %v4689 = vpop.f32.mrb[0].mxu0
  %v4690 = vadd.f32 0.0, %v4689
  %v4691 = vpop.f32.mrb[0].mxu0
  %v4692 = vpop.f32.mrb[0].mxu0
  %v4693 = vadd.f32 0.0, %v4692
  %v4694 = vpop.f32.mrb[0].mxu0
  %4695 = vmatprep.mubr.bf16.mxu0 0
  %4696 = vmatmul.mubr.bf16.gmra.mrb[0].mxu0 %v2564
  %v4697 = vpop.f32.mrb[0].mxu0
  %v4698 = vadd.f32 0.0, %v4697
  %v4699 = vpop.f32.mrb[0].mxu0
  %v4700 = vpop.f32.mrb[0].mxu0
  %v4701 = vadd.f32 0.0, %v4700
  %v4702 = vpop.f32.mrb[0].mxu0
  %4703 = vmatprep.mubr.bf16.mxu0 0
  %4704 = vmatmul.mubr.bf16.gmra.mrb[0].mxu0 %v2565
  %v4705 = vpop.f32.mrb[0].mxu0
  %v4706 = vadd.f32 0.0, %v4705
  %v4707 = vpop.f32.mrb[0].mxu0
  %v4708 = vpop.f32.mrb[0].mxu0
  %v4709 = vadd.f32 0.0, %v4708
  %v4710 = vpop.f32.mrb[0].mxu0
  %4711 = vmatprep.mubr.bf16.mxu0 0
  %4712 = vmatmul.mubr.bf16.gmra.mrb[0].mxu0 %v2566
  %v4713 = vpop.f32.mrb[0].mxu0
  %v4714 = vadd.f32 0.0, %v4713
  %v4715 = vpop.f32.mrb[0].mxu0
  %v4716 = vpop.f32.mrb[0].mxu0
  %v4717 = vadd.f32 0.0, %v4716
  %v4718 = vpop.f32.mrb[0].mxu0
  %4719 = vmatprep.mubr.bf16.mxu0 0
  %4720 = vmatmul.mubr.bf16.gmra.mrb[0].mxu0 %v2567
  %v4721 = vpop.f32.mrb[0].mxu0
  %v4722 = vadd.f32 0.0, %v4721
  %v4723 = vpop.f32.mrb[0].mxu0
  %v4724 = vpop.f32.mrb[0].mxu0
  %v4725 = vadd.f32 0.0, %v4724
  %v4726 = vpop.f32.mrb[0].mxu0
  %4727 = vmatprep.mubr.bf16.mxu0 0
  %4728 = vmatmul.mubr.bf16.gmra.mrb[0].mxu0 %v2568
  %v4729 = vpop.f32.mrb[0].mxu0
  %v4730 = vadd.f32 0.0, %v4729
  %v4731 = vpop.f32.mrb[0].mxu0
  %v4732 = vpop.f32.mrb[0].mxu0
  %v4733 = vadd.f32 0.0, %v4732
  %v4734 = vpop.f32.mrb[0].mxu0
  %4735 = vmatprep.mubr.bf16.mxu0 0
  %4736 = vmatmul.mubr.bf16.gmra.mrb[0].mxu0 %v2569
  %v4737 = vpop.f32.mrb[0].mxu0
  %v4738 = vadd.f32 0.0, %v4737
  %v4739 = vpop.f32.mrb[0].mxu0
  %v4740 = vpop.f32.mrb[0].mxu0
  %v4741 = vadd.f32 0.0, %v4740
  %v4742 = vpop.f32.mrb[0].mxu0
  %4743 = vmatprep.mubr.bf16.mxu0 0
  %4744 = vmatmul.mubr.bf16.gmra.mrb[0].mxu0 %v2570
  %v4745 = vpop.f32.mrb[0].mxu0
  %v4746 = vadd.f32 0.0, %v4745
  %v4747 = vpop.f32.mrb[0].mxu0
  %v4748 = vpop.f32.mrb[0].mxu0
  %v4749 = vadd.f32 0.0, %v4748
  %v4750 = vpop.f32.mrb[0].mxu0
  %4751 = vmatprep.mubr.bf16.mxu0 0
  %4752 = vmatmul.mubr.bf16.gmra.mrb[0].mxu0 %v2571
  %v4753 = vpop.f32.mrb[0].mxu0
  %v4754 = vadd.f32 0.0, %v4753
  %v4755 = vpop.f32.mrb[0].mxu0
  %v4756 = vpop.f32.mrb[0].mxu0
  %v4757 = vadd.f32 0.0, %v4756
  %v4758 = vpop.f32.mrb[0].mxu0
  %4759 = vmatprep.mubr.bf16.mxu0 0
  %4760 = vmatmul.mubr.bf16.gmra.mrb[0].mxu0 %v2572
  %v4761 = vpop.f32.mrb[0].mxu0
  %v4762 = vadd.f32 0.0, %v4761
  %v4763 = vpop.f32.mrb[0].mxu0
  %v4764 = vpop.f32.mrb[0].mxu0
  %v4765 = vadd.f32 0.0, %v4764
  %v4766 = vpop.f32.mrb[0].mxu0
  %4767 = vmatprep.mubr.bf16.mxu0 0
  %4768 = vmatmul.mubr.bf16.gmra.mrb[0].mxu0 %v2573
  %v4769 = vpop.f32.mrb[0].mxu0
  %v4770 = vadd.f32 0.0, %v4769
  %v4771 = vpop.f32.mrb[0].mxu0
  %v4772 = vpop.f32.mrb[0].mxu0
  %v4773 = vadd.f32 0.0, %v4772
  %v4774 = vpop.f32.mrb[0].mxu0
  %4775 = vmatprep.mubr.bf16.mxu0 0
  %4776 = vmatmul.mubr.bf16.gmra.mrb[0].mxu0 %v2574
  %v4777 = vpop.f32.mrb[0].mxu0
  %v4778 = vadd.f32 0.0, %v4777
  %v4779 = vpop.f32.mrb[0].mxu0
  %v4780 = vpop.f32.mrb[0].mxu0
  %v4781 = vadd.f32 0.0, %v4780
  %v4782 = vpop.f32.mrb[0].mxu0
  %4783 = vmatprep.mubr.bf16.mxu0 0
  %4784 = vmatmul.mubr.bf16.gmra.mrb[0].mxu0 %v2575
  %v4785 = vpop.f32.mrb[0].mxu0
  %v4786 = vadd.f32 0.0, %v4785
  %v4787 = vpop.f32.mrb[0].mxu0
  %v4788 = vpop.f32.mrb[0].mxu0
  %v4789 = vadd.f32 0.0, %v4788
  %v4790 = vpop.f32.mrb[0].mxu0
  %4791 = vmatprep.mubr.bf16.mxu0 0
  %4792 = vmatmul.mubr.bf16.gmra.mrb[0].mxu0 %v2576
  %v4793 = vpop.f32.mrb[0].mxu0
  %v4794 = vadd.f32 0.0, %v4793
  %v4795 = vpop.f32.mrb[0].mxu0
  %v4796 = vpop.f32.mrb[0].mxu0
  %v4797 = vadd.f32 0.0, %v4796
  %v4798 = vpop.f32.mrb[0].mxu0
  %4799 = vmatprep.mubr.bf16.mxu0 0
  %4800 = vmatmul.mubr.bf16.gmra.mrb[0].mxu0 %v2577
  %v4801 = vpop.f32.mrb[0].mxu0
  %v4802 = vadd.f32 0.0, %v4801
  %v4803 = vpop.f32.mrb[0].mxu0
  %v4804 = vpop.f32.mrb[0].mxu0
  %v4805 = vadd.f32 0.0, %v4804
  %v4806 = vpop.f32.mrb[0].mxu0
  %4807 = vmatprep.mubr.bf16.mxu0 0
  %4808 = vmatmul.mubr.bf16.gmra.mrb[0].mxu0 %v2578
  %v4809 = vpop.f32.mrb[0].mxu0
  %v4810 = vadd.f32 0.0, %v4809
  %v4811 = vpop.f32.mrb[0].mxu0
  %v4812 = vpop.f32.mrb[0].mxu0
  %v4813 = vadd.f32 0.0, %v4812
  %v4814 = vpop.f32.mrb[0].mxu0
  %4815 = vmatprep.mubr.bf16.mxu0 0
  %4816 = vmatmul.mubr.bf16.gmra.mrb[0].mxu0 %v2579
  %v4817 = vpop.f32.mrb[0].mxu0
  %v4818 = vadd.f32 0.0, %v4817
  %v4819 = vpop.f32.mrb[0].mxu0
  %v4820 = vpop.f32.mrb[0].mxu0
  %v4821 = vadd.f32 0.0, %v4820
  %v4822 = vpop.f32.mrb[0].mxu0
  %4823 = vmatprep.mubr.bf16.mxu0 0
  %4824 = vmatmul.mubr.bf16.gmra.mrb[0].mxu0 %v2580
  %v4825 = vpop.f32.mrb[0].mxu0
  %v4826 = vadd.f32 0.0, %v4825
  %v4827 = vpop.f32.mrb[0].mxu0
  %v4828 = vpop.f32.mrb[0].mxu0
  %v4829 = vadd.f32 0.0, %v4828
  %v4830 = vpop.f32.mrb[0].mxu0
  %4831 = vmatprep.mubr.bf16.mxu0 0
  %4832 = vmatmul.mubr.bf16.gmra.mrb[0].mxu0 %v2581
  %v4833 = vpop.f32.mrb[0].mxu0
  %v4834 = vadd.f32 0.0, %v4833
  %v4835 = vpop.f32.mrb[0].mxu0
  %v4836 = vpop.f32.mrb[0].mxu0
  %v4837 = vadd.f32 0.0, %v4836
  %v4838 = vpop.f32.mrb[0].mxu0
  %4839 = vmatprep.mubr.bf16.mxu0 0
  %4840 = vmatmul.mubr.bf16.gmra.mrb[0].mxu0 %v2582
  %v4841 = vpop.f32.mrb[0].mxu0
  %v4842 = vadd.f32 0.0, %v4841
  %v4843 = vpop.f32.mrb[0].mxu0
  %v4844 = vpop.f32.mrb[0].mxu0
  %v4845 = vadd.f32 0.0, %v4844
  %v4846 = vpop.f32.mrb[0].mxu0
  %4847 = vmatprep.mubr.bf16.mxu0 0
  %4848 = vmatmul.mubr.bf16.gmra.mrb[0].mxu0 %v2583
  %v4849 = vpop.f32.mrb[0].mxu0
  %v4850 = vadd.f32 0.0, %v4849
  %v4851 = vpop.f32.mrb[0].mxu0
  %v4852 = vpop.f32.mrb[0].mxu0
  %v4853 = vadd.f32 0.0, %v4852
  %v4854 = vpop.f32.mrb[0].mxu0
  %4855 = vmatprep.mubr.bf16.mxu0 0
  %4856 = vmatmul.mubr.bf16.gmra.mrb[0].mxu0 %v2584
  %v4857 = vpop.f32.mrb[0].mxu0
  %v4858 = vadd.f32 0.0, %v4857
  %v4859 = vpop.f32.mrb[0].mxu0
  %v4860 = vpop.f32.mrb[0].mxu0
  %v4861 = vadd.f32 0.0, %v4860
  %v4862 = vpop.f32.mrb[0].mxu0
  %4863 = vmatprep.mubr.bf16.mxu0 0
  %4864 = vmatmul.mubr.bf16.gmra.mrb[0].mxu0 %v2585
  %v4865 = vpop.f32.mrb[0].mxu0
  %v4866 = vadd.f32 0.0, %v4865
  %v4867 = vpop.f32.mrb[0].mxu0
  %v4868 = vpop.f32.mrb[0].mxu0
  %v4869 = vadd.f32 0.0, %v4868
  %v4870 = vpop.f32.mrb[0].mxu0
  %4871 = vmatprep.mubr.bf16.mxu0 0
  %4872 = vmatmul.mubr.bf16.gmra.mrb[0].mxu0 %v2586
  %v4873 = vpop.f32.mrb[0].mxu0
  %v4874 = vadd.f32 0.0, %v4873
  %v4875 = vpop.f32.mrb[0].mxu0
  %v4876 = vpop.f32.mrb[0].mxu0
  %v4877 = vadd.f32 0.0, %v4876
  %v4878 = vpop.f32.mrb[0].mxu0
  %4879 = vmatprep.mubr.bf16.mxu0 0
  %4880 = vmatmul.mubr.bf16.gmra.mrb[0].mxu0 %v2587
  %v4881 = vpop.f32.mrb[0].mxu0
  %v4882 = vadd.f32 0.0, %v4881
  %v4883 = vpop.f32.mrb[0].mxu0
  %v4884 = vpop.f32.mrb[0].mxu0
  %v4885 = vadd.f32 0.0, %v4884
  %v4886 = vpop.f32.mrb[0].mxu0
  %4887 = vmatprep.mubr.bf16.mxu0 0
  %4888 = vmatmul.mubr.bf16.gmra.mrb[0].mxu0 %v2588
  %v4889 = vpop.f32.mrb[0].mxu0
  %v4890 = vadd.f32 0.0, %v4889
  %v4891 = vpop.f32.mrb[0].mxu0
  %v4892 = vpop.f32.mrb[0].mxu0
  %v4893 = vadd.f32 0.0, %v4892
  %v4894 = vpop.f32.mrb[0].mxu0
  %4895 = vmatprep.mubr.bf16.mxu0 0
  %4896 = vmatmul.mubr.bf16.gmra.mrb[0].mxu0 %v2589
  %v4897 = vpop.f32.mrb[0].mxu0
  %v4898 = vadd.f32 0.0, %v4897
  %v4899 = vpop.f32.mrb[0].mxu0
  %v4900 = vpop.f32.mrb[0].mxu0
  %v4901 = vadd.f32 0.0, %v4900
  %v4902 = vpop.f32.mrb[0].mxu0
  %4903 = vmatprep.mubr.bf16.mxu0 0
  %4904 = vmatmul.mubr.bf16.gmra.mrb[0].mxu0 %v2590
  %v4905 = vpop.f32.mrb[0].mxu0
  %v4906 = vadd.f32 0.0, %v4905
  %v4907 = vpop.f32.mrb[0].mxu0
  %v4908 = vpop.f32.mrb[0].mxu0
  %v4909 = vadd.f32 0.0, %v4908
  %v4910 = vpop.f32.mrb[0].mxu0
  %4911 = vmatprep.mubr.bf16.mxu0 0
  %4912 = vmatmul.mubr.bf16.gmra.mrb[0].mxu0 %v2591
  %v4913 = vpop.f32.mrb[0].mxu0
  %v4914 = vadd.f32 0.0, %v4913
  %v4915 = vpop.f32.mrb[0].mxu0
  %v4916 = vpop.f32.mrb[0].mxu0
  %v4917 = vadd.f32 0.0, %v4916
  %v4918 = vpop.f32.mrb[0].mxu0
  %4919 = vmatprep.mubr.bf16.mxu0 0
  %4920 = vmatmul.mubr.bf16.gmra.mrb[0].mxu0 %v2592
  %v4921 = vpop.f32.mrb[0].mxu0
  %v4922 = vadd.f32 0.0, %v4921
  %v4923 = vpop.f32.mrb[0].mxu0
  %v4924 = vpop.f32.mrb[0].mxu0
  %v4925 = vadd.f32 0.0, %v4924
  %v4926 = vpop.f32.mrb[0].mxu0
  %4927 = vmatprep.mubr.bf16.mxu0 0
  %4928 = vmatmul.mubr.bf16.gmra.mrb[0].mxu0 %v2593
  %v4929 = vpop.f32.mrb[0].mxu0
  %v4930 = vadd.f32 0.0, %v4929
  %v4931 = vpop.f32.mrb[0].mxu0
  %v4932 = vpop.f32.mrb[0].mxu0
  %v4933 = vadd.f32 0.0, %v4932
  %v4934 = vpop.f32.mrb[0].mxu0
  %4935 = vmatprep.mubr.bf16.mxu0 0
  %4936 = vmatmul.mubr.bf16.gmra.mrb[0].mxu0 %v2594
  %v4937 = vpop.f32.mrb[0].mxu0
  %v4938 = vadd.f32 0.0, %v4937
  %v4939 = vpop.f32.mrb[0].mxu0
  %v4940 = vpop.f32.mrb[0].mxu0
  %v4941 = vadd.f32 0.0, %v4940
  %v4942 = vpop.f32.mrb[0].mxu0
  %4943 = vmatprep.mubr.bf16.mxu0 0
  %4944 = vmatmul.mubr.bf16.gmra.mrb[0].mxu0 %v2595
  %v4945 = vpop.f32.mrb[0].mxu0
  %v4946 = vadd.f32 0.0, %v4945
  %v4947 = vpop.f32.mrb[0].mxu0
  %v4948 = vpop.f32.mrb[0].mxu0
  %v4949 = vadd.f32 0.0, %v4948
  %v4950 = vpop.f32.mrb[0].mxu0
  %4951 = vmatprep.mubr.bf16.mxu0 0
  %4952 = vmatmul.mubr.bf16.gmra.mrb[0].mxu0 %v2596
  %v4953 = vpop.f32.mrb[0].mxu0
  %v4954 = vadd.f32 0.0, %v4953
  %v4955 = vpop.f32.mrb[0].mxu0
  %v4956 = vpop.f32.mrb[0].mxu0
  %v4957 = vadd.f32 0.0, %v4956
  %v4958 = vpop.f32.mrb[0].mxu0
  %4959 = vmatprep.mubr.bf16.mxu0 0
  %4960 = vmatmul.mubr.bf16.gmra.mrb[0].mxu0 %v2597
  %v4961 = vpop.f32.mrb[0].mxu0
  %v4962 = vadd.f32 0.0, %v4961
  %v4963 = vpop.f32.mrb[0].mxu0
  %v4964 = vpop.f32.mrb[0].mxu0
  %v4965 = vadd.f32 0.0, %v4964
  %v4966 = vpop.f32.mrb[0].mxu0
  %4967 = vmatprep.mubr.bf16.mxu0 0
  %4968 = vmatmul.mubr.bf16.gmra.mrb[0].mxu0 %v2598
  %v4969 = vpop.f32.mrb[0].mxu0
  %v4970 = vadd.f32 0.0, %v4969
  %v4971 = vpop.f32.mrb[0].mxu0
  %v4972 = vpop.f32.mrb[0].mxu0
  %v4973 = vadd.f32 0.0, %v4972
  %v4974 = vpop.f32.mrb[0].mxu0
  %4975 = vmatprep.mubr.bf16.mxu0 0
  %4976 = vmatmul.mubr.bf16.gmra.mrb[0].mxu0 %v2599
  %v4977 = vpop.f32.mrb[0].mxu0
  %v4978 = vadd.f32 0.0, %v4977
  %v4979 = vpop.f32.mrb[0].mxu0
  %v4980 = vpop.f32.mrb[0].mxu0
  %v4981 = vadd.f32 0.0, %v4980
  %v4982 = vpop.f32.mrb[0].mxu0
  %4983 = vmatprep.mubr.bf16.mxu0 0
  %4984 = vmatmul.mubr.bf16.gmra.mrb[0].mxu0 %v2600
  %v4985 = vpop.f32.mrb[0].mxu0
  %v4986 = vadd.f32 0.0, %v4985
  %v4987 = vpop.f32.mrb[0].mxu0
  %v4988 = vpop.f32.mrb[0].mxu0
  %v4989 = vadd.f32 0.0, %v4988
  %v4990 = vpop.f32.mrb[0].mxu0
  %4991 = vmatprep.mubr.bf16.mxu0 0
  %4992 = vmatmul.mubr.bf16.gmra.mrb[0].mxu0 %v2601
  %v4993 = vpop.f32.mrb[0].mxu0
  %v4994 = vadd.f32 0.0, %v4993
  %v4995 = vpop.f32.mrb[0].mxu0
  %v4996 = vpop.f32.mrb[0].mxu0
  %v4997 = vadd.f32 0.0, %v4996
  %v4998 = vpop.f32.mrb[0].mxu0
  %4999 = vmatprep.mubr.bf16.mxu0 0
  %5000 = vmatmul.mubr.bf16.gmra.mrb[0].mxu0 %v2602
  %v5001 = vpop.f32.mrb[0].mxu0
  %v5002 = vadd.f32 0.0, %v5001
  %v5003 = vpop.f32.mrb[0].mxu0
  %v5004 = vpop.f32.mrb[0].mxu0
  %v5005 = vadd.f32 0.0, %v5004
  %v5006 = vpop.f32.mrb[0].mxu0
  %5007 = vmatprep.mubr.bf16.mxu0 0
  %5008 = vmatmul.mubr.bf16.gmra.mrb[0].mxu0 %v2603
  %v5009 = vpop.f32.mrb[0].mxu0
  %v5010 = vadd.f32 0.0, %v5009
  %v5011 = vpop.f32.mrb[0].mxu0
  %v5012 = vpop.f32.mrb[0].mxu0
  %v5013 = vadd.f32 0.0, %v5012
  %v5014 = vpop.f32.mrb[0].mxu0
  %5015 = vmatprep.mubr.bf16.mxu0 0
  %5016 = vmatmul.mubr.bf16.gmra.mrb[0].mxu0 %v2604
  %v5017 = vpop.f32.mrb[0].mxu0
  %v5018 = vadd.f32 0.0, %v5017
  %v5019 = vpop.f32.mrb[0].mxu0
  %v5020 = vpop.f32.mrb[0].mxu0
  %v5021 = vadd.f32 0.0, %v5020
  %v5022 = vpop.f32.mrb[0].mxu0
  %5023 = vmatprep.mubr.bf16.mxu0 0
  %5024 = vmatmul.mubr.bf16.gmra.mrb[0].mxu0 %v2605
  %v5025 = vpop.f32.mrb[0].mxu0
  %v5026 = vadd.f32 0.0, %v5025
  %v5027 = vpop.f32.mrb[0].mxu0
  %v5028 = vpop.f32.mrb[0].mxu0
  %v5029 = vadd.f32 0.0, %v5028
  %v5030 = vpop.f32.mrb[0].mxu0
  %5031 = vmatprep.mubr.bf16.mxu0 0
  %5032 = vmatmul.mubr.bf16.gmra.mrb[0].mxu0 %v2606
  %v5033 = vpop.f32.mrb[0].mxu0
  %v5034 = vadd.f32 0.0, %v5033
  %v5035 = vpop.f32.mrb[0].mxu0
  %v5036 = vpop.f32.mrb[0].mxu0
  %v5037 = vadd.f32 0.0, %v5036
  %v5038 = vpop.f32.mrb[0].mxu0
  %5039 = vmatprep.mubr.bf16.mxu0 0
  %5040 = vmatmul.mubr.bf16.gmra.mrb[0].mxu0 %v2607
  %v5041 = vpop.f32.mrb[0].mxu0
  %v5042 = vadd.f32 0.0, %v5041
  %v5043 = vpop.f32.mrb[0].mxu0
  %v5044 = vpop.f32.mrb[0].mxu0
  %v5045 = vadd.f32 0.0, %v5044
  %v5046 = vpop.f32.mrb[0].mxu0
  %5047 = vmatprep.mubr.bf16.mxu0 0
  %5048 = vmatmul.mubr.bf16.gmra.mrb[0].mxu0 %v2608
  %v5049 = vpop.f32.mrb[0].mxu0
  %v5050 = vadd.f32 0.0, %v5049
  %v5051 = vpop.f32.mrb[0].mxu0
  %v5052 = vpop.f32.mrb[0].mxu0
  %v5053 = vadd.f32 0.0, %v5052
  %v5054 = vpop.f32.mrb[0].mxu0
  %5055 = vmatprep.mubr.bf16.mxu0 0
  %5056 = vmatmul.mubr.bf16.gmra.mrb[0].mxu0 %v2609
  %v5057 = vpop.f32.mrb[0].mxu0
  %v5058 = vadd.f32 0.0, %v5057
  %v5059 = vpop.f32.mrb[0].mxu0
  %v5060 = vpop.f32.mrb[0].mxu0
  %v5061 = vadd.f32 0.0, %v5060
  %v5062 = vpop.f32.mrb[0].mxu0
  %5063 = vmatprep.mubr.bf16.mxu0 0
  %5064 = vmatmul.mubr.bf16.gmra.mrb[0].mxu0 %v2610
  %v5065 = vpop.f32.mrb[0].mxu0
  %v5066 = vadd.f32 0.0, %v5065
  %v5067 = vpop.f32.mrb[0].mxu0
  %v5068 = vpop.f32.mrb[0].mxu0
  %v5069 = vadd.f32 0.0, %v5068
  %v5070 = vpop.f32.mrb[0].mxu0
  %5071 = vmatprep.mubr.bf16.mxu0 0
  %5072 = vmatmul.mubr.bf16.gmra.mrb[0].mxu0 %v2611
  %v5073 = vpop.f32.mrb[0].mxu0
  %v5074 = vadd.f32 0.0, %v5073
  %v5075 = vpop.f32.mrb[0].mxu0
  %v5076 = vpop.f32.mrb[0].mxu0
  %v5077 = vadd.f32 0.0, %v5076
  %v5078 = vpop.f32.mrb[0].mxu0
  %5079 = vmatprep.mubr.bf16.mxu0 0
  %5080 = vmatmul.mubr.bf16.gmra.mrb[0].mxu0 %v2612
  %v5081 = vpop.f32.mrb[0].mxu0
  %v5082 = vadd.f32 0.0, %v5081
  %v5083 = vpop.f32.mrb[0].mxu0
  %v5084 = vpop.f32.mrb[0].mxu0
  %v5085 = vadd.f32 0.0, %v5084
  %v5086 = vpop.f32.mrb[0].mxu0
  %5087 = vmatprep.mubr.bf16.mxu0 0
  %5088 = vmatmul.mubr.bf16.gmra.mrb[0].mxu0 %v2613
  %v5089 = vpop.f32.mrb[0].mxu0
  %v5090 = vadd.f32 0.0, %v5089
  %v5091 = vpop.f32.mrb[0].mxu0
  %v5092 = vpop.f32.mrb[0].mxu0
  %v5093 = vadd.f32 0.0, %v5092
  %v5094 = vpop.f32.mrb[0].mxu0
  %5095 = vmatprep.mubr.bf16.mxu0 0
  %5096 = vmatmul.mubr.bf16.gmra.mrb[0].mxu0 %v2614
  %v5097 = vpop.f32.mrb[0].mxu0
  %v5098 = vadd.f32 0.0, %v5097
  %v5099 = vpop.f32.mrb[0].mxu0
  %v5100 = vpop.f32.mrb[0].mxu0
  %v5101 = vadd.f32 0.0, %v5100
  %v5102 = vpop.f32.mrb[0].mxu0
  %5103 = vmatprep.mubr.bf16.mxu0 0
  %5104 = vmatmul.mubr.bf16.gmra.mrb[0].mxu0 %v2615
  %v5105 = vpop.f32.mrb[0].mxu0
  %v5106 = vadd.f32 0.0, %v5105
  %v5107 = vpop.f32.mrb[0].mxu0
  %v5108 = vpop.f32.mrb[0].mxu0
  %v5109 = vadd.f32 0.0, %v5108
  %v5110 = vpop.f32.mrb[0].mxu0
  %5111 = vmatprep.mubr.bf16.mxu0 0
  %5112 = vmatmul.mubr.bf16.gmra.mrb[0].mxu0 %v2616
  %v5113 = vpop.f32.mrb[0].mxu0
  %v5114 = vadd.f32 0.0, %v5113
  %v5115 = vpop.f32.mrb[0].mxu0
  %v5116 = vpop.f32.mrb[0].mxu0
  %v5117 = vadd.f32 0.0, %v5116
  %v5118 = vpop.f32.mrb[0].mxu0
  %5119 = vmatprep.mubr.bf16.mxu0 0
  %5120 = vmatmul.mubr.bf16.gmra.mrb[0].mxu0 %v2617
  %v5121 = vpop.f32.mrb[0].mxu0
  %v5122 = vadd.f32 0.0, %v5121
  %v5123 = vpop.f32.mrb[0].mxu0
  %v5124 = vpop.f32.mrb[0].mxu0
  %v5125 = vadd.f32 0.0, %v5124
  %v5126 = vpop.f32.mrb[0].mxu0
  %5127 = vmatprep.mubr.bf16.mxu0 0
  %5128 = vmatmul.mubr.bf16.gmra.mrb[0].mxu0 %v2618
  %v5129 = vpop.f32.mrb[0].mxu0
  %v5130 = vadd.f32 0.0, %v5129
  %v5131 = vpop.f32.mrb[0].mxu0
  %v5132 = vpop.f32.mrb[0].mxu0
  %v5133 = vadd.f32 0.0, %v5132
  %v5134 = vpop.f32.mrb[0].mxu0
  %5135 = vmatprep.mubr.bf16.mxu0 0
  %5136 = vmatmul.mubr.bf16.gmra.mrb[0].mxu0 %v2619
  %v5137 = vpop.f32.mrb[0].mxu0
  %v5138 = vadd.f32 0.0, %v5137
  %v5139 = vpop.f32.mrb[0].mxu0
  %v5140 = vpop.f32.mrb[0].mxu0
  %v5141 = vadd.f32 0.0, %v5140
  %v5142 = vpop.f32.mrb[0].mxu0
  %5143 = vmatprep.mubr.bf16.mxu0 0
  %5144 = vmatmul.mubr.bf16.gmra.mrb[0].mxu0 %v2620
  %v5145 = vpop.f32.mrb[0].mxu0
  %v5146 = vadd.f32 0.0, %v5145
  %v5147 = vpop.f32.mrb[0].mxu0
  %v5148 = vpop.f32.mrb[0].mxu0
  %v5149 = vadd.f32 0.0, %v5148
  %v5150 = vpop.f32.mrb[0].mxu0
  %5151 = vmatprep.mubr.bf16.mxu0 0
  %5152 = vmatmul.mubr.bf16.gmra.mrb[0].mxu0 %v2621
  %v5153 = vpop.f32.mrb[0].mxu0
  %v5154 = vadd.f32 0.0, %v5153
  %v5155 = vpop.f32.mrb[0].mxu0
  %v5156 = vpop.f32.mrb[0].mxu0
  %v5157 = vadd.f32 0.0, %v5156
  %v5158 = vpop.f32.mrb[0].mxu0
  %5159 = vmatprep.mubr.bf16.mxu0 0
  %5160 = vmatmul.mubr.bf16.gmra.mrb[0].mxu0 %v2622
  %v5161 = vpop.f32.mrb[0].mxu0
  %v5162 = vadd.f32 0.0, %v5161
  %v5163 = vpop.f32.mrb[0].mxu0
  %v5164 = vpop.f32.mrb[0].mxu0
  %v5165 = vadd.f32 0.0, %v5164
  %v5166 = vpop.f32.mrb[0].mxu0
  %5167 = vmatprep.mubr.bf16.mxu0 0
  %5168 = vmatmul.mubr.bf16.gmra.mrb[0].mxu0 %v2623
  %v5169 = vpop.f32.mrb[0].mxu0
  %v5170 = vadd.f32 0.0, %v5169
  %v5171 = vpop.f32.mrb[0].mxu0
  %v5172 = vpop.f32.mrb[0].mxu0
  %v5173 = vadd.f32 0.0, %v5172
  %v5174 = vpop.f32.mrb[0].mxu0
  %5175 = vmatprep.mubr.bf16.mxu0 0
  %5176 = vmatmul.mubr.bf16.gmra.mrb[0].mxu0 %v2624
  %v5177 = vpop.f32.mrb[0].mxu0
  %v5178 = vadd.f32 0.0, %v5177
  %v5179 = vpop.f32.mrb[0].mxu0
  %v5180 = vpop.f32.mrb[0].mxu0
  %v5181 = vadd.f32 0.0, %v5180
  %v5182 = vpop.f32.mrb[0].mxu0
  %5183 = vmatprep.mubr.bf16.mxu0 0
  %5184 = vmatmul.mubr.bf16.gmra.mrb[0].mxu0 %v2625
  %v5185 = vpop.f32.mrb[0].mxu0
  %v5186 = vadd.f32 0.0, %v5185
  %v5187 = vpop.f32.mrb[0].mxu0
  %v5188 = vpop.f32.mrb[0].mxu0
  %v5189 = vadd.f32 0.0, %v5188
  %v5190 = vpop.f32.mrb[0].mxu0
  %5191 = vmatprep.mubr.bf16.mxu0 0
  %5192 = vmatmul.mubr.bf16.gmra.mrb[0].mxu0 %v2626
  %v5193 = vpop.f32.mrb[0].mxu0
  %v5194 = vadd.f32 0.0, %v5193
  %v5195 = vpop.f32.mrb[0].mxu0
  %v5196 = vpop.f32.mrb[0].mxu0
  %v5197 = vadd.f32 0.0, %v5196
  %v5198 = vpop.f32.mrb[0].mxu0
  %5199 = vmatprep.mubr.bf16.mxu0 0
  %5200 = vmatmul.mubr.bf16.gmra.mrb[0].mxu0 %v2627
  %v5201 = vpop.f32.mrb[0].mxu0
  %v5202 = vadd.f32 0.0, %v5201
  %v5203 = vpop.f32.mrb[0].mxu0
  %v5204 = vpop.f32.mrb[0].mxu0
  %v5205 = vadd.f32 0.0, %v5204
  %v5206 = vpop.f32.mrb[0].mxu0
  %5207 = vmatprep.mubr.bf16.mxu0 0
  %5208 = vmatmul.mubr.bf16.gmra.mrb[0].mxu0 %v2628
  %v5209 = vpop.f32.mrb[0].mxu0
  %v5210 = vadd.f32 0.0, %v5209
  %v5211 = vpop.f32.mrb[0].mxu0
  %v5212 = vpop.f32.mrb[0].mxu0
  %v5213 = vadd.f32 0.0, %v5212
  %v5214 = vpop.f32.mrb[0].mxu0
  %5215 = vmatprep.mubr.bf16.mxu0 0
  %5216 = vmatmul.mubr.bf16.gmra.mrb[0].mxu0 %v2629
  %v5217 = vpop.f32.mrb[0].mxu0
  %v5218 = vadd.f32 0.0, %v5217
  %v5219 = vpop.f32.mrb[0].mxu0
  %v5220 = vpop.f32.mrb[0].mxu0
  %v5221 = vadd.f32 0.0, %v5220
  %v5222 = vpop.f32.mrb[0].mxu0
  %5223 = vmatprep.mubr.bf16.mxu0 0
  %5224 = vmatmul.mubr.bf16.gmra.mrb[0].mxu0 %v2630
  %v5225 = vpop.f32.mrb[0].mxu0
  %v5226 = vadd.f32 0.0, %v5225
  %v5227 = vpop.f32.mrb[0].mxu0
  %v5228 = vpop.f32.mrb[0].mxu0
  %v5229 = vadd.f32 0.0, %v5228
  %v5230 = vpop.f32.mrb[0].mxu0
  %5231 = vmatprep.mubr.bf16.mxu0 0
  %5232 = vmatmul.mubr.bf16.gmra.mrb[0].mxu0 %v2631
  %v5233 = vpop.f32.mrb[0].mxu0
  %v5234 = vadd.f32 0.0, %v5233
  %v5235 = vpop.f32.mrb[0].mxu0
  %v5236 = vpop.f32.mrb[0].mxu0
  %v5237 = vadd.f32 0.0, %v5236
  %v5238 = vpop.f32.mrb[0].mxu0
  %5239 = vmatprep.mubr.bf16.mxu0 0
  %5240 = vmatmul.mubr.bf16.gmra.mrb[0].mxu0 %v2632
  %v5241 = vpop.f32.mrb[0].mxu0
  %v5242 = vadd.f32 0.0, %v5241
  %v5243 = vpop.f32.mrb[0].mxu0
  %v5244 = vpop.f32.mrb[0].mxu0
  %v5245 = vadd.f32 0.0, %v5244
  %v5246 = vpop.f32.mrb[0].mxu0
  %5247 = vmatprep.mubr.bf16.mxu0 0
  %5248 = vmatmul.mubr.bf16.gmra.mrb[0].mxu0 %v2633
  %v5249 = vpop.f32.mrb[0].mxu0
  %v5250 = vadd.f32 0.0, %v5249
  %v5251 = vpop.f32.mrb[0].mxu0
  %v5252 = vpop.f32.mrb[0].mxu0
  %v5253 = vadd.f32 0.0, %v5252
  %v5254 = vpop.f32.mrb[0].mxu0
  %5255 = vmatprep.mubr.bf16.mxu0 0
  %5256 = vmatmul.mubr.bf16.gmra.mrb[0].mxu0 %v2634
  %v5257 = vpop.f32.mrb[0].mxu0
  %v5258 = vadd.f32 0.0, %v5257
  %v5259 = vpop.f32.mrb[0].mxu0
  %v5260 = vpop.f32.mrb[0].mxu0
  %v5261 = vadd.f32 0.0, %v5260
  %v5262 = vpop.f32.mrb[0].mxu0
  %5263 = vmatprep.mubr.bf16.mxu0 0
  %5264 = vmatmul.mubr.bf16.gmra.mrb[0].mxu0 %v2635
  %v5265 = vpop.f32.mrb[0].mxu0
  %v5266 = vadd.f32 0.0, %v5265
  %v5267 = vpop.f32.mrb[0].mxu0
  %v5268 = vpop.f32.mrb[0].mxu0
  %v5269 = vadd.f32 0.0, %v5268
  %v5270 = vpop.f32.mrb[0].mxu0
  %5271 = vmatprep.mubr.bf16.mxu0 0
  %5272 = vmatmul.mubr.bf16.gmra.mrb[0].mxu0 %v2636
  %v5273 = vpop.f32.mrb[0].mxu0
  %v5274 = vadd.f32 0.0, %v5273
  %v5275 = vpop.f32.mrb[0].mxu0
  %v5276 = vpop.f32.mrb[0].mxu0
  %v5277 = vadd.f32 0.0, %v5276
  %v5278 = vpop.f32.mrb[0].mxu0
  %5279 = vmatprep.mubr.bf16.mxu0 0
  %5280 = vmatmul.mubr.bf16.gmra.mrb[0].mxu0 %v2637
  %v5281 = vpop.f32.mrb[0].mxu0
  %v5282 = vadd.f32 0.0, %v5281
  %v5283 = vpop.f32.mrb[0].mxu0
  %v5284 = vpop.f32.mrb[0].mxu0
  %v5285 = vadd.f32 0.0, %v5284
  %v5286 = vpop.f32.mrb[0].mxu0
  %5287 = vmatprep.mubr.bf16.mxu0 0
  %5288 = vmatmul.mubr.bf16.gmra.mrb[0].mxu0 %v2638
  %v5289 = vpop.f32.mrb[0].mxu0
  %v5290 = vadd.f32 0.0, %v5289
  %v5291 = vpop.f32.mrb[0].mxu0
  %v5292 = vpop.f32.mrb[0].mxu0
  %v5293 = vadd.f32 0.0, %v5292
  %v5294 = vpop.f32.mrb[0].mxu0
  %5295 = vmatprep.mubr.bf16.mxu0 0
  %5296 = vmatmul.mubr.bf16.gmra.mrb[0].mxu0 %v2639
  %v5297 = vpop.f32.mrb[0].mxu0
  %v5298 = vadd.f32 0.0, %v5297
  %v5299 = vpop.f32.mrb[0].mxu0
  %v5300 = vpop.f32.mrb[0].mxu0
  %v5301 = vadd.f32 0.0, %v5300
  %v5302 = vpop.f32.mrb[0].mxu0
  %5303 = vmatprep.mubr.bf16.mxu0 0
  %5304 = vmatmul.mubr.bf16.gmra.mrb[0].mxu0 %v2640
  %v5305 = vpop.f32.mrb[0].mxu0
  %v5306 = vadd.f32 0.0, %v5305
  %v5307 = vpop.f32.mrb[0].mxu0
  %v5308 = vpop.f32.mrb[0].mxu0
  %v5309 = vadd.f32 0.0, %v5308
  %v5310 = vpop.f32.mrb[0].mxu0
  %5311 = vmatprep.mubr.bf16.mxu0 0
  %5312 = vmatmul.mubr.bf16.gmra.mrb[0].mxu0 %v2641
  %v5313 = vpop.f32.mrb[0].mxu0
  %v5314 = vadd.f32 0.0, %v5313
  %v5315 = vpop.f32.mrb[0].mxu0
  %v5316 = vpop.f32.mrb[0].mxu0
  %v5317 = vadd.f32 0.0, %v5316
  %v5318 = vpop.f32.mrb[0].mxu0
  %5319 = vmatprep.mubr.bf16.mxu0 0
  %5320 = vmatmul.mubr.bf16.gmra.mrb[0].mxu0 %v2642
  %v5321 = vpop.f32.mrb[0].mxu0
  %v5322 = vadd.f32 0.0, %v5321
  %v5323 = vpop.f32.mrb[0].mxu0
  %v5324 = vpop.f32.mrb[0].mxu0
  %v5325 = vadd.f32 0.0, %v5324
  %v5326 = vpop.f32.mrb[0].mxu0
  %5327 = vmatprep.mubr.bf16.mxu0 0
  %5328 = vmatmul.mubr.bf16.gmra.mrb[0].mxu0 %v2643
  %v5329 = vpop.f32.mrb[0].mxu0
  %v5330 = vadd.f32 0.0, %v5329
  %v5331 = vpop.f32.mrb[0].mxu0
  %v5332 = vpop.f32.mrb[0].mxu0
  %v5333 = vadd.f32 0.0, %v5332
  %v5334 = vpop.f32.mrb[0].mxu0
  %5335 = vmatprep.mubr.bf16.mxu0 0
  %5336 = vmatmul.mubr.bf16.gmra.mrb[0].mxu0 %v2644
  %v5337 = vpop.f32.mrb[0].mxu0
  %v5338 = vadd.f32 0.0, %v5337
  %v5339 = vpop.f32.mrb[0].mxu0
  %v5340 = vpop.f32.mrb[0].mxu0
  %v5341 = vadd.f32 0.0, %v5340
  %v5342 = vpop.f32.mrb[0].mxu0
  %5343 = vmatprep.mubr.bf16.mxu0 0
  %5344 = vmatmul.mubr.bf16.gmra.mrb[0].mxu0 %v2645
  %v5345 = vpop.f32.mrb[0].mxu0
  %v5346 = vadd.f32 0.0, %v5345
  %v5347 = vpop.f32.mrb[0].mxu0
  %v5348 = vpop.f32.mrb[0].mxu0
  %v5349 = vadd.f32 0.0, %v5348
  %v5350 = vpop.f32.mrb[0].mxu0
  %5351 = vmatprep.mubr.bf16.mxu0 0
  %5352 = vmatmul.mubr.bf16.gmra.mrb[0].mxu0 %v2646
  %v5353 = vpop.f32.mrb[0].mxu0
  %v5354 = vadd.f32 0.0, %v5353
  %v5355 = vpop.f32.mrb[0].mxu0
  %v5356 = vpop.f32.mrb[0].mxu0
  %v5357 = vadd.f32 0.0, %v5356
  %v5358 = vpop.f32.mrb[0].mxu0
  %5359 = vmatprep.mubr.bf16.mxu0 0
  %5360 = vmatmul.mubr.bf16.gmra.mrb[0].mxu0 %v2647
  %v5361 = vpop.f32.mrb[0].mxu0
  %v5362 = vadd.f32 0.0, %v5361
  %v5363 = vpop.f32.mrb[0].mxu0
  %v5364 = vpop.f32.mrb[0].mxu0
  %v5365 = vadd.f32 0.0, %v5364
  %v5366 = vpop.f32.mrb[0].mxu0
  %5367 = vmatprep.mubr.bf16.mxu0 0
  %5368 = vmatmul.mubr.bf16.gmra.mrb[0].mxu0 %v2648
  %v5369 = vpop.f32.mrb[0].mxu0
  %v5370 = vadd.f32 0.0, %v5369
  %v5371 = vpop.f32.mrb[0].mxu0
  %v5372 = vpop.f32.mrb[0].mxu0
  %v5373 = vadd.f32 0.0, %v5372
  %v5374 = vpop.f32.mrb[0].mxu0
  %5375 = vmatprep.mubr.bf16.mxu0 0
  %5376 = vmatmul.mubr.bf16.gmra.mrb[0].mxu0 %v2649
  %v5377 = vpop.f32.mrb[0].mxu0
  %v5378 = vadd.f32 0.0, %v5377
  %v5379 = vpop.f32.mrb[0].mxu0
  %v5380 = vpop.f32.mrb[0].mxu0
  %v5381 = vadd.f32 0.0, %v5380
  %v5382 = vpop.f32.mrb[0].mxu0
  %5383 = vmatprep.mubr.bf16.mxu0 0
  %5384 = vmatmul.mubr.bf16.gmra.mrb[0].mxu0 %v2650
  %v5385 = vpop.f32.mrb[0].mxu0
  %v5386 = vadd.f32 0.0, %v5385
  %v5387 = vpop.f32.mrb[0].mxu0
  %v5388 = vpop.f32.mrb[0].mxu0
  %v5389 = vadd.f32 0.0, %v5388
  %v5390 = vpop.f32.mrb[0].mxu0
  %5391 = vmatprep.mubr.bf16.mxu0 0
  %5392 = vmatmul.mubr.bf16.gmra.mrb[0].mxu0 %v2651
  %v5393 = vpop.f32.mrb[0].mxu0
  %v5394 = vadd.f32 0.0, %v5393
  %v5395 = vpop.f32.mrb[0].mxu0
  %v5396 = vpop.f32.mrb[0].mxu0
  %v5397 = vadd.f32 0.0, %v5396
  %v5398 = vpop.f32.mrb[0].mxu0
  %5399 = vmatprep.mubr.bf16.mxu0 0
  %5400 = vmatmul.mubr.bf16.gmra.mrb[0].mxu0 %v2652
  %v5401 = vpop.f32.mrb[0].mxu0
  %v5402 = vadd.f32 0.0, %v5401
  %v5403 = vpop.f32.mrb[0].mxu0
  %v5404 = vpop.f32.mrb[0].mxu0
  %v5405 = vadd.f32 0.0, %v5404
  %v5406 = vpop.f32.mrb[0].mxu0
  %5407 = vmatprep.mubr.bf16.mxu0 0
  %5408 = vmatmul.mubr.bf16.gmra.mrb[0].mxu0 %v2653
  %v5409 = vpop.f32.mrb[0].mxu0
  %v5410 = vadd.f32 0.0, %v5409
  %v5411 = vpop.f32.mrb[0].mxu0
  %v5412 = vpop.f32.mrb[0].mxu0
  %v5413 = vadd.f32 0.0, %v5412
  %v5414 = vpop.f32.mrb[0].mxu0
  %5415 = vmatprep.mubr.bf16.mxu0 0
  %5416 = vmatmul.mubr.bf16.gmra.mrb[0].mxu0 %v2654
  %v5417 = vpop.f32.mrb[0].mxu0
  %v5418 = vadd.f32 0.0, %v5417
  %v5419 = vpop.f32.mrb[0].mxu0
  %v5420 = vpop.f32.mrb[0].mxu0
  %v5421 = vadd.f32 0.0, %v5420
  %v5422 = vpop.f32.mrb[0].mxu0
  %5423 = vmatprep.mubr.bf16.mxu0 0
  %5424 = vmatmul.mubr.bf16.gmra.mrb[0].mxu0 %v2655
  %v5425 = vpop.f32.mrb[0].mxu0
  %v5426 = vadd.f32 0.0, %v5425
  %v5427 = vpop.f32.mrb[0].mxu0
  %v5428 = vpop.f32.mrb[0].mxu0
  %v5429 = vadd.f32 0.0, %v5428
  %v5430 = vpop.f32.mrb[0].mxu0
  %5431 = vmatprep.mubr.bf16.mxu0 0
  %5432 = vmatmul.mubr.bf16.gmra.mrb[0].mxu0 %v2656
  %v5433 = vpop.f32.mrb[0].mxu0
  %v5434 = vadd.f32 0.0, %v5433
  %v5435 = vpop.f32.mrb[0].mxu0
  %v5436 = vpop.f32.mrb[0].mxu0
  %v5437 = vadd.f32 0.0, %v5436
  %v5438 = vpop.f32.mrb[0].mxu0
  %5439 = vmatprep.mubr.bf16.mxu0 0
  %5440 = vmatmul.mubr.bf16.gmra.mrb[0].mxu0 %v2657
  %v5441 = vpop.f32.mrb[0].mxu0
  %v5442 = vadd.f32 0.0, %v5441
  %v5443 = vpop.f32.mrb[0].mxu0
  %v5444 = vpop.f32.mrb[0].mxu0
  %v5445 = vadd.f32 0.0, %v5444
  %v5446 = vpop.f32.mrb[0].mxu0
  %5447 = vmatprep.mubr.bf16.mxu0 0
  %5448 = vmatmul.mubr.bf16.gmra.mrb[0].mxu0 %v2658
  %v5449 = vpop.f32.mrb[0].mxu0
  %v5450 = vadd.f32 0.0, %v5449
  %v5451 = vpop.f32.mrb[0].mxu0
  %v5452 = vpop.f32.mrb[0].mxu0
  %v5453 = vadd.f32 0.0, %v5452
  %v5454 = vpop.f32.mrb[0].mxu0
  %5455 = vmatprep.mubr.bf16.mxu0 0
  %5456 = vmatmul.mubr.bf16.gmra.mrb[0].mxu0 %v2659
  %v5457 = vpop.f32.mrb[0].mxu0
  %v5458 = vadd.f32 0.0, %v5457
  %v5459 = vpop.f32.mrb[0].mxu0
  %v5460 = vpop.f32.mrb[0].mxu0
  %v5461 = vadd.f32 0.0, %v5460
  %v5462 = vpop.f32.mrb[0].mxu0
  %5463 = vmatprep.mubr.bf16.mxu0 0
  %5464 = vmatmul.mubr.bf16.gmra.mrb[0].mxu0 %v2660
  %v5465 = vpop.f32.mrb[0].mxu0
  %v5466 = vadd.f32 0.0, %v5465
  %v5467 = vpop.f32.mrb[0].mxu0
  %v5468 = vpop.f32.mrb[0].mxu0
  %v5469 = vadd.f32 0.0, %v5468
  %v5470 = vpop.f32.mrb[0].mxu0
  %5471 = vmatprep.mubr.bf16.mxu0 0
  %5472 = vmatmul.mubr.bf16.gmra.mrb[0].mxu0 %v2661
  %v5473 = vpop.f32.mrb[0].mxu0
  %v5474 = vadd.f32 0.0, %v5473
  %v5475 = vpop.f32.mrb[0].mxu0
  %v5476 = vpop.f32.mrb[0].mxu0
  %v5477 = vadd.f32 0.0, %v5476
  %v5478 = vpop.f32.mrb[0].mxu0
  %5479 = vmatprep.mubr.bf16.mxu0 0
  %5480 = vmatmul.mubr.bf16.gmra.mrb[0].mxu0 %v2662
  %v5481 = vpop.f32.mrb[0].mxu0
  %v5482 = vadd.f32 0.0, %v5481
  %v5483 = vpop.f32.mrb[0].mxu0
  %v5484 = vpop.f32.mrb[0].mxu0
  %v5485 = vadd.f32 0.0, %v5484
  %v5486 = vpop.f32.mrb[0].mxu0
  %5487 = vmatprep.mubr.bf16.mxu0 0
  %5488 = vmatmul.mubr.bf16.gmra.mrb[0].mxu0 %v2663
  %v5489 = vpop.f32.mrb[0].mxu0
  %v5490 = vadd.f32 0.0, %v5489
  %v5491 = vpop.f32.mrb[0].mxu0
  %v5492 = vpop.f32.mrb[0].mxu0
  %v5493 = vadd.f32 0.0, %v5492
  %v5494 = vpop.f32.mrb[0].mxu0
  %5495 = vmatprep.mubr.bf16.mxu0 0
  %5496 = vmatmul.mubr.bf16.gmra.mrb[0].mxu0 %v2664
  %v5497 = vpop.f32.mrb[0].mxu0
  %v5498 = vadd.f32 0.0, %v5497
  %v5499 = vpop.f32.mrb[0].mxu0
  %v5500 = vpop.f32.mrb[0].mxu0
  %v5501 = vadd.f32 0.0, %v5500
  %v5502 = vpop.f32.mrb[0].mxu0
  %5503 = vmatprep.mubr.bf16.mxu0 0
  %5504 = vmatmul.mubr.bf16.gmra.mrb[0].mxu0 %v2665
  %v5505 = vpop.f32.mrb[0].mxu0
  %v5506 = vadd.f32 0.0, %v5505
  %v5507 = vpop.f32.mrb[0].mxu0
  %v5508 = vpop.f32.mrb[0].mxu0
  %v5509 = vadd.f32 0.0, %v5508
  %v5510 = vpop.f32.mrb[0].mxu0
  %5511 = vmatprep.mubr.bf16.mxu0 0
  %5512 = vmatmul.mubr.bf16.gmra.mrb[0].mxu0 %v2666
  %v5513 = vpop.f32.mrb[0].mxu0
  %v5514 = vadd.f32 0.0, %v5513
  %v5515 = vpop.f32.mrb[0].mxu0
  %v5516 = vpop.f32.mrb[0].mxu0
  %v5517 = vadd.f32 0.0, %v5516
  %v5518 = vpop.f32.mrb[0].mxu0
  %5519 = vmatprep.mubr.bf16.mxu0 0
  %5520 = vmatmul.mubr.bf16.gmra.mrb[0].mxu0 %v2667
  %v5521 = vpop.f32.mrb[0].mxu0
  %v5522 = vadd.f32 0.0, %v5521
  %v5523 = vpop.f32.mrb[0].mxu0
  %v5524 = vpop.f32.mrb[0].mxu0
  %v5525 = vadd.f32 0.0, %v5524
  %v5526 = vpop.f32.mrb[0].mxu0
  %5527 = vmatprep.mubr.bf16.mxu0 0
  %5528 = vmatmul.mubr.bf16.gmra.mrb[0].mxu0 %v2668
  %v5529 = vpop.f32.mrb[0].mxu0
  %v5530 = vadd.f32 0.0, %v5529
  %v5531 = vpop.f32.mrb[0].mxu0
  %v5532 = vpop.f32.mrb[0].mxu0
  %v5533 = vadd.f32 0.0, %v5532
  %v5534 = vpop.f32.mrb[0].mxu0
  %5535 = vmatprep.mubr.bf16.mxu0 0
  %5536 = vmatmul.mubr.bf16.gmra.mrb[0].mxu0 %v2669
  %v5537 = vpop.f32.mrb[0].mxu0
  %v5538 = vadd.f32 0.0, %v5537
  %v5539 = vpop.f32.mrb[0].mxu0
  %v5540 = vpop.f32.mrb[0].mxu0
  %v5541 = vadd.f32 0.0, %v5540
  %v5542 = vpop.f32.mrb[0].mxu0
  %5543 = vmatprep.mubr.bf16.mxu0 0
  %5544 = vmatmul.mubr.bf16.gmra.mrb[0].mxu0 %v2670
  %v5545 = vpop.f32.mrb[0].mxu0
  %v5546 = vadd.f32 0.0, %v5545
  %v5547 = vpop.f32.mrb[0].mxu0
  %v5548 = vpop.f32.mrb[0].mxu0
  %v5549 = vadd.f32 0.0, %v5548
  %v5550 = vpop.f32.mrb[0].mxu0
  %5551 = vmatprep.mubr.bf16.mxu0 0
  %5552 = vmatmul.mubr.bf16.gmra.mrb[0].mxu0 %v2671
  %v5553 = vpop.f32.mrb[0].mxu0
  %v5554 = vadd.f32 0.0, %v5553
  %v5555 = vpop.f32.mrb[0].mxu0
  %v5556 = vpop.f32.mrb[0].mxu0
  %v5557 = vadd.f32 0.0, %v5556
  %v5558 = vpop.f32.mrb[0].mxu0
  %5559 = vmatprep.mubr.bf16.mxu0 0
  %5560 = vmatmul.mubr.bf16.gmra.mrb[0].mxu0 %v2672
  %v5561 = vpop.f32.mrb[0].mxu0
  %v5562 = vadd.f32 0.0, %v5561
  %v5563 = vpop.f32.mrb[0].mxu0
  %v5564 = vpop.f32.mrb[0].mxu0
  %v5565 = vadd.f32 0.0, %v5564
  %v5566 = vpop.f32.mrb[0].mxu0
  %5567 = vmatprep.mubr.bf16.mxu0 0
  %5568 = vmatmul.mubr.bf16.gmra.mrb[0].mxu0 %v2673
  %v5569 = vpop.f32.mrb[0].mxu0
  %v5570 = vadd.f32 0.0, %v5569
  %v5571 = vpop.f32.mrb[0].mxu0
  %v5572 = vpop.f32.mrb[0].mxu0
  %v5573 = vadd.f32 0.0, %v5572
  %v5574 = vpop.f32.mrb[0].mxu0
  %5575 = vmatprep.mubr.bf16.mxu0 0
  %5576 = vmatmul.mubr.bf16.gmra.mrb[0].mxu0 %v2674
  %v5577 = vpop.f32.mrb[0].mxu0
  %v5578 = vadd.f32 0.0, %v5577
  %v5579 = vpop.f32.mrb[0].mxu0
  %v5580 = vpop.f32.mrb[0].mxu0
  %v5581 = vadd.f32 0.0, %v5580
  %v5582 = vpop.f32.mrb[0].mxu0
  %5583 = vmatprep.mubr.bf16.mxu0 0
  %5584 = vmatmul.mubr.bf16.gmra.mrb[0].mxu0 %v2675
  %v5585 = vpop.f32.mrb[0].mxu0
  %v5586 = vadd.f32 0.0, %v5585
  %v5587 = vpop.f32.mrb[0].mxu0
  %v5588 = vpop.f32.mrb[0].mxu0
  %v5589 = vadd.f32 0.0, %v5588
  %v5590 = vpop.f32.mrb[0].mxu0
  %5591 = vmatprep.mubr.bf16.mxu0 0
  %5592 = vmatmul.mubr.bf16.gmra.mrb[0].mxu0 %v2676
  %v5593 = vpop.f32.mrb[0].mxu0
  %v5594 = vadd.f32 0.0, %v5593
  %v5595 = vpop.f32.mrb[0].mxu0
  %v5596 = vpop.f32.mrb[0].mxu0
  %v5597 = vadd.f32 0.0, %v5596
  %v5598 = vpop.f32.mrb[0].mxu0
  %5599 = vmatprep.mubr.bf16.mxu0 0
  %5600 = vmatmul.mubr.bf16.gmra.mrb[0].mxu0 %v2677
  %v5601 = vpop.f32.mrb[0].mxu0
  %v5602 = vadd.f32 0.0, %v5601
  %v5603 = vpop.f32.mrb[0].mxu0
  %v5604 = vpop.f32.mrb[0].mxu0
  %v5605 = vadd.f32 0.0, %v5604
  %v5606 = vpop.f32.mrb[0].mxu0
  %5607 = vmatprep.mubr.bf16.mxu0 0
  %5608 = vmatmul.mubr.bf16.gmra.mrb[0].mxu0 %v2678
  %v5609 = vpop.f32.mrb[0].mxu0
  %v5610 = vadd.f32 0.0, %v5609
  %v5611 = vpop.f32.mrb[0].mxu0
  %v5612 = vpop.f32.mrb[0].mxu0
  %v5613 = vadd.f32 0.0, %v5612
  %v5614 = vpop.f32.mrb[0].mxu0
  %5615 = vmatprep.mubr.bf16.mxu0 0
  %5616 = vmatmul.mubr.bf16.gmra.mrb[0].mxu0 %v2679
  %v5617 = vpop.f32.mrb[0].mxu0
  %v5618 = vadd.f32 0.0, %v5617
  %v5619 = vpop.f32.mrb[0].mxu0
  %v5620 = vpop.f32.mrb[0].mxu0
  %v5621 = vadd.f32 0.0, %v5620
  %v5622 = vpop.f32.mrb[0].mxu0
  %5623 = vmatprep.mubr.bf16.mxu0 0
  %5624 = vmatmul.mubr.bf16.gmra.mrb[0].mxu0 %v2680
  %v5625 = vpop.f32.mrb[0].mxu0
  %v5626 = vadd.f32 0.0, %v5625
  %v5627 = vpop.f32.mrb[0].mxu0
  %v5628 = vpop.f32.mrb[0].mxu0
  %v5629 = vadd.f32 0.0, %v5628
  %v5630 = vpop.f32.mrb[0].mxu0
  %5631 = vmatprep.mubr.bf16.mxu0 0
  %5632 = vmatmul.mubr.bf16.gmra.mrb[0].mxu0 %v2681
  %v5633 = vpop.f32.mrb[0].mxu0
  %v5634 = vadd.f32 0.0, %v5633
  %v5635 = vpop.f32.mrb[0].mxu0
  %v5636 = vpop.f32.mrb[0].mxu0
  %v5637 = vadd.f32 0.0, %v5636
  %v5638 = vpop.f32.mrb[0].mxu0
  %5639 = vmatprep.mubr.bf16.mxu0 0
  %5640 = vmatmul.mubr.bf16.gmra.mrb[0].mxu0 %v2682
  %v5641 = vpop.f32.mrb[0].mxu0
  %v5642 = vadd.f32 0.0, %v5641
  %v5643 = vpop.f32.mrb[0].mxu0
  %v5644 = vpop.f32.mrb[0].mxu0
  %v5645 = vadd.f32 0.0, %v5644
  %v5646 = vpop.f32.mrb[0].mxu0
  %5647 = vmatprep.mubr.bf16.mxu0 0
  %5648 = vmatmul.mubr.bf16.gmra.mrb[0].mxu0 %v2683
  %v5649 = vpop.f32.mrb[0].mxu0
  %v5650 = vadd.f32 0.0, %v5649
  %v5651 = vpop.f32.mrb[0].mxu0
  %v5652 = vpop.f32.mrb[0].mxu0
  %v5653 = vadd.f32 0.0, %v5652
  %v5654 = vpop.f32.mrb[0].mxu0
  %5655 = vmatprep.mubr.bf16.mxu0 0
  %5656 = vmatmul.mubr.bf16.gmra.mrb[0].mxu0 %v2684
  %v5657 = vpop.f32.mrb[0].mxu0
  %v5658 = vadd.f32 0.0, %v5657
  %v5659 = vpop.f32.mrb[0].mxu0
  %v5660 = vpop.f32.mrb[0].mxu0
  %v5661 = vadd.f32 0.0, %v5660
  %v5662 = vpop.f32.mrb[0].mxu0
  %5663 = vmatprep.mubr.bf16.mxu0 0
  %5664 = vmatmul.mubr.bf16.gmra.mrb[0].mxu0 %v2685
  %v5665 = vpop.f32.mrb[0].mxu0
  %v5666 = vadd.f32 0.0, %v5665
  %v5667 = vpop.f32.mrb[0].mxu0
  %v5668 = vpop.f32.mrb[0].mxu0
  %v5669 = vadd.f32 0.0, %v5668
  %v5670 = vpop.f32.mrb[0].mxu0
  %5671 = vmatprep.mubr.bf16.mxu0 0
  %5672 = vmatmul.mubr.bf16.gmra.mrb[0].mxu0 %v2686
  %v5673 = vpop.f32.mrb[0].mxu0
  %v5674 = vadd.f32 0.0, %v5673
  %v5675 = vpop.f32.mrb[0].mxu0
  %v5676 = vpop.f32.mrb[0].mxu0
  %v5677 = vadd.f32 0.0, %v5676
  %v5678 = vpop.f32.mrb[0].mxu0
  %5679 = vmatprep.mubr.bf16.mxu0 0
  %5680 = vmatmul.mubr.bf16.gmra.mrb[0].mxu0 %v2687
  %v5681 = vpop.f32.mrb[0].mxu0
  %v5682 = vadd.f32 0.0, %v5681
  %v5683 = vpop.f32.mrb[0].mxu0
  %v5684 = vpop.f32.mrb[0].mxu0
  %v5685 = vadd.f32 0.0, %v5684
  %v5686 = vpop.f32.mrb[0].mxu0
  %5687 = vmatprep.mubr.bf16.mxu0 0
  %5688 = vmatmul.mubr.bf16.gmra.mrb[0].mxu0 %v2688
  %v5689 = vpop.f32.mrb[0].mxu0
  %v5690 = vadd.f32 0.0, %v5689
  %v5691 = vpop.f32.mrb[0].mxu0
  %v5692 = vpop.f32.mrb[0].mxu0
  %v5693 = vadd.f32 0.0, %v5692
  %v5694 = vpop.f32.mrb[0].mxu0
  %5695 = vmatprep.mubr.bf16.mxu0 0
  %5696 = vmatmul.mubr.bf16.gmra.mrb[0].mxu0 %v2689
  %v5697 = vpop.f32.mrb[0].mxu0
  %v5698 = vadd.f32 0.0, %v5697
  %v5699 = vpop.f32.mrb[0].mxu0
  %v5700 = vpop.f32.mrb[0].mxu0
  %v5701 = vadd.f32 0.0, %v5700
  %v5702 = vpop.f32.mrb[0].mxu0
  %5703 = vmatprep.mubr.bf16.mxu0 0
  %5704 = vmatmul.mubr.bf16.gmra.mrb[0].mxu0 %v2690
  %v5705 = vpop.f32.mrb[0].mxu0
  %v5706 = vadd.f32 0.0, %v5705
  %v5707 = vpop.f32.mrb[0].mxu0
  %v5708 = vpop.f32.mrb[0].mxu0
  %v5709 = vadd.f32 0.0, %v5708
  %v5710 = vpop.f32.mrb[0].mxu0
  %5711 = vmatprep.mubr.bf16.mxu0 0
  %5712 = vmatmul.mubr.bf16.gmra.mrb[0].mxu0 %v2691
  %v5713 = vpop.f32.mrb[0].mxu0
  %v5714 = vadd.f32 0.0, %v5713
  %v5715 = vpop.f32.mrb[0].mxu0
  %v5716 = vpop.f32.mrb[0].mxu0
  %v5717 = vadd.f32 0.0, %v5716
  %v5718 = vpop.f32.mrb[0].mxu0
  %5719 = vmatprep.mubr.bf16.mxu0 0
  %5720 = vmatmul.mubr.bf16.gmra.mrb[0].mxu0 %v2692
  %v5721 = vpop.f32.mrb[0].mxu0
  %v5722 = vadd.f32 0.0, %v5721
  %v5723 = vpop.f32.mrb[0].mxu0
  %v5724 = vpop.f32.mrb[0].mxu0
  %v5725 = vadd.f32 0.0, %v5724
  %v5726 = vpop.f32.mrb[0].mxu0
  %5727 = vmatprep.mubr.bf16.mxu0 0
  %5728 = vmatmul.mubr.bf16.gmra.mrb[0].mxu0 %v2693
  %v5729 = vpop.f32.mrb[0].mxu0
  %v5730 = vadd.f32 0.0, %v5729
  %v5731 = vpop.f32.mrb[0].mxu0
  %v5732 = vpop.f32.mrb[0].mxu0
  %v5733 = vadd.f32 0.0, %v5732
  %v5734 = vpop.f32.mrb[0].mxu0
  %5735 = vmatprep.mubr.bf16.mxu0 0
  %5736 = vmatmul.mubr.bf16.gmra.mrb[0].mxu0 %v2694
  %v5737 = vpop.f32.mrb[0].mxu0
  %v5738 = vadd.f32 0.0, %v5737
  %v5739 = vpop.f32.mrb[0].mxu0
  %v5740 = vpop.f32.mrb[0].mxu0
  %v5741 = vadd.f32 0.0, %v5740
  %v5742 = vpop.f32.mrb[0].mxu0
  %5743 = vmatprep.mubr.bf16.mxu0 0
  %5744 = vmatmul.mubr.bf16.gmra.mrb[0].mxu0 %v2695
  %v5745 = vpop.f32.mrb[0].mxu0
  %v5746 = vadd.f32 0.0, %v5745
  %v5747 = vpop.f32.mrb[0].mxu0
  %v5748 = vpop.f32.mrb[0].mxu0
  %v5749 = vadd.f32 0.0, %v5748
  %v5750 = vpop.f32.mrb[0].mxu0
  %5751 = vmatprep.mubr.bf16.mxu0 0
  %5752 = vmatmul.mubr.bf16.gmra.mrb[0].mxu0 %v2696
  %v5753 = vpop.f32.mrb[0].mxu0
  %v5754 = vadd.f32 0.0, %v5753
  %v5755 = vpop.f32.mrb[0].mxu0
  %v5756 = vpop.f32.mrb[0].mxu0
  %v5757 = vadd.f32 0.0, %v5756
  %v5758 = vpop.f32.mrb[0].mxu0
  %5759 = vmatprep.mubr.bf16.mxu0 0
  %5760 = vmatmul.mubr.bf16.gmra.mrb[0].mxu0 %v2697
  %v5761 = vpop.f32.mrb[0].mxu0
  %v5762 = vadd.f32 0.0, %v5761
  %v5763 = vpop.f32.mrb[0].mxu0
  %v5764 = vpop.f32.mrb[0].mxu0
  %v5765 = vadd.f32 0.0, %v5764
  %v5766 = vpop.f32.mrb[0].mxu0
  %5767 = vmatprep.mubr.bf16.mxu0 0
  %5768 = vmatmul.mubr.bf16.gmra.mrb[0].mxu0 %v2698
  %v5769 = vpop.f32.mrb[0].mxu0
  %v5770 = vadd.f32 0.0, %v5769
  %v5771 = vpop.f32.mrb[0].mxu0
  %v5772 = vpop.f32.mrb[0].mxu0
  %v5773 = vadd.f32 0.0, %v5772
  %v5774 = vpop.f32.mrb[0].mxu0
  %5775 = vmatprep.mubr.bf16.mxu0 0
  %5776 = vmatmul.mubr.bf16.gmra.mrb[0].mxu0 %v2699
  %v5777 = vpop.f32.mrb[0].mxu0
  %v5778 = vadd.f32 0.0, %v5777
  %v5779 = vpop.f32.mrb[0].mxu0
  %v5780 = vpop.f32.mrb[0].mxu0
  %v5781 = vadd.f32 0.0, %v5780
  %v5782 = vpop.f32.mrb[0].mxu0
  %5783 = vmatprep.mubr.bf16.mxu0 0
  %5784 = vmatmul.mubr.bf16.gmra.mrb[0].mxu0 %v2700
  %v5785 = vpop.f32.mrb[0].mxu0
  %v5786 = vadd.f32 0.0, %v5785
  %v5787 = vpop.f32.mrb[0].mxu0
  %v5788 = vpop.f32.mrb[0].mxu0
  %v5789 = vadd.f32 0.0, %v5788
  %v5790 = vpop.f32.mrb[0].mxu0
  %5791 = vmatprep.mubr.bf16.mxu0 0
  %5792 = vmatmul.mubr.bf16.gmra.mrb[0].mxu0 %v2701
  %v5793 = vpop.f32.mrb[0].mxu0
  %v5794 = vadd.f32 0.0, %v5793
  %v5795 = vpop.f32.mrb[0].mxu0
  %v5796 = vpop.f32.mrb[0].mxu0
  %v5797 = vadd.f32 0.0, %v5796
  %v5798 = vpop.f32.mrb[0].mxu0
  %5799 = vmatprep.mubr.bf16.mxu0 0
  %5800 = vmatmul.mubr.bf16.gmra.mrb[0].mxu0 %v2702
  %v5801 = vpop.f32.mrb[0].mxu0
  %v5802 = vadd.f32 0.0, %v5801
  %v5803 = vpop.f32.mrb[0].mxu0
  %v5804 = vpop.f32.mrb[0].mxu0
  %v5805 = vadd.f32 0.0, %v5804
  %v5806 = vpop.f32.mrb[0].mxu0
  %5807 = vmatprep.mubr.bf16.mxu0 0
  %5808 = vmatmul.mubr.bf16.gmra.mrb[0].mxu0 %v2703
  %v5809 = vpop.f32.mrb[0].mxu0
  %v5810 = vadd.f32 0.0, %v5809
  %v5811 = vpop.f32.mrb[0].mxu0
  %v5812 = vpop.f32.mrb[0].mxu0
  %v5813 = vadd.f32 0.0, %v5812
  %v5814 = vpop.f32.mrb[0].mxu0
  %5815 = vmatprep.mubr.bf16.mxu0 0
  %5816 = vmatmul.mubr.bf16.gmra.mrb[0].mxu0 %v2704
  %v5817 = vpop.f32.mrb[0].mxu0
  %v5818 = vadd.f32 0.0, %v5817
  %v5819 = vpop.f32.mrb[0].mxu0
  %v5820 = vpop.f32.mrb[0].mxu0
  %v5821 = vadd.f32 0.0, %v5820
  %v5822 = vpop.f32.mrb[0].mxu0
  %5823 = vmatprep.mubr.bf16.mxu0 0
  %5824 = vmatmul.mubr.bf16.gmra.mrb[0].mxu0 %v2705
  %v5825 = vpop.f32.mrb[0].mxu0
  %v5826 = vadd.f32 0.0, %v5825
  %v5827 = vpop.f32.mrb[0].mxu0
  %v5828 = vpop.f32.mrb[0].mxu0
  %v5829 = vadd.f32 0.0, %v5828
  %v5830 = vpop.f32.mrb[0].mxu0
  %5831 = vmatprep.mubr.bf16.mxu0 0
  %5832 = vmatmul.mubr.bf16.gmra.mrb[0].mxu0 %v2706
  %v5833 = vpop.f32.mrb[0].mxu0
  %v5834 = vadd.f32 0.0, %v5833
  %v5835 = vpop.f32.mrb[0].mxu0
  %v5836 = vpop.f32.mrb[0].mxu0
  %v5837 = vadd.f32 0.0, %v5836
  %v5838 = vpop.f32.mrb[0].mxu0
  %5839 = vmatprep.mubr.bf16.mxu0 0
  %5840 = vmatmul.mubr.bf16.gmra.mrb[0].mxu0 %v2707
  %v5841 = vpop.f32.mrb[0].mxu0
  %v5842 = vadd.f32 0.0, %v5841
  %v5843 = vpop.f32.mrb[0].mxu0
  %v5844 = vpop.f32.mrb[0].mxu0
  %v5845 = vadd.f32 0.0, %v5844
  %v5846 = vpop.f32.mrb[0].mxu0
  %5847 = vmatprep.mubr.bf16.mxu0 0
  %5848 = vmatmul.mubr.bf16.gmra.mrb[0].mxu0 %v2708
  %v5849 = vpop.f32.mrb[0].mxu0
  %v5850 = vadd.f32 0.0, %v5849
  %v5851 = vpop.f32.mrb[0].mxu0
  %v5852 = vpop.f32.mrb[0].mxu0
  %v5853 = vadd.f32 0.0, %v5852
  %v5854 = vpop.f32.mrb[0].mxu0
  %5855 = vmatprep.mubr.bf16.mxu0 0
  %5856 = vmatmul.mubr.bf16.gmra.mrb[0].mxu0 %v2709
  %v5857 = vpop.f32.mrb[0].mxu0
  %v5858 = vadd.f32 0.0, %v5857
  %v5859 = vpop.f32.mrb[0].mxu0
  %v5860 = vpop.f32.mrb[0].mxu0
  %v5861 = vadd.f32 0.0, %v5860
  %v5862 = vpop.f32.mrb[0].mxu0
  %5863 = vmatprep.mubr.bf16.mxu0 0
  %5864 = vmatmul.mubr.bf16.gmra.mrb[0].mxu0 %v2710
  %v5865 = vpop.f32.mrb[0].mxu0
  %v5866 = vadd.f32 0.0, %v5865
  %v5867 = vpop.f32.mrb[0].mxu0
  %v5868 = vpop.f32.mrb[0].mxu0
  %v5869 = vadd.f32 0.0, %v5868
  %v5870 = vpop.f32.mrb[0].mxu0
  %5871 = vmatprep.mubr.bf16.mxu0 0
  %5872 = vmatmul.mubr.bf16.gmra.mrb[0].mxu0 %v2711
  %v5873 = vpop.f32.mrb[0].mxu0
  %v5874 = vadd.f32 0.0, %v5873
  %v5875 = vpop.f32.mrb[0].mxu0
  %v5876 = vpop.f32.mrb[0].mxu0
  %v5877 = vadd.f32 0.0, %v5876
  %v5878 = vpop.f32.mrb[0].mxu0
  %5879 = vmatprep.mubr.bf16.mxu0 0
  %5880 = vmatmul.mubr.bf16.gmra.mrb[0].mxu0 %v2712
  %v5881 = vpop.f32.mrb[0].mxu0
  %v5882 = vadd.f32 0.0, %v5881
  %v5883 = vpop.f32.mrb[0].mxu0
  %v5884 = vpop.f32.mrb[0].mxu0
  %v5885 = vadd.f32 0.0, %v5884
  %v5886 = vpop.f32.mrb[0].mxu0
  %5887 = vmatprep.mubr.bf16.mxu0 0
  %5888 = vmatmul.mubr.bf16.gmra.mrb[0].mxu0 %v2713
  %v5889 = vpop.f32.mrb[0].mxu0
  %v5890 = vadd.f32 0.0, %v5889
  %v5891 = vpop.f32.mrb[0].mxu0
  %v5892 = vpop.f32.mrb[0].mxu0
  %v5893 = vadd.f32 0.0, %v5892
  %v5894 = vpop.f32.mrb[0].mxu0
  %5895 = vmatprep.mubr.bf16.mxu0 0
  %5896 = vmatmul.mubr.bf16.gmra.mrb[0].mxu0 %v2714
  %v5897 = vpop.f32.mrb[0].mxu0
  %v5898 = vadd.f32 0.0, %v5897
  %v5899 = vpop.f32.mrb[0].mxu0
  %v5900 = vpop.f32.mrb[0].mxu0
  %v5901 = vadd.f32 0.0, %v5900
  %v5902 = vpop.f32.mrb[0].mxu0
  %5903 = vmatprep.mubr.bf16.mxu0 0
  %5904 = vmatmul.mubr.bf16.gmra.mrb[0].mxu0 %v2715
  %v5905 = vpop.f32.mrb[0].mxu0
  %v5906 = vadd.f32 0.0, %v5905
  %v5907 = vpop.f32.mrb[0].mxu0
  %v5908 = vpop.f32.mrb[0].mxu0
  %v5909 = vadd.f32 0.0, %v5908
  %v5910 = vpop.f32.mrb[0].mxu0
  %5911 = vmatprep.mubr.bf16.mxu0 0
  %5912 = vmatmul.mubr.bf16.gmra.mrb[0].mxu0 %v2716
  %v5913 = vpop.f32.mrb[0].mxu0
  %v5914 = vadd.f32 0.0, %v5913
  %v5915 = vpop.f32.mrb[0].mxu0
  %v5916 = vpop.f32.mrb[0].mxu0
  %v5917 = vadd.f32 0.0, %v5916
  %v5918 = vpop.f32.mrb[0].mxu0
  %5919 = vmatprep.mubr.bf16.mxu0 0
  %5920 = vmatmul.mubr.bf16.gmra.mrb[0].mxu0 %v2717
  %v5921 = vpop.f32.mrb[0].mxu0
  %v5922 = vadd.f32 0.0, %v5921
  %v5923 = vpop.f32.mrb[0].mxu0
  %v5924 = vpop.f32.mrb[0].mxu0
  %v5925 = vadd.f32 0.0, %v5924
  %v5926 = vpop.f32.mrb[0].mxu0
  %5927 = vmatprep.mubr.bf16.mxu0 0
  %5928 = vmatmul.mubr.bf16.gmra.mrb[0].mxu0 %v2718
  %v5929 = vpop.f32.mrb[0].mxu0
  %v5930 = vadd.f32 0.0, %v5929
  %v5931 = vpop.f32.mrb[0].mxu0
  %v5932 = vpop.f32.mrb[0].mxu0
  %v5933 = vadd.f32 0.0, %v5932
  %v5934 = vpop.f32.mrb[0].mxu0
  %5935 = vmatprep.mubr.bf16.mxu0 0
  %5936 = vmatmul.mubr.bf16.gmra.mrb[0].mxu0 %v2719
  %v5937 = vpop.f32.mrb[0].mxu0
  %v5938 = vadd.f32 0.0, %v5937
  %v5939 = vpop.f32.mrb[0].mxu0
  %v5940 = vpop.f32.mrb[0].mxu0
  %v5941 = vadd.f32 0.0, %v5940
  %v5942 = vpop.f32.mrb[0].mxu0
  %5943 = vmatprep.mubr.bf16.mxu0 0
  %5944 = vmatmul.mubr.bf16.gmra.mrb[0].mxu0 %v2720
  %v5945 = vpop.f32.mrb[0].mxu0
  %v5946 = vadd.f32 0.0, %v5945
  %v5947 = vpop.f32.mrb[0].mxu0
  %v5948 = vpop.f32.mrb[0].mxu0
  %v5949 = vadd.f32 0.0, %v5948
  %v5950 = vpop.f32.mrb[0].mxu0
  %5951 = vmatprep.mubr.bf16.mxu0 0
  %5952 = vmatmul.mubr.bf16.gmra.mrb[0].mxu0 %v2721
  %v5953 = vpop.f32.mrb[0].mxu0
  %v5954 = vadd.f32 0.0, %v5953
  %v5955 = vpop.f32.mrb[0].mxu0
  %v5956 = vpop.f32.mrb[0].mxu0
  %v5957 = vadd.f32 0.0, %v5956
  %v5958 = vpop.f32.mrb[0].mxu0
  %5959 = vmatprep.mubr.bf16.mxu0 0
  %5960 = vmatmul.mubr.bf16.gmra.mrb[0].mxu0 %v2722
  %v5961 = vpop.f32.mrb[0].mxu0
  %v5962 = vadd.f32 0.0, %v5961
  %v5963 = vpop.f32.mrb[0].mxu0
  %v5964 = vpop.f32.mrb[0].mxu0
  %v5965 = vadd.f32 0.0, %v5964
  %v5966 = vpop.f32.mrb[0].mxu0
  %5967 = vmatprep.mubr.bf16.mxu0 0
  %5968 = vmatmul.mubr.bf16.gmra.mrb[0].mxu0 %v2723
  %v5969 = vpop.f32.mrb[0].mxu0
  %v5970 = vadd.f32 0.0, %v5969
  %v5971 = vpop.f32.mrb[0].mxu0
  %v5972 = vpop.f32.mrb[0].mxu0
  %v5973 = vadd.f32 0.0, %v5972
  %v5974 = vpop.f32.mrb[0].mxu0
  %5975 = vmatprep.mubr.bf16.mxu0 0
  %5976 = vmatmul.mubr.bf16.gmra.mrb[0].mxu0 %v2724
  %v5977 = vpop.f32.mrb[0].mxu0
  %v5978 = vadd.f32 0.0, %v5977
  %v5979 = vpop.f32.mrb[0].mxu0
  %v5980 = vpop.f32.mrb[0].mxu0
  %v5981 = vadd.f32 0.0, %v5980
  %v5982 = vpop.f32.mrb[0].mxu0
  %5983 = vmatprep.mubr.bf16.mxu0 0
  %5984 = vmatmul.mubr.bf16.gmra.mrb[0].mxu0 %v2725
  %v5985 = vpop.f32.mrb[0].mxu0
  %v5986 = vadd.f32 0.0, %v5985
  %v5987 = vpop.f32.mrb[0].mxu0
  %v5988 = vpop.f32.mrb[0].mxu0
  %v5989 = vadd.f32 0.0, %v5988
  %v5990 = vpop.f32.mrb[0].mxu0
  %5991 = vmatprep.mubr.bf16.mxu0 0
  %5992 = vmatmul.mubr.bf16.gmra.mrb[0].mxu0 %v2726
  %v5993 = vpop.f32.mrb[0].mxu0
  %v5994 = vadd.f32 0.0, %v5993
  %v5995 = vpop.f32.mrb[0].mxu0
  %v5996 = vpop.f32.mrb[0].mxu0
  %v5997 = vadd.f32 0.0, %v5996
  %v5998 = vpop.f32.mrb[0].mxu0
  %5999 = vmatprep.mubr.bf16.mxu0 0
  %6000 = vmatmul.mubr.bf16.gmra.mrb[0].mxu0 %v2727
  %v6001 = vpop.f32.mrb[0].mxu0
  %v6002 = vadd.f32 0.0, %v6001
  %v6003 = vpop.f32.mrb[0].mxu0
  %v6004 = vpop.f32.mrb[0].mxu0
  %v6005 = vadd.f32 0.0, %v6004
  %v6006 = vpop.f32.mrb[0].mxu0
  %6007 = vmatprep.mubr.bf16.mxu0 0
  %6008 = vmatmul.mubr.bf16.gmra.mrb[0].mxu0 %v2728
  %v6009 = vpop.f32.mrb[0].mxu0
  %v6010 = vadd.f32 0.0, %v6009
  %v6011 = vpop.f32.mrb[0].mxu0
  %v6012 = vpop.f32.mrb[0].mxu0
  %v6013 = vadd.f32 0.0, %v6012
  %v6014 = vpop.f32.mrb[0].mxu0
  %6015 = vmatprep.mubr.bf16.mxu0 0
  %6016 = vmatmul.mubr.bf16.gmra.mrb[0].mxu0 %v2729
  %v6017 = vpop.f32.mrb[0].mxu0
  %v6018 = vadd.f32 0.0, %v6017
  %v6019 = vpop.f32.mrb[0].mxu0
  %v6020 = vpop.f32.mrb[0].mxu0
  %v6021 = vadd.f32 0.0, %v6020
  %v6022 = vpop.f32.mrb[0].mxu0
  %6023 = vmatprep.mubr.bf16.mxu0 0
  %6024 = vmatmul.mubr.bf16.gmra.mrb[0].mxu0 %v2730
  %v6025 = vpop.f32.mrb[0].mxu0
  %v6026 = vadd.f32 0.0, %v6025
  %v6027 = vpop.f32.mrb[0].mxu0
  %v6028 = vpop.f32.mrb[0].mxu0
  %v6029 = vadd.f32 0.0, %v6028
  %v6030 = vpop.f32.mrb[0].mxu0
  %6031 = vmatprep.mubr.bf16.mxu0 0
  %6032 = vmatmul.mubr.bf16.gmra.mrb[0].mxu0 %v2731
  %v6033 = vpop.f32.mrb[0].mxu0
  %v6034 = vadd.f32 0.0, %v6033
  %v6035 = vpop.f32.mrb[0].mxu0
  %v6036 = vpop.f32.mrb[0].mxu0
  %v6037 = vadd.f32 0.0, %v6036
  %v6038 = vpop.f32.mrb[0].mxu0
  %6039 = vmatprep.mubr.bf16.mxu0 0
  %6040 = vmatmul.mubr.bf16.gmra.mrb[0].mxu0 %v2732
  %v6041 = vpop.f32.mrb[0].mxu0
  %v6042 = vadd.f32 0.0, %v6041
  %v6043 = vpop.f32.mrb[0].mxu0
  %v6044 = vpop.f32.mrb[0].mxu0
  %v6045 = vadd.f32 0.0, %v6044
  %v6046 = vpop.f32.mrb[0].mxu0
  %6047 = vmatprep.mubr.bf16.mxu0 0
  %6048 = vmatmul.mubr.bf16.gmra.mrb[0].mxu0 %v2733
  %v6049 = vpop.f32.mrb[0].mxu0
  %v6050 = vadd.f32 0.0, %v6049
  %v6051 = vpop.f32.mrb[0].mxu0
  %v6052 = vpop.f32.mrb[0].mxu0
  %v6053 = vadd.f32 0.0, %v6052
  %v6054 = vpop.f32.mrb[0].mxu0
  %6055 = vmatprep.mubr.bf16.mxu0 0
  %6056 = vmatmul.mubr.bf16.gmra.mrb[0].mxu0 %v2734
  %v6057 = vpop.f32.mrb[0].mxu0
  %v6058 = vadd.f32 0.0, %v6057
  %v6059 = vpop.f32.mrb[0].mxu0
  %v6060 = vpop.f32.mrb[0].mxu0
  %v6061 = vadd.f32 0.0, %v6060
  %v6062 = vpop.f32.mrb[0].mxu0
  %6063 = vmatprep.mubr.bf16.mxu0 0
  %6064 = vmatmul.mubr.bf16.gmra.mrb[0].mxu0 %v2735
  %v6065 = vpop.f32.mrb[0].mxu0
  %v6066 = vadd.f32 0.0, %v6065
  %v6067 = vpop.f32.mrb[0].mxu0
  %v6068 = vpop.f32.mrb[0].mxu0
  %v6069 = vadd.f32 0.0, %v6068
  %v6070 = vpop.f32.mrb[0].mxu0
  %6071 = vmatprep.mubr.bf16.mxu0 0
  %6072 = vmatmul.mubr.bf16.gmra.mrb[0].mxu0 %v2736
  %v6073 = vpop.f32.mrb[0].mxu0
  %v6074 = vadd.f32 0.0, %v6073
  %v6075 = vpop.f32.mrb[0].mxu0
  %v6076 = vpop.f32.mrb[0].mxu0
  %v6077 = vadd.f32 0.0, %v6076
  %v6078 = vpop.f32.mrb[0].mxu0
  %6079 = vmatprep.mubr.bf16.mxu0 0
  %6080 = vmatmul.mubr.bf16.gmra.mrb[0].mxu0 %v2737
  %v6081 = vpop.f32.mrb[0].mxu0
  %v6082 = vadd.f32 0.0, %v6081
  %v6083 = vpop.f32.mrb[0].mxu0
  %v6084 = vpop.f32.mrb[0].mxu0
  %v6085 = vadd.f32 0.0, %v6084
  %v6086 = vpop.f32.mrb[0].mxu0
  %6087 = vmatprep.mubr.bf16.mxu0 0
  %6088 = vmatmul.mubr.bf16.gmra.mrb[0].mxu0 %v2738
  %v6089 = vpop.f32.mrb[0].mxu0
  %v6090 = vadd.f32 0.0, %v6089
  %v6091 = vpop.f32.mrb[0].mxu0
  %v6092 = vpop.f32.mrb[0].mxu0
  %v6093 = vadd.f32 0.0, %v6092
  %v6094 = vpop.f32.mrb[0].mxu0
  %6095 = vmatprep.mubr.bf16.mxu0 0
  %6096 = vmatmul.mubr.bf16.gmra.mrb[0].mxu0 %v2739
  %v6097 = vpop.f32.mrb[0].mxu0
  %v6098 = vadd.f32 0.0, %v6097
  %v6099 = vpop.f32.mrb[0].mxu0
  %v6100 = vpop.f32.mrb[0].mxu0
  %v6101 = vadd.f32 0.0, %v6100
  %v6102 = vpop.f32.mrb[0].mxu0
  %6103 = vmatprep.mubr.bf16.mxu0 0
  %6104 = vmatmul.mubr.bf16.gmra.mrb[0].mxu0 %v2740
  %v6105 = vpop.f32.mrb[0].mxu0
  %v6106 = vadd.f32 0.0, %v6105
  %v6107 = vpop.f32.mrb[0].mxu0
  %v6108 = vpop.f32.mrb[0].mxu0
  %v6109 = vadd.f32 0.0, %v6108
  %v6110 = vpop.f32.mrb[0].mxu0
  %6111 = vmatprep.mubr.bf16.mxu0 0
  %6112 = vmatmul.mubr.bf16.gmra.mrb[0].mxu0 %v2741
  %v6113 = vpop.f32.mrb[0].mxu0
  %v6114 = vadd.f32 0.0, %v6113
  %v6115 = vpop.f32.mrb[0].mxu0
  %v6116 = vpop.f32.mrb[0].mxu0
  %v6117 = vadd.f32 0.0, %v6116
  %v6118 = vpop.f32.mrb[0].mxu0
  %6119 = vmatprep.mubr.bf16.mxu0 0
  %6120 = vmatmul.mubr.bf16.gmra.mrb[0].mxu0 %v2742
  %v6121 = vpop.f32.mrb[0].mxu0
  %v6122 = vadd.f32 0.0, %v6121
  %v6123 = vpop.f32.mrb[0].mxu0
  %v6124 = vpop.f32.mrb[0].mxu0
  %v6125 = vadd.f32 0.0, %v6124
  %v6126 = vpop.f32.mrb[0].mxu0
  %6127 = vmatprep.mubr.bf16.mxu0 0
  %6128 = vmatmul.mubr.bf16.gmra.mrb[0].mxu0 %v2743
  %v6129 = vpop.f32.mrb[0].mxu0
  %v6130 = vadd.f32 0.0, %v6129
  %v6131 = vpop.f32.mrb[0].mxu0
  %v6132 = vpop.f32.mrb[0].mxu0
  %v6133 = vadd.f32 0.0, %v6132
  %v6134 = vpop.f32.mrb[0].mxu0
  %6135 = vmatprep.mubr.bf16.mxu0 0
  %6136 = vmatmul.mubr.bf16.gmra.mrb[0].mxu0 %v2744
  %v6137 = vpop.f32.mrb[0].mxu0
  %v6138 = vadd.f32 0.0, %v6137
  %v6139 = vpop.f32.mrb[0].mxu0
  %v6140 = vpop.f32.mrb[0].mxu0
  %v6141 = vadd.f32 0.0, %v6140
  %v6142 = vpop.f32.mrb[0].mxu0
  %6143 = vmatprep.mubr.bf16.mxu0 0
  %6144 = vmatmul.mubr.bf16.gmra.mrb[0].mxu0 %v2745
  %v6145 = vpop.f32.mrb[0].mxu0
  %v6146 = vadd.f32 0.0, %v6145
  %v6147 = vpop.f32.mrb[0].mxu0
  %v6148 = vpop.f32.mrb[0].mxu0
  %v6149 = vadd.f32 0.0, %v6148
  %v6150 = vpop.f32.mrb[0].mxu0
  %6151 = vmatprep.mubr.bf16.mxu0 0
  %6152 = vmatmul.mubr.bf16.gmra.mrb[0].mxu0 %v2746
  %v6153 = vpop.f32.mrb[0].mxu0
  %v6154 = vadd.f32 0.0, %v6153
  %v6155 = vpop.f32.mrb[0].mxu0
  %v6156 = vpop.f32.mrb[0].mxu0
  %v6157 = vadd.f32 0.0, %v6156
  %v6158 = vpop.f32.mrb[0].mxu0
  %6159 = vmatprep.mubr.bf16.mxu0 0
  %6160 = vmatmul.mubr.bf16.gmra.mrb[0].mxu0 %v2747
  %v6161 = vpop.f32.mrb[0].mxu0
  %v6162 = vadd.f32 0.0, %v6161
  %v6163 = vpop.f32.mrb[0].mxu0
  %v6164 = vpop.f32.mrb[0].mxu0
  %v6165 = vadd.f32 0.0, %v6164
  %v6166 = vpop.f32.mrb[0].mxu0
  %6167 = vmatprep.mubr.bf16.mxu0 0
  %6168 = vmatmul.mubr.bf16.gmra.mrb[0].mxu0 %v2748
  %v6169 = vpop.f32.mrb[0].mxu0
  %v6170 = vadd.f32 0.0, %v6169
  %v6171 = vpop.f32.mrb[0].mxu0
  %v6172 = vpop.f32.mrb[0].mxu0
  %v6173 = vadd.f32 0.0, %v6172
  %v6174 = vpop.f32.mrb[0].mxu0
  %6175 = vmatprep.mubr.bf16.mxu0 0
  %6176 = vmatmul.mubr.bf16.gmra.mrb[0].mxu0 %v2749
  %v6177 = vpop.f32.mrb[0].mxu0
  %v6178 = vadd.f32 0.0, %v6177
  %v6179 = vpop.f32.mrb[0].mxu0
  %v6180 = vpop.f32.mrb[0].mxu0
  %v6181 = vadd.f32 0.0, %v6180
  %v6182 = vpop.f32.mrb[0].mxu0
  %6183 = vmatprep.mubr.bf16.mxu0 0
  %6184 = vmatmul.mubr.bf16.gmra.mrb[0].mxu0 %v2750
  %v6185 = vpop.f32.mrb[0].mxu0
  %v6186 = vadd.f32 0.0, %v6185
  %v6187 = vpop.f32.mrb[0].mxu0
  %v6188 = vpop.f32.mrb[0].mxu0
  %v6189 = vadd.f32 0.0, %v6188
  %v6190 = vpop.f32.mrb[0].mxu0
  %6191 = vmatprep.mubr.bf16.mxu0 0
  %6192 = vmatmul.mubr.bf16.gmra.mrb[0].mxu0 %v2751
  %v6193 = vpop.f32.mrb[0].mxu0
  %v6194 = vadd.f32 0.0, %v6193
  %v6195 = vpop.f32.mrb[0].mxu0
  %v6196 = vpop.f32.mrb[0].mxu0
  %v6197 = vadd.f32 0.0, %v6196
  %v6198 = vpop.f32.mrb[0].mxu0
  %6199 = vmatprep.mubr.bf16.mxu0 0
  %6200 = vmatmul.mubr.bf16.gmra.mrb[0].mxu0 %v2752
  %v6201 = vpop.f32.mrb[0].mxu0
  %v6202 = vadd.f32 0.0, %v6201
  %v6203 = vpop.f32.mrb[0].mxu0
  %v6204 = vpop.f32.mrb[0].mxu0
  %v6205 = vadd.f32 0.0, %v6204
  %v6206 = vpop.f32.mrb[0].mxu0
  %6207 = vmatprep.mubr.bf16.mxu0 0
  %6208 = vmatmul.mubr.bf16.gmra.mrb[0].mxu0 %v2753
  %v6209 = vpop.f32.mrb[0].mxu0
  %v6210 = vadd.f32 0.0, %v6209
  %v6211 = vpop.f32.mrb[0].mxu0
  %v6212 = vpop.f32.mrb[0].mxu0
  %v6213 = vadd.f32 0.0, %v6212
  %v6214 = vpop.f32.mrb[0].mxu0
  %6215 = vmatprep.mubr.bf16.mxu0 0
  %6216 = vmatmul.mubr.bf16.gmra.mrb[0].mxu0 %v2754
  %v6217 = vpop.f32.mrb[0].mxu0
  %v6218 = vadd.f32 0.0, %v6217
  %v6219 = vpop.f32.mrb[0].mxu0
  %v6220 = vpop.f32.mrb[0].mxu0
  %v6221 = vadd.f32 0.0, %v6220
  %v6222 = vpop.f32.mrb[0].mxu0
  %6223 = vmatprep.mubr.bf16.mxu0 0
  %6224 = vmatmul.mubr.bf16.gmra.mrb[0].mxu0 %v2755
  %v6225 = vpop.f32.mrb[0].mxu0
  %v6226 = vadd.f32 0.0, %v6225
  %v6227 = vpop.f32.mrb[0].mxu0
  %v6228 = vpop.f32.mrb[0].mxu0
  %v6229 = vadd.f32 0.0, %v6228
  %v6230 = vpop.f32.mrb[0].mxu0
  %6231 = vmatprep.mubr.bf16.mxu0 0
  %6232 = vmatmul.mubr.bf16.gmra.mrb[0].mxu0 %v2756
  %v6233 = vpop.f32.mrb[0].mxu0
  %v6234 = vadd.f32 0.0, %v6233
  %v6235 = vpop.f32.mrb[0].mxu0
  %v6236 = vpop.f32.mrb[0].mxu0
  %v6237 = vadd.f32 0.0, %v6236
  %v6238 = vpop.f32.mrb[0].mxu0
  %6239 = vmatprep.mubr.bf16.mxu0 0
  %6240 = vmatmul.mubr.bf16.gmra.mrb[0].mxu0 %v2757
  %v6241 = vpop.f32.mrb[0].mxu0
  %v6242 = vadd.f32 0.0, %v6241
  %v6243 = vpop.f32.mrb[0].mxu0
  %v6244 = vpop.f32.mrb[0].mxu0
  %v6245 = vadd.f32 0.0, %v6244
  %v6246 = vpop.f32.mrb[0].mxu0
  %6247 = vmatprep.mubr.bf16.mxu0 0
  %6248 = vmatmul.mubr.bf16.gmra.mrb[0].mxu0 %v2758
  %v6249 = vpop.f32.mrb[0].mxu0
  %v6250 = vadd.f32 0.0, %v6249
  %v6251 = vpop.f32.mrb[0].mxu0
  %v6252 = vpop.f32.mrb[0].mxu0
  %v6253 = vadd.f32 0.0, %v6252
  %v6254 = vpop.f32.mrb[0].mxu0
  %6255 = vmatprep.mubr.bf16.mxu0 0
  %6256 = vmatmul.mubr.bf16.gmra.mrb[0].mxu0 %v2759
  %v6257 = vpop.f32.mrb[0].mxu0
  %v6258 = vadd.f32 0.0, %v6257
  %v6259 = vpop.f32.mrb[0].mxu0
  %v6260 = vpop.f32.mrb[0].mxu0
  %v6261 = vadd.f32 0.0, %v6260
  %v6262 = vpop.f32.mrb[0].mxu0
  %6263 = vmatprep.mubr.bf16.mxu0 0
  %6264 = vmatmul.mubr.bf16.gmra.mrb[0].mxu0 %v2760
  %v6265 = vpop.f32.mrb[0].mxu0
  %v6266 = vadd.f32 0.0, %v6265
  %v6267 = vpop.f32.mrb[0].mxu0
  %v6268 = vpop.f32.mrb[0].mxu0
  %v6269 = vadd.f32 0.0, %v6268
  %v6270 = vpop.f32.mrb[0].mxu0
  %6271 = vmatprep.mubr.bf16.mxu0 0
  %6272 = vmatmul.mubr.bf16.gmra.mrb[0].mxu0 %v2761
  %v6273 = vpop.f32.mrb[0].mxu0
  %v6274 = vadd.f32 0.0, %v6273
  %v6275 = vpop.f32.mrb[0].mxu0
  %v6276 = vpop.f32.mrb[0].mxu0
  %v6277 = vadd.f32 0.0, %v6276
  %v6278 = vpop.f32.mrb[0].mxu0
  %6279 = vmatprep.mubr.bf16.mxu0 0
  %6280 = vmatmul.mubr.bf16.gmra.mrb[0].mxu0 %v2762
  %v6281 = vpop.f32.mrb[0].mxu0
  %v6282 = vadd.f32 0.0, %v6281
  %v6283 = vpop.f32.mrb[0].mxu0
  %v6284 = vpop.f32.mrb[0].mxu0
  %v6285 = vadd.f32 0.0, %v6284
  %v6286 = vpop.f32.mrb[0].mxu0
  %6287 = vmatprep.mubr.bf16.mxu0 0
  %6288 = vmatmul.mubr.bf16.gmra.mrb[0].mxu0 %v2763
  %v6289 = vpop.f32.mrb[0].mxu0
  %v6290 = vadd.f32 0.0, %v6289
  %v6291 = vpop.f32.mrb[0].mxu0
  %v6292 = vpop.f32.mrb[0].mxu0
  %v6293 = vadd.f32 0.0, %v6292
  %v6294 = vpop.f32.mrb[0].mxu0
  %6295 = vmatprep.mubr.bf16.mxu0 0
  %6296 = vmatmul.mubr.bf16.gmra.mrb[0].mxu0 %v2764
  %v6297 = vpop.f32.mrb[0].mxu0
  %v6298 = vadd.f32 0.0, %v6297
  %v6299 = vpop.f32.mrb[0].mxu0
  %v6300 = vpop.f32.mrb[0].mxu0
  %v6301 = vadd.f32 0.0, %v6300
  %v6302 = vpop.f32.mrb[0].mxu0
  %6303 = vmatprep.mubr.bf16.mxu0 0
  %6304 = vmatmul.mubr.bf16.gmra.mrb[0].mxu0 %v2765
  %v6305 = vpop.f32.mrb[0].mxu0
  %v6306 = vadd.f32 0.0, %v6305
  %v6307 = vpop.f32.mrb[0].mxu0
  %v6308 = vpop.f32.mrb[0].mxu0
  %v6309 = vadd.f32 0.0, %v6308
  %v6310 = vpop.f32.mrb[0].mxu0
  %6311 = vmatprep.mubr.bf16.mxu0 0
  %6312 = vmatmul.mubr.bf16.gmra.mrb[0].mxu0 %v2766
  %v6313 = vpop.f32.mrb[0].mxu0
  %v6314 = vadd.f32 0.0, %v6313
  %v6315 = vpop.f32.mrb[0].mxu0
  %v6316 = vpop.f32.mrb[0].mxu0
  %v6317 = vadd.f32 0.0, %v6316
  %v6318 = vpop.f32.mrb[0].mxu0
  %6319 = vmatprep.mubr.bf16.mxu0 0
  %6320 = vmatmul.mubr.bf16.gmra.mrb[0].mxu0 %v2767
  %v6321 = vpop.f32.mrb[0].mxu0
  %v6322 = vadd.f32 0.0, %v6321
  %v6323 = vpop.f32.mrb[0].mxu0
  %v6324 = vpop.f32.mrb[0].mxu0
  %v6325 = vadd.f32 0.0, %v6324
  %v6326 = vpop.f32.mrb[0].mxu0
  %6327 = vmatprep.mubr.bf16.mxu0 0
  %6328 = vmatmul.mubr.bf16.gmra.mrb[0].mxu0 %v2768
  %v6329 = vpop.f32.mrb[0].mxu0
  %v6330 = vadd.f32 0.0, %v6329
  %v6331 = vpop.f32.mrb[0].mxu0
  %v6332 = vpop.f32.mrb[0].mxu0
  %v6333 = vadd.f32 0.0, %v6332
  %v6334 = vpop.f32.mrb[0].mxu0
  %6335 = vmatprep.mubr.bf16.mxu0 0
  %6336 = vmatmul.mubr.bf16.gmra.mrb[0].mxu0 %v2769
  %v6337 = vpop.f32.mrb[0].mxu0
  %v6338 = vadd.f32 0.0, %v6337
  %v6339 = vpop.f32.mrb[0].mxu0
  %v6340 = vpop.f32.mrb[0].mxu0
  %v6341 = vadd.f32 0.0, %v6340
  %v6342 = vpop.f32.mrb[0].mxu0
  %6343 = vmatprep.mubr.bf16.mxu0 0
  %6344 = vmatmul.mubr.bf16.gmra.mrb[0].mxu0 %v2770
  %v6345 = vpop.f32.mrb[0].mxu0
  %v6346 = vadd.f32 0.0, %v6345
  %v6347 = vpop.f32.mrb[0].mxu0
  %v6348 = vpop.f32.mrb[0].mxu0
  %v6349 = vadd.f32 0.0, %v6348
  %v6350 = vpop.f32.mrb[0].mxu0
  %6351 = vmatprep.mubr.bf16.mxu0 0
  %6352 = vmatmul.mubr.bf16.gmra.mrb[0].mxu0 %v2771
  %v6353 = vpop.f32.mrb[0].mxu0
  %v6354 = vadd.f32 0.0, %v6353
  %v6355 = vpop.f32.mrb[0].mxu0
  %v6356 = vpop.f32.mrb[0].mxu0
  %v6357 = vadd.f32 0.0, %v6356
  %v6358 = vpop.f32.mrb[0].mxu0
  %6359 = vmatprep.mubr.bf16.mxu0 0
  %6360 = vmatmul.mubr.bf16.gmra.mrb[0].mxu0 %v2772
  %v6361 = vpop.f32.mrb[0].mxu0
  %v6362 = vadd.f32 0.0, %v6361
  %v6363 = vpop.f32.mrb[0].mxu0
  %v6364 = vpop.f32.mrb[0].mxu0
  %v6365 = vadd.f32 0.0, %v6364
  %v6366 = vpop.f32.mrb[0].mxu0
  %6367 = vmatprep.mubr.bf16.mxu0 0
  %6368 = vmatmul.mubr.bf16.gmra.mrb[0].mxu0 %v2773
  %v6369 = vpop.f32.mrb[0].mxu0
  %v6370 = vadd.f32 0.0, %v6369
  %v6371 = vpop.f32.mrb[0].mxu0
  %v6372 = vpop.f32.mrb[0].mxu0
  %v6373 = vadd.f32 0.0, %v6372
  %v6374 = vpop.f32.mrb[0].mxu0
  %6375 = vmatprep.mubr.bf16.mxu0 0
  %6376 = vmatmul.mubr.bf16.gmra.mrb[0].mxu0 %v2774
  %v6377 = vpop.f32.mrb[0].mxu0
  %v6378 = vadd.f32 0.0, %v6377
  %v6379 = vpop.f32.mrb[0].mxu0
  %v6380 = vpop.f32.mrb[0].mxu0
  %v6381 = vadd.f32 0.0, %v6380
  %v6382 = vpop.f32.mrb[0].mxu0
  %6383 = vdwg.mxu0
  %v6384 = vmax.f32 %v3250, %v4034
  %v6385 = vmax.f32 %v3253, %v4037
  %v6386 = vmax.f32 %v3258, %v4042
  %v6387 = vmax.f32 %v3261, %v4045
  %v6388 = vmax.f32 %v3266, %v4050
  %v6389 = vmax.f32 %v3269, %v4053
  %v6390 = vmax.f32 %v3274, %v4058
  %v6391 = vmax.f32 %v3277, %v4061
  %v6392 = vmax.f32 %v3282, %v4066
  %v6393 = vmax.f32 %v3285, %v4069
  %v6394 = vmax.f32 %v3290, %v4074
  %v6395 = vmax.f32 %v3293, %v4077
  %v6396 = vmax.f32 %v3298, %v4082
  %v6397 = vmax.f32 %v3301, %v4085
  %v6398 = vmax.f32 %v3306, %v4090
  %v6399 = vmax.f32 %v3309, %v4093
  %v6400 = vmax.f32 %v3314, %v4098
  %v6401 = vmax.f32 %v3317, %v4101
  %v6402 = vmax.f32 %v3322, %v4106
  %v6403 = vmax.f32 %v3325, %v4109
  %v6404 = vmax.f32 %v3330, %v4114
  %v6405 = vmax.f32 %v3333, %v4117
  %v6406 = vmax.f32 %v3338, %v4122
  %v6407 = vmax.f32 %v3341, %v4125
  %v6408 = vmax.f32 %v3346, %v4130
  %v6409 = vmax.f32 %v3349, %v4133
  %v6410 = vmax.f32 %v3354, %v4138
  %v6411 = vmax.f32 %v3357, %v4141
  %v6412 = vmax.f32 %v3362, %v4146
  %v6413 = vmax.f32 %v3365, %v4149
  %v6414 = vmax.f32 %v3370, %v4154
  %v6415 = vmax.f32 %v3373, %v4157
  %v6416 = vmax.f32 %v3378, %v4162
  %v6417 = vmax.f32 %v3381, %v4165
  %v6418 = vmax.f32 %v3386, %v4170
  %v6419 = vmax.f32 %v3389, %v4173
  %v6420 = vmax.f32 %v3394, %v4178
  %v6421 = vmax.f32 %v3397, %v4181
  %v6422 = vmax.f32 %v3402, %v4186
  %v6423 = vmax.f32 %v3405, %v4189
  %v6424 = vmax.f32 %v3410, %v4194
  %v6425 = vmax.f32 %v3413, %v4197
  %v6426 = vmax.f32 %v3418, %v4202
  %v6427 = vmax.f32 %v3421, %v4205
  %v6428 = vmax.f32 %v3426, %v4210
  %v6429 = vmax.f32 %v3429, %v4213
  %v6430 = vmax.f32 %v3434, %v4218
  %v6431 = vmax.f32 %v3437, %v4221
  %v6432 = vmax.f32 %v3442, %v4226
  %v6433 = vmax.f32 %v3445, %v4229
  %v6434 = vmax.f32 %v3450, %v4234
  %v6435 = vmax.f32 %v3453, %v4237
  %v6436 = vmax.f32 %v3458, %v4242
  %v6437 = vmax.f32 %v3461, %v4245
  %v6438 = vmax.f32 %v3466, %v4250
  %v6439 = vmax.f32 %v3469, %v4253
  %v6440 = vmax.f32 %v3474, %v4258
  %v6441 = vmax.f32 %v3477, %v4261
  %v6442 = vmax.f32 %v3482, %v4266
  %v6443 = vmax.f32 %v3485, %v4269
  %v6444 = vmax.f32 %v3490, %v4274
  %v6445 = vmax.f32 %v3493, %v4277
  %v6446 = vmax.f32 %v3498, %v4282
  %v6447 = vmax.f32 %v3501, %v4285
  %v6448 = vmax.f32 %v3506, %v4290
  %v6449 = vmax.f32 %v3509, %v4293
  %v6450 = vmax.f32 %v3514, %v4298
  %v6451 = vmax.f32 %v3517, %v4301
  %v6452 = vmax.f32 %v3522, %v4306
  %v6453 = vmax.f32 %v3525, %v4309
  %v6454 = vmax.f32 %v3530, %v4314
  %v6455 = vmax.f32 %v3533, %v4317
  %v6456 = vmax.f32 %v3538, %v4322
  %v6457 = vmax.f32 %v3541, %v4325
  %v6458 = vmax.f32 %v3546, %v4330
  %v6459 = vmax.f32 %v3549, %v4333
  %v6460 = vmax.f32 %v3554, %v4338
  %v6461 = vmax.f32 %v3557, %v4341
  %v6462 = vmax.f32 %v3562, %v4346
  %v6463 = vmax.f32 %v3565, %v4349
  %v6464 = vmax.f32 %v3570, %v4354
  %v6465 = vmax.f32 %v3573, %v4357
  %v6466 = vmax.f32 %v3578, %v4362
  %v6467 = vmax.f32 %v3581, %v4365
  %v6468 = vmax.f32 %v3586, %v4370
  %v6469 = vmax.f32 %v3589, %v4373
  %v6470 = vmax.f32 %v3594, %v4378
  %v6471 = vmax.f32 %v3597, %v4381
  %v6472 = vmax.f32 %v3602, %v4386
  %v6473 = vmax.f32 %v3605, %v4389
  %v6474 = vmax.f32 %v3610, %v4394
  %v6475 = vmax.f32 %v3613, %v4397
  %v6476 = vmax.f32 %v3618, %v4402
  %v6477 = vmax.f32 %v3621, %v4405
  %v6478 = vmax.f32 %v3626, %v4410
  %v6479 = vmax.f32 %v3629, %v4413
  %v6480 = vmax.f32 %v3634, %v4418
  %v6481 = vmax.f32 %v3637, %v4421
  %v6482 = vmax.f32 %v3642, %v4426
  %v6483 = vmax.f32 %v3645, %v4429
  %v6484 = vmax.f32 %v3650, %v4434
  %v6485 = vmax.f32 %v3653, %v4437
  %v6486 = vmax.f32 %v3658, %v4442
  %v6487 = vmax.f32 %v3661, %v4445
  %v6488 = vmax.f32 %v3666, %v4450
  %v6489 = vmax.f32 %v3669, %v4453
  %v6490 = vmax.f32 %v3674, %v4458
  %v6491 = vmax.f32 %v3677, %v4461
  %v6492 = vmax.f32 %v3682, %v4466
  %v6493 = vmax.f32 %v3685, %v4469
  %v6494 = vmax.f32 %v3690, %v4474
  %v6495 = vmax.f32 %v3693, %v4477
  %v6496 = vmax.f32 %v3698, %v4482
  %v6497 = vmax.f32 %v3701, %v4485
  %v6498 = vmax.f32 %v3706, %v4490
  %v6499 = vmax.f32 %v3709, %v4493
  %v6500 = vmax.f32 %v3714, %v4498
  %v6501 = vmax.f32 %v3717, %v4501
  %v6502 = vmax.f32 %v3722, %v4506
  %v6503 = vmax.f32 %v3725, %v4509
  %v6504 = vmax.f32 %v3730, %v4514
  %v6505 = vmax.f32 %v3733, %v4517
  %v6506 = vmax.f32 %v3738, %v4522
  %v6507 = vmax.f32 %v3741, %v4525
  %v6508 = vmax.f32 %v3746, %v4530
  %v6509 = vmax.f32 %v3749, %v4533
  %v6510 = vmax.f32 %v3754, %v4538
  %v6511 = vmax.f32 %v3757, %v4541
  %v6512 = vmax.f32 %v3762, %v4546
  %v6513 = vmax.f32 %v3765, %v4549
  %v6514 = vmax.f32 %v3770, %v4554
  %v6515 = vmax.f32 %v3773, %v4557
  %v6516 = vmax.f32 %v3778, %v4562
  %v6517 = vmax.f32 %v3781, %v4565
  %v6518 = vmax.f32 %v3786, %v4570
  %v6519 = vmax.f32 %v3789, %v4573
  %v6520 = vmax.f32 %v3794, %v4578
  %v6521 = vmax.f32 %v3797, %v4581
  %v6522 = vmax.f32 %v3802, %v4586
  %v6523 = vmax.f32 %v3805, %v4589
  %v6524 = vmax.f32 %v3810, %v4594
  %v6525 = vmax.f32 %v3813, %v4597
  %v6526 = vmax.f32 %v3818, %v4602
  %v6527 = vmax.f32 %v3821, %v4605
  %v6528 = vmax.f32 %v3826, %v4610
  %v6529 = vmax.f32 %v3829, %v4613
  %v6530 = vmax.f32 %v3834, %v4618
  %v6531 = vmax.f32 %v3837, %v4621
  %v6532 = vmax.f32 %v3842, %v4626
  %v6533 = vmax.f32 %v3845, %v4629
  %v6534 = vmax.f32 %v3850, %v4634
  %v6535 = vmax.f32 %v3853, %v4637
  %v6536 = vmax.f32 %v3858, %v4642
  %v6537 = vmax.f32 %v3861, %v4645
  %v6538 = vmax.f32 %v3866, %v4650
  %v6539 = vmax.f32 %v3869, %v4653
  %v6540 = vmax.f32 %v3874, %v4658
  %v6541 = vmax.f32 %v3877, %v4661
  %v6542 = vmax.f32 %v3882, %v4666
  %v6543 = vmax.f32 %v3885, %v4669
  %v6544 = vmax.f32 %v3890, %v4674
  %v6545 = vmax.f32 %v3893, %v4677
  %v6546 = vmax.f32 %v3898, %v4682
  %v6547 = vmax.f32 %v3901, %v4685
  %v6548 = vmax.f32 %v3906, %v4690
  %v6549 = vmax.f32 %v3909, %v4693
  %v6550 = vmax.f32 %v3914, %v4698
  %v6551 = vmax.f32 %v3917, %v4701
  %v6552 = vmax.f32 %v3922, %v4706
  %v6553 = vmax.f32 %v3925, %v4709
  %v6554 = vmax.f32 %v3930, %v4714
  %v6555 = vmax.f32 %v3933, %v4717
  %v6556 = vmax.f32 %v3938, %v4722
  %v6557 = vmax.f32 %v3941, %v4725
  %v6558 = vmax.f32 %v3946, %v4730
  %v6559 = vmax.f32 %v3949, %v4733
  %v6560 = vmax.f32 %v3954, %v4738
  %v6561 = vmax.f32 %v3957, %v4741
  %v6562 = vmax.f32 %v3962, %v4746
  %v6563 = vmax.f32 %v3965, %v4749
  %v6564 = vmax.f32 %v3970, %v4754
  %v6565 = vmax.f32 %v3973, %v4757
  %v6566 = vmax.f32 %v3978, %v4762
  %v6567 = vmax.f32 %v3981, %v4765
  %v6568 = vmax.f32 %v3986, %v4770
  %v6569 = vmax.f32 %v3989, %v4773
  %v6570 = vmax.f32 %v3994, %v4778
  %v6571 = vmax.f32 %v3997, %v4781
  %v6572 = vmax.f32 %v4002, %v4786
  %v6573 = vmax.f32 %v4005, %v4789
  %v6574 = vmax.f32 %v4010, %v4794
  %v6575 = vmax.f32 %v4013, %v4797
  %v6576 = vmax.f32 %v4018, %v4802
  %v6577 = vmax.f32 %v4021, %v4805
  %v6578 = vmax.f32 %v4026, %v4810
  %v6579 = vmax.f32 %v4029, %v4813
  %v6580 = vmax.f32 %v4818, %v5602
  %v6581 = vmax.f32 %v4821, %v5605
  %v6582 = vmax.f32 %v4826, %v5610
  %v6583 = vmax.f32 %v4829, %v5613
  %v6584 = vmax.f32 %v4834, %v5618
  %v6585 = vmax.f32 %v4837, %v5621
  %v6586 = vmax.f32 %v4842, %v5626
  %v6587 = vmax.f32 %v4845, %v5629
  %v6588 = vmax.f32 %v4850, %v5634
  %v6589 = vmax.f32 %v4853, %v5637
  %v6590 = vmax.f32 %v4858, %v5642
  %v6591 = vmax.f32 %v4861, %v5645
  %v6592 = vmax.f32 %v4866, %v5650
  %v6593 = vmax.f32 %v4869, %v5653
  %v6594 = vmax.f32 %v4874, %v5658
  %v6595 = vmax.f32 %v4877, %v5661
  %v6596 = vmax.f32 %v4882, %v5666
  %v6597 = vmax.f32 %v4885, %v5669
  %v6598 = vmax.f32 %v4890, %v5674
  %v6599 = vmax.f32 %v4893, %v5677
  %v6600 = vmax.f32 %v4898, %v5682
  %v6601 = vmax.f32 %v4901, %v5685
  %v6602 = vmax.f32 %v4906, %v5690
  %v6603 = vmax.f32 %v4909, %v5693
  %v6604 = vmax.f32 %v4914, %v5698
  %v6605 = vmax.f32 %v4917, %v5701
  %v6606 = vmax.f32 %v4922, %v5706
  %v6607 = vmax.f32 %v4925, %v5709
  %v6608 = vmax.f32 %v4930, %v5714
  %v6609 = vmax.f32 %v4933, %v5717
  %v6610 = vmax.f32 %v4938, %v5722
  %v6611 = vmax.f32 %v4941, %v5725
  %v6612 = vmax.f32 %v4946, %v5730
  %v6613 = vmax.f32 %v4949, %v5733
  %v6614 = vmax.f32 %v4954, %v5738
  %v6615 = vmax.f32 %v4957, %v5741
  %v6616 = vmax.f32 %v4962, %v5746
  %v6617 = vmax.f32 %v4965, %v5749
  %v6618 = vmax.f32 %v4970, %v5754
  %v6619 = vmax.f32 %v4973, %v5757
  %v6620 = vmax.f32 %v4978, %v5762
  %v6621 = vmax.f32 %v4981, %v5765
  %v6622 = vmax.f32 %v4986, %v5770
  %v6623 = vmax.f32 %v4989, %v5773
  %v6624 = vmax.f32 %v4994, %v5778
  %v6625 = vmax.f32 %v4997, %v5781
  %v6626 = vmax.f32 %v5002, %v5786
  %v6627 = vmax.f32 %v5005, %v5789
  %v6628 = vmax.f32 %v5010, %v5794
  %v6629 = vmax.f32 %v5013, %v5797
  %v6630 = vmax.f32 %v5018, %v5802
  %v6631 = vmax.f32 %v5021, %v5805
  %v6632 = vmax.f32 %v5026, %v5810
  %v6633 = vmax.f32 %v5029, %v5813
  %v6634 = vmax.f32 %v5034, %v5818
  %v6635 = vmax.f32 %v5037, %v5821
  %v6636 = vmax.f32 %v5042, %v5826
  %v6637 = vmax.f32 %v5045, %v5829
  %v6638 = vmax.f32 %v5050, %v5834
  %v6639 = vmax.f32 %v5053, %v5837
  %v6640 = vmax.f32 %v5058, %v5842
  %v6641 = vmax.f32 %v5061, %v5845
  %v6642 = vmax.f32 %v5066, %v5850
  %v6643 = vmax.f32 %v5069, %v5853
  %v6644 = vmax.f32 %v5074, %v5858
  %v6645 = vmax.f32 %v5077, %v5861
  %v6646 = vmax.f32 %v5082, %v5866
  %v6647 = vmax.f32 %v5085, %v5869
  %v6648 = vmax.f32 %v5090, %v5874
  %v6649 = vmax.f32 %v5093, %v5877
  %v6650 = vmax.f32 %v5098, %v5882
  %v6651 = vmax.f32 %v5101, %v5885
  %v6652 = vmax.f32 %v5106, %v5890
  %v6653 = vmax.f32 %v5109, %v5893
  %v6654 = vmax.f32 %v5114, %v5898
  %v6655 = vmax.f32 %v5117, %v5901
  %v6656 = vmax.f32 %v5122, %v5906
  %v6657 = vmax.f32 %v5125, %v5909
  %v6658 = vmax.f32 %v5130, %v5914
  %v6659 = vmax.f32 %v5133, %v5917
  %v6660 = vmax.f32 %v5138, %v5922
  %v6661 = vmax.f32 %v5141, %v5925
  %v6662 = vmax.f32 %v5146, %v5930
  %v6663 = vmax.f32 %v5149, %v5933
  %v6664 = vmax.f32 %v5154, %v5938
  %v6665 = vmax.f32 %v5157, %v5941
  %v6666 = vmax.f32 %v5162, %v5946
  %v6667 = vmax.f32 %v5165, %v5949
  %v6668 = vmax.f32 %v5170, %v5954
  %v6669 = vmax.f32 %v5173, %v5957
  %v6670 = vmax.f32 %v5178, %v5962
  %v6671 = vmax.f32 %v5181, %v5965
  %v6672 = vmax.f32 %v5186, %v5970
  %v6673 = vmax.f32 %v5189, %v5973
  %v6674 = vmax.f32 %v5194, %v5978
  %v6675 = vmax.f32 %v5197, %v5981
  %v6676 = vmax.f32 %v5202, %v5986
  %v6677 = vmax.f32 %v5205, %v5989
  %v6678 = vmax.f32 %v5210, %v5994
  %v6679 = vmax.f32 %v5213, %v5997
  %v6680 = vmax.f32 %v5218, %v6002
  %v6681 = vmax.f32 %v5221, %v6005
  %v6682 = vmax.f32 %v5226, %v6010
  %v6683 = vmax.f32 %v5229, %v6013
  %v6684 = vmax.f32 %v5234, %v6018
  %v6685 = vmax.f32 %v5237, %v6021
  %v6686 = vmax.f32 %v5242, %v6026
  %v6687 = vmax.f32 %v5245, %v6029
  %v6688 = vmax.f32 %v5250, %v6034
  %v6689 = vmax.f32 %v5253, %v6037
  %v6690 = vmax.f32 %v5258, %v6042
  %v6691 = vmax.f32 %v5261, %v6045
  %v6692 = vmax.f32 %v5266, %v6050
  %v6693 = vmax.f32 %v5269, %v6053
  %v6694 = vmax.f32 %v5274, %v6058
  %v6695 = vmax.f32 %v5277, %v6061
  %v6696 = vmax.f32 %v5282, %v6066
  %v6697 = vmax.f32 %v5285, %v6069
  %v6698 = vmax.f32 %v5290, %v6074
  %v6699 = vmax.f32 %v5293, %v6077
  %v6700 = vmax.f32 %v5298, %v6082
  %v6701 = vmax.f32 %v5301, %v6085
  %v6702 = vmax.f32 %v5306, %v6090
  %v6703 = vmax.f32 %v5309, %v6093
  %v6704 = vmax.f32 %v5314, %v6098
  %v6705 = vmax.f32 %v5317, %v6101
  %v6706 = vmax.f32 %v5322, %v6106
  %v6707 = vmax.f32 %v5325, %v6109
  %v6708 = vmax.f32 %v5330, %v6114
  %v6709 = vmax.f32 %v5333, %v6117
  %v6710 = vmax.f32 %v5338, %v6122
  %v6711 = vmax.f32 %v5341, %v6125
  %v6712 = vmax.f32 %v5346, %v6130
  %v6713 = vmax.f32 %v5349, %v6133
  %v6714 = vmax.f32 %v5354, %v6138
  %v6715 = vmax.f32 %v5357, %v6141
  %v6716 = vmax.f32 %v5362, %v6146
  %v6717 = vmax.f32 %v5365, %v6149
  %v6718 = vmax.f32 %v5370, %v6154
  %v6719 = vmax.f32 %v5373, %v6157
  %v6720 = vmax.f32 %v5378, %v6162
  %v6721 = vmax.f32 %v5381, %v6165
  %v6722 = vmax.f32 %v5386, %v6170
  %v6723 = vmax.f32 %v5389, %v6173
  %v6724 = vmax.f32 %v5394, %v6178
  %v6725 = vmax.f32 %v5397, %v6181
  %v6726 = vmax.f32 %v5402, %v6186
  %v6727 = vmax.f32 %v5405, %v6189
  %v6728 = vmax.f32 %v5410, %v6194
  %v6729 = vmax.f32 %v5413, %v6197
  %v6730 = vmax.f32 %v5418, %v6202
  %v6731 = vmax.f32 %v5421, %v6205
  %v6732 = vmax.f32 %v5426, %v6210
  %v6733 = vmax.f32 %v5429, %v6213
  %v6734 = vmax.f32 %v5434, %v6218
  %v6735 = vmax.f32 %v5437, %v6221
  %v6736 = vmax.f32 %v5442, %v6226
  %v6737 = vmax.f32 %v5445, %v6229
  %v6738 = vmax.f32 %v5450, %v6234
  %v6739 = vmax.f32 %v5453, %v6237
  %v6740 = vmax.f32 %v5458, %v6242
  %v6741 = vmax.f32 %v5461, %v6245
  %v6742 = vmax.f32 %v5466, %v6250
  %v6743 = vmax.f32 %v5469, %v6253
  %v6744 = vmax.f32 %v5474, %v6258
  %v6745 = vmax.f32 %v5477, %v6261
  %v6746 = vmax.f32 %v5482, %v6266
  %v6747 = vmax.f32 %v5485, %v6269
  %v6748 = vmax.f32 %v5490, %v6274
  %v6749 = vmax.f32 %v5493, %v6277
  %v6750 = vmax.f32 %v5498, %v6282
  %v6751 = vmax.f32 %v5501, %v6285
  %v6752 = vmax.f32 %v5506, %v6290
  %v6753 = vmax.f32 %v5509, %v6293
  %v6754 = vmax.f32 %v5514, %v6298
  %v6755 = vmax.f32 %v5517, %v6301
  %v6756 = vmax.f32 %v5522, %v6306
  %v6757 = vmax.f32 %v5525, %v6309
  %v6758 = vmax.f32 %v5530, %v6314
  %v6759 = vmax.f32 %v5533, %v6317
  %v6760 = vmax.f32 %v5538, %v6322
  %v6761 = vmax.f32 %v5541, %v6325
  %v6762 = vmax.f32 %v5546, %v6330
  %v6763 = vmax.f32 %v5549, %v6333
  %v6764 = vmax.f32 %v5554, %v6338
  %v6765 = vmax.f32 %v5557, %v6341
  %v6766 = vmax.f32 %v5562, %v6346
  %v6767 = vmax.f32 %v5565, %v6349
  %v6768 = vmax.f32 %v5570, %v6354
  %v6769 = vmax.f32 %v5573, %v6357
  %v6770 = vmax.f32 %v5578, %v6362
  %v6771 = vmax.f32 %v5581, %v6365
  %v6772 = vmax.f32 %v5586, %v6370
  %v6773 = vmax.f32 %v5589, %v6373
  %v6774 = vmax.f32 %v5594, %v6378
  %v6775 = vmax.f32 %v5597, %v6381
  %v6776 = vmax.f32 %v6384, %v6580
  %v6777 = vmax.f32 %v6385, %v6581
  %v6778 = vmax.f32 %v6386, %v6582
  %v6779 = vmax.f32 %v6387, %v6583
  %v6780 = vmax.f32 %v6388, %v6584
  %v6781 = vmax.f32 %v6389, %v6585
  %v6782 = vmax.f32 %v6390, %v6586
  %v6783 = vmax.f32 %v6391, %v6587
  %v6784 = vmax.f32 %v6392, %v6588
  %v6785 = vmax.f32 %v6393, %v6589
  %v6786 = vmax.f32 %v6394, %v6590
  %v6787 = vmax.f32 %v6395, %v6591
  %v6788 = vmax.f32 %v6396, %v6592
  %v6789 = vmax.f32 %v6397, %v6593
  %v6790 = vmax.f32 %v6398, %v6594
  %v6791 = vmax.f32 %v6399, %v6595
  %v6792 = vmax.f32 %v6400, %v6596
  %v6793 = vmax.f32 %v6401, %v6597
  %v6794 = vmax.f32 %v6402, %v6598
  %v6795 = vmax.f32 %v6403, %v6599
  %v6796 = vmax.f32 %v6404, %v6600
  %v6797 = vmax.f32 %v6405, %v6601
  %v6798 = vmax.f32 %v6406, %v6602
  %v6799 = vmax.f32 %v6407, %v6603
  %v6800 = vmax.f32 %v6408, %v6604
  %v6801 = vmax.f32 %v6409, %v6605
  %v6802 = vmax.f32 %v6410, %v6606
  %v6803 = vmax.f32 %v6411, %v6607
  %v6804 = vmax.f32 %v6412, %v6608
  %v6805 = vmax.f32 %v6413, %v6609
  %v6806 = vmax.f32 %v6414, %v6610
  %v6807 = vmax.f32 %v6415, %v6611
  %v6808 = vmax.f32 %v6416, %v6612
  %v6809 = vmax.f32 %v6417, %v6613
  %v6810 = vmax.f32 %v6418, %v6614
  %v6811 = vmax.f32 %v6419, %v6615
  %v6812 = vmax.f32 %v6420, %v6616
  %v6813 = vmax.f32 %v6421, %v6617
  %v6814 = vmax.f32 %v6422, %v6618
  %v6815 = vmax.f32 %v6423, %v6619
  %v6816 = vmax.f32 %v6424, %v6620
  %v6817 = vmax.f32 %v6425, %v6621
  %v6818 = vmax.f32 %v6426, %v6622
  %v6819 = vmax.f32 %v6427, %v6623
  %v6820 = vmax.f32 %v6428, %v6624
  %v6821 = vmax.f32 %v6429, %v6625
  %v6822 = vmax.f32 %v6430, %v6626
  %v6823 = vmax.f32 %v6431, %v6627
  %v6824 = vmax.f32 %v6432, %v6628
  %v6825 = vmax.f32 %v6433, %v6629
  %v6826 = vmax.f32 %v6434, %v6630
  %v6827 = vmax.f32 %v6435, %v6631
  %v6828 = vmax.f32 %v6436, %v6632
  %v6829 = vmax.f32 %v6437, %v6633
  %v6830 = vmax.f32 %v6438, %v6634
  %v6831 = vmax.f32 %v6439, %v6635
  %v6832 = vmax.f32 %v6440, %v6636
  %v6833 = vmax.f32 %v6441, %v6637
  %v6834 = vmax.f32 %v6442, %v6638
  %v6835 = vmax.f32 %v6443, %v6639
  %v6836 = vmax.f32 %v6444, %v6640
  %v6837 = vmax.f32 %v6445, %v6641
  %v6838 = vmax.f32 %v6446, %v6642
  %v6839 = vmax.f32 %v6447, %v6643
  %v6840 = vmax.f32 %v6448, %v6644
  %v6841 = vmax.f32 %v6449, %v6645
  %v6842 = vmax.f32 %v6450, %v6646
  %v6843 = vmax.f32 %v6451, %v6647
  %v6844 = vmax.f32 %v6452, %v6648
  %v6845 = vmax.f32 %v6453, %v6649
  %v6846 = vmax.f32 %v6454, %v6650
  %v6847 = vmax.f32 %v6455, %v6651
  %v6848 = vmax.f32 %v6456, %v6652
  %v6849 = vmax.f32 %v6457, %v6653
  %v6850 = vmax.f32 %v6458, %v6654
  %v6851 = vmax.f32 %v6459, %v6655
  %v6852 = vmax.f32 %v6460, %v6656
  %v6853 = vmax.f32 %v6461, %v6657
  %v6854 = vmax.f32 %v6462, %v6658
  %v6855 = vmax.f32 %v6463, %v6659
  %v6856 = vmax.f32 %v6464, %v6660
  %v6857 = vmax.f32 %v6465, %v6661
  %v6858 = vmax.f32 %v6466, %v6662
  %v6859 = vmax.f32 %v6467, %v6663
  %v6860 = vmax.f32 %v6468, %v6664
  %v6861 = vmax.f32 %v6469, %v6665
  %v6862 = vmax.f32 %v6470, %v6666
  %v6863 = vmax.f32 %v6471, %v6667
  %v6864 = vmax.f32 %v6472, %v6668
  %v6865 = vmax.f32 %v6473, %v6669
  %v6866 = vmax.f32 %v6474, %v6670
  %v6867 = vmax.f32 %v6475, %v6671
  %v6868 = vmax.f32 %v6476, %v6672
  %v6869 = vmax.f32 %v6477, %v6673
  %v6870 = vmax.f32 %v6478, %v6674
  %v6871 = vmax.f32 %v6479, %v6675
  %v6872 = vmax.f32 %v6480, %v6676
  %v6873 = vmax.f32 %v6481, %v6677
  %v6874 = vmax.f32 %v6482, %v6678
  %v6875 = vmax.f32 %v6483, %v6679
  %v6876 = vmax.f32 %v6484, %v6680
  %v6877 = vmax.f32 %v6485, %v6681
  %v6878 = vmax.f32 %v6486, %v6682
  %v6879 = vmax.f32 %v6487, %v6683
  %v6880 = vmax.f32 %v6488, %v6684
  %v6881 = vmax.f32 %v6489, %v6685
  %v6882 = vmax.f32 %v6490, %v6686
  %v6883 = vmax.f32 %v6491, %v6687
  %v6884 = vmax.f32 %v6492, %v6688
  %v6885 = vmax.f32 %v6493, %v6689
  %v6886 = vmax.f32 %v6494, %v6690
  %v6887 = vmax.f32 %v6495, %v6691
  %v6888 = vmax.f32 %v6496, %v6692
  %v6889 = vmax.f32 %v6497, %v6693
  %v6890 = vmax.f32 %v6498, %v6694
  %v6891 = vmax.f32 %v6499, %v6695
  %v6892 = vmax.f32 %v6500, %v6696
  %v6893 = vmax.f32 %v6501, %v6697
  %v6894 = vmax.f32 %v6502, %v6698
  %v6895 = vmax.f32 %v6503, %v6699
  %v6896 = vmax.f32 %v6504, %v6700
  %v6897 = vmax.f32 %v6505, %v6701
  %v6898 = vmax.f32 %v6506, %v6702
  %v6899 = vmax.f32 %v6507, %v6703
  %v6900 = vmax.f32 %v6508, %v6704
  %v6901 = vmax.f32 %v6509, %v6705
  %v6902 = vmax.f32 %v6510, %v6706
  %v6903 = vmax.f32 %v6511, %v6707
  %v6904 = vmax.f32 %v6512, %v6708
  %v6905 = vmax.f32 %v6513, %v6709
  %v6906 = vmax.f32 %v6514, %v6710
  %v6907 = vmax.f32 %v6515, %v6711
  %v6908 = vmax.f32 %v6516, %v6712
  %v6909 = vmax.f32 %v6517, %v6713
  %v6910 = vmax.f32 %v6518, %v6714
  %v6911 = vmax.f32 %v6519, %v6715
  %v6912 = vmax.f32 %v6520, %v6716
  %v6913 = vmax.f32 %v6521, %v6717
  %v6914 = vmax.f32 %v6522, %v6718
  %v6915 = vmax.f32 %v6523, %v6719
  %v6916 = vmax.f32 %v6524, %v6720
  %v6917 = vmax.f32 %v6525, %v6721
  %v6918 = vmax.f32 %v6526, %v6722
  %v6919 = vmax.f32 %v6527, %v6723
  %v6920 = vmax.f32 %v6528, %v6724
  %v6921 = vmax.f32 %v6529, %v6725
  %v6922 = vmax.f32 %v6530, %v6726
  %v6923 = vmax.f32 %v6531, %v6727
  %v6924 = vmax.f32 %v6532, %v6728
  %v6925 = vmax.f32 %v6533, %v6729
  %v6926 = vmax.f32 %v6534, %v6730
  %v6927 = vmax.f32 %v6535, %v6731
  %v6928 = vmax.f32 %v6536, %v6732
  %v6929 = vmax.f32 %v6537, %v6733
  %v6930 = vmax.f32 %v6538, %v6734
  %v6931 = vmax.f32 %v6539, %v6735
  %v6932 = vmax.f32 %v6540, %v6736
  %v6933 = vmax.f32 %v6541, %v6737
  %v6934 = vmax.f32 %v6542, %v6738
  %v6935 = vmax.f32 %v6543, %v6739
  %v6936 = vmax.f32 %v6544, %v6740
  %v6937 = vmax.f32 %v6545, %v6741
  %v6938 = vmax.f32 %v6546, %v6742
  %v6939 = vmax.f32 %v6547, %v6743
  %v6940 = vmax.f32 %v6548, %v6744
  %v6941 = vmax.f32 %v6549, %v6745
  %v6942 = vmax.f32 %v6550, %v6746
  %v6943 = vmax.f32 %v6551, %v6747
  %v6944 = vmax.f32 %v6552, %v6748
  %v6945 = vmax.f32 %v6553, %v6749
  %v6946 = vmax.f32 %v6554, %v6750
  %v6947 = vmax.f32 %v6555, %v6751
  %v6948 = vmax.f32 %v6556, %v6752
  %v6949 = vmax.f32 %v6557, %v6753
  %v6950 = vmax.f32 %v6558, %v6754
  %v6951 = vmax.f32 %v6559, %v6755
  %v6952 = vmax.f32 %v6560, %v6756
  %v6953 = vmax.f32 %v6561, %v6757
  %v6954 = vmax.f32 %v6562, %v6758
  %v6955 = vmax.f32 %v6563, %v6759
  %v6956 = vmax.f32 %v6564, %v6760
  %v6957 = vmax.f32 %v6565, %v6761
  %v6958 = vmax.f32 %v6566, %v6762
  %v6959 = vmax.f32 %v6567, %v6763
  %v6960 = vmax.f32 %v6568, %v6764
  %v6961 = vmax.f32 %v6569, %v6765
  %v6962 = vmax.f32 %v6570, %v6766
  %v6963 = vmax.f32 %v6571, %v6767
  %v6964 = vmax.f32 %v6572, %v6768
  %v6965 = vmax.f32 %v6573, %v6769
  %v6966 = vmax.f32 %v6574, %v6770
  %v6967 = vmax.f32 %v6575, %v6771
  %v6968 = vmax.f32 %v6576, %v6772
  %v6969 = vmax.f32 %v6577, %v6773
  %v6970 = vmax.f32 %v6578, %v6774
  %v6971 = vmax.f32 %v6579, %v6775
  %v6972 = vld [vmem:[%s2] sm:$0x1]
  %v6974 = vlaneseq
  %v6975 = vshrl.u32 %v6974, 7
  %v6976 = vsub.s32 0, %v6975
  %v6977 = vrot.slane %v6972, %v6976
  %v6979 = vadd.f32 %v6776, %v6977
  %v6980 = vadd.f32 %v6777, %v6977
  %v6981 = vadd.f32 %v6778, %v6977
  %v6982 = vadd.f32 %v6779, %v6977
  %v6983 = vadd.f32 %v6780, %v6977
  %v6984 = vadd.f32 %v6781, %v6977
  %v6985 = vadd.f32 %v6782, %v6977
  %v6986 = vadd.f32 %v6783, %v6977
  %v6987 = vadd.f32 %v6784, %v6977
  %v6988 = vadd.f32 %v6785, %v6977
  %v6989 = vadd.f32 %v6786, %v6977
  %v6990 = vadd.f32 %v6787, %v6977
  %v6991 = vadd.f32 %v6788, %v6977
  %v6992 = vadd.f32 %v6789, %v6977
  %v6993 = vadd.f32 %v6790, %v6977
  %v6994 = vadd.f32 %v6791, %v6977
  %v6995 = vadd.f32 %v6792, %v6977
  %v6996 = vadd.f32 %v6793, %v6977
  %v6997 = vadd.f32 %v6794, %v6977
  %v6998 = vadd.f32 %v6795, %v6977
  %v6999 = vadd.f32 %v6796, %v6977
  %v7000 = vadd.f32 %v6797, %v6977
  %v7001 = vadd.f32 %v6798, %v6977
  %v7002 = vadd.f32 %v6799, %v6977
  %v7003 = vadd.f32 %v6800, %v6977
  %v7004 = vadd.f32 %v6801, %v6977
  %v7005 = vadd.f32 %v6802, %v6977
  %v7006 = vadd.f32 %v6803, %v6977
  %v7007 = vadd.f32 %v6804, %v6977
  %v7008 = vadd.f32 %v6805, %v6977
  %v7009 = vadd.f32 %v6806, %v6977
  %v7010 = vadd.f32 %v6807, %v6977
  %v7011 = vadd.f32 %v6808, %v6977
  %v7012 = vadd.f32 %v6809, %v6977
  %v7013 = vadd.f32 %v6810, %v6977
  %v7014 = vadd.f32 %v6811, %v6977
  %v7015 = vadd.f32 %v6812, %v6977
  %v7016 = vadd.f32 %v6813, %v6977
  %v7017 = vadd.f32 %v6814, %v6977
  %v7018 = vadd.f32 %v6815, %v6977
  %v7019 = vadd.f32 %v6816, %v6977
  %v7020 = vadd.f32 %v6817, %v6977
  %v7021 = vadd.f32 %v6818, %v6977
  %v7022 = vadd.f32 %v6819, %v6977
  %v7023 = vadd.f32 %v6820, %v6977
  %v7024 = vadd.f32 %v6821, %v6977
  %v7025 = vadd.f32 %v6822, %v6977
  %v7026 = vadd.f32 %v6823, %v6977
  %v7027 = vadd.f32 %v6824, %v6977
  %v7028 = vadd.f32 %v6825, %v6977
  %v7029 = vadd.f32 %v6826, %v6977
  %v7030 = vadd.f32 %v6827, %v6977
  %v7031 = vadd.f32 %v6828, %v6977
  %v7032 = vadd.f32 %v6829, %v6977
  %v7033 = vadd.f32 %v6830, %v6977
  %v7034 = vadd.f32 %v6831, %v6977
  %v7035 = vadd.f32 %v6832, %v6977
  %v7036 = vadd.f32 %v6833, %v6977
  %v7037 = vadd.f32 %v6834, %v6977
  %v7038 = vadd.f32 %v6835, %v6977
  %v7039 = vadd.f32 %v6836, %v6977
  %v7040 = vadd.f32 %v6837, %v6977
  %v7041 = vadd.f32 %v6838, %v6977
  %v7042 = vadd.f32 %v6839, %v6977
  %v7043 = vadd.f32 %v6840, %v6977
  %v7044 = vadd.f32 %v6841, %v6977
  %v7045 = vadd.f32 %v6842, %v6977
  %v7046 = vadd.f32 %v6843, %v6977
  %v7047 = vadd.f32 %v6844, %v6977
  %v7048 = vadd.f32 %v6845, %v6977
  %v7049 = vadd.f32 %v6846, %v6977
  %v7050 = vadd.f32 %v6847, %v6977
  %v7051 = vadd.f32 %v6848, %v6977
  %v7052 = vadd.f32 %v6849, %v6977
  %v7053 = vadd.f32 %v6850, %v6977
  %v7054 = vadd.f32 %v6851, %v6977
  %v7055 = vadd.f32 %v6852, %v6977
  %v7056 = vadd.f32 %v6853, %v6977
  %v7057 = vadd.f32 %v6854, %v6977
  %v7058 = vadd.f32 %v6855, %v6977
  %v7059 = vadd.f32 %v6856, %v6977
  %v7060 = vadd.f32 %v6857, %v6977
  %v7061 = vadd.f32 %v6858, %v6977
  %v7062 = vadd.f32 %v6859, %v6977
  %v7063 = vadd.f32 %v6860, %v6977
  %v7064 = vadd.f32 %v6861, %v6977
  %v7065 = vadd.f32 %v6862, %v6977
  %v7066 = vadd.f32 %v6863, %v6977
  %v7067 = vadd.f32 %v6864, %v6977
  %v7068 = vadd.f32 %v6865, %v6977
  %v7069 = vadd.f32 %v6866, %v6977
  %v7070 = vadd.f32 %v6867, %v6977
  %v7071 = vadd.f32 %v6868, %v6977
  %v7072 = vadd.f32 %v6869, %v6977
  %v7073 = vadd.f32 %v6870, %v6977
  %v7074 = vadd.f32 %v6871, %v6977
  %v7075 = vadd.f32 %v6872, %v6977
  %v7076 = vadd.f32 %v6873, %v6977
  %v7077 = vadd.f32 %v6874, %v6977
  %v7078 = vadd.f32 %v6875, %v6977
  %v7079 = vadd.f32 %v6876, %v6977
  %v7080 = vadd.f32 %v6877, %v6977
  %v7081 = vadd.f32 %v6878, %v6977
  %v7082 = vadd.f32 %v6879, %v6977
  %v7083 = vadd.f32 %v6880, %v6977
  %v7084 = vadd.f32 %v6881, %v6977
  %v7085 = vadd.f32 %v6882, %v6977
  %v7086 = vadd.f32 %v6883, %v6977
  %v7087 = vadd.f32 %v6884, %v6977
  %v7088 = vadd.f32 %v6885, %v6977
  %v7089 = vadd.f32 %v6886, %v6977
  %v7090 = vadd.f32 %v6887, %v6977
  %v7091 = vadd.f32 %v6888, %v6977
  %v7092 = vadd.f32 %v6889, %v6977
  %v7093 = vadd.f32 %v6890, %v6977
  %v7094 = vadd.f32 %v6891, %v6977
  %v7095 = vadd.f32 %v6892, %v6977
  %v7096 = vadd.f32 %v6893, %v6977
  %v7097 = vadd.f32 %v6894, %v6977
  %v7098 = vadd.f32 %v6895, %v6977
  %v7099 = vadd.f32 %v6896, %v6977
  %v7100 = vadd.f32 %v6897, %v6977
  %v7101 = vadd.f32 %v6898, %v6977
  %v7102 = vadd.f32 %v6899, %v6977
  %v7103 = vadd.f32 %v6900, %v6977
  %v7104 = vadd.f32 %v6901, %v6977
  %v7105 = vadd.f32 %v6902, %v6977
  %v7106 = vadd.f32 %v6903, %v6977
  %v7107 = vadd.f32 %v6904, %v6977
  %v7108 = vadd.f32 %v6905, %v6977
  %v7109 = vadd.f32 %v6906, %v6977
  %v7110 = vadd.f32 %v6907, %v6977
  %v7111 = vadd.f32 %v6908, %v6977
  %v7112 = vadd.f32 %v6909, %v6977
  %v7113 = vadd.f32 %v6910, %v6977
  %v7114 = vadd.f32 %v6911, %v6977
  %v7115 = vadd.f32 %v6912, %v6977
  %v7116 = vadd.f32 %v6913, %v6977
  %v7117 = vadd.f32 %v6914, %v6977
  %v7118 = vadd.f32 %v6915, %v6977
  %v7119 = vadd.f32 %v6916, %v6977
  %v7120 = vadd.f32 %v6917, %v6977
  %v7121 = vadd.f32 %v6918, %v6977
  %v7122 = vadd.f32 %v6919, %v6977
  %v7123 = vadd.f32 %v6920, %v6977
  %v7124 = vadd.f32 %v6921, %v6977
  %v7125 = vadd.f32 %v6922, %v6977
  %v7126 = vadd.f32 %v6923, %v6977
  %v7127 = vadd.f32 %v6924, %v6977
  %v7128 = vadd.f32 %v6925, %v6977
  %v7129 = vadd.f32 %v6926, %v6977
  %v7130 = vadd.f32 %v6927, %v6977
  %v7131 = vadd.f32 %v6928, %v6977
  %v7132 = vadd.f32 %v6929, %v6977
  %v7133 = vadd.f32 %v6930, %v6977
  %v7134 = vadd.f32 %v6931, %v6977
  %v7135 = vadd.f32 %v6932, %v6977
  %v7136 = vadd.f32 %v6933, %v6977
  %v7137 = vadd.f32 %v6934, %v6977
  %v7138 = vadd.f32 %v6935, %v6977
  %v7139 = vadd.f32 %v6936, %v6977
  %v7140 = vadd.f32 %v6937, %v6977
  %v7141 = vadd.f32 %v6938, %v6977
  %v7142 = vadd.f32 %v6939, %v6977
  %v7143 = vadd.f32 %v6940, %v6977
  %v7144 = vadd.f32 %v6941, %v6977
  %v7145 = vadd.f32 %v6942, %v6977
  %v7146 = vadd.f32 %v6943, %v6977
  %v7147 = vadd.f32 %v6944, %v6977
  %v7148 = vadd.f32 %v6945, %v6977
  %v7149 = vadd.f32 %v6946, %v6977
  %v7150 = vadd.f32 %v6947, %v6977
  %v7151 = vadd.f32 %v6948, %v6977
  %v7152 = vadd.f32 %v6949, %v6977
  %v7153 = vadd.f32 %v6950, %v6977
  %v7154 = vadd.f32 %v6951, %v6977
  %v7155 = vadd.f32 %v6952, %v6977
  %v7156 = vadd.f32 %v6953, %v6977
  %v7157 = vadd.f32 %v6954, %v6977
  %v7158 = vadd.f32 %v6955, %v6977
  %v7159 = vadd.f32 %v6956, %v6977
  %v7160 = vadd.f32 %v6957, %v6977
  %v7161 = vadd.f32 %v6958, %v6977
  %v7162 = vadd.f32 %v6959, %v6977
  %v7163 = vadd.f32 %v6960, %v6977
  %v7164 = vadd.f32 %v6961, %v6977
  %v7165 = vadd.f32 %v6962, %v6977
  %v7166 = vadd.f32 %v6963, %v6977
  %v7167 = vadd.f32 %v6964, %v6977
  %v7168 = vadd.f32 %v6965, %v6977
  %v7169 = vadd.f32 %v6966, %v6977
  %v7170 = vadd.f32 %v6967, %v6977
  %v7171 = vadd.f32 %v6968, %v6977
  %v7172 = vadd.f32 %v6969, %v6977
  %v7173 = vadd.f32 %v6970, %v6977
  %v7174 = vadd.f32 %v6971, %v6977
  %v7175 = vmax.f32 %v6979, 0.0
  %v7176 = vmax.f32 %v6980, 0.0
  %v7177 = vmax.f32 %v6981, 0.0
  %v7178 = vmax.f32 %v6982, 0.0
  %v7179 = vmax.f32 %v6983, 0.0
  %v7180 = vmax.f32 %v6984, 0.0
  %v7181 = vmax.f32 %v6985, 0.0
  %v7182 = vmax.f32 %v6986, 0.0
  %v7183 = vmax.f32 %v6987, 0.0
  %v7184 = vmax.f32 %v6988, 0.0
  %v7185 = vmax.f32 %v6989, 0.0
  %v7186 = vmax.f32 %v6990, 0.0
  %v7187 = vmax.f32 %v6991, 0.0
  %v7188 = vmax.f32 %v6992, 0.0
  %v7189 = vmax.f32 %v6993, 0.0
  %v7190 = vmax.f32 %v6994, 0.0
  %v7191 = vmax.f32 %v6995, 0.0
  %v7192 = vmax.f32 %v6996, 0.0
  %v7193 = vmax.f32 %v6997, 0.0
  %v7194 = vmax.f32 %v6998, 0.0
  %v7195 = vmax.f32 %v6999, 0.0
  %v7196 = vmax.f32 %v7000, 0.0
  %v7197 = vmax.f32 %v7001, 0.0
  %v7198 = vmax.f32 %v7002, 0.0
  %v7199 = vmax.f32 %v7003, 0.0
  %v7200 = vmax.f32 %v7004, 0.0
  %v7201 = vmax.f32 %v7005, 0.0
  %v7202 = vmax.f32 %v7006, 0.0
  %v7203 = vmax.f32 %v7007, 0.0
  %v7204 = vmax.f32 %v7008, 0.0
  %v7205 = vmax.f32 %v7009, 0.0
  %v7206 = vmax.f32 %v7010, 0.0
  %v7207 = vmax.f32 %v7011, 0.0
  %v7208 = vmax.f32 %v7012, 0.0
  %v7209 = vmax.f32 %v7013, 0.0
  %v7210 = vmax.f32 %v7014, 0.0
  %v7211 = vmax.f32 %v7015, 0.0
  %v7212 = vmax.f32 %v7016, 0.0
  %v7213 = vmax.f32 %v7017, 0.0
  %v7214 = vmax.f32 %v7018, 0.0
  %v7215 = vmax.f32 %v7019, 0.0
  %v7216 = vmax.f32 %v7020, 0.0
  %v7217 = vmax.f32 %v7021, 0.0
  %v7218 = vmax.f32 %v7022, 0.0
  %v7219 = vmax.f32 %v7023, 0.0
  %v7220 = vmax.f32 %v7024, 0.0
  %v7221 = vmax.f32 %v7025, 0.0
  %v7222 = vmax.f32 %v7026, 0.0
  %v7223 = vmax.f32 %v7027, 0.0
  %v7224 = vmax.f32 %v7028, 0.0
  %v7225 = vmax.f32 %v7029, 0.0
  %v7226 = vmax.f32 %v7030, 0.0
  %v7227 = vmax.f32 %v7031, 0.0
  %v7228 = vmax.f32 %v7032, 0.0
  %v7229 = vmax.f32 %v7033, 0.0
  %v7230 = vmax.f32 %v7034, 0.0
  %v7231 = vmax.f32 %v7035, 0.0
  %v7232 = vmax.f32 %v7036, 0.0
  %v7233 = vmax.f32 %v7037, 0.0
  %v7234 = vmax.f32 %v7038, 0.0
  %v7235 = vmax.f32 %v7039, 0.0
  %v7236 = vmax.f32 %v7040, 0.0
  %v7237 = vmax.f32 %v7041, 0.0
  %v7238 = vmax.f32 %v7042, 0.0
  %v7239 = vmax.f32 %v7043, 0.0
  %v7240 = vmax.f32 %v7044, 0.0
  %v7241 = vmax.f32 %v7045, 0.0
  %v7242 = vmax.f32 %v7046, 0.0
  %v7243 = vmax.f32 %v7047, 0.0
  %v7244 = vmax.f32 %v7048, 0.0
  %v7245 = vmax.f32 %v7049, 0.0
  %v7246 = vmax.f32 %v7050, 0.0
  %v7247 = vmax.f32 %v7051, 0.0
  %v7248 = vmax.f32 %v7052, 0.0
  %v7249 = vmax.f32 %v7053, 0.0
  %v7250 = vmax.f32 %v7054, 0.0
  %v7251 = vmax.f32 %v7055, 0.0
  %v7252 = vmax.f32 %v7056, 0.0
  %v7253 = vmax.f32 %v7057, 0.0
  %v7254 = vmax.f32 %v7058, 0.0
  %v7255 = vmax.f32 %v7059, 0.0
  %v7256 = vmax.f32 %v7060, 0.0
  %v7257 = vmax.f32 %v7061, 0.0
  %v7258 = vmax.f32 %v7062, 0.0
  %v7259 = vmax.f32 %v7063, 0.0
  %v7260 = vmax.f32 %v7064, 0.0
  %v7261 = vmax.f32 %v7065, 0.0
  %v7262 = vmax.f32 %v7066, 0.0
  %v7263 = vmax.f32 %v7067, 0.0
  %v7264 = vmax.f32 %v7068, 0.0
  %v7265 = vmax.f32 %v7069, 0.0
  %v7266 = vmax.f32 %v7070, 0.0
  %v7267 = vmax.f32 %v7071, 0.0
  %v7268 = vmax.f32 %v7072, 0.0
  %v7269 = vmax.f32 %v7073, 0.0
  %v7270 = vmax.f32 %v7074, 0.0
  %v7271 = vmax.f32 %v7075, 0.0
  %v7272 = vmax.f32 %v7076, 0.0
  %v7273 = vmax.f32 %v7077, 0.0
  %v7274 = vmax.f32 %v7078, 0.0
  %v7275 = vmax.f32 %v7079, 0.0
  %v7276 = vmax.f32 %v7080, 0.0
  %v7277 = vmax.f32 %v7081, 0.0
  %v7278 = vmax.f32 %v7082, 0.0
  %v7279 = vmax.f32 %v7083, 0.0
  %v7280 = vmax.f32 %v7084, 0.0
  %v7281 = vmax.f32 %v7085, 0.0
  %v7282 = vmax.f32 %v7086, 0.0
  %v7283 = vmax.f32 %v7087, 0.0
  %v7284 = vmax.f32 %v7088, 0.0
  %v7285 = vmax.f32 %v7089, 0.0
  %v7286 = vmax.f32 %v7090, 0.0
  %v7287 = vmax.f32 %v7091, 0.0
  %v7288 = vmax.f32 %v7092, 0.0
  %v7289 = vmax.f32 %v7093, 0.0
  %v7290 = vmax.f32 %v7094, 0.0
  %v7291 = vmax.f32 %v7095, 0.0
  %v7292 = vmax.f32 %v7096, 0.0
  %v7293 = vmax.f32 %v7097, 0.0
  %v7294 = vmax.f32 %v7098, 0.0
  %v7295 = vmax.f32 %v7099, 0.0
  %v7296 = vmax.f32 %v7100, 0.0
  %v7297 = vmax.f32 %v7101, 0.0
  %v7298 = vmax.f32 %v7102, 0.0
  %v7299 = vmax.f32 %v7103, 0.0
  %v7300 = vmax.f32 %v7104, 0.0
  %v7301 = vmax.f32 %v7105, 0.0
  %v7302 = vmax.f32 %v7106, 0.0
  %v7303 = vmax.f32 %v7107, 0.0
  %v7304 = vmax.f32 %v7108, 0.0
  %v7305 = vmax.f32 %v7109, 0.0
  %v7306 = vmax.f32 %v7110, 0.0
  %v7307 = vmax.f32 %v7111, 0.0
  %v7308 = vmax.f32 %v7112, 0.0
  %v7309 = vmax.f32 %v7113, 0.0
  %v7310 = vmax.f32 %v7114, 0.0
  %v7311 = vmax.f32 %v7115, 0.0
  %v7312 = vmax.f32 %v7116, 0.0
  %v7313 = vmax.f32 %v7117, 0.0
  %v7314 = vmax.f32 %v7118, 0.0
  %v7315 = vmax.f32 %v7119, 0.0
  %v7316 = vmax.f32 %v7120, 0.0
  %v7317 = vmax.f32 %v7121, 0.0
  %v7318 = vmax.f32 %v7122, 0.0
  %v7319 = vmax.f32 %v7123, 0.0
  %v7320 = vmax.f32 %v7124, 0.0
  %v7321 = vmax.f32 %v7125, 0.0
  %v7322 = vmax.f32 %v7126, 0.0
  %v7323 = vmax.f32 %v7127, 0.0
  %v7324 = vmax.f32 %v7128, 0.0
  %v7325 = vmax.f32 %v7129, 0.0
  %v7326 = vmax.f32 %v7130, 0.0
  %v7327 = vmax.f32 %v7131, 0.0
  %v7328 = vmax.f32 %v7132, 0.0
  %v7329 = vmax.f32 %v7133, 0.0
  %v7330 = vmax.f32 %v7134, 0.0
  %v7331 = vmax.f32 %v7135, 0.0
  %v7332 = vmax.f32 %v7136, 0.0
  %v7333 = vmax.f32 %v7137, 0.0
  %v7334 = vmax.f32 %v7138, 0.0
  %v7335 = vmax.f32 %v7139, 0.0
  %v7336 = vmax.f32 %v7140, 0.0
  %v7337 = vmax.f32 %v7141, 0.0
  %v7338 = vmax.f32 %v7142, 0.0
  %v7339 = vmax.f32 %v7143, 0.0
  %v7340 = vmax.f32 %v7144, 0.0
  %v7341 = vmax.f32 %v7145, 0.0
  %v7342 = vmax.f32 %v7146, 0.0
  %v7343 = vmax.f32 %v7147, 0.0
  %v7344 = vmax.f32 %v7148, 0.0
  %v7345 = vmax.f32 %v7149, 0.0
  %v7346 = vmax.f32 %v7150, 0.0
  %v7347 = vmax.f32 %v7151, 0.0
  %v7348 = vmax.f32 %v7152, 0.0
  %v7349 = vmax.f32 %v7153, 0.0
  %v7350 = vmax.f32 %v7154, 0.0
  %v7351 = vmax.f32 %v7155, 0.0
  %v7352 = vmax.f32 %v7156, 0.0
  %v7353 = vmax.f32 %v7157, 0.0
  %v7354 = vmax.f32 %v7158, 0.0
  %v7355 = vmax.f32 %v7159, 0.0
  %v7356 = vmax.f32 %v7160, 0.0
  %v7357 = vmax.f32 %v7161, 0.0
  %v7358 = vmax.f32 %v7162, 0.0
  %v7359 = vmax.f32 %v7163, 0.0
  %v7360 = vmax.f32 %v7164, 0.0
  %v7361 = vmax.f32 %v7165, 0.0
  %v7362 = vmax.f32 %v7166, 0.0
  %v7363 = vmax.f32 %v7167, 0.0
  %v7364 = vmax.f32 %v7168, 0.0
  %v7365 = vmax.f32 %v7169, 0.0
  %v7366 = vmax.f32 %v7170, 0.0
  %v7367 = vmax.f32 %v7171, 0.0
  %v7368 = vmax.f32 %v7172, 0.0
  %v7369 = vmax.f32 %v7173, 0.0
  %v7370 = vmax.f32 %v7174, 0.0
  %v7371 = vpack.c.bf16 %v7176, %v7175
  %v7372 = vpack.c.bf16 %v7178, %v7177
  %v7373 = vpack.c.bf16 %v7180, %v7179
  %v7374 = vpack.c.bf16 %v7182, %v7181
  %v7375 = vpack.c.bf16 %v7184, %v7183
  %v7376 = vpack.c.bf16 %v7186, %v7185
  %v7377 = vpack.c.bf16 %v7188, %v7187
  %v7378 = vpack.c.bf16 %v7190, %v7189
  %v7379 = vpack.c.bf16 %v7192, %v7191
  %v7380 = vpack.c.bf16 %v7194, %v7193
  %v7381 = vpack.c.bf16 %v7196, %v7195
  %v7382 = vpack.c.bf16 %v7198, %v7197
  %v7383 = vpack.c.bf16 %v7200, %v7199
  %v7384 = vpack.c.bf16 %v7202, %v7201
  %v7385 = vpack.c.bf16 %v7204, %v7203
  %v7386 = vpack.c.bf16 %v7206, %v7205
  %v7387 = vpack.c.bf16 %v7208, %v7207
  %v7388 = vpack.c.bf16 %v7210, %v7209
  %v7389 = vpack.c.bf16 %v7212, %v7211
  %v7390 = vpack.c.bf16 %v7214, %v7213
  %v7391 = vpack.c.bf16 %v7216, %v7215
  %v7392 = vpack.c.bf16 %v7218, %v7217
  %v7393 = vpack.c.bf16 %v7220, %v7219
  %v7394 = vpack.c.bf16 %v7222, %v7221
  %v7395 = vpack.c.bf16 %v7224, %v7223
  %v7396 = vpack.c.bf16 %v7226, %v7225
  %v7397 = vpack.c.bf16 %v7228, %v7227
  %v7398 = vpack.c.bf16 %v7230, %v7229
  %v7399 = vpack.c.bf16 %v7232, %v7231
  %v7400 = vpack.c.bf16 %v7234, %v7233
  %v7401 = vpack.c.bf16 %v7236, %v7235
  %v7402 = vpack.c.bf16 %v7238, %v7237
  %v7403 = vpack.c.bf16 %v7240, %v7239
  %v7404 = vpack.c.bf16 %v7242, %v7241
  %v7405 = vpack.c.bf16 %v7244, %v7243
  %v7406 = vpack.c.bf16 %v7246, %v7245
  %v7407 = vpack.c.bf16 %v7248, %v7247
  %v7408 = vpack.c.bf16 %v7250, %v7249
  %v7409 = vpack.c.bf16 %v7252, %v7251
  %v7410 = vpack.c.bf16 %v7254, %v7253
  %v7411 = vpack.c.bf16 %v7256, %v7255
  %v7412 = vpack.c.bf16 %v7258, %v7257
  %v7413 = vpack.c.bf16 %v7260, %v7259
  %v7414 = vpack.c.bf16 %v7262, %v7261
  %v7415 = vpack.c.bf16 %v7264, %v7263
  %v7416 = vpack.c.bf16 %v7266, %v7265
  %v7417 = vpack.c.bf16 %v7268, %v7267
  %v7418 = vpack.c.bf16 %v7270, %v7269
  %v7419 = vpack.c.bf16 %v7272, %v7271
  %v7420 = vpack.c.bf16 %v7274, %v7273
  %v7421 = vpack.c.bf16 %v7276, %v7275
  %v7422 = vpack.c.bf16 %v7278, %v7277
  %v7423 = vpack.c.bf16 %v7280, %v7279
  %v7424 = vpack.c.bf16 %v7282, %v7281
  %v7425 = vpack.c.bf16 %v7284, %v7283
  %v7426 = vpack.c.bf16 %v7286, %v7285
  %v7427 = vpack.c.bf16 %v7288, %v7287
  %v7428 = vpack.c.bf16 %v7290, %v7289
  %v7429 = vpack.c.bf16 %v7292, %v7291
  %v7430 = vpack.c.bf16 %v7294, %v7293
  %v7431 = vpack.c.bf16 %v7296, %v7295
  %v7432 = vpack.c.bf16 %v7298, %v7297
  %v7433 = vpack.c.bf16 %v7300, %v7299
  %v7434 = vpack.c.bf16 %v7302, %v7301
  %v7435 = vpack.c.bf16 %v7304, %v7303
  %v7436 = vpack.c.bf16 %v7306, %v7305
  %v7437 = vpack.c.bf16 %v7308, %v7307
  %v7438 = vpack.c.bf16 %v7310, %v7309
  %v7439 = vpack.c.bf16 %v7312, %v7311
  %v7440 = vpack.c.bf16 %v7314, %v7313
  %v7441 = vpack.c.bf16 %v7316, %v7315
  %v7442 = vpack.c.bf16 %v7318, %v7317
  %v7443 = vpack.c.bf16 %v7320, %v7319
  %v7444 = vpack.c.bf16 %v7322, %v7321
  %v7445 = vpack.c.bf16 %v7324, %v7323
  %v7446 = vpack.c.bf16 %v7326, %v7325
  %v7447 = vpack.c.bf16 %v7328, %v7327
  %v7448 = vpack.c.bf16 %v7330, %v7329
  %v7449 = vpack.c.bf16 %v7332, %v7331
  %v7450 = vpack.c.bf16 %v7334, %v7333
  %v7451 = vpack.c.bf16 %v7336, %v7335
  %v7452 = vpack.c.bf16 %v7338, %v7337
  %v7453 = vpack.c.bf16 %v7340, %v7339
  %v7454 = vpack.c.bf16 %v7342, %v7341
  %v7455 = vpack.c.bf16 %v7344, %v7343
  %v7456 = vpack.c.bf16 %v7346, %v7345
  %v7457 = vpack.c.bf16 %v7348, %v7347
  %v7458 = vpack.c.bf16 %v7350, %v7349
  %v7459 = vpack.c.bf16 %v7352, %v7351
  %v7460 = vpack.c.bf16 %v7354, %v7353
  %v7461 = vpack.c.bf16 %v7356, %v7355
  %v7462 = vpack.c.bf16 %v7358, %v7357
  %v7463 = vpack.c.bf16 %v7360, %v7359
  %v7464 = vpack.c.bf16 %v7362, %v7361
  %v7465 = vpack.c.bf16 %v7364, %v7363
  %v7466 = vpack.c.bf16 %v7366, %v7365
  %v7467 = vpack.c.bf16 %v7368, %v7367
  %v7468 = vpack.c.bf16 %v7370, %v7369
  %v7567 = vunpack.c.l.b16 %v7371
  %v7568 = vunpack.c.h.b16 %v7371
  %v7569 = vunpack.c.l.b16 %v7372
  %v7570 = vunpack.c.h.b16 %v7372
  %v7571 = vunpack.c.l.b16 %v7373
  %v7572 = vunpack.c.h.b16 %v7373
  %v7573 = vunpack.c.l.b16 %v7374
  %v7574 = vunpack.c.h.b16 %v7374
  %v7575 = vunpack.c.l.b16 %v7375
  %v7576 = vunpack.c.h.b16 %v7375
  %v7577 = vunpack.c.l.b16 %v7376
  %v7578 = vunpack.c.h.b16 %v7376
  %v7579 = vunpack.c.l.b16 %v7377
  %v7580 = vunpack.c.h.b16 %v7377
  %v7581 = vunpack.c.l.b16 %v7378
  %v7582 = vunpack.c.h.b16 %v7378
  %v7583 = vunpack.c.l.b16 %v7379
  %v7584 = vunpack.c.h.b16 %v7379
  %v7585 = vunpack.c.l.b16 %v7380
  %v7586 = vunpack.c.h.b16 %v7380
  %v7587 = vunpack.c.l.b16 %v7381
  %v7588 = vunpack.c.h.b16 %v7381
  %v7589 = vunpack.c.l.b16 %v7382
  %v7590 = vunpack.c.h.b16 %v7382
  %v7591 = vunpack.c.l.b16 %v7383
  %v7592 = vunpack.c.h.b16 %v7383
  %v7593 = vunpack.c.l.b16 %v7384
  %v7594 = vunpack.c.h.b16 %v7384
  %v7595 = vunpack.c.l.b16 %v7385
  %v7596 = vunpack.c.h.b16 %v7385
  %v7597 = vunpack.c.l.b16 %v7386
  %v7598 = vunpack.c.h.b16 %v7386
  %v7599 = vunpack.c.l.b16 %v7387
  %v7600 = vunpack.c.h.b16 %v7387
  %v7601 = vunpack.c.l.b16 %v7388
  %v7602 = vunpack.c.h.b16 %v7388
  %v7603 = vunpack.c.l.b16 %v7389
  %v7604 = vunpack.c.h.b16 %v7389
  %v7605 = vunpack.c.l.b16 %v7390
  %v7606 = vunpack.c.h.b16 %v7390
  %v7607 = vunpack.c.l.b16 %v7391
  %v7608 = vunpack.c.h.b16 %v7391
  %v7609 = vunpack.c.l.b16 %v7392
  %v7610 = vunpack.c.h.b16 %v7392
  %v7611 = vunpack.c.l.b16 %v7393
  %v7612 = vunpack.c.h.b16 %v7393
  %v7613 = vunpack.c.l.b16 %v7394
  %v7614 = vunpack.c.h.b16 %v7394
  %v7615 = vunpack.c.l.b16 %v7395
  %v7616 = vunpack.c.h.b16 %v7395
  %v7617 = vunpack.c.l.b16 %v7396
  %v7618 = vunpack.c.h.b16 %v7396
  %v7619 = vunpack.c.l.b16 %v7397
  %v7620 = vunpack.c.h.b16 %v7397
  %v7621 = vunpack.c.l.b16 %v7398
  %v7622 = vunpack.c.h.b16 %v7398
  %v7623 = vunpack.c.l.b16 %v7399
  %v7624 = vunpack.c.h.b16 %v7399
  %v7625 = vunpack.c.l.b16 %v7400
  %v7626 = vunpack.c.h.b16 %v7400
  %v7627 = vunpack.c.l.b16 %v7401
  %v7628 = vunpack.c.h.b16 %v7401
  %v7629 = vunpack.c.l.b16 %v7402
  %v7630 = vunpack.c.h.b16 %v7402
  %v7631 = vunpack.c.l.b16 %v7403
  %v7632 = vunpack.c.h.b16 %v7403
  %v7633 = vunpack.c.l.b16 %v7404
  %v7634 = vunpack.c.h.b16 %v7404
  %v7635 = vunpack.c.l.b16 %v7405
  %v7636 = vunpack.c.h.b16 %v7405
  %v7637 = vunpack.c.l.b16 %v7406
  %v7638 = vunpack.c.h.b16 %v7406
  %v7639 = vunpack.c.l.b16 %v7407
  %v7640 = vunpack.c.h.b16 %v7407
  %v7641 = vunpack.c.l.b16 %v7408
  %v7642 = vunpack.c.h.b16 %v7408
  %v7643 = vunpack.c.l.b16 %v7409
  %v7644 = vunpack.c.h.b16 %v7409
  %v7645 = vunpack.c.l.b16 %v7410
  %v7646 = vunpack.c.h.b16 %v7410
  %v7647 = vunpack.c.l.b16 %v7411
  %v7648 = vunpack.c.h.b16 %v7411
  %v7649 = vunpack.c.l.b16 %v7412
  %v7650 = vunpack.c.h.b16 %v7412
  %v7651 = vunpack.c.l.b16 %v7413
  %v7652 = vunpack.c.h.b16 %v7413
  %v7653 = vunpack.c.l.b16 %v7414
  %v7654 = vunpack.c.h.b16 %v7414
  %v7655 = vunpack.c.l.b16 %v7415
  %v7656 = vunpack.c.h.b16 %v7415
  %v7657 = vunpack.c.l.b16 %v7416
  %v7658 = vunpack.c.h.b16 %v7416
  %v7659 = vunpack.c.l.b16 %v7417
  %v7660 = vunpack.c.h.b16 %v7417
  %v7661 = vunpack.c.l.b16 %v7418
  %v7662 = vunpack.c.h.b16 %v7418
  %v7663 = vunpack.c.l.b16 %v7419
  %v7664 = vunpack.c.h.b16 %v7419
  %v7665 = vunpack.c.l.b16 %v7420
  %v7666 = vunpack.c.h.b16 %v7420
  %v7667 = vunpack.c.l.b16 %v7421
  %v7668 = vunpack.c.h.b16 %v7421
  %v7669 = vunpack.c.l.b16 %v7422
  %v7670 = vunpack.c.h.b16 %v7422
  %v7671 = vunpack.c.l.b16 %v7423
  %v7672 = vunpack.c.h.b16 %v7423
  %v7673 = vunpack.c.l.b16 %v7424
  %v7674 = vunpack.c.h.b16 %v7424
  %v7675 = vunpack.c.l.b16 %v7425
  %v7676 = vunpack.c.h.b16 %v7425
  %v7677 = vunpack.c.l.b16 %v7426
  %v7678 = vunpack.c.h.b16 %v7426
  %v7679 = vunpack.c.l.b16 %v7427
  %v7680 = vunpack.c.h.b16 %v7427
  %v7681 = vunpack.c.l.b16 %v7428
  %v7682 = vunpack.c.h.b16 %v7428
  %v7683 = vunpack.c.l.b16 %v7429
  %v7684 = vunpack.c.h.b16 %v7429
  %v7685 = vunpack.c.l.b16 %v7430
  %v7686 = vunpack.c.h.b16 %v7430
  %v7687 = vunpack.c.l.b16 %v7431
  %v7688 = vunpack.c.h.b16 %v7431
  %v7689 = vunpack.c.l.b16 %v7432
  %v7690 = vunpack.c.h.b16 %v7432
  %v7691 = vunpack.c.l.b16 %v7433
  %v7692 = vunpack.c.h.b16 %v7433
  %v7693 = vunpack.c.l.b16 %v7434
  %v7694 = vunpack.c.h.b16 %v7434
  %v7695 = vunpack.c.l.b16 %v7435
  %v7696 = vunpack.c.h.b16 %v7435
  %v7697 = vunpack.c.l.b16 %v7436
  %v7698 = vunpack.c.h.b16 %v7436
  %v7699 = vunpack.c.l.b16 %v7437
  %v7700 = vunpack.c.h.b16 %v7437
  %v7701 = vunpack.c.l.b16 %v7438
  %v7702 = vunpack.c.h.b16 %v7438
  %v7703 = vunpack.c.l.b16 %v7439
  %v7704 = vunpack.c.h.b16 %v7439
  %v7705 = vunpack.c.l.b16 %v7440
  %v7706 = vunpack.c.h.b16 %v7440
  %v7707 = vunpack.c.l.b16 %v7441
  %v7708 = vunpack.c.h.b16 %v7441
  %v7709 = vunpack.c.l.b16 %v7442
  %v7710 = vunpack.c.h.b16 %v7442
  %v7711 = vunpack.c.l.b16 %v7443
  %v7712 = vunpack.c.h.b16 %v7443
  %v7713 = vunpack.c.l.b16 %v7444
  %v7714 = vunpack.c.h.b16 %v7444
  %v7715 = vunpack.c.l.b16 %v7445
  %v7716 = vunpack.c.h.b16 %v7445
  %v7717 = vunpack.c.l.b16 %v7446
  %v7718 = vunpack.c.h.b16 %v7446
  %v7719 = vunpack.c.l.b16 %v7447
  %v7720 = vunpack.c.h.b16 %v7447
  %v7721 = vunpack.c.l.b16 %v7448
  %v7722 = vunpack.c.h.b16 %v7448
  %v7723 = vunpack.c.l.b16 %v7449
  %v7724 = vunpack.c.h.b16 %v7449
  %v7725 = vunpack.c.l.b16 %v7450
  %v7726 = vunpack.c.h.b16 %v7450
  %v7727 = vunpack.c.l.b16 %v7451
  %v7728 = vunpack.c.h.b16 %v7451
  %v7729 = vunpack.c.l.b16 %v7452
  %v7730 = vunpack.c.h.b16 %v7452
  %v7731 = vunpack.c.l.b16 %v7453
  %v7732 = vunpack.c.h.b16 %v7453
  %v7733 = vunpack.c.l.b16 %v7454
  %v7734 = vunpack.c.h.b16 %v7454
  %v7735 = vunpack.c.l.b16 %v7455
  %v7736 = vunpack.c.h.b16 %v7455
  %v7737 = vunpack.c.l.b16 %v7456
  %v7738 = vunpack.c.h.b16 %v7456
  %v7739 = vunpack.c.l.b16 %v7457
  %v7740 = vunpack.c.h.b16 %v7457
  %v7741 = vunpack.c.l.b16 %v7458
  %v7742 = vunpack.c.h.b16 %v7458
  %v7743 = vunpack.c.l.b16 %v7459
  %v7744 = vunpack.c.h.b16 %v7459
  %v7745 = vunpack.c.l.b16 %v7460
  %v7746 = vunpack.c.h.b16 %v7460
  %v7747 = vunpack.c.l.b16 %v7461
  %v7748 = vunpack.c.h.b16 %v7461
  %v7749 = vunpack.c.l.b16 %v7462
  %v7750 = vunpack.c.h.b16 %v7462
  %v7751 = vunpack.c.l.b16 %v7463
  %v7752 = vunpack.c.h.b16 %v7463
  %v7753 = vunpack.c.l.b16 %v7464
  %v7754 = vunpack.c.h.b16 %v7464
  %v7755 = vunpack.c.l.b16 %v7465
  %v7756 = vunpack.c.h.b16 %v7465
  %v7757 = vunpack.c.l.b16 %v7466
  %v7758 = vunpack.c.h.b16 %v7466
  %v7759 = vunpack.c.l.b16 %v7467
  %v7760 = vunpack.c.h.b16 %v7467
  %v7761 = vunpack.c.l.b16 %v7468
  %v7762 = vunpack.c.h.b16 %v7468
  %v7763 = vpack.c.b16 %v7567, %v7567
  %v7764 = vpack.c.b16 %v7568, %v7568
  %v7765 = vpack.c.b16 %v7569, %v7569
  %v7766 = vpack.c.b16 %v7570, %v7570
  %v7767 = vpack.c.b16 %v7571, %v7571
  %v7768 = vpack.c.b16 %v7572, %v7572
  %v7769 = vpack.c.b16 %v7573, %v7573
  %v7770 = vpack.c.b16 %v7574, %v7574
  %v7771 = vpack.c.b16 %v7575, %v7575
  %v7772 = vpack.c.b16 %v7576, %v7576
  %v7773 = vpack.c.b16 %v7577, %v7577
  %v7774 = vpack.c.b16 %v7578, %v7578
  %v7775 = vpack.c.b16 %v7579, %v7579
  %v7776 = vpack.c.b16 %v7580, %v7580
  %v7777 = vpack.c.b16 %v7581, %v7581
  %v7778 = vpack.c.b16 %v7582, %v7582
  %v7779 = vpack.c.b16 %v7583, %v7583
  %v7780 = vpack.c.b16 %v7584, %v7584
  %v7781 = vpack.c.b16 %v7585, %v7585
  %v7782 = vpack.c.b16 %v7586, %v7586
  %v7783 = vpack.c.b16 %v7587, %v7587
  %v7784 = vpack.c.b16 %v7588, %v7588
  %v7785 = vpack.c.b16 %v7589, %v7589
  %v7786 = vpack.c.b16 %v7590, %v7590
  %v7787 = vpack.c.b16 %v7591, %v7591
  %v7788 = vpack.c.b16 %v7592, %v7592
  %v7789 = vpack.c.b16 %v7593, %v7593
  %v7790 = vpack.c.b16 %v7594, %v7594
  %v7791 = vpack.c.b16 %v7595, %v7595
  %v7792 = vpack.c.b16 %v7596, %v7596
  %v7793 = vpack.c.b16 %v7597, %v7597
  %v7794 = vpack.c.b16 %v7598, %v7598
  %v7795 = vpack.c.b16 %v7599, %v7599
  %v7796 = vpack.c.b16 %v7600, %v7600
  %v7797 = vpack.c.b16 %v7601, %v7601
  %v7798 = vpack.c.b16 %v7602, %v7602
  %v7799 = vpack.c.b16 %v7603, %v7603
  %v7800 = vpack.c.b16 %v7604, %v7604
  %v7801 = vpack.c.b16 %v7605, %v7605
  %v7802 = vpack.c.b16 %v7606, %v7606
  %v7803 = vpack.c.b16 %v7607, %v7607
  %v7804 = vpack.c.b16 %v7608, %v7608
  %v7805 = vpack.c.b16 %v7609, %v7609
  %v7806 = vpack.c.b16 %v7610, %v7610
  %v7807 = vpack.c.b16 %v7611, %v7611
  %v7808 = vpack.c.b16 %v7612, %v7612
  %v7809 = vpack.c.b16 %v7613, %v7613
  %v7810 = vpack.c.b16 %v7614, %v7614
  %v7811 = vpack.c.b16 %v7615, %v7615
  %v7812 = vpack.c.b16 %v7616, %v7616
  %v7813 = vpack.c.b16 %v7617, %v7617
  %v7814 = vpack.c.b16 %v7618, %v7618
  %v7815 = vpack.c.b16 %v7619, %v7619
  %v7816 = vpack.c.b16 %v7620, %v7620
  %v7817 = vpack.c.b16 %v7621, %v7621
  %v7818 = vpack.c.b16 %v7622, %v7622
  %v7819 = vpack.c.b16 %v7623, %v7623
  %v7820 = vpack.c.b16 %v7624, %v7624
  %v7821 = vpack.c.b16 %v7625, %v7625
  %v7822 = vpack.c.b16 %v7626, %v7626
  %v7823 = vpack.c.b16 %v7627, %v7627
  %v7824 = vpack.c.b16 %v7628, %v7628
  %v7825 = vpack.c.b16 %v7629, %v7629
  %v7826 = vpack.c.b16 %v7630, %v7630
  %v7827 = vpack.c.b16 %v7631, %v7631
  %v7828 = vpack.c.b16 %v7632, %v7632
  %v7829 = vpack.c.b16 %v7633, %v7633
  %v7830 = vpack.c.b16 %v7634, %v7634
  %v7831 = vpack.c.b16 %v7635, %v7635
  %v7832 = vpack.c.b16 %v7636, %v7636
  %v7833 = vpack.c.b16 %v7637, %v7637
  %v7834 = vpack.c.b16 %v7638, %v7638
  %v7835 = vpack.c.b16 %v7639, %v7639
  %v7836 = vpack.c.b16 %v7640, %v7640
  %v7837 = vpack.c.b16 %v7641, %v7641
  %v7838 = vpack.c.b16 %v7642, %v7642
  %v7839 = vpack.c.b16 %v7643, %v7643
  %v7840 = vpack.c.b16 %v7644, %v7644
  %v7841 = vpack.c.b16 %v7645, %v7645
  %v7842 = vpack.c.b16 %v7646, %v7646
  %v7843 = vpack.c.b16 %v7647, %v7647
  %v7844 = vpack.c.b16 %v7648, %v7648
  %v7845 = vpack.c.b16 %v7649, %v7649
  %v7846 = vpack.c.b16 %v7650, %v7650
  %v7847 = vpack.c.b16 %v7651, %v7651
  %v7848 = vpack.c.b16 %v7652, %v7652
  %v7849 = vpack.c.b16 %v7653, %v7653
  %v7850 = vpack.c.b16 %v7654, %v7654
  %v7851 = vpack.c.b16 %v7655, %v7655
  %v7852 = vpack.c.b16 %v7656, %v7656
  %v7853 = vpack.c.b16 %v7657, %v7657
  %v7854 = vpack.c.b16 %v7658, %v7658
  %v7855 = vpack.c.b16 %v7659, %v7659
  %v7856 = vpack.c.b16 %v7660, %v7660
  %v7857 = vpack.c.b16 %v7661, %v7661
  %v7858 = vpack.c.b16 %v7662, %v7662
  %v7859 = vpack.c.b16 %v7663, %v7663
  %v7860 = vpack.c.b16 %v7664, %v7664
  %v7861 = vpack.c.b16 %v7665, %v7665
  %v7862 = vpack.c.b16 %v7666, %v7666
  %v7863 = vpack.c.b16 %v7667, %v7667
  %v7864 = vpack.c.b16 %v7668, %v7668
  %v7865 = vpack.c.b16 %v7669, %v7669
  %v7866 = vpack.c.b16 %v7670, %v7670
  %v7867 = vpack.c.b16 %v7671, %v7671
  %v7868 = vpack.c.b16 %v7672, %v7672
  %v7869 = vpack.c.b16 %v7673, %v7673
  %v7870 = vpack.c.b16 %v7674, %v7674
  %v7871 = vpack.c.b16 %v7675, %v7675
  %v7872 = vpack.c.b16 %v7676, %v7676
  %v7873 = vpack.c.b16 %v7677, %v7677
  %v7874 = vpack.c.b16 %v7678, %v7678
  %v7875 = vpack.c.b16 %v7679, %v7679
  %v7876 = vpack.c.b16 %v7680, %v7680
  %v7877 = vpack.c.b16 %v7681, %v7681
  %v7878 = vpack.c.b16 %v7682, %v7682
  %v7879 = vpack.c.b16 %v7683, %v7683
  %v7880 = vpack.c.b16 %v7684, %v7684
  %v7881 = vpack.c.b16 %v7685, %v7685
  %v7882 = vpack.c.b16 %v7686, %v7686
  %v7883 = vpack.c.b16 %v7687, %v7687
  %v7884 = vpack.c.b16 %v7688, %v7688
  %v7885 = vpack.c.b16 %v7689, %v7689
  %v7886 = vpack.c.b16 %v7690, %v7690
  %v7887 = vpack.c.b16 %v7691, %v7691
  %v7888 = vpack.c.b16 %v7692, %v7692
  %v7889 = vpack.c.b16 %v7693, %v7693
  %v7890 = vpack.c.b16 %v7694, %v7694
  %v7891 = vpack.c.b16 %v7695, %v7695
  %v7892 = vpack.c.b16 %v7696, %v7696
  %v7893 = vpack.c.b16 %v7697, %v7697
  %v7894 = vpack.c.b16 %v7698, %v7698
  %v7895 = vpack.c.b16 %v7699, %v7699
  %v7896 = vpack.c.b16 %v7700, %v7700
  %v7897 = vpack.c.b16 %v7701, %v7701
  %v7898 = vpack.c.b16 %v7702, %v7702
  %v7899 = vpack.c.b16 %v7703, %v7703
  %v7900 = vpack.c.b16 %v7704, %v7704
  %v7901 = vpack.c.b16 %v7705, %v7705
  %v7902 = vpack.c.b16 %v7706, %v7706
  %v7903 = vpack.c.b16 %v7707, %v7707
  %v7904 = vpack.c.b16 %v7708, %v7708
  %v7905 = vpack.c.b16 %v7709, %v7709
  %v7906 = vpack.c.b16 %v7710, %v7710
  %v7907 = vpack.c.b16 %v7711, %v7711
  %v7908 = vpack.c.b16 %v7712, %v7712
  %v7909 = vpack.c.b16 %v7713, %v7713
  %v7910 = vpack.c.b16 %v7714, %v7714
  %v7911 = vpack.c.b16 %v7715, %v7715
  %v7912 = vpack.c.b16 %v7716, %v7716
  %v7913 = vpack.c.b16 %v7717, %v7717
  %v7914 = vpack.c.b16 %v7718, %v7718
  %v7915 = vpack.c.b16 %v7719, %v7719
  %v7916 = vpack.c.b16 %v7720, %v7720
  %v7917 = vpack.c.b16 %v7721, %v7721
  %v7918 = vpack.c.b16 %v7722, %v7722
  %v7919 = vpack.c.b16 %v7723, %v7723
  %v7920 = vpack.c.b16 %v7724, %v7724
  %v7921 = vpack.c.b16 %v7725, %v7725
  %v7922 = vpack.c.b16 %v7726, %v7726
  %v7923 = vpack.c.b16 %v7727, %v7727
  %v7924 = vpack.c.b16 %v7728, %v7728
  %v7925 = vpack.c.b16 %v7729, %v7729
  %v7926 = vpack.c.b16 %v7730, %v7730
  %v7927 = vpack.c.b16 %v7731, %v7731
  %v7928 = vpack.c.b16 %v7732, %v7732
  %v7929 = vpack.c.b16 %v7733, %v7733
  %v7930 = vpack.c.b16 %v7734, %v7734
  %v7931 = vpack.c.b16 %v7735, %v7735
  %v7932 = vpack.c.b16 %v7736, %v7736
  %v7933 = vpack.c.b16 %v7737, %v7737
  %v7934 = vpack.c.b16 %v7738, %v7738
  %v7935 = vpack.c.b16 %v7739, %v7739
  %v7936 = vpack.c.b16 %v7740, %v7740
  %v7937 = vpack.c.b16 %v7741, %v7741
  %v7938 = vpack.c.b16 %v7742, %v7742
  %v7939 = vpack.c.b16 %v7743, %v7743
  %v7940 = vpack.c.b16 %v7744, %v7744
  %v7941 = vpack.c.b16 %v7745, %v7745
  %v7942 = vpack.c.b16 %v7746, %v7746
  %v7943 = vpack.c.b16 %v7747, %v7747
  %v7944 = vpack.c.b16 %v7748, %v7748
  %v7945 = vpack.c.b16 %v7749, %v7749
  %v7946 = vpack.c.b16 %v7750, %v7750
  %v7947 = vpack.c.b16 %v7751, %v7751
  %v7948 = vpack.c.b16 %v7752, %v7752
  %v7949 = vpack.c.b16 %v7753, %v7753
  %v7950 = vpack.c.b16 %v7754, %v7754
  %v7951 = vpack.c.b16 %v7755, %v7755
  %v7952 = vpack.c.b16 %v7756, %v7756
  %v7953 = vpack.c.b16 %v7757, %v7757
  %v7954 = vpack.c.b16 %v7758, %v7758
  %v7955 = vpack.c.b16 %v7759, %v7759
  %v7956 = vpack.c.b16 %v7760, %v7760
  %v7957 = vpack.c.b16 %v7761, %v7761
  %v7958 = vpack.c.b16 %v7762, %v7762
  %8155 = vst [vmem:[%s3] sm:$0xf] %v7763
  %8156 = vst [vmem:[%s3 + $0x4] sm:$0xf] %v7764
  %8157 = vst [vmem:[%s3 + $0x8] sm:$0xf] %v7765
  %8158 = vst [vmem:[%s3 + $0xc] sm:$0xf] %v7766
  %8159 = vst [vmem:[%s3 + $0x10] sm:$0xf] %v7767
  %8160 = vst [vmem:[%s3 + $0x14] sm:$0xf] %v7768
  %8161 = vst [vmem:[%s3 + $0x18] sm:$0xf] %v7769
  %8162 = vst [vmem:[%s3 + $0x1c] sm:$0xf] %v7770
  %8163 = vst [vmem:[%s3 + $0x20] sm:$0xf] %v7771
  %8164 = vst [vmem:[%s3 + $0x24] sm:$0xf] %v7772
  %8165 = vst [vmem:[%s3 + $0x28] sm:$0xf] %v7773
  %8166 = vst [vmem:[%s3 + $0x2c] sm:$0xf] %v7774
  %8167 = vst [vmem:[%s3 + $0x30] sm:$0xf] %v7775
  %8168 = vst [vmem:[%s3 + $0x34] sm:$0xf] %v7776
  %8169 = vst [vmem:[%s3 + $0x38] sm:$0xf] %v7777
  %8170 = vst [vmem:[%s3 + $0x3c] sm:$0xf] %v7778
  %8171 = vst [vmem:[%s3 + $0x40] sm:$0xf] %v7779
  %8172 = vst [vmem:[%s3 + $0x44] sm:$0xf] %v7780
  %8173 = vst [vmem:[%s3 + $0x48] sm:$0xf] %v7781
  %8174 = vst [vmem:[%s3 + $0x4c] sm:$0xf] %v7782
  %8175 = vst [vmem:[%s3 + $0x50] sm:$0xf] %v7783
  %8176 = vst [vmem:[%s3 + $0x54] sm:$0xf] %v7784
  %8177 = vst [vmem:[%s3 + $0x58] sm:$0xf] %v7785
  %8178 = vst [vmem:[%s3 + $0x5c] sm:$0xf] %v7786
  %8179 = vst [vmem:[%s3 + $0x60] sm:$0xf] %v7787
  %8180 = vst [vmem:[%s3 + $0x64] sm:$0xf] %v7788
  %8181 = vst [vmem:[%s3 + $0x68] sm:$0xf] %v7789
  %8182 = vst [vmem:[%s3 + $0x6c] sm:$0xf] %v7790
  %8183 = vst [vmem:[%s3 + $0x70] sm:$0xf] %v7791
  %8184 = vst [vmem:[%s3 + $0x74] sm:$0xf] %v7792
  %8185 = vst [vmem:[%s3 + $0x78] sm:$0xf] %v7793
  %8186 = vst [vmem:[%s3 + $0x7c] sm:$0xf] %v7794
  %8187 = vst [vmem:[%s3 + $0x80] sm:$0xf] %v7795
  %8188 = vst [vmem:[%s3 + $0x84] sm:$0xf] %v7796
  %8189 = vst [vmem:[%s3 + $0x88] sm:$0xf] %v7797
  %8190 = vst [vmem:[%s3 + $0x8c] sm:$0xf] %v7798
  %8191 = vst [vmem:[%s3 + $0x90] sm:$0xf] %v7799
  %8192 = vst [vmem:[%s3 + $0x94] sm:$0xf] %v7800
  %8193 = vst [vmem:[%s3 + $0x98] sm:$0xf] %v7801
  %8194 = vst [vmem:[%s3 + $0x9c] sm:$0xf] %v7802
  %8195 = vst [vmem:[%s3 + $0xa0] sm:$0xf] %v7803
  %8196 = vst [vmem:[%s3 + $0xa4] sm:$0xf] %v7804
  %8197 = vst [vmem:[%s3 + $0xa8] sm:$0xf] %v7805
  %8198 = vst [vmem:[%s3 + $0xac] sm:$0xf] %v7806
  %8199 = vst [vmem:[%s3 + $0xb0] sm:$0xf] %v7807
  %8200 = vst [vmem:[%s3 + $0xb4] sm:$0xf] %v7808
  %8201 = vst [vmem:[%s3 + $0xb8] sm:$0xf] %v7809
  %8202 = vst [vmem:[%s3 + $0xbc] sm:$0xf] %v7810
  %8203 = vst [vmem:[%s3 + $0xc0] sm:$0xf] %v7811
  %8204 = vst [vmem:[%s3 + $0xc4] sm:$0xf] %v7812
  %8205 = vst [vmem:[%s3 + $0xc8] sm:$0xf] %v7813
  %8206 = vst [vmem:[%s3 + $0xcc] sm:$0xf] %v7814
  %8207 = vst [vmem:[%s3 + $0xd0] sm:$0xf] %v7815
  %8208 = vst [vmem:[%s3 + $0xd4] sm:$0xf] %v7816
  %8209 = vst [vmem:[%s3 + $0xd8] sm:$0xf] %v7817
  %8210 = vst [vmem:[%s3 + $0xdc] sm:$0xf] %v7818
  %8211 = vst [vmem:[%s3 + $0xe0] sm:$0xf] %v7819
  %8212 = vst [vmem:[%s3 + $0xe4] sm:$0xf] %v7820
  %8213 = vst [vmem:[%s3 + $0xe8] sm:$0xf] %v7821
  %8214 = vst [vmem:[%s3 + $0xec] sm:$0xf] %v7822
  %8215 = vst [vmem:[%s3 + $0xf0] sm:$0xf] %v7823
  %8216 = vst [vmem:[%s3 + $0xf4] sm:$0xf] %v7824
  %8217 = vst [vmem:[%s3 + $0xf8] sm:$0xf] %v7825
  %8218 = vst [vmem:[%s3 + $0xfc] sm:$0xf] %v7826
  %8219 = vst [vmem:[%s3 + $0x100] sm:$0xf] %v7827
  %8220 = vst [vmem:[%s3 + $0x104] sm:$0xf] %v7828
  %8221 = vst [vmem:[%s3 + $0x108] sm:$0xf] %v7829
  %8222 = vst [vmem:[%s3 + $0x10c] sm:$0xf] %v7830
  %8223 = vst [vmem:[%s3 + $0x110] sm:$0xf] %v7831
  %8224 = vst [vmem:[%s3 + $0x114] sm:$0xf] %v7832
  %8225 = vst [vmem:[%s3 + $0x118] sm:$0xf] %v7833
  %8226 = vst [vmem:[%s3 + $0x11c] sm:$0xf] %v7834
  %8227 = vst [vmem:[%s3 + $0x120] sm:$0xf] %v7835
  %8228 = vst [vmem:[%s3 + $0x124] sm:$0xf] %v7836
  %8229 = vst [vmem:[%s3 + $0x128] sm:$0xf] %v7837
  %8230 = vst [vmem:[%s3 + $0x12c] sm:$0xf] %v7838
  %8231 = vst [vmem:[%s3 + $0x130] sm:$0xf] %v7839
  %8232 = vst [vmem:[%s3 + $0x134] sm:$0xf] %v7840
  %8233 = vst [vmem:[%s3 + $0x138] sm:$0xf] %v7841
  %8234 = vst [vmem:[%s3 + $0x13c] sm:$0xf] %v7842
  %8235 = vst [vmem:[%s3 + $0x140] sm:$0xf] %v7843
  %8236 = vst [vmem:[%s3 + $0x144] sm:$0xf] %v7844
  %8237 = vst [vmem:[%s3 + $0x148] sm:$0xf] %v7845
  %8238 = vst [vmem:[%s3 + $0x14c] sm:$0xf] %v7846
  %8239 = vst [vmem:[%s3 + $0x150] sm:$0xf] %v7847
  %8240 = vst [vmem:[%s3 + $0x154] sm:$0xf] %v7848
  %8241 = vst [vmem:[%s3 + $0x158] sm:$0xf] %v7849
  %8242 = vst [vmem:[%s3 + $0x15c] sm:$0xf] %v7850
  %8243 = vst [vmem:[%s3 + $0x160] sm:$0xf] %v7851
  %8244 = vst [vmem:[%s3 + $0x164] sm:$0xf] %v7852
  %8245 = vst [vmem:[%s3 + $0x168] sm:$0xf] %v7853
  %8246 = vst [vmem:[%s3 + $0x16c] sm:$0xf] %v7854
  %8247 = vst [vmem:[%s3 + $0x170] sm:$0xf] %v7855
  %8248 = vst [vmem:[%s3 + $0x174] sm:$0xf] %v7856
  %8249 = vst [vmem:[%s3 + $0x178] sm:$0xf] %v7857
  %8250 = vst [vmem:[%s3 + $0x17c] sm:$0xf] %v7858
  %8251 = vst [vmem:[%s3 + $0x180] sm:$0xf] %v7859
  %8252 = vst [vmem:[%s3 + $0x184] sm:$0xf] %v7860
  %8253 = vst [vmem:[%s3 + $0x188] sm:$0xf] %v7861
  %8254 = vst [vmem:[%s3 + $0x18c] sm:$0xf] %v7862
  %8255 = vst [vmem:[%s3 + $0x190] sm:$0xf] %v7863
  %8256 = vst [vmem:[%s3 + $0x194] sm:$0xf] %v7864
  %8257 = vst [vmem:[%s3 + $0x198] sm:$0xf] %v7865
  %8258 = vst [vmem:[%s3 + $0x19c] sm:$0xf] %v7866
  %8259 = vst [vmem:[%s3 + $0x1a0] sm:$0xf] %v7867
  %8260 = vst [vmem:[%s3 + $0x1a4] sm:$0xf] %v7868
  %8261 = vst [vmem:[%s3 + $0x1a8] sm:$0xf] %v7869
  %8262 = vst [vmem:[%s3 + $0x1ac] sm:$0xf] %v7870
  %8263 = vst [vmem:[%s3 + $0x1b0] sm:$0xf] %v7871
  %8264 = vst [vmem:[%s3 + $0x1b4] sm:$0xf] %v7872
  %8265 = vst [vmem:[%s3 + $0x1b8] sm:$0xf] %v7873
  %8266 = vst [vmem:[%s3 + $0x1bc] sm:$0xf] %v7874
  %8267 = vst [vmem:[%s3 + $0x1c0] sm:$0xf] %v7875
  %8268 = vst [vmem:[%s3 + $0x1c4] sm:$0xf] %v7876
  %8269 = vst [vmem:[%s3 + $0x1c8] sm:$0xf] %v7877
  %8270 = vst [vmem:[%s3 + $0x1cc] sm:$0xf] %v7878
  %8271 = vst [vmem:[%s3 + $0x1d0] sm:$0xf] %v7879
  %8272 = vst [vmem:[%s3 + $0x1d4] sm:$0xf] %v7880
  %8273 = vst [vmem:[%s3 + $0x1d8] sm:$0xf] %v7881
  %8274 = vst [vmem:[%s3 + $0x1dc] sm:$0xf] %v7882
  %8275 = vst [vmem:[%s3 + $0x1e0] sm:$0xf] %v7883
  %8276 = vst [vmem:[%s3 + $0x1e4] sm:$0xf] %v7884
  %8277 = vst [vmem:[%s3 + $0x1e8] sm:$0xf] %v7885
  %8278 = vst [vmem:[%s3 + $0x1ec] sm:$0xf] %v7886
  %8279 = vst [vmem:[%s3 + $0x1f0] sm:$0xf] %v7887
  %8280 = vst [vmem:[%s3 + $0x1f4] sm:$0xf] %v7888
  %8281 = vst [vmem:[%s3 + $0x1f8] sm:$0xf] %v7889
  %8282 = vst [vmem:[%s3 + $0x1fc] sm:$0xf] %v7890
  %8283 = vst [vmem:[%s3 + $0x200] sm:$0xf] %v7891
  %8284 = vst [vmem:[%s3 + $0x204] sm:$0xf] %v7892
  %8285 = vst [vmem:[%s3 + $0x208] sm:$0xf] %v7893
  %8286 = vst [vmem:[%s3 + $0x20c] sm:$0xf] %v7894
  %8287 = vst [vmem:[%s3 + $0x210] sm:$0xf] %v7895
  %8288 = vst [vmem:[%s3 + $0x214] sm:$0xf] %v7896
  %8289 = vst [vmem:[%s3 + $0x218] sm:$0xf] %v7897
  %8290 = vst [vmem:[%s3 + $0x21c] sm:$0xf] %v7898
  %8291 = vst [vmem:[%s3 + $0x220] sm:$0xf] %v7899
  %8292 = vst [vmem:[%s3 + $0x224] sm:$0xf] %v7900
  %8293 = vst [vmem:[%s3 + $0x228] sm:$0xf] %v7901
  %8294 = vst [vmem:[%s3 + $0x22c] sm:$0xf] %v7902
  %8295 = vst [vmem:[%s3 + $0x230] sm:$0xf] %v7903
  %8296 = vst [vmem:[%s3 + $0x234] sm:$0xf] %v7904
  %8297 = vst [vmem:[%s3 + $0x238] sm:$0xf] %v7905
  %8298 = vst [vmem:[%s3 + $0x23c] sm:$0xf] %v7906
  %8299 = vst [vmem:[%s3 + $0x240] sm:$0xf] %v7907
  %8300 = vst [vmem:[%s3 + $0x244] sm:$0xf] %v7908
  %8301 = vst [vmem:[%s3 + $0x248] sm:$0xf] %v7909
  %8302 = vst [vmem:[%s3 + $0x24c] sm:$0xf] %v7910
  %8303 = vst [vmem:[%s3 + $0x250] sm:$0xf] %v7911
  %8304 = vst [vmem:[%s3 + $0x254] sm:$0xf] %v7912
  %8305 = vst [vmem:[%s3 + $0x258] sm:$0xf] %v7913
  %8306 = vst [vmem:[%s3 + $0x25c] sm:$0xf] %v7914
  %8307 = vst [vmem:[%s3 + $0x260] sm:$0xf] %v7915
  %8308 = vst [vmem:[%s3 + $0x264] sm:$0xf] %v7916
  %8309 = vst [vmem:[%s3 + $0x268] sm:$0xf] %v7917
  %8310 = vst [vmem:[%s3 + $0x26c] sm:$0xf] %v7918
  %8311 = vst [vmem:[%s3 + $0x270] sm:$0xf] %v7919
  %8312 = vst [vmem:[%s3 + $0x274] sm:$0xf] %v7920
  %8313 = vst [vmem:[%s3 + $0x278] sm:$0xf] %v7921
  %8314 = vst [vmem:[%s3 + $0x27c] sm:$0xf] %v7922
  %8315 = vst [vmem:[%s3 + $0x280] sm:$0xf] %v7923
  %8316 = vst [vmem:[%s3 + $0x284] sm:$0xf] %v7924
  %8317 = vst [vmem:[%s3 + $0x288] sm:$0xf] %v7925
  %8318 = vst [vmem:[%s3 + $0x28c] sm:$0xf] %v7926
  %8319 = vst [vmem:[%s3 + $0x290] sm:$0xf] %v7927
  %8320 = vst [vmem:[%s3 + $0x294] sm:$0xf] %v7928
  %8321 = vst [vmem:[%s3 + $0x298] sm:$0xf] %v7929
  %8322 = vst [vmem:[%s3 + $0x29c] sm:$0xf] %v7930
  %8323 = vst [vmem:[%s3 + $0x2a0] sm:$0xf] %v7931
  %8324 = vst [vmem:[%s3 + $0x2a4] sm:$0xf] %v7932
  %8325 = vst [vmem:[%s3 + $0x2a8] sm:$0xf] %v7933
  %8326 = vst [vmem:[%s3 + $0x2ac] sm:$0xf] %v7934
  %8327 = vst [vmem:[%s3 + $0x2b0] sm:$0xf] %v7935
  %8328 = vst [vmem:[%s3 + $0x2b4] sm:$0xf] %v7936
  %8329 = vst [vmem:[%s3 + $0x2b8] sm:$0xf] %v7937
  %8330 = vst [vmem:[%s3 + $0x2bc] sm:$0xf] %v7938
  %8331 = vst [vmem:[%s3 + $0x2c0] sm:$0xf] %v7939
  %8332 = vst [vmem:[%s3 + $0x2c4] sm:$0xf] %v7940
  %8333 = vst [vmem:[%s3 + $0x2c8] sm:$0xf] %v7941
  %8334 = vst [vmem:[%s3 + $0x2cc] sm:$0xf] %v7942
  %8335 = vst [vmem:[%s3 + $0x2d0] sm:$0xf] %v7943
  %8336 = vst [vmem:[%s3 + $0x2d4] sm:$0xf] %v7944
  %8337 = vst [vmem:[%s3 + $0x2d8] sm:$0xf] %v7945
  %8338 = vst [vmem:[%s3 + $0x2dc] sm:$0xf] %v7946
  %8339 = vst [vmem:[%s3 + $0x2e0] sm:$0xf] %v7947
  %8340 = vst [vmem:[%s3 + $0x2e4] sm:$0xf] %v7948
  %8341 = vst [vmem:[%s3 + $0x2e8] sm:$0xf] %v7949
  %8342 = vst [vmem:[%s3 + $0x2ec] sm:$0xf] %v7950
  %8343 = vst [vmem:[%s3 + $0x2f0] sm:$0xf] %v7951
  %8344 = vst [vmem:[%s3 + $0x2f4] sm:$0xf] %v7952
  %8345 = vst [vmem:[%s3 + $0x2f8] sm:$0xf] %v7953
  %8346 = vst [vmem:[%s3 + $0x2fc] sm:$0xf] %v7954
  %8347 = vst [vmem:[%s3 + $0x300] sm:$0xf] %v7955
  %8348 = vst [vmem:[%s3 + $0x304] sm:$0xf] %v7956
  %8349 = vst [vmem:[%s3 + $0x308] sm:$0xf] %v7957
  %8350 = vst [vmem:[%s3 + $0x30c] sm:$0xf] %v7958
  // Predicated region
  $region14: #{net_forward.3} parent=0 // pred_check
    _
  $region15: #{net_forward.3} parent=0 // pred_check_branch
    %8352 = sbr.rel (0) target = $region17
  $region16: #{net_forward.3} parent=0 // pred_region
    _
  $region17: #{net_forward.3} parent=0 // pred_fallthru
    _
  // Predicated region
  $region18: #{net_forward.3} parent=0 // pred_check
    _
  $region19: #{net_forward.3} parent=0 // pred_check_branch
    %8354 = sbr.rel (0) target = $region21
  $region20: #{net_forward.3} parent=0 // pred_region
    _
  $region21: #{net_forward.3} parent=0 // pred_fallthru
    _

// kernel: net_forward.4
$region0: #{net_forward.4}
  #allocation0 [shape = 'u32[]', space=smem, size = 0x4, offset = 0x4, fixed_abs, tag = 'smem constant byte address 0x4 - core index']
  #allocation1 [shape = 'u32[144,128]{1,0:T(1,128)}', space=vmem, size = 0x12000, scoped, tag = 'internal scratch']
  %s0 = inlined_call_operand.vmem [shape: bf16[1,800,256], index: 0, kind: input, shape index: {}]
  %s1 = inlined_call_operand.vmem [shape: bf16[256,128], index: 1, kind: input, shape index: {}]
  %s2 = inlined_call_operand.vmem [shape: f32[1,128], index: 2, kind: input, shape index: {}]
  %s3 = inlined_call_operand.vmem [shape: bf16[1,200,128], index: 3, kind: output, shape index: {}]
  %s4 = sld [smem:[#allocation0]]
  $region22: #{net_forward.4} parent=0
    _
  %s6 = ssub.s32 1, %s4
  %s7 = scalar_select 0, %s6, %s4
  // Predicated region
  $region2: #{net_forward.4} parent=0 // pred_check
    _
  $region3: #{net_forward.4} parent=0 // pred_check_branch
    %9 = sbr.rel (0) target = $region5
  $region4: #{net_forward.4} parent=0 // pred_region
    _
  $region5: #{net_forward.4} parent=0 // pred_fallthru
    _
  // Predicated region
  $region6: #{net_forward.4} parent=0 // pred_check
    _
  $region7: #{net_forward.4} parent=0 // pred_check_branch
    %11 = sbr.rel (0) target = $region9
  $region8: #{net_forward.4} parent=0 // pred_region
    _
  $region9: #{net_forward.4} parent=0 // pred_fallthru
    _
  // Predicated region
  $region10: #{net_forward.4} parent=0 // pred_check
    _
  $region11: #{net_forward.4} parent=0 // pred_check_branch
    %13 = sbr.rel (0) target = $region13
  $region12: #{net_forward.4} parent=0 // pred_region
    _
  $region13: #{net_forward.4} parent=0 // pred_fallthru
    _
  %v15 = vld [vmem:[%s0] sm:$0xff]
  %v16 = vld [vmem:[%s0 + $0x8] sm:$0xff]
  %v17 = vld [vmem:[%s0 + $0x10] sm:$0xff]
  %v18 = vld [vmem:[%s0 + $0x18] sm:$0xff]
  %v19 = vld [vmem:[%s0 + $0x20] sm:$0xff]
  %v20 = vld [vmem:[%s0 + $0x28] sm:$0xff]
  %v21 = vld [vmem:[%s0 + $0x30] sm:$0xff]
  %v22 = vld [vmem:[%s0 + $0x38] sm:$0xff]
  %v23 = vld [vmem:[%s0 + $0x40] sm:$0xff]
  %v24 = vld [vmem:[%s0 + $0x48] sm:$0xff]
  %v25 = vld [vmem:[%s0 + $0x50] sm:$0xff]
  %v26 = vld [vmem:[%s0 + $0x58] sm:$0xff]
  %v27 = vld [vmem:[%s0 + $0x60] sm:$0xff]
  %v28 = vld [vmem:[%s0 + $0x68] sm:$0xff]
  %v29 = vld [vmem:[%s0 + $0x70] sm:$0xff]
  %v30 = vld [vmem:[%s0 + $0x78] sm:$0xff]
  %v31 = vld [vmem:[%s0 + $0x80] sm:$0xff]
  %v32 = vld [vmem:[%s0 + $0x88] sm:$0xff]
  %v33 = vld [vmem:[%s0 + $0x90] sm:$0xff]
  %v34 = vld [vmem:[%s0 + $0x98] sm:$0xff]
  %v35 = vld [vmem:[%s0 + $0xa0] sm:$0xff]
  %v36 = vld [vmem:[%s0 + $0xa8] sm:$0xff]
  %v37 = vld [vmem:[%s0 + $0xb0] sm:$0xff]
  %v38 = vld [vmem:[%s0 + $0xb8] sm:$0xff]
  %v39 = vld [vmem:[%s0 + $0xc0] sm:$0xff]
  %v40 = vld [vmem:[%s0 + $0xc8] sm:$0xff]
  %v41 = vld [vmem:[%s0 + $0xd0] sm:$0xff]
  %v42 = vld [vmem:[%s0 + $0xd8] sm:$0xff]
  %v43 = vld [vmem:[%s0 + $0xe0] sm:$0xff]
  %v44 = vld [vmem:[%s0 + $0xe8] sm:$0xff]
  %v45 = vld [vmem:[%s0 + $0xf0] sm:$0xff]
  %v46 = vld [vmem:[%s0 + $0xf8] sm:$0xff]
  %v47 = vld [vmem:[%s0 + $0x100] sm:$0xff]
  %v48 = vld [vmem:[%s0 + $0x108] sm:$0xff]
  %v49 = vld [vmem:[%s0 + $0x110] sm:$0xff]
  %v50 = vld [vmem:[%s0 + $0x118] sm:$0xff]
  %v51 = vld [vmem:[%s0 + $0x120] sm:$0xff]
  %v52 = vld [vmem:[%s0 + $0x128] sm:$0xff]
  %v53 = vld [vmem:[%s0 + $0x130] sm:$0xff]
  %v54 = vld [vmem:[%s0 + $0x138] sm:$0xff]
  %v55 = vld [vmem:[%s0 + $0x140] sm:$0xff]
  %v56 = vld [vmem:[%s0 + $0x148] sm:$0xff]
  %v57 = vld [vmem:[%s0 + $0x150] sm:$0xff]
  %v58 = vld [vmem:[%s0 + $0x158] sm:$0xff]
  %v59 = vld [vmem:[%s0 + $0x160] sm:$0xff]
  %v60 = vld [vmem:[%s0 + $0x168] sm:$0xff]
  %v61 = vld [vmem:[%s0 + $0x170] sm:$0xff]
  %v62 = vld [vmem:[%s0 + $0x178] sm:$0xff]
  %v63 = vld [vmem:[%s0 + $0x180] sm:$0xff]
  %v64 = vld [vmem:[%s0 + $0x188] sm:$0xff]
  %v65 = vld [vmem:[%s0 + $0x190] sm:$0xff]
  %v66 = vld [vmem:[%s0 + $0x198] sm:$0xff]
  %v67 = vld [vmem:[%s0 + $0x1a0] sm:$0xff]
  %v68 = vld [vmem:[%s0 + $0x1a8] sm:$0xff]
  %v69 = vld [vmem:[%s0 + $0x1b0] sm:$0xff]
  %v70 = vld [vmem:[%s0 + $0x1b8] sm:$0xff]
  %v71 = vld [vmem:[%s0 + $0x1c0] sm:$0xff]
  %v72 = vld [vmem:[%s0 + $0x1c8] sm:$0xff]
  %v73 = vld [vmem:[%s0 + $0x1d0] sm:$0xff]
  %v74 = vld [vmem:[%s0 + $0x1d8] sm:$0xff]
  %v75 = vld [vmem:[%s0 + $0x1e0] sm:$0xff]
  %v76 = vld [vmem:[%s0 + $0x1e8] sm:$0xff]
  %v77 = vld [vmem:[%s0 + $0x1f0] sm:$0xff]
  %v78 = vld [vmem:[%s0 + $0x1f8] sm:$0xff]
  %v79 = vld [vmem:[%s0 + $0x200] sm:$0xff]
  %v80 = vld [vmem:[%s0 + $0x208] sm:$0xff]
  %v81 = vld [vmem:[%s0 + $0x210] sm:$0xff]
  %v82 = vld [vmem:[%s0 + $0x218] sm:$0xff]
  %v83 = vld [vmem:[%s0 + $0x220] sm:$0xff]
  %v84 = vld [vmem:[%s0 + $0x228] sm:$0xff]
  %v85 = vld [vmem:[%s0 + $0x230] sm:$0xff]
  %v86 = vld [vmem:[%s0 + $0x238] sm:$0xff]
  %v87 = vld [vmem:[%s0 + $0x240] sm:$0xff]
  %v88 = vld [vmem:[%s0 + $0x248] sm:$0xff]
  %v89 = vld [vmem:[%s0 + $0x250] sm:$0xff]
  %v90 = vld [vmem:[%s0 + $0x258] sm:$0xff]
  %v91 = vld [vmem:[%s0 + $0x260] sm:$0xff]
  %v92 = vld [vmem:[%s0 + $0x268] sm:$0xff]
  %v93 = vld [vmem:[%s0 + $0x270] sm:$0xff]
  %v94 = vld [vmem:[%s0 + $0x278] sm:$0xff]
  %v95 = vld [vmem:[%s0 + $0x280] sm:$0xff]
  %v96 = vld [vmem:[%s0 + $0x288] sm:$0xff]
  %v97 = vld [vmem:[%s0 + $0x290] sm:$0xff]
  %v98 = vld [vmem:[%s0 + $0x298] sm:$0xff]
  %v99 = vld [vmem:[%s0 + $0x2a0] sm:$0xff]
  %v100 = vld [vmem:[%s0 + $0x2a8] sm:$0xff]
  %v101 = vld [vmem:[%s0 + $0x2b0] sm:$0xff]
  %v102 = vld [vmem:[%s0 + $0x2b8] sm:$0xff]
  %v103 = vld [vmem:[%s0 + $0x2c0] sm:$0xff]
  %v104 = vld [vmem:[%s0 + $0x2c8] sm:$0xff]
  %v105 = vld [vmem:[%s0 + $0x2d0] sm:$0xff]
  %v106 = vld [vmem:[%s0 + $0x2d8] sm:$0xff]
  %v107 = vld [vmem:[%s0 + $0x2e0] sm:$0xff]
  %v108 = vld [vmem:[%s0 + $0x2e8] sm:$0xff]
  %v109 = vld [vmem:[%s0 + $0x2f0] sm:$0xff]
  %v110 = vld [vmem:[%s0 + $0x2f8] sm:$0xff]
  %v111 = vld [vmem:[%s0 + $0x300] sm:$0xff]
  %v112 = vld [vmem:[%s0 + $0x308] sm:$0xff]
  %v113 = vld [vmem:[%s0 + $0x310] sm:$0xff]
  %v114 = vld [vmem:[%s0 + $0x318] sm:$0xff]
  %v115 = vld [vmem:[%s1] sm:$0xf]
  %v116 = vld [vmem:[%s1 + $0x4] sm:$0xf]
  %v117 = vld [vmem:[%s1 + $0x8] sm:$0xf]
  %v118 = vld [vmem:[%s1 + $0xc] sm:$0xf]
  %v119 = vld [vmem:[%s1 + $0x10] sm:$0xf]
  %v120 = vld [vmem:[%s1 + $0x14] sm:$0xf]
  %v121 = vld [vmem:[%s1 + $0x18] sm:$0xf]
  %v122 = vld [vmem:[%s1 + $0x1c] sm:$0xf]
  %v123 = vld [vmem:[%s1 + $0x20] sm:$0xf]
  %v124 = vld [vmem:[%s1 + $0x24] sm:$0xf]
  %v125 = vld [vmem:[%s1 + $0x28] sm:$0xf]
  %v126 = vld [vmem:[%s1 + $0x2c] sm:$0xf]
  %v127 = vld [vmem:[%s1 + $0x30] sm:$0xf]
  %v128 = vld [vmem:[%s1 + $0x34] sm:$0xf]
  %v129 = vld [vmem:[%s1 + $0x38] sm:$0xf]
  %v130 = vld [vmem:[%s1 + $0x3c] sm:$0xf]
  %v131 = vld [vmem:[%s1 + $0x40] sm:$0xf]
  %v132 = vld [vmem:[%s1 + $0x44] sm:$0xf]
  %v133 = vld [vmem:[%s1 + $0x48] sm:$0xf]
  %v134 = vld [vmem:[%s1 + $0x4c] sm:$0xf]
  %v135 = vld [vmem:[%s1 + $0x50] sm:$0xf]
  %v136 = vld [vmem:[%s1 + $0x54] sm:$0xf]
  %v137 = vld [vmem:[%s1 + $0x58] sm:$0xf]
  %v138 = vld [vmem:[%s1 + $0x5c] sm:$0xf]
  %v139 = vld [vmem:[%s1 + $0x60] sm:$0xf]
  %v140 = vld [vmem:[%s1 + $0x64] sm:$0xf]
  %v141 = vld [vmem:[%s1 + $0x68] sm:$0xf]
  %v142 = vld [vmem:[%s1 + $0x6c] sm:$0xf]
  %v143 = vld [vmem:[%s1 + $0x70] sm:$0xf]
  %v144 = vld [vmem:[%s1 + $0x74] sm:$0xf]
  %v145 = vld [vmem:[%s1 + $0x78] sm:$0xf]
  %v146 = vld [vmem:[%s1 + $0x7c] sm:$0xf]
  %v247 = vunpack.c.l.b16 %v15
  %v248 = vunpack.c.h.b16 %v15
  %v249 = vunpack.c.l.b16 %v16
  %v250 = vunpack.c.h.b16 %v16
  %v251 = vunpack.c.l.b16 %v17
  %v252 = vunpack.c.h.b16 %v17
  %v253 = vunpack.c.l.b16 %v18
  %v254 = vunpack.c.h.b16 %v18
  %v255 = vunpack.c.l.b16 %v19
  %v256 = vunpack.c.h.b16 %v19
  %v257 = vunpack.c.l.b16 %v20
  %v258 = vunpack.c.h.b16 %v20
  %v259 = vunpack.c.l.b16 %v21
  %v260 = vunpack.c.h.b16 %v21
  %v261 = vunpack.c.l.b16 %v22
  %v262 = vunpack.c.h.b16 %v22
  %v263 = vunpack.c.l.b16 %v23
  %v264 = vunpack.c.h.b16 %v23
  %v265 = vunpack.c.l.b16 %v24
  %v266 = vunpack.c.h.b16 %v24
  %v267 = vunpack.c.l.b16 %v25
  %v268 = vunpack.c.h.b16 %v25
  %v269 = vunpack.c.l.b16 %v26
  %v270 = vunpack.c.h.b16 %v26
  %v271 = vunpack.c.l.b16 %v27
  %v272 = vunpack.c.h.b16 %v27
  %v273 = vunpack.c.l.b16 %v28
  %v274 = vunpack.c.h.b16 %v28
  %v275 = vunpack.c.l.b16 %v29
  %v276 = vunpack.c.h.b16 %v29
  %v277 = vunpack.c.l.b16 %v30
  %v278 = vunpack.c.h.b16 %v30
  %v279 = vunpack.c.l.b16 %v31
  %v280 = vunpack.c.h.b16 %v31
  %v281 = vunpack.c.l.b16 %v32
  %v282 = vunpack.c.h.b16 %v32
  %v283 = vunpack.c.l.b16 %v33
  %v284 = vunpack.c.h.b16 %v33
  %v285 = vunpack.c.l.b16 %v34
  %v286 = vunpack.c.h.b16 %v34
  %v287 = vunpack.c.l.b16 %v35
  %v288 = vunpack.c.h.b16 %v35
  %v289 = vunpack.c.l.b16 %v36
  %v290 = vunpack.c.h.b16 %v36
  %v291 = vunpack.c.l.b16 %v37
  %v292 = vunpack.c.h.b16 %v37
  %v293 = vunpack.c.l.b16 %v38
  %v294 = vunpack.c.h.b16 %v38
  %v295 = vunpack.c.l.b16 %v39
  %v296 = vunpack.c.h.b16 %v39
  %v297 = vunpack.c.l.b16 %v40
  %v298 = vunpack.c.h.b16 %v40
  %v299 = vunpack.c.l.b16 %v41
  %v300 = vunpack.c.h.b16 %v41
  %v301 = vunpack.c.l.b16 %v42
  %v302 = vunpack.c.h.b16 %v42
  %v303 = vunpack.c.l.b16 %v43
  %v304 = vunpack.c.h.b16 %v43
  %v305 = vunpack.c.l.b16 %v44
  %v306 = vunpack.c.h.b16 %v44
  %v307 = vunpack.c.l.b16 %v45
  %v308 = vunpack.c.h.b16 %v45
  %v309 = vunpack.c.l.b16 %v46
  %v310 = vunpack.c.h.b16 %v46
  %v311 = vunpack.c.l.b16 %v47
  %v312 = vunpack.c.h.b16 %v47
  %v313 = vunpack.c.l.b16 %v48
  %v314 = vunpack.c.h.b16 %v48
  %v315 = vunpack.c.l.b16 %v49
  %v316 = vunpack.c.h.b16 %v49
  %v317 = vunpack.c.l.b16 %v50
  %v318 = vunpack.c.h.b16 %v50
  %v319 = vunpack.c.l.b16 %v51
  %v320 = vunpack.c.h.b16 %v51
  %v321 = vunpack.c.l.b16 %v52
  %v322 = vunpack.c.h.b16 %v52
  %v323 = vunpack.c.l.b16 %v53
  %v324 = vunpack.c.h.b16 %v53
  %v325 = vunpack.c.l.b16 %v54
  %v326 = vunpack.c.h.b16 %v54
  %v327 = vunpack.c.l.b16 %v55
  %v328 = vunpack.c.h.b16 %v55
  %v329 = vunpack.c.l.b16 %v56
  %v330 = vunpack.c.h.b16 %v56
  %v331 = vunpack.c.l.b16 %v57
  %v332 = vunpack.c.h.b16 %v57
  %v333 = vunpack.c.l.b16 %v58
  %v334 = vunpack.c.h.b16 %v58
  %v335 = vunpack.c.l.b16 %v59
  %v336 = vunpack.c.h.b16 %v59
  %v337 = vunpack.c.l.b16 %v60
  %v338 = vunpack.c.h.b16 %v60
  %v339 = vunpack.c.l.b16 %v61
  %v340 = vunpack.c.h.b16 %v61
  %v341 = vunpack.c.l.b16 %v62
  %v342 = vunpack.c.h.b16 %v62
  %v343 = vunpack.c.l.b16 %v63
  %v344 = vunpack.c.h.b16 %v63
  %v345 = vunpack.c.l.b16 %v64
  %v346 = vunpack.c.h.b16 %v64
  %v347 = vunpack.c.l.b16 %v65
  %v348 = vunpack.c.h.b16 %v65
  %v349 = vunpack.c.l.b16 %v66
  %v350 = vunpack.c.h.b16 %v66
  %v351 = vunpack.c.l.b16 %v67
  %v352 = vunpack.c.h.b16 %v67
  %v353 = vunpack.c.l.b16 %v68
  %v354 = vunpack.c.h.b16 %v68
  %v355 = vunpack.c.l.b16 %v69
  %v356 = vunpack.c.h.b16 %v69
  %v357 = vunpack.c.l.b16 %v70
  %v358 = vunpack.c.h.b16 %v70
  %v359 = vunpack.c.l.b16 %v71
  %v360 = vunpack.c.h.b16 %v71
  %v361 = vunpack.c.l.b16 %v72
  %v362 = vunpack.c.h.b16 %v72
  %v363 = vunpack.c.l.b16 %v73
  %v364 = vunpack.c.h.b16 %v73
  %v365 = vunpack.c.l.b16 %v74
  %v366 = vunpack.c.h.b16 %v74
  %v367 = vunpack.c.l.b16 %v75
  %v368 = vunpack.c.h.b16 %v75
  %v369 = vunpack.c.l.b16 %v76
  %v370 = vunpack.c.h.b16 %v76
  %v371 = vunpack.c.l.b16 %v77
  %v372 = vunpack.c.h.b16 %v77
  %v373 = vunpack.c.l.b16 %v78
  %v374 = vunpack.c.h.b16 %v78
  %v375 = vunpack.c.l.b16 %v79
  %v376 = vunpack.c.h.b16 %v79
  %v377 = vunpack.c.l.b16 %v80
  %v378 = vunpack.c.h.b16 %v80
  %v379 = vunpack.c.l.b16 %v81
  %v380 = vunpack.c.h.b16 %v81
  %v381 = vunpack.c.l.b16 %v82
  %v382 = vunpack.c.h.b16 %v82
  %v383 = vunpack.c.l.b16 %v83
  %v384 = vunpack.c.h.b16 %v83
  %v385 = vunpack.c.l.b16 %v84
  %v386 = vunpack.c.h.b16 %v84
  %v387 = vunpack.c.l.b16 %v85
  %v388 = vunpack.c.h.b16 %v85
  %v389 = vunpack.c.l.b16 %v86
  %v390 = vunpack.c.h.b16 %v86
  %v391 = vunpack.c.l.b16 %v87
  %v392 = vunpack.c.h.b16 %v87
  %v393 = vunpack.c.l.b16 %v88
  %v394 = vunpack.c.h.b16 %v88
  %v395 = vunpack.c.l.b16 %v89
  %v396 = vunpack.c.h.b16 %v89
  %v397 = vunpack.c.l.b16 %v90
  %v398 = vunpack.c.h.b16 %v90
  %v399 = vunpack.c.l.b16 %v91
  %v400 = vunpack.c.h.b16 %v91
  %v401 = vunpack.c.l.b16 %v92
  %v402 = vunpack.c.h.b16 %v92
  %v403 = vunpack.c.l.b16 %v93
  %v404 = vunpack.c.h.b16 %v93
  %v405 = vunpack.c.l.b16 %v94
  %v406 = vunpack.c.h.b16 %v94
  %v407 = vunpack.c.l.b16 %v95
  %v408 = vunpack.c.h.b16 %v95
  %v409 = vunpack.c.l.b16 %v96
  %v410 = vunpack.c.h.b16 %v96
  %v411 = vunpack.c.l.b16 %v97
  %v412 = vunpack.c.h.b16 %v97
  %v413 = vunpack.c.l.b16 %v98
  %v414 = vunpack.c.h.b16 %v98
  %v415 = vunpack.c.l.b16 %v99
  %v416 = vunpack.c.h.b16 %v99
  %v417 = vunpack.c.l.b16 %v100
  %v418 = vunpack.c.h.b16 %v100
  %v419 = vunpack.c.l.b16 %v101
  %v420 = vunpack.c.h.b16 %v101
  %v421 = vunpack.c.l.b16 %v102
  %v422 = vunpack.c.h.b16 %v102
  %v423 = vunpack.c.l.b16 %v103
  %v424 = vunpack.c.h.b16 %v103
  %v425 = vunpack.c.l.b16 %v104
  %v426 = vunpack.c.h.b16 %v104
  %v427 = vunpack.c.l.b16 %v105
  %v428 = vunpack.c.h.b16 %v105
  %v429 = vunpack.c.l.b16 %v106
  %v430 = vunpack.c.h.b16 %v106
  %v431 = vunpack.c.l.b16 %v107
  %v432 = vunpack.c.h.b16 %v107
  %v433 = vunpack.c.l.b16 %v108
  %v434 = vunpack.c.h.b16 %v108
  %v435 = vunpack.c.l.b16 %v109
  %v436 = vunpack.c.h.b16 %v109
  %v437 = vunpack.c.l.b16 %v110
  %v438 = vunpack.c.h.b16 %v110
  %v439 = vunpack.c.l.b16 %v111
  %v440 = vunpack.c.h.b16 %v111
  %v441 = vunpack.c.l.b16 %v112
  %v442 = vunpack.c.h.b16 %v112
  %v443 = vunpack.c.l.b16 %v113
  %v444 = vunpack.c.h.b16 %v113
  %v445 = vunpack.c.l.b16 %v114
  %v446 = vunpack.c.h.b16 %v114
  %v447 = vpack.c.b16 %v249, %v247
  %v448 = vpack.c.b16 %v250, %v248
  %v449 = vpack.c.b16 %v253, %v251
  %v450 = vpack.c.b16 %v254, %v252
  %v451 = vpack.c.b16 %v257, %v255
  %v452 = vpack.c.b16 %v258, %v256
  %v453 = vpack.c.b16 %v261, %v259
  %v454 = vpack.c.b16 %v262, %v260
  %v455 = vpack.c.b16 %v265, %v263
  %v456 = vpack.c.b16 %v266, %v264
  %v457 = vpack.c.b16 %v269, %v267
  %v458 = vpack.c.b16 %v270, %v268
  %v459 = vpack.c.b16 %v273, %v271
  %v460 = vpack.c.b16 %v274, %v272
  %v461 = vpack.c.b16 %v277, %v275
  %v462 = vpack.c.b16 %v278, %v276
  %v463 = vpack.c.b16 %v281, %v279
  %v464 = vpack.c.b16 %v282, %v280
  %v465 = vpack.c.b16 %v285, %v283
  %v466 = vpack.c.b16 %v286, %v284
  %v467 = vpack.c.b16 %v289, %v287
  %v468 = vpack.c.b16 %v290, %v288
  %v469 = vpack.c.b16 %v293, %v291
  %v470 = vpack.c.b16 %v294, %v292
  %v471 = vpack.c.b16 %v297, %v295
  %v472 = vpack.c.b16 %v298, %v296
  %v473 = vpack.c.b16 %v301, %v299
  %v474 = vpack.c.b16 %v302, %v300
  %v475 = vpack.c.b16 %v305, %v303
  %v476 = vpack.c.b16 %v306, %v304
  %v477 = vpack.c.b16 %v309, %v307
  %v478 = vpack.c.b16 %v310, %v308
  %v479 = vpack.c.b16 %v313, %v311
  %v480 = vpack.c.b16 %v314, %v312
  %v481 = vpack.c.b16 %v317, %v315
  %v482 = vpack.c.b16 %v318, %v316
  %v483 = vpack.c.b16 %v321, %v319
  %v484 = vpack.c.b16 %v322, %v320
  %v485 = vpack.c.b16 %v325, %v323
  %v486 = vpack.c.b16 %v326, %v324
  %v487 = vpack.c.b16 %v329, %v327
  %v488 = vpack.c.b16 %v330, %v328
  %v489 = vpack.c.b16 %v333, %v331
  %v490 = vpack.c.b16 %v334, %v332
  %v491 = vpack.c.b16 %v337, %v335
  %v492 = vpack.c.b16 %v338, %v336
  %v493 = vpack.c.b16 %v341, %v339
  %v494 = vpack.c.b16 %v342, %v340
  %v495 = vpack.c.b16 %v345, %v343
  %v496 = vpack.c.b16 %v346, %v344
  %v497 = vpack.c.b16 %v349, %v347
  %v498 = vpack.c.b16 %v350, %v348
  %v499 = vpack.c.b16 %v353, %v351
  %v500 = vpack.c.b16 %v354, %v352
  %v501 = vpack.c.b16 %v357, %v355
  %v502 = vpack.c.b16 %v358, %v356
  %v503 = vpack.c.b16 %v361, %v359
  %v504 = vpack.c.b16 %v362, %v360
  %v505 = vpack.c.b16 %v365, %v363
  %v506 = vpack.c.b16 %v366, %v364
  %v507 = vpack.c.b16 %v369, %v367
  %v508 = vpack.c.b16 %v370, %v368
  %v509 = vpack.c.b16 %v373, %v371
  %v510 = vpack.c.b16 %v374, %v372
  %v511 = vpack.c.b16 %v377, %v375
  %v512 = vpack.c.b16 %v378, %v376
  %v513 = vpack.c.b16 %v381, %v379
  %v514 = vpack.c.b16 %v382, %v380
  %v515 = vpack.c.b16 %v385, %v383
  %v516 = vpack.c.b16 %v386, %v384
  %v517 = vpack.c.b16 %v389, %v387
  %v518 = vpack.c.b16 %v390, %v388
  %v519 = vpack.c.b16 %v393, %v391
  %v520 = vpack.c.b16 %v394, %v392
  %v521 = vpack.c.b16 %v397, %v395
  %v522 = vpack.c.b16 %v398, %v396
  %v523 = vpack.c.b16 %v401, %v399
  %v524 = vpack.c.b16 %v402, %v400
  %v525 = vpack.c.b16 %v405, %v403
  %v526 = vpack.c.b16 %v406, %v404
  %v527 = vpack.c.b16 %v409, %v407
  %v528 = vpack.c.b16 %v410, %v408
  %v529 = vpack.c.b16 %v413, %v411
  %v530 = vpack.c.b16 %v414, %v412
  %v531 = vpack.c.b16 %v417, %v415
  %v532 = vpack.c.b16 %v418, %v416
  %v533 = vpack.c.b16 %v421, %v419
  %v534 = vpack.c.b16 %v422, %v420
  %v535 = vpack.c.b16 %v425, %v423
  %v536 = vpack.c.b16 %v426, %v424
  %v537 = vpack.c.b16 %v429, %v427
  %v538 = vpack.c.b16 %v430, %v428
  %v539 = vpack.c.b16 %v433, %v431
  %v540 = vpack.c.b16 %v434, %v432
  %v541 = vpack.c.b16 %v437, %v435
  %v542 = vpack.c.b16 %v438, %v436
  %v543 = vpack.c.b16 %v441, %v439
  %v544 = vpack.c.b16 %v442, %v440
  %v545 = vpack.c.b16 %v445, %v443
  %v546 = vpack.c.b16 %v446, %v444
  %v679 = vunpack.c.l.b16 %v115
  %v680 = vunpack.c.l.b16 %v116
  %v681 = vunpack.c.l.b16 %v117
  %v682 = vunpack.c.l.b16 %v118
  %v683 = vunpack.c.l.b16 %v119
  %v684 = vunpack.c.l.b16 %v120
  %v685 = vunpack.c.l.b16 %v121
  %v686 = vunpack.c.l.b16 %v122
  %v687 = vunpack.c.l.b16 %v123
  %v688 = vunpack.c.l.b16 %v124
  %v689 = vunpack.c.l.b16 %v125
  %v690 = vunpack.c.l.b16 %v126
  %v691 = vunpack.c.l.b16 %v127
  %v692 = vunpack.c.l.b16 %v128
  %v693 = vunpack.c.l.b16 %v129
  %v694 = vunpack.c.l.b16 %v130
  %v695 = vunpack.c.l.b16 %v131
  %v696 = vunpack.c.l.b16 %v132
  %v697 = vunpack.c.l.b16 %v133
  %v698 = vunpack.c.l.b16 %v134
  %v699 = vunpack.c.l.b16 %v135
  %v700 = vunpack.c.l.b16 %v136
  %v701 = vunpack.c.l.b16 %v137
  %v702 = vunpack.c.l.b16 %v138
  %v703 = vunpack.c.l.b16 %v139
  %v704 = vunpack.c.l.b16 %v140
  %v705 = vunpack.c.l.b16 %v141
  %v706 = vunpack.c.l.b16 %v142
  %v707 = vunpack.c.l.b16 %v143
  %v708 = vunpack.c.l.b16 %v144
  %v709 = vunpack.c.l.b16 %v145
  %v710 = vunpack.c.l.b16 %v146
  %v711 = vpack.c.b16 %v680, %v679
  %v712 = vpack.c.b16 %v682, %v681
  %v713 = vpack.c.b16 %v684, %v683
  %v714 = vpack.c.b16 %v686, %v685
  %v715 = vpack.c.b16 %v688, %v687
  %v716 = vpack.c.b16 %v690, %v689
  %v717 = vpack.c.b16 %v692, %v691
  %v718 = vpack.c.b16 %v694, %v693
  %v719 = vpack.c.b16 %v696, %v695
  %v720 = vpack.c.b16 %v698, %v697
  %v721 = vpack.c.b16 %v700, %v699
  %v722 = vpack.c.b16 %v702, %v701
  %v723 = vpack.c.b16 %v704, %v703
  %v724 = vpack.c.b16 %v706, %v705
  %v725 = vpack.c.b16 %v708, %v707
  %v726 = vpack.c.b16 %v710, %v709
  %743 = vmatprep.subr.bf16.mxu0 0
  %744 = vmatpush1.bf16.msra.mxu0 %v711
  %745 = vmatprep.subr.bf16.mxu0 0
  %746 = vmatpush1.bf16.msra.mxu0 %v712
  %747 = vmatprep.subr.bf16.mxu0 0
  %748 = vmatpush1.bf16.msra.mxu0 %v713
  %749 = vmatprep.subr.bf16.mxu0 0
  %750 = vmatpush1.bf16.msra.mxu0 %v714
  %751 = vmatprep.subr.bf16.mxu0 0
  %752 = vmatpush1.bf16.msra.mxu0 %v715
  %753 = vmatprep.subr.bf16.mxu0 0
  %754 = vmatpush1.bf16.msra.mxu0 %v716
  %755 = vmatprep.subr.bf16.mxu0 0
  %756 = vmatpush1.bf16.msra.mxu0 %v717
  %757 = vmatprep.subr.bf16.mxu0 0
  %758 = vmatpush1.bf16.msra.mxu0 %v718
  %759 = vmatprep.subr.bf16.mxu0 0
  %760 = vmatpush1.bf16.msra.mxu0 %v719
  %761 = vmatprep.subr.bf16.mxu0 0
  %762 = vmatpush1.bf16.msra.mxu0 %v720
  %763 = vmatprep.subr.bf16.mxu0 0
  %764 = vmatpush1.bf16.msra.mxu0 %v721
  %765 = vmatprep.subr.bf16.mxu0 0
  %766 = vmatpush1.bf16.msra.mxu0 %v722
  %767 = vmatprep.subr.bf16.mxu0 0
  %768 = vmatpush1.bf16.msra.mxu0 %v723
  %769 = vmatprep.subr.bf16.mxu0 0
  %770 = vmatpush1.bf16.msra.mxu0 %v724
  %771 = vmatprep.subr.bf16.mxu0 0
  %772 = vmatpush1.bf16.msra.mxu0 %v725
  %773 = vmatprep.subr.bf16.mxu0 0
  %774 = vmatpush1.bf16.msra.mxu0 %v726
  %775 = vmatprep.mubr.bf16.mxu0 %v448
  %776 = vmatmul.mubr.bf16.gmra.mrb[0].mxu0 %v447
  %v777 = vpop.f32.mrb[0].mxu0
  %v778 = vadd.f32 0.0, %v777
  %v779 = vpop.f32.mrb[0].mxu0
  %v780 = vpop.f32.mrb[0].mxu0
  %v781 = vadd.f32 0.0, %v780
  %v782 = vpop.f32.mrb[0].mxu0
  %783 = vmatprep.mubr.bf16.mxu0 %v450
  %784 = vmatmul.mubr.bf16.gmra.mrb[0].mxu0 %v449
  %v785 = vpop.f32.mrb[0].mxu0
  %v786 = vadd.f32 0.0, %v785
  %v787 = vpop.f32.mrb[0].mxu0
  %v788 = vpop.f32.mrb[0].mxu0
  %v789 = vadd.f32 0.0, %v788
  %v790 = vpop.f32.mrb[0].mxu0
  %791 = vmatprep.mubr.bf16.mxu0 %v452
  %792 = vmatmul.mubr.bf16.gmra.mrb[0].mxu0 %v451
  %v793 = vpop.f32.mrb[0].mxu0
  %v794 = vadd.f32 0.0, %v793
  %v795 = vpop.f32.mrb[0].mxu0
  %v796 = vpop.f32.mrb[0].mxu0
  %v797 = vadd.f32 0.0, %v796
  %v798 = vpop.f32.mrb[0].mxu0
  %799 = vmatprep.mubr.bf16.mxu0 %v454
  %800 = vmatmul.mubr.bf16.gmra.mrb[0].mxu0 %v453
  %v801 = vpop.f32.mrb[0].mxu0
  %v802 = vadd.f32 0.0, %v801
  %v803 = vpop.f32.mrb[0].mxu0
  %v804 = vpop.f32.mrb[0].mxu0
  %v805 = vadd.f32 0.0, %v804
  %v806 = vpop.f32.mrb[0].mxu0
  %807 = vmatprep.mubr.bf16.mxu0 %v456
  %808 = vmatmul.mubr.bf16.gmra.mrb[0].mxu0 %v455
  %v809 = vpop.f32.mrb[0].mxu0
  %v810 = vadd.f32 0.0, %v809
  %v811 = vpop.f32.mrb[0].mxu0
  %v812 = vpop.f32.mrb[0].mxu0
  %v813 = vadd.f32 0.0, %v812
  %v814 = vpop.f32.mrb[0].mxu0
  %815 = vmatprep.mubr.bf16.mxu0 %v458
  %816 = vmatmul.mubr.bf16.gmra.mrb[0].mxu0 %v457
  %v817 = vpop.f32.mrb[0].mxu0
  %v818 = vadd.f32 0.0, %v817
  %v819 = vpop.f32.mrb[0].mxu0
  %v820 = vpop.f32.mrb[0].mxu0
  %v821 = vadd.f32 0.0, %v820
  %v822 = vpop.f32.mrb[0].mxu0
  %823 = vmatprep.mubr.bf16.mxu0 %v460
  %824 = vmatmul.mubr.bf16.gmra.mrb[0].mxu0 %v459
  %v825 = vpop.f32.mrb[0].mxu0
  %v826 = vadd.f32 0.0, %v825
  %v827 = vpop.f32.mrb[0].mxu0
  %v828 = vpop.f32.mrb[0].mxu0
  %v829 = vadd.f32 0.0, %v828
  %v830 = vpop.f32.mrb[0].mxu0
  %831 = vmatprep.mubr.bf16.mxu0 %v462
  %832 = vmatmul.mubr.bf16.gmra.mrb[0].mxu0 %v461
  %v833 = vpop.f32.mrb[0].mxu0
  %v834 = vadd.f32 0.0, %v833
  %v835 = vpop.f32.mrb[0].mxu0
  %v836 = vpop.f32.mrb[0].mxu0
  %v837 = vadd.f32 0.0, %v836
  %v838 = vpop.f32.mrb[0].mxu0
  %839 = vmatprep.mubr.bf16.mxu0 %v464
  %840 = vmatmul.mubr.bf16.gmra.mrb[0].mxu0 %v463
  %v841 = vpop.f32.mrb[0].mxu0
  %v842 = vadd.f32 0.0, %v841
  %v843 = vpop.f32.mrb[0].mxu0
  %v844 = vpop.f32.mrb[0].mxu0
  %v845 = vadd.f32 0.0, %v844
  %v846 = vpop.f32.mrb[0].mxu0
  %847 = vmatprep.mubr.bf16.mxu0 %v466
  %848 = vmatmul.mubr.bf16.gmra.mrb[0].mxu0 %v465
  %v849 = vpop.f32.mrb[0].mxu0
  %v850 = vadd.f32 0.0, %v849
  %v851 = vpop.f32.mrb[0].mxu0
  %v852 = vpop.f32.mrb[0].mxu0
  %v853 = vadd.f32 0.0, %v852
  %v854 = vpop.f32.mrb[0].mxu0
  %855 = vmatprep.mubr.bf16.mxu0 %v468
  %856 = vmatmul.mubr.bf16.gmra.mrb[0].mxu0 %v467
  %v857 = vpop.f32.mrb[0].mxu0
  %v858 = vadd.f32 0.0, %v857
  %v859 = vpop.f32.mrb[0].mxu0
  %v860 = vpop.f32.mrb[0].mxu0
  %v861 = vadd.f32 0.0, %v860
  %v862 = vpop.f32.mrb[0].mxu0
  %863 = vmatprep.mubr.bf16.mxu0 %v470
  %864 = vmatmul.mubr.bf16.gmra.mrb[0].mxu0 %v469
  %v865 = vpop.f32.mrb[0].mxu0
  %v866 = vadd.f32 0.0, %v865
  %v867 = vpop.f32.mrb[0].mxu0
  %v868 = vpop.f32.mrb[0].mxu0
  %v869 = vadd.f32 0.0, %v868
  %v870 = vpop.f32.mrb[0].mxu0
  %871 = vmatprep.mubr.bf16.mxu0 %v472
  %872 = vmatmul.mubr.bf16.gmra.mrb[0].mxu0 %v471
  %v873 = vpop.f32.mrb[0].mxu0
  %v874 = vadd.f32 0.0, %v873
  %v875 = vpop.f32.mrb[0].mxu0
  %v876 = vpop.f32.mrb[0].mxu0
  %v877 = vadd.f32 0.0, %v876
  %v878 = vpop.f32.mrb[0].mxu0
  %879 = vmatprep.mubr.bf16.mxu0 %v474
  %880 = vmatmul.mubr.bf16.gmra.mrb[0].mxu0 %v473
  %v881 = vpop.f32.mrb[0].mxu0
  %v882 = vadd.f32 0.0, %v881
  %v883 = vpop.f32.mrb[0].mxu0
  %v884 = vpop.f32.mrb[0].mxu0
  %v885 = vadd.f32 0.0, %v884
  %v886 = vpop.f32.mrb[0].mxu0
  %887 = vmatprep.mubr.bf16.mxu0 %v476
  %888 = vmatmul.mubr.bf16.gmra.mrb[0].mxu0 %v475
  %v889 = vpop.f32.mrb[0].mxu0
  %v890 = vadd.f32 0.0, %v889
  %v891 = vpop.f32.mrb[0].mxu0
  %v892 = vpop.f32.mrb[0].mxu0
  %v893 = vadd.f32 0.0, %v892
  %v894 = vpop.f32.mrb[0].mxu0
  %895 = vmatprep.mubr.bf16.mxu0 %v478
  %896 = vmatmul.mubr.bf16.gmra.mrb[0].mxu0 %v477
  %v897 = vpop.f32.mrb[0].mxu0
  %v898 = vadd.f32 0.0, %v897
  %v899 = vpop.f32.mrb[0].mxu0
  %v900 = vpop.f32.mrb[0].mxu0
  %v901 = vadd.f32 0.0, %v900
  %v902 = vpop.f32.mrb[0].mxu0
  %903 = vmatprep.mubr.bf16.mxu0 %v480
  %904 = vmatmul.mubr.bf16.gmra.mrb[0].mxu0 %v479
  %v905 = vpop.f32.mrb[0].mxu0
  %v906 = vadd.f32 0.0, %v905
  %v907 = vpop.f32.mrb[0].mxu0
  %v908 = vpop.f32.mrb[0].mxu0
  %v909 = vadd.f32 0.0, %v908
  %v910 = vpop.f32.mrb[0].mxu0
  %911 = vmatprep.mubr.bf16.mxu0 %v482
  %912 = vmatmul.mubr.bf16.gmra.mrb[0].mxu0 %v481
  %v913 = vpop.f32.mrb[0].mxu0
  %v914 = vadd.f32 0.0, %v913
  %v915 = vpop.f32.mrb[0].mxu0
  %v916 = vpop.f32.mrb[0].mxu0
  %v917 = vadd.f32 0.0, %v916
  %v918 = vpop.f32.mrb[0].mxu0
  %919 = vmatprep.mubr.bf16.mxu0 %v484
  %920 = vmatmul.mubr.bf16.gmra.mrb[0].mxu0 %v483
  %v921 = vpop.f32.mrb[0].mxu0
  %v922 = vadd.f32 0.0, %v921
  %v923 = vpop.f32.mrb[0].mxu0
  %v924 = vpop.f32.mrb[0].mxu0
  %v925 = vadd.f32 0.0, %v924
  %v926 = vpop.f32.mrb[0].mxu0
  %927 = vmatprep.mubr.bf16.mxu0 %v486
  %928 = vmatmul.mubr.bf16.gmra.mrb[0].mxu0 %v485
  %v929 = vpop.f32.mrb[0].mxu0
  %v930 = vadd.f32 0.0, %v929
  %v931 = vpop.f32.mrb[0].mxu0
  %v932 = vpop.f32.mrb[0].mxu0
  %v933 = vadd.f32 0.0, %v932
  %v934 = vpop.f32.mrb[0].mxu0
  %935 = vmatprep.mubr.bf16.mxu0 %v488
  %936 = vmatmul.mubr.bf16.gmra.mrb[0].mxu0 %v487
  %v937 = vpop.f32.mrb[0].mxu0
  %v938 = vadd.f32 0.0, %v937
  %v939 = vpop.f32.mrb[0].mxu0
  %v940 = vpop.f32.mrb[0].mxu0
  %v941 = vadd.f32 0.0, %v940
  %v942 = vpop.f32.mrb[0].mxu0
  %943 = vmatprep.mubr.bf16.mxu0 %v490
  %944 = vmatmul.mubr.bf16.gmra.mrb[0].mxu0 %v489
  %v945 = vpop.f32.mrb[0].mxu0
  %v946 = vadd.f32 0.0, %v945
  %v947 = vpop.f32.mrb[0].mxu0
  %v948 = vpop.f32.mrb[0].mxu0
  %v949 = vadd.f32 0.0, %v948
  %v950 = vpop.f32.mrb[0].mxu0
  %951 = vmatprep.mubr.bf16.mxu0 %v492
  %952 = vmatmul.mubr.bf16.gmra.mrb[0].mxu0 %v491
  %v953 = vpop.f32.mrb[0].mxu0
  %v954 = vadd.f32 0.0, %v953
  %v955 = vpop.f32.mrb[0].mxu0
  %v956 = vpop.f32.mrb[0].mxu0
  %v957 = vadd.f32 0.0, %v956
  %v958 = vpop.f32.mrb[0].mxu0
  %959 = vmatprep.mubr.bf16.mxu0 %v494
  %960 = vmatmul.mubr.bf16.gmra.mrb[0].mxu0 %v493
  %v961 = vpop.f32.mrb[0].mxu0
  %v962 = vadd.f32 0.0, %v961
  %v963 = vpop.f32.mrb[0].mxu0
  %v964 = vpop.f32.mrb[0].mxu0
  %v965 = vadd.f32 0.0, %v964
  %v966 = vpop.f32.mrb[0].mxu0
  %967 = vmatprep.mubr.bf16.mxu0 %v496
  %968 = vmatmul.mubr.bf16.gmra.mrb[0].mxu0 %v495
  %v969 = vpop.f32.mrb[0].mxu0
  %v970 = vadd.f32 0.0, %v969
  %v971 = vpop.f32.mrb[0].mxu0
  %v972 = vpop.f32.mrb[0].mxu0
  %v973 = vadd.f32 0.0, %v972
  %v974 = vpop.f32.mrb[0].mxu0
  %975 = vmatprep.mubr.bf16.mxu0 %v498
  %976 = vmatmul.mubr.bf16.gmra.mrb[0].mxu0 %v497
  %v977 = vpop.f32.mrb[0].mxu0
  %v978 = vadd.f32 0.0, %v977
  %v979 = vpop.f32.mrb[0].mxu0
  %v980 = vpop.f32.mrb[0].mxu0
  %v981 = vadd.f32 0.0, %v980
  %v982 = vpop.f32.mrb[0].mxu0
  %983 = vmatprep.mubr.bf16.mxu0 %v500
  %984 = vmatmul.mubr.bf16.gmra.mrb[0].mxu0 %v499
  %v985 = vpop.f32.mrb[0].mxu0
  %v986 = vadd.f32 0.0, %v985
  %v987 = vpop.f32.mrb[0].mxu0
  %v988 = vpop.f32.mrb[0].mxu0
  %v989 = vadd.f32 0.0, %v988
  %v990 = vpop.f32.mrb[0].mxu0
  %991 = vmatprep.mubr.bf16.mxu0 %v502
  %992 = vmatmul.mubr.bf16.gmra.mrb[0].mxu0 %v501
  %v993 = vpop.f32.mrb[0].mxu0
  %v994 = vadd.f32 0.0, %v993
  %v995 = vpop.f32.mrb[0].mxu0
  %v996 = vpop.f32.mrb[0].mxu0
  %v997 = vadd.f32 0.0, %v996
  %v998 = vpop.f32.mrb[0].mxu0
  %999 = vmatprep.mubr.bf16.mxu0 %v504
  %1000 = vmatmul.mubr.bf16.gmra.mrb[0].mxu0 %v503
  %v1001 = vpop.f32.mrb[0].mxu0
  %v1002 = vadd.f32 0.0, %v1001
  %v1003 = vpop.f32.mrb[0].mxu0
  %v1004 = vpop.f32.mrb[0].mxu0
  %v1005 = vadd.f32 0.0, %v1004
  %v1006 = vpop.f32.mrb[0].mxu0
  %1007 = vmatprep.mubr.bf16.mxu0 %v506
  %1008 = vmatmul.mubr.bf16.gmra.mrb[0].mxu0 %v505
  %v1009 = vpop.f32.mrb[0].mxu0
  %v1010 = vadd.f32 0.0, %v1009
  %v1011 = vpop.f32.mrb[0].mxu0
  %v1012 = vpop.f32.mrb[0].mxu0
  %v1013 = vadd.f32 0.0, %v1012
  %v1014 = vpop.f32.mrb[0].mxu0
  %1015 = vmatprep.mubr.bf16.mxu0 %v508
  %1016 = vmatmul.mubr.bf16.gmra.mrb[0].mxu0 %v507
  %v1017 = vpop.f32.mrb[0].mxu0
  %v1018 = vadd.f32 0.0, %v1017
  %v1019 = vpop.f32.mrb[0].mxu0
  %v1020 = vpop.f32.mrb[0].mxu0
  %v1021 = vadd.f32 0.0, %v1020
  %v1022 = vpop.f32.mrb[0].mxu0
  %1023 = vmatprep.mubr.bf16.mxu0 %v510
  %1024 = vmatmul.mubr.bf16.gmra.mrb[0].mxu0 %v509
  %v1025 = vpop.f32.mrb[0].mxu0
  %v1026 = vadd.f32 0.0, %v1025
  %v1027 = vpop.f32.mrb[0].mxu0
  %v1028 = vpop.f32.mrb[0].mxu0
  %v1029 = vadd.f32 0.0, %v1028
  %v1030 = vpop.f32.mrb[0].mxu0
  %1031 = vmatprep.mubr.bf16.mxu0 %v512
  %1032 = vmatmul.mubr.bf16.gmra.mrb[0].mxu0 %v511
  %v1033 = vpop.f32.mrb[0].mxu0
  %v1034 = vadd.f32 0.0, %v1033
  %v1035 = vpop.f32.mrb[0].mxu0
  %v1036 = vpop.f32.mrb[0].mxu0
  %v1037 = vadd.f32 0.0, %v1036
  %v1038 = vpop.f32.mrb[0].mxu0
  %1039 = vmatprep.mubr.bf16.mxu0 %v514
  %1040 = vmatmul.mubr.bf16.gmra.mrb[0].mxu0 %v513
  %v1041 = vpop.f32.mrb[0].mxu0
  %v1042 = vadd.f32 0.0, %v1041
  %v1043 = vpop.f32.mrb[0].mxu0
  %v1044 = vpop.f32.mrb[0].mxu0
  %v1045 = vadd.f32 0.0, %v1044
  %v1046 = vpop.f32.mrb[0].mxu0
  %1047 = vmatprep.mubr.bf16.mxu0 %v516
  %1048 = vmatmul.mubr.bf16.gmra.mrb[0].mxu0 %v515
  %v1049 = vpop.f32.mrb[0].mxu0
  %v1050 = vadd.f32 0.0, %v1049
  %v1051 = vpop.f32.mrb[0].mxu0
  %v1052 = vpop.f32.mrb[0].mxu0
  %v1053 = vadd.f32 0.0, %v1052
  %v1054 = vpop.f32.mrb[0].mxu0
  %1055 = vmatprep.mubr.bf16.mxu0 %v518
  %1056 = vmatmul.mubr.bf16.gmra.mrb[0].mxu0 %v517
  %v1057 = vpop.f32.mrb[0].mxu0
  %v1058 = vadd.f32 0.0, %v1057
  %v1059 = vpop.f32.mrb[0].mxu0
  %v1060 = vpop.f32.mrb[0].mxu0
  %v1061 = vadd.f32 0.0, %v1060
  %v1062 = vpop.f32.mrb[0].mxu0
  %1063 = vmatprep.mubr.bf16.mxu0 %v520
  %1064 = vmatmul.mubr.bf16.gmra.mrb[0].mxu0 %v519
  %v1065 = vpop.f32.mrb[0].mxu0
  %v1066 = vadd.f32 0.0, %v1065
  %v1067 = vpop.f32.mrb[0].mxu0
  %v1068 = vpop.f32.mrb[0].mxu0
  %v1069 = vadd.f32 0.0, %v1068
  %v1070 = vpop.f32.mrb[0].mxu0
  %1071 = vmatprep.mubr.bf16.mxu0 %v522
  %1072 = vmatmul.mubr.bf16.gmra.mrb[0].mxu0 %v521
  %v1073 = vpop.f32.mrb[0].mxu0
  %v1074 = vadd.f32 0.0, %v1073
  %v1075 = vpop.f32.mrb[0].mxu0
  %v1076 = vpop.f32.mrb[0].mxu0
  %v1077 = vadd.f32 0.0, %v1076
  %v1078 = vpop.f32.mrb[0].mxu0
  %1079 = vmatprep.mubr.bf16.mxu0 %v524
  %1080 = vmatmul.mubr.bf16.gmra.mrb[0].mxu0 %v523
  %v1081 = vpop.f32.mrb[0].mxu0
  %v1082 = vadd.f32 0.0, %v1081
  %v1083 = vpop.f32.mrb[0].mxu0
  %v1084 = vpop.f32.mrb[0].mxu0
  %v1085 = vadd.f32 0.0, %v1084
  %v1086 = vpop.f32.mrb[0].mxu0
  %1087 = vmatprep.mubr.bf16.mxu0 %v526
  %1088 = vmatmul.mubr.bf16.gmra.mrb[0].mxu0 %v525
  %v1089 = vpop.f32.mrb[0].mxu0
  %v1090 = vadd.f32 0.0, %v1089
  %v1091 = vpop.f32.mrb[0].mxu0
  %v1092 = vpop.f32.mrb[0].mxu0
  %v1093 = vadd.f32 0.0, %v1092
  %v1094 = vpop.f32.mrb[0].mxu0
  %1095 = vmatprep.mubr.bf16.mxu0 %v528
  %1096 = vmatmul.mubr.bf16.gmra.mrb[0].mxu0 %v527
  %v1097 = vpop.f32.mrb[0].mxu0
  %v1098 = vadd.f32 0.0, %v1097
  %v1099 = vpop.f32.mrb[0].mxu0
  %v1100 = vpop.f32.mrb[0].mxu0
  %v1101 = vadd.f32 0.0, %v1100
  %v1102 = vpop.f32.mrb[0].mxu0
  %1103 = vmatprep.mubr.bf16.mxu0 %v530
  %1104 = vmatmul.mubr.bf16.gmra.mrb[0].mxu0 %v529
  %v1105 = vpop.f32.mrb[0].mxu0
  %v1106 = vadd.f32 0.0, %v1105
  %v1107 = vpop.f32.mrb[0].mxu0
  %v1108 = vpop.f32.mrb[0].mxu0
  %v1109 = vadd.f32 0.0, %v1108
  %v1110 = vpop.f32.mrb[0].mxu0
  %1111 = vmatprep.mubr.bf16.mxu0 %v532
  %1112 = vmatmul.mubr.bf16.gmra.mrb[0].mxu0 %v531
  %v1113 = vpop.f32.mrb[0].mxu0
  %v1114 = vadd.f32 0.0, %v1113
  %v1115 = vpop.f32.mrb[0].mxu0
  %v1116 = vpop.f32.mrb[0].mxu0
  %v1117 = vadd.f32 0.0, %v1116
  %v1118 = vpop.f32.mrb[0].mxu0
  %1119 = vmatprep.mubr.bf16.mxu0 %v534
  %1120 = vmatmul.mubr.bf16.gmra.mrb[0].mxu0 %v533
  %v1121 = vpop.f32.mrb[0].mxu0
  %v1122 = vadd.f32 0.0, %v1121
  %v1123 = vpop.f32.mrb[0].mxu0
  %v1124 = vpop.f32.mrb[0].mxu0
  %v1125 = vadd.f32 0.0, %v1124
  %v1126 = vpop.f32.mrb[0].mxu0
  %1127 = vmatprep.mubr.bf16.mxu0 %v536
  %1128 = vmatmul.mubr.bf16.gmra.mrb[0].mxu0 %v535
  %v1129 = vpop.f32.mrb[0].mxu0
  %v1130 = vadd.f32 0.0, %v1129
  %v1131 = vpop.f32.mrb[0].mxu0
  %v1132 = vpop.f32.mrb[0].mxu0
  %v1133 = vadd.f32 0.0, %v1132
  %v1134 = vpop.f32.mrb[0].mxu0
  %1135 = vmatprep.mubr.bf16.mxu0 %v538
  %1136 = vmatmul.mubr.bf16.gmra.mrb[0].mxu0 %v537
  %v1137 = vpop.f32.mrb[0].mxu0
  %v1138 = vadd.f32 0.0, %v1137
  %v1139 = vpop.f32.mrb[0].mxu0
  %v1140 = vpop.f32.mrb[0].mxu0
  %v1141 = vadd.f32 0.0, %v1140
  %v1142 = vpop.f32.mrb[0].mxu0
  %1143 = vmatprep.mubr.bf16.mxu0 %v540
  %1144 = vmatmul.mubr.bf16.gmra.mrb[0].mxu0 %v539
  %v1145 = vpop.f32.mrb[0].mxu0
  %v1146 = vadd.f32 0.0, %v1145
  %v1147 = vpop.f32.mrb[0].mxu0
  %v1148 = vpop.f32.mrb[0].mxu0
  %v1149 = vadd.f32 0.0, %v1148
  %v1150 = vpop.f32.mrb[0].mxu0
  %1151 = vmatprep.mubr.bf16.mxu0 %v542
  %1152 = vmatmul.mubr.bf16.gmra.mrb[0].mxu0 %v541
  %v1153 = vpop.f32.mrb[0].mxu0
  %v1154 = vadd.f32 0.0, %v1153
  %v1155 = vpop.f32.mrb[0].mxu0
  %v1156 = vpop.f32.mrb[0].mxu0
  %v1157 = vadd.f32 0.0, %v1156
  %v1158 = vpop.f32.mrb[0].mxu0
  %1159 = vmatprep.mubr.bf16.mxu0 %v544
  %1160 = vmatmul.mubr.bf16.gmra.mrb[0].mxu0 %v543
  %v1161 = vpop.f32.mrb[0].mxu0
  %v1162 = vadd.f32 0.0, %v1161
  %v1163 = vpop.f32.mrb[0].mxu0
  %v1164 = vpop.f32.mrb[0].mxu0
  %v1165 = vadd.f32 0.0, %v1164
  %v1166 = vpop.f32.mrb[0].mxu0
  %1167 = vmatprep.mubr.bf16.mxu0 %v546
  %1168 = vmatmul.mubr.bf16.gmra.mrb[0].mxu0 %v545
  %v1169 = vpop.f32.mrb[0].mxu0
  %v1170 = vadd.f32 0.0, %v1169
  %v1171 = vpop.f32.mrb[0].mxu0
  %v1172 = vpop.f32.mrb[0].mxu0
  %v1173 = vadd.f32 0.0, %v1172
  %v1174 = vpop.f32.mrb[0].mxu0
  %1175 = vdwg.mxu0
  %v1176 = vmax.f32 %v778, %v877
  %v1177 = vmax.f32 %v781, %v882
  %v1178 = vmax.f32 %v786, %v885
  %v1179 = vmax.f32 %v789, %v890
  %v1180 = vmax.f32 %v794, %v893
  %v1181 = vmax.f32 %v797, %v898
  %v1182 = vmax.f32 %v802, %v901
  %v1183 = vmax.f32 %v805, %v906
  %v1184 = vmax.f32 %v810, %v909
  %v1185 = vmax.f32 %v813, %v914
  %v1186 = vmax.f32 %v818, %v917
  %v1187 = vmax.f32 %v821, %v922
  %v1188 = vmax.f32 %v826, %v925
  %v1189 = vmax.f32 %v829, %v930
  %v1190 = vmax.f32 %v834, %v933
  %v1191 = vmax.f32 %v837, %v938
  %v1192 = vmax.f32 %v842, %v941
  %v1193 = vmax.f32 %v845, %v946
  %v1194 = vmax.f32 %v850, %v949
  %v1195 = vmax.f32 %v853, %v954
  %v1196 = vmax.f32 %v858, %v957
  %v1197 = vmax.f32 %v861, %v962
  %v1198 = vmax.f32 %v866, %v965
  %v1199 = vmax.f32 %v869, %v970
  %v1200 = vmax.f32 %v874, %v973
  %v1201 = vmax.f32 %v978, %v1077
  %v1202 = vmax.f32 %v981, %v1082
  %v1203 = vmax.f32 %v986, %v1085
  %v1204 = vmax.f32 %v989, %v1090
  %v1205 = vmax.f32 %v994, %v1093
  %v1206 = vmax.f32 %v997, %v1098
  %v1207 = vmax.f32 %v1002, %v1101
  %v1208 = vmax.f32 %v1005, %v1106
  %v1209 = vmax.f32 %v1010, %v1109
  %v1210 = vmax.f32 %v1013, %v1114
  %v1211 = vmax.f32 %v1018, %v1117
  %v1212 = vmax.f32 %v1021, %v1122
  %v1213 = vmax.f32 %v1026, %v1125
  %v1214 = vmax.f32 %v1029, %v1130
  %v1215 = vmax.f32 %v1034, %v1133
  %v1216 = vmax.f32 %v1037, %v1138
  %v1217 = vmax.f32 %v1042, %v1141
  %v1218 = vmax.f32 %v1045, %v1146
  %v1219 = vmax.f32 %v1050, %v1149
  %v1220 = vmax.f32 %v1053, %v1154
  %v1221 = vmax.f32 %v1058, %v1157
  %v1222 = vmax.f32 %v1061, %v1162
  %v1223 = vmax.f32 %v1066, %v1165
  %v1224 = vmax.f32 %v1069, %v1170
  %v1225 = vmax.f32 %v1074, %v1173
  %v1226 = vmax.f32 %v1176, %v1201
  %v1227 = vmax.f32 %v1177, %v1202
  %v1228 = vmax.f32 %v1178, %v1203
  %v1229 = vmax.f32 %v1179, %v1204
  %v1230 = vmax.f32 %v1180, %v1205
  %v1231 = vmax.f32 %v1181, %v1206
  %v1232 = vmax.f32 %v1182, %v1207
  %v1233 = vmax.f32 %v1183, %v1208
  %v1234 = vmax.f32 %v1184, %v1209
  %v1235 = vmax.f32 %v1185, %v1210
  %v1236 = vmax.f32 %v1186, %v1211
  %v1237 = vmax.f32 %v1187, %v1212
  %v1238 = vmax.f32 %v1188, %v1213
  %v1239 = vmax.f32 %v1189, %v1214
  %v1240 = vmax.f32 %v1190, %v1215
  %v1241 = vmax.f32 %v1191, %v1216
  %v1242 = vmax.f32 %v1192, %v1217
  %v1243 = vmax.f32 %v1193, %v1218
  %v1244 = vmax.f32 %v1194, %v1219
  %v1245 = vmax.f32 %v1195, %v1220
  %v1246 = vmax.f32 %v1196, %v1221
  %v1247 = vmax.f32 %v1197, %v1222
  %v1248 = vmax.f32 %v1198, %v1223
  %v1249 = vmax.f32 %v1199, %v1224
  %v1250 = vmax.f32 %v1200, %v1225
  %v1251 = vld [vmem:[%s2] sm:$0x1]
  %v1253 = vlaneseq
  %v1254 = vshrl.u32 %v1253, 7
  %v1255 = vsub.s32 0, %v1254
  %v1256 = vrot.slane %v1251, %v1255
  %v1258 = vadd.f32 %v1226, %v1256
  %v1259 = vadd.f32 %v1227, %v1256
  %v1260 = vadd.f32 %v1228, %v1256
  %v1261 = vadd.f32 %v1229, %v1256
  %v1262 = vadd.f32 %v1230, %v1256
  %v1263 = vadd.f32 %v1231, %v1256
  %v1264 = vadd.f32 %v1232, %v1256
  %v1265 = vadd.f32 %v1233, %v1256
  %v1266 = vadd.f32 %v1234, %v1256
  %v1267 = vadd.f32 %v1235, %v1256
  %v1268 = vadd.f32 %v1236, %v1256
  %v1269 = vadd.f32 %v1237, %v1256
  %v1270 = vadd.f32 %v1238, %v1256
  %v1271 = vadd.f32 %v1239, %v1256
  %v1272 = vadd.f32 %v1240, %v1256
  %v1273 = vadd.f32 %v1241, %v1256
  %v1274 = vadd.f32 %v1242, %v1256
  %v1275 = vadd.f32 %v1243, %v1256
  %v1276 = vadd.f32 %v1244, %v1256
  %v1277 = vadd.f32 %v1245, %v1256
  %v1278 = vadd.f32 %v1246, %v1256
  %v1279 = vadd.f32 %v1247, %v1256
  %v1280 = vadd.f32 %v1248, %v1256
  %v1281 = vadd.f32 %v1249, %v1256
  %v1282 = vadd.f32 %v1250, %v1256
  %v1283 = vmax.f32 %v1258, 0.0
  %v1284 = vmax.f32 %v1259, 0.0
  %v1285 = vmax.f32 %v1260, 0.0
  %v1286 = vmax.f32 %v1261, 0.0
  %v1287 = vmax.f32 %v1262, 0.0
  %v1288 = vmax.f32 %v1263, 0.0
  %v1289 = vmax.f32 %v1264, 0.0
  %v1290 = vmax.f32 %v1265, 0.0
  %v1291 = vmax.f32 %v1266, 0.0
  %v1292 = vmax.f32 %v1267, 0.0
  %v1293 = vmax.f32 %v1268, 0.0
  %v1294 = vmax.f32 %v1269, 0.0
  %v1295 = vmax.f32 %v1270, 0.0
  %v1296 = vmax.f32 %v1271, 0.0
  %v1297 = vmax.f32 %v1272, 0.0
  %v1298 = vmax.f32 %v1273, 0.0
  %v1299 = vmax.f32 %v1274, 0.0
  %v1300 = vmax.f32 %v1275, 0.0
  %v1301 = vmax.f32 %v1276, 0.0
  %v1302 = vmax.f32 %v1277, 0.0
  %v1303 = vmax.f32 %v1278, 0.0
  %v1304 = vmax.f32 %v1279, 0.0
  %v1305 = vmax.f32 %v1280, 0.0
  %v1306 = vmax.f32 %v1281, 0.0
  %v1307 = vmax.f32 %v1282, 0.0
  %v1308 = vpack.c.bf16 %v1284, %v1283
  %v1309 = vpack.c.bf16 %v1286, %v1285
  %v1310 = vpack.c.bf16 %v1288, %v1287
  %v1311 = vpack.c.bf16 %v1290, %v1289
  %v1312 = vpack.c.bf16 %v1292, %v1291
  %v1313 = vpack.c.bf16 %v1294, %v1293
  %v1314 = vpack.c.bf16 %v1296, %v1295
  %v1315 = vpack.c.bf16 %v1298, %v1297
  %v1316 = vpack.c.bf16 %v1300, %v1299
  %v1317 = vpack.c.bf16 %v1302, %v1301
  %v1318 = vpack.c.bf16 %v1304, %v1303
  %v1319 = vpack.c.bf16 %v1306, %v1305
  %v1320 = vpack.c.bf16 %v1307, %v1307
  %v1334 = vunpack.c.l.b16 %v1308
  %v1335 = vunpack.c.h.b16 %v1308
  %v1336 = vunpack.c.l.b16 %v1309
  %v1337 = vunpack.c.h.b16 %v1309
  %v1338 = vunpack.c.l.b16 %v1310
  %v1339 = vunpack.c.h.b16 %v1310
  %v1340 = vunpack.c.l.b16 %v1311
  %v1341 = vunpack.c.h.b16 %v1311
  %v1342 = vunpack.c.l.b16 %v1312
  %v1343 = vunpack.c.h.b16 %v1312
  %v1344 = vunpack.c.l.b16 %v1313
  %v1345 = vunpack.c.h.b16 %v1313
  %v1346 = vunpack.c.l.b16 %v1314
  %v1347 = vunpack.c.h.b16 %v1314
  %v1348 = vunpack.c.l.b16 %v1315
  %v1349 = vunpack.c.h.b16 %v1315
  %v1350 = vunpack.c.l.b16 %v1316
  %v1351 = vunpack.c.h.b16 %v1316
  %v1352 = vunpack.c.l.b16 %v1317
  %v1353 = vunpack.c.h.b16 %v1317
  %v1354 = vunpack.c.l.b16 %v1318
  %v1355 = vunpack.c.h.b16 %v1318
  %v1356 = vunpack.c.l.b16 %v1319
  %v1357 = vunpack.c.h.b16 %v1319
  %v1358 = vunpack.c.l.b16 %v1320
  %v1359 = vpack.c.b16 %v1334, %v1334
  %v1360 = vpack.c.b16 %v1335, %v1335
  %v1361 = vpack.c.b16 %v1336, %v1336
  %v1362 = vpack.c.b16 %v1337, %v1337
  %v1363 = vpack.c.b16 %v1338, %v1338
  %v1364 = vpack.c.b16 %v1339, %v1339
  %v1365 = vpack.c.b16 %v1340, %v1340
  %v1366 = vpack.c.b16 %v1341, %v1341
  %v1367 = vpack.c.b16 %v1342, %v1342
  %v1368 = vpack.c.b16 %v1343, %v1343
  %v1369 = vpack.c.b16 %v1344, %v1344
  %v1370 = vpack.c.b16 %v1345, %v1345
  %v1371 = vpack.c.b16 %v1346, %v1346
  %v1372 = vpack.c.b16 %v1347, %v1347
  %v1373 = vpack.c.b16 %v1348, %v1348
  %v1374 = vpack.c.b16 %v1349, %v1349
  %v1375 = vpack.c.b16 %v1350, %v1350
  %v1376 = vpack.c.b16 %v1351, %v1351
  %v1377 = vpack.c.b16 %v1352, %v1352
  %v1378 = vpack.c.b16 %v1353, %v1353
  %v1379 = vpack.c.b16 %v1354, %v1354
  %v1380 = vpack.c.b16 %v1355, %v1355
  %v1381 = vpack.c.b16 %v1356, %v1356
  %v1382 = vpack.c.b16 %v1357, %v1357
  %v1383 = vpack.c.b16 %v1358, %v1358
  %1409 = vst [vmem:[%s3] sm:$0xf] %v1359
  %1410 = vst [vmem:[%s3 + $0x4] sm:$0xf] %v1360
  %1411 = vst [vmem:[%s3 + $0x8] sm:$0xf] %v1361
  %1412 = vst [vmem:[%s3 + $0xc] sm:$0xf] %v1362
  %1413 = vst [vmem:[%s3 + $0x10] sm:$0xf] %v1363
  %1414 = vst [vmem:[%s3 + $0x14] sm:$0xf] %v1364
  %1415 = vst [vmem:[%s3 + $0x18] sm:$0xf] %v1365
  %1416 = vst [vmem:[%s3 + $0x1c] sm:$0xf] %v1366
  %1417 = vst [vmem:[%s3 + $0x20] sm:$0xf] %v1367
  %1418 = vst [vmem:[%s3 + $0x24] sm:$0xf] %v1368
  %1419 = vst [vmem:[%s3 + $0x28] sm:$0xf] %v1369
  %1420 = vst [vmem:[%s3 + $0x2c] sm:$0xf] %v1370
  %1421 = vst [vmem:[%s3 + $0x30] sm:$0xf] %v1371
  %1422 = vst [vmem:[%s3 + $0x34] sm:$0xf] %v1372
  %1423 = vst [vmem:[%s3 + $0x38] sm:$0xf] %v1373
  %1424 = vst [vmem:[%s3 + $0x3c] sm:$0xf] %v1374
  %1425 = vst [vmem:[%s3 + $0x40] sm:$0xf] %v1375
  %1426 = vst [vmem:[%s3 + $0x44] sm:$0xf] %v1376
  %1427 = vst [vmem:[%s3 + $0x48] sm:$0xf] %v1377
  %1428 = vst [vmem:[%s3 + $0x4c] sm:$0xf] %v1378
  %1429 = vst [vmem:[%s3 + $0x50] sm:$0xf] %v1379
  %1430 = vst [vmem:[%s3 + $0x54] sm:$0xf] %v1380
  %1431 = vst [vmem:[%s3 + $0x58] sm:$0xf] %v1381
  %1432 = vst [vmem:[%s3 + $0x5c] sm:$0xf] %v1382
  %1433 = vst [vmem:[%s3 + $0x60] sm:$0xf] %v1383
  // Predicated region
  $region14: #{net_forward.4} parent=0 // pred_check
    _
  $region15: #{net_forward.4} parent=0 // pred_check_branch
    %1435 = sbr.rel (0) target = $region17
  $region16: #{net_forward.4} parent=0 // pred_region
    _
  $region17: #{net_forward.4} parent=0 // pred_fallthru
    _
  // Predicated region
  $region18: #{net_forward.4} parent=0 // pred_check
    _
  $region19: #{net_forward.4} parent=0 // pred_check_branch
    %1437 = sbr.rel (0) target = $region21
  $region20: #{net_forward.4} parent=0 // pred_region
    _
  $region21: #{net_forward.4} parent=0 // pred_fallthru
    _

// kernel: net_forward.5
$region0: #{net_forward.5}
  #allocation0 [shape = 'u32[]', space=smem, size = 0x4, offset = 0x4, fixed_abs, tag = 'smem constant byte address 0x4 - core index']
  #allocation1 [shape = 'u32[144,128]{1,0:T(1,128)}', space=vmem, size = 0x12000, scoped, tag = 'internal scratch']
  %s0 = inlined_call_operand.vmem [shape: bf16[8,512], index: 0, kind: input, shape index: {}]
  %s1 = inlined_call_operand.vmem [shape: bf16[512,128], index: 1, kind: input, shape index: {}]
  %s2 = inlined_call_operand.vmem [shape: f32[1,128], index: 2, kind: input, shape index: {}]
  %s3 = inlined_call_operand.vmem [shape: bf16[128,128], index: 3, kind: input, shape index: {}]
  %s4 = inlined_call_operand.vmem [shape: f32[1,128], index: 4, kind: input, shape index: {}]
  %s5 = inlined_call_operand.vmem [shape: bf16[128,128], index: 5, kind: input, shape index: {}]
  %s6 = inlined_call_operand.vmem [shape: f32[1,128], index: 6, kind: input, shape index: {}]
  %s7 = inlined_call_operand.vmem [shape: f32[8,128], index: 7, kind: output, shape index: {}]
  %s8 = sld [smem:[#allocation0]]
  $region38: #{net_forward.5} parent=0
    _
  %s10 = ssub.s32 1, %s8
  %s11 = scalar_select 0, %s10, %s8
  // Predicated region
  $region2: #{net_forward.5} parent=0 // pred_check
    _
  $region3: #{net_forward.5} parent=0 // pred_check_branch
    %13 = sbr.rel (0) target = $region5
  $region4: #{net_forward.5} parent=0 // pred_region
    _
  $region5: #{net_forward.5} parent=0 // pred_fallthru
    _
  // Predicated region
  $region6: #{net_forward.5} parent=0 // pred_check
    _
  $region7: #{net_forward.5} parent=0 // pred_check_branch
    %15 = sbr.rel (0) target = $region9
  $region8: #{net_forward.5} parent=0 // pred_region
    _
  $region9: #{net_forward.5} parent=0 // pred_fallthru
    _
  // Predicated region
  $region10: #{net_forward.5} parent=0 // pred_check
    _
  $region11: #{net_forward.5} parent=0 // pred_check_branch
    %17 = sbr.rel (0) target = $region13
  $region12: #{net_forward.5} parent=0 // pred_region
    _
  $region13: #{net_forward.5} parent=0 // pred_fallthru
    _
  // Predicated region
  $region14: #{net_forward.5} parent=0 // pred_check
    _
  $region15: #{net_forward.5} parent=0 // pred_check_branch
    %19 = sbr.rel (0) target = $region17
  $region16: #{net_forward.5} parent=0 // pred_region
    _
  $region17: #{net_forward.5} parent=0 // pred_fallthru
    _
  // Predicated region
  $region18: #{net_forward.5} parent=0 // pred_check
    _
  $region19: #{net_forward.5} parent=0 // pred_check_branch
    %21 = sbr.rel (0) target = $region21
  $region20: #{net_forward.5} parent=0 // pred_region
    _
  $region21: #{net_forward.5} parent=0 // pred_fallthru
    _
  // Predicated region
  $region22: #{net_forward.5} parent=0 // pred_check
    _
  $region23: #{net_forward.5} parent=0 // pred_check_branch
    %23 = sbr.rel (0) target = $region25
  $region24: #{net_forward.5} parent=0 // pred_region
    _
  $region25: #{net_forward.5} parent=0 // pred_fallthru
    _
  // Predicated region
  $region26: #{net_forward.5} parent=0 // pred_check
    _
  $region27: #{net_forward.5} parent=0 // pred_check_branch
    %25 = sbr.rel (0) target = $region29
  $region28: #{net_forward.5} parent=0 // pred_region
    _
  $region29: #{net_forward.5} parent=0 // pred_fallthru
    _
  %v27 = vld [vmem:[%s0] sm:$0xff]
  %v28 = vld [vmem:[%s0 + $0x8] sm:$0xff]
  %v29 = vld [vmem:[%s1] sm:$0xf]
  %v30 = vld [vmem:[%s1 + $0x4] sm:$0xf]
  %v31 = vld [vmem:[%s1 + $0x8] sm:$0xf]
  %v32 = vld [vmem:[%s1 + $0xc] sm:$0xf]
  %v33 = vld [vmem:[%s1 + $0x10] sm:$0xf]
  %v34 = vld [vmem:[%s1 + $0x14] sm:$0xf]
  %v35 = vld [vmem:[%s1 + $0x18] sm:$0xf]
  %v36 = vld [vmem:[%s1 + $0x1c] sm:$0xf]
  %v37 = vld [vmem:[%s1 + $0x20] sm:$0xf]
  %v38 = vld [vmem:[%s1 + $0x24] sm:$0xf]
  %v39 = vld [vmem:[%s1 + $0x28] sm:$0xf]
  %v40 = vld [vmem:[%s1 + $0x2c] sm:$0xf]
  %v41 = vld [vmem:[%s1 + $0x30] sm:$0xf]
  %v42 = vld [vmem:[%s1 + $0x34] sm:$0xf]
  %v43 = vld [vmem:[%s1 + $0x38] sm:$0xf]
  %v44 = vld [vmem:[%s1 + $0x3c] sm:$0xf]
  %v45 = vld [vmem:[%s1 + $0x40] sm:$0xf]
  %v46 = vld [vmem:[%s1 + $0x44] sm:$0xf]
  %v47 = vld [vmem:[%s1 + $0x48] sm:$0xf]
  %v48 = vld [vmem:[%s1 + $0x4c] sm:$0xf]
  %v49 = vld [vmem:[%s1 + $0x50] sm:$0xf]
  %v50 = vld [vmem:[%s1 + $0x54] sm:$0xf]
  %v51 = vld [vmem:[%s1 + $0x58] sm:$0xf]
  %v52 = vld [vmem:[%s1 + $0x5c] sm:$0xf]
  %v53 = vld [vmem:[%s1 + $0x60] sm:$0xf]
  %v54 = vld [vmem:[%s1 + $0x64] sm:$0xf]
  %v55 = vld [vmem:[%s1 + $0x68] sm:$0xf]
  %v56 = vld [vmem:[%s1 + $0x6c] sm:$0xf]
  %v57 = vld [vmem:[%s1 + $0x70] sm:$0xf]
  %v58 = vld [vmem:[%s1 + $0x74] sm:$0xf]
  %v59 = vld [vmem:[%s1 + $0x78] sm:$0xf]
  %v60 = vld [vmem:[%s1 + $0x7c] sm:$0xf]
  %v61 = vld [vmem:[%s1 + $0x80] sm:$0xf]
  %v62 = vld [vmem:[%s1 + $0x84] sm:$0xf]
  %v63 = vld [vmem:[%s1 + $0x88] sm:$0xf]
  %v64 = vld [vmem:[%s1 + $0x8c] sm:$0xf]
  %v65 = vld [vmem:[%s1 + $0x90] sm:$0xf]
  %v66 = vld [vmem:[%s1 + $0x94] sm:$0xf]
  %v67 = vld [vmem:[%s1 + $0x98] sm:$0xf]
  %v68 = vld [vmem:[%s1 + $0x9c] sm:$0xf]
  %v69 = vld [vmem:[%s1 + $0xa0] sm:$0xf]
  %v70 = vld [vmem:[%s1 + $0xa4] sm:$0xf]
  %v71 = vld [vmem:[%s1 + $0xa8] sm:$0xf]
  %v72 = vld [vmem:[%s1 + $0xac] sm:$0xf]
  %v73 = vld [vmem:[%s1 + $0xb0] sm:$0xf]
  %v74 = vld [vmem:[%s1 + $0xb4] sm:$0xf]
  %v75 = vld [vmem:[%s1 + $0xb8] sm:$0xf]
  %v76 = vld [vmem:[%s1 + $0xbc] sm:$0xf]
  %v77 = vld [vmem:[%s1 + $0xc0] sm:$0xf]
  %v78 = vld [vmem:[%s1 + $0xc4] sm:$0xf]
  %v79 = vld [vmem:[%s1 + $0xc8] sm:$0xf]
  %v80 = vld [vmem:[%s1 + $0xcc] sm:$0xf]
  %v81 = vld [vmem:[%s1 + $0xd0] sm:$0xf]
  %v82 = vld [vmem:[%s1 + $0xd4] sm:$0xf]
  %v83 = vld [vmem:[%s1 + $0xd8] sm:$0xf]
  %v84 = vld [vmem:[%s1 + $0xdc] sm:$0xf]
  %v85 = vld [vmem:[%s1 + $0xe0] sm:$0xf]
  %v86 = vld [vmem:[%s1 + $0xe4] sm:$0xf]
  %v87 = vld [vmem:[%s1 + $0xe8] sm:$0xf]
  %v88 = vld [vmem:[%s1 + $0xec] sm:$0xf]
  %v89 = vld [vmem:[%s1 + $0xf0] sm:$0xf]
  %v90 = vld [vmem:[%s1 + $0xf4] sm:$0xf]
  %v91 = vld [vmem:[%s1 + $0xf8] sm:$0xf]
  %v92 = vld [vmem:[%s1 + $0xfc] sm:$0xf]
  %v93 = vld [vmem:[%s2] sm:$0x1]
  %v95 = vlaneseq
  %v96 = vshrl.u32 %v95, 7
  %v97 = vsub.s32 0, %v96
  %v98 = vrot.slane %v93, %v97
  %v102 = vunpack.c.l.b16 %v27
  %v103 = vunpack.c.h.b16 %v27
  %v104 = vunpack.c.l.b16 %v28
  %v105 = vunpack.c.h.b16 %v28
  %v106 = vpack.c.b16 %v102, %v102
  %v107 = vpack.c.b16 %v103, %v103
  %v108 = vpack.c.b16 %v104, %v104
  %v109 = vpack.c.b16 %v105, %v105
  %v178 = vunpack.c.l.b16 %v29
  %v179 = vunpack.c.l.b16 %v30
  %v180 = vunpack.c.l.b16 %v31
  %v181 = vunpack.c.l.b16 %v32
  %v182 = vunpack.c.l.b16 %v33
  %v183 = vunpack.c.l.b16 %v34
  %v184 = vunpack.c.l.b16 %v35
  %v185 = vunpack.c.l.b16 %v36
  %v186 = vunpack.c.l.b16 %v37
  %v187 = vunpack.c.l.b16 %v38
  %v188 = vunpack.c.l.b16 %v39
  %v189 = vunpack.c.l.b16 %v40
  %v190 = vunpack.c.l.b16 %v41
  %v191 = vunpack.c.l.b16 %v42
  %v192 = vunpack.c.l.b16 %v43
  %v193 = vunpack.c.l.b16 %v44
  %v194 = vunpack.c.l.b16 %v45
  %v195 = vunpack.c.l.b16 %v46
  %v196 = vunpack.c.l.b16 %v47
  %v197 = vunpack.c.l.b16 %v48
  %v198 = vunpack.c.l.b16 %v49
  %v199 = vunpack.c.l.b16 %v50
  %v200 = vunpack.c.l.b16 %v51
  %v201 = vunpack.c.l.b16 %v52
  %v202 = vunpack.c.l.b16 %v53
  %v203 = vunpack.c.l.b16 %v54
  %v204 = vunpack.c.l.b16 %v55
  %v205 = vunpack.c.l.b16 %v56
  %v206 = vunpack.c.l.b16 %v57
  %v207 = vunpack.c.l.b16 %v58
  %v208 = vunpack.c.l.b16 %v59
  %v209 = vunpack.c.l.b16 %v60
  %v210 = vunpack.c.l.b16 %v61
  %v211 = vunpack.c.l.b16 %v62
  %v212 = vunpack.c.l.b16 %v63
  %v213 = vunpack.c.l.b16 %v64
  %v214 = vunpack.c.l.b16 %v65
  %v215 = vunpack.c.l.b16 %v66
  %v216 = vunpack.c.l.b16 %v67
  %v217 = vunpack.c.l.b16 %v68
  %v218 = vunpack.c.l.b16 %v69
  %v219 = vunpack.c.l.b16 %v70
  %v220 = vunpack.c.l.b16 %v71
  %v221 = vunpack.c.l.b16 %v72
  %v222 = vunpack.c.l.b16 %v73
  %v223 = vunpack.c.l.b16 %v74
  %v224 = vunpack.c.l.b16 %v75
  %v225 = vunpack.c.l.b16 %v76
  %v226 = vunpack.c.l.b16 %v77
  %v227 = vunpack.c.l.b16 %v78
  %v228 = vunpack.c.l.b16 %v79
  %v229 = vunpack.c.l.b16 %v80
  %v230 = vunpack.c.l.b16 %v81
  %v231 = vunpack.c.l.b16 %v82
  %v232 = vunpack.c.l.b16 %v83
  %v233 = vunpack.c.l.b16 %v84
  %v234 = vunpack.c.l.b16 %v85
  %v235 = vunpack.c.l.b16 %v86
  %v236 = vunpack.c.l.b16 %v87
  %v237 = vunpack.c.l.b16 %v88
  %v238 = vunpack.c.l.b16 %v89
  %v239 = vunpack.c.l.b16 %v90
  %v240 = vunpack.c.l.b16 %v91
  %v241 = vunpack.c.l.b16 %v92
  %v242 = vpack.c.b16 %v179, %v178
  %v243 = vpack.c.b16 %v181, %v180
  %v244 = vpack.c.b16 %v183, %v182
  %v245 = vpack.c.b16 %v185, %v184
  %v246 = vpack.c.b16 %v187, %v186
  %v247 = vpack.c.b16 %v189, %v188
  %v248 = vpack.c.b16 %v191, %v190
  %v249 = vpack.c.b16 %v193, %v192
  %v250 = vpack.c.b16 %v195, %v194
  %v251 = vpack.c.b16 %v197, %v196
  %v252 = vpack.c.b16 %v199, %v198
  %v253 = vpack.c.b16 %v201, %v200
  %v254 = vpack.c.b16 %v203, %v202
  %v255 = vpack.c.b16 %v205, %v204
  %v256 = vpack.c.b16 %v207, %v206
  %v257 = vpack.c.b16 %v209, %v208
  %v258 = vpack.c.b16 %v211, %v210
  %v259 = vpack.c.b16 %v213, %v212
  %v260 = vpack.c.b16 %v215, %v214
  %v261 = vpack.c.b16 %v217, %v216
  %v262 = vpack.c.b16 %v219, %v218
  %v263 = vpack.c.b16 %v221, %v220
  %v264 = vpack.c.b16 %v223, %v222
  %v265 = vpack.c.b16 %v225, %v224
  %v266 = vpack.c.b16 %v227, %v226
  %v267 = vpack.c.b16 %v229, %v228
  %v268 = vpack.c.b16 %v231, %v230
  %v269 = vpack.c.b16 %v233, %v232
  %v270 = vpack.c.b16 %v235, %v234
  %v271 = vpack.c.b16 %v237, %v236
  %v272 = vpack.c.b16 %v239, %v238
  %v273 = vpack.c.b16 %v241, %v240
  %306 = vmatprep.subr.bf16.mxu0 0
  %307 = vmatpush1.bf16.msra.mxu0 %v242
  %308 = vmatprep.subr.bf16.mxu0 0
  %309 = vmatpush1.bf16.msra.mxu0 %v243
  %310 = vmatprep.subr.bf16.mxu0 0
  %311 = vmatpush1.bf16.msra.mxu0 %v244
  %312 = vmatprep.subr.bf16.mxu0 0
  %313 = vmatpush1.bf16.msra.mxu0 %v245
  %314 = vmatprep.subr.bf16.mxu0 0
  %315 = vmatpush1.bf16.msra.mxu0 %v246
  %316 = vmatprep.subr.bf16.mxu0 0
  %317 = vmatpush1.bf16.msra.mxu0 %v247
  %318 = vmatprep.subr.bf16.mxu0 0
  %319 = vmatpush1.bf16.msra.mxu0 %v248
  %320 = vmatprep.subr.bf16.mxu0 0
  %321 = vmatpush1.bf16.msra.mxu0 %v249
  %322 = vmatprep.subr.bf16.mxu0 0
  %323 = vmatpush1.bf16.msra.mxu0 %v250
  %324 = vmatprep.subr.bf16.mxu0 0
  %325 = vmatpush1.bf16.msra.mxu0 %v251
  %326 = vmatprep.subr.bf16.mxu0 0
  %327 = vmatpush1.bf16.msra.mxu0 %v252
  %328 = vmatprep.subr.bf16.mxu0 0
  %329 = vmatpush1.bf16.msra.mxu0 %v253
  %330 = vmatprep.subr.bf16.mxu0 0
  %331 = vmatpush1.bf16.msra.mxu0 %v254
  %332 = vmatprep.subr.bf16.mxu0 0
  %333 = vmatpush1.bf16.msra.mxu0 %v255
  %334 = vmatprep.subr.bf16.mxu0 0
  %335 = vmatpush1.bf16.msra.mxu0 %v256
  %336 = vmatprep.subr.bf16.mxu0 0
  %337 = vmatpush1.bf16.msra.mxu0 %v257
  %338 = vmatprep.mubr.bf16.mxu0 %v107
  %339 = vmatmul.mubr.bf16.gmra.mrb[0].mxu0 %v106
  %v340 = vpop.f32.mrb[0].mxu0
  %v341 = vadd.f32 %v98, %v340
  %v342 = vpop.f32.mrb[0].mxu0
  %v343 = vpop.f32.mrb[0].mxu0
  %v344 = vpop.f32.mrb[0].mxu0
  %345 = vdwg.mxu0
  %346 = vmatprep.subr.bf16.mxu0 0
  %347 = vmatpush1.bf16.msra.mxu0 %v258
  %348 = vmatprep.subr.bf16.mxu0 0
  %349 = vmatpush1.bf16.msra.mxu0 %v259
  %350 = vmatprep.subr.bf16.mxu0 0
  %351 = vmatpush1.bf16.msra.mxu0 %v260
  %352 = vmatprep.subr.bf16.mxu0 0
  %353 = vmatpush1.bf16.msra.mxu0 %v261
  %354 = vmatprep.subr.bf16.mxu0 0
  %355 = vmatpush1.bf16.msra.mxu0 %v262
  %356 = vmatprep.subr.bf16.mxu0 0
  %357 = vmatpush1.bf16.msra.mxu0 %v263
  %358 = vmatprep.subr.bf16.mxu0 0
  %359 = vmatpush1.bf16.msra.mxu0 %v264
  %360 = vmatprep.subr.bf16.mxu0 0
  %361 = vmatpush1.bf16.msra.mxu0 %v265
  %362 = vmatprep.subr.bf16.mxu0 0
  %363 = vmatpush1.bf16.msra.mxu0 %v266
  %364 = vmatprep.subr.bf16.mxu0 0
  %365 = vmatpush1.bf16.msra.mxu0 %v267
  %366 = vmatprep.subr.bf16.mxu0 0
  %367 = vmatpush1.bf16.msra.mxu0 %v268
  %368 = vmatprep.subr.bf16.mxu0 0
  %369 = vmatpush1.bf16.msra.mxu0 %v269
  %370 = vmatprep.subr.bf16.mxu0 0
  %371 = vmatpush1.bf16.msra.mxu0 %v270
  %372 = vmatprep.subr.bf16.mxu0 0
  %373 = vmatpush1.bf16.msra.mxu0 %v271
  %374 = vmatprep.subr.bf16.mxu0 0
  %375 = vmatpush1.bf16.msra.mxu0 %v272
  %376 = vmatprep.subr.bf16.mxu0 0
  %377 = vmatpush1.bf16.msra.mxu0 %v273
  %378 = vmatprep.mubr.bf16.mxu0 %v109
  %379 = vmatmul.mubr.bf16.gmra.mrb[0].mxu0 %v108
  %v380 = vpop.f32.mrb[0].mxu0
  %v381 = vadd.f32 %v341, %v380
  %v382 = vpop.f32.mrb[0].mxu0
  %v383 = vpop.f32.mrb[0].mxu0
  %v384 = vpop.f32.mrb[0].mxu0
  %385 = vdwg.mxu0
  %v386 = vmax.f32 %v381, 0.0
  %v387 = vpack.c.bf16 %v386, %v386
  %v388 = vld [vmem:[%s3] sm:$0xf]
  %v389 = vld [vmem:[%s3 + $0x4] sm:$0xf]
  %v390 = vld [vmem:[%s3 + $0x8] sm:$0xf]
  %v391 = vld [vmem:[%s3 + $0xc] sm:$0xf]
  %v392 = vld [vmem:[%s3 + $0x10] sm:$0xf]
  %v393 = vld [vmem:[%s3 + $0x14] sm:$0xf]
  %v394 = vld [vmem:[%s3 + $0x18] sm:$0xf]
  %v395 = vld [vmem:[%s3 + $0x1c] sm:$0xf]
  %v396 = vld [vmem:[%s3 + $0x20] sm:$0xf]
  %v397 = vld [vmem:[%s3 + $0x24] sm:$0xf]
  %v398 = vld [vmem:[%s3 + $0x28] sm:$0xf]
  %v399 = vld [vmem:[%s3 + $0x2c] sm:$0xf]
  %v400 = vld [vmem:[%s3 + $0x30] sm:$0xf]
  %v401 = vld [vmem:[%s3 + $0x34] sm:$0xf]
  %v402 = vld [vmem:[%s3 + $0x38] sm:$0xf]
  %v403 = vld [vmem:[%s3 + $0x3c] sm:$0xf]
  %v404 = vld [vmem:[%s4] sm:$0x1]
  %v406 = vlaneseq
  %v407 = vshrl.u32 %v406, 7
  %v408 = vsub.s32 0, %v407
  %v409 = vrot.slane %v404, %v408
  %v427 = vunpack.c.l.b16 %v388
  %v428 = vunpack.c.l.b16 %v389
  %v429 = vunpack.c.l.b16 %v390
  %v430 = vunpack.c.l.b16 %v391
  %v431 = vunpack.c.l.b16 %v392
  %v432 = vunpack.c.l.b16 %v393
  %v433 = vunpack.c.l.b16 %v394
  %v434 = vunpack.c.l.b16 %v395
  %v435 = vunpack.c.l.b16 %v396
  %v436 = vunpack.c.l.b16 %v397
  %v437 = vunpack.c.l.b16 %v398
  %v438 = vunpack.c.l.b16 %v399
  %v439 = vunpack.c.l.b16 %v400
  %v440 = vunpack.c.l.b16 %v401
  %v441 = vunpack.c.l.b16 %v402
  %v442 = vunpack.c.l.b16 %v403
  %v443 = vpack.c.b16 %v428, %v427
  %v444 = vpack.c.b16 %v430, %v429
  %v445 = vpack.c.b16 %v432, %v431
  %v446 = vpack.c.b16 %v434, %v433
  %v447 = vpack.c.b16 %v436, %v435
  %v448 = vpack.c.b16 %v438, %v437
  %v449 = vpack.c.b16 %v440, %v439
  %v450 = vpack.c.b16 %v442, %v441
  %459 = vmatprep.subr.bf16.mxu0 0
  %460 = vmatpush1.bf16.msra.mxu0 %v443
  %461 = vmatprep.subr.bf16.mxu0 0
  %462 = vmatpush1.bf16.msra.mxu0 %v444
  %463 = vmatprep.subr.bf16.mxu0 0
  %464 = vmatpush1.bf16.msra.mxu0 %v445
  %465 = vmatprep.subr.bf16.mxu0 0
  %466 = vmatpush1.bf16.msra.mxu0 %v446
  %467 = vmatprep.subr.bf16.mxu0 0
  %468 = vmatpush1.bf16.msra.mxu0 %v447
  %469 = vmatprep.subr.bf16.mxu0 0
  %470 = vmatpush1.bf16.msra.mxu0 %v448
  %471 = vmatprep.subr.bf16.mxu0 0
  %472 = vmatpush1.bf16.msra.mxu0 %v449
  %473 = vmatprep.subr.bf16.mxu0 0
  %474 = vmatpush1.bf16.msra.mxu0 %v450
  %475 = vmatprep.subr.bf16.mxu0 0
  %476 = vmatpush1.bf16.msra.mxu0 0
  %477 = vmatprep.subr.bf16.mxu0 0
  %478 = vmatpush1.bf16.msra.mxu0 0
  %479 = vmatprep.subr.bf16.mxu0 0
  %480 = vmatpush1.bf16.msra.mxu0 0
  %481 = vmatprep.subr.bf16.mxu0 0
  %482 = vmatpush1.bf16.msra.mxu0 0
  %483 = vmatprep.subr.bf16.mxu0 0
  %484 = vmatpush1.bf16.msra.mxu0 0
  %485 = vmatprep.subr.bf16.mxu0 0
  %486 = vmatpush1.bf16.msra.mxu0 0
  %487 = vmatprep.subr.bf16.mxu0 0
  %488 = vmatpush1.bf16.msra.mxu0 0
  %489 = vmatprep.subr.bf16.mxu0 0
  %490 = vmatpush1.bf16.msra.mxu0 0
  %491 = vmatprep.mubr.bf16.mxu0 0
  %492 = vmatmul.mubr.bf16.gmra.mrb[0].mxu0 %v387
  %v493 = vpop.f32.mrb[0].mxu0
  %v494 = vadd.f32 %v409, %v493
  %v495 = vpop.f32.mrb[0].mxu0
  %v496 = vpop.f32.mrb[0].mxu0
  %v497 = vpop.f32.mrb[0].mxu0
  %498 = vdwg.mxu0
  %v499 = vmax.f32 %v494, 0.0
  %v500 = vpack.c.bf16 %v499, %v499
  %v501 = vld [vmem:[%s5] sm:$0xf]
  %v502 = vld [vmem:[%s5 + $0x4] sm:$0xf]
  %v503 = vld [vmem:[%s5 + $0x8] sm:$0xf]
  %v504 = vld [vmem:[%s5 + $0xc] sm:$0xf]
  %v505 = vld [vmem:[%s5 + $0x10] sm:$0xf]
  %v506 = vld [vmem:[%s5 + $0x14] sm:$0xf]
  %v507 = vld [vmem:[%s5 + $0x18] sm:$0xf]
  %v508 = vld [vmem:[%s5 + $0x1c] sm:$0xf]
  %v509 = vld [vmem:[%s5 + $0x20] sm:$0xf]
  %v510 = vld [vmem:[%s5 + $0x24] sm:$0xf]
  %v511 = vld [vmem:[%s5 + $0x28] sm:$0xf]
  %v512 = vld [vmem:[%s5 + $0x2c] sm:$0xf]
  %v513 = vld [vmem:[%s5 + $0x30] sm:$0xf]
  %v514 = vld [vmem:[%s5 + $0x34] sm:$0xf]
  %v515 = vld [vmem:[%s5 + $0x38] sm:$0xf]
  %v516 = vld [vmem:[%s5 + $0x3c] sm:$0xf]
  %v517 = vld [vmem:[%s6] sm:$0x1]
  %v519 = vlaneseq
  %v520 = vshrl.u32 %v519, 7
  %v521 = vsub.s32 0, %v520
  %v522 = vrot.slane %v517, %v521
  %v540 = vunpack.c.l.b16 %v501
  %v541 = vunpack.c.l.b16 %v502
  %v542 = vunpack.c.l.b16 %v503
  %v543 = vunpack.c.l.b16 %v504
  %v544 = vunpack.c.l.b16 %v505
  %v545 = vunpack.c.l.b16 %v506
  %v546 = vunpack.c.l.b16 %v507
  %v547 = vunpack.c.l.b16 %v508
  %v548 = vunpack.c.l.b16 %v509
  %v549 = vunpack.c.l.b16 %v510
  %v550 = vunpack.c.l.b16 %v511
  %v551 = vunpack.c.l.b16 %v512
  %v552 = vunpack.c.l.b16 %v513
  %v553 = vunpack.c.l.b16 %v514
  %v554 = vunpack.c.l.b16 %v515
  %v555 = vunpack.c.l.b16 %v516
  %v556 = vpack.c.b16 %v541, %v540
  %v557 = vpack.c.b16 %v543, %v542
  %v558 = vpack.c.b16 %v545, %v544
  %v559 = vpack.c.b16 %v547, %v546
  %v560 = vpack.c.b16 %v549, %v548
  %v561 = vpack.c.b16 %v551, %v550
  %v562 = vpack.c.b16 %v553, %v552
  %v563 = vpack.c.b16 %v555, %v554
  %572 = vmatprep.subr.bf16.mxu0 0
  %573 = vmatpush1.bf16.msra.mxu0 %v556
  %574 = vmatprep.subr.bf16.mxu0 0
  %575 = vmatpush1.bf16.msra.mxu0 %v557
  %576 = vmatprep.subr.bf16.mxu0 0
  %577 = vmatpush1.bf16.msra.mxu0 %v558
  %578 = vmatprep.subr.bf16.mxu0 0
  %579 = vmatpush1.bf16.msra.mxu0 %v559
  %580 = vmatprep.subr.bf16.mxu0 0
  %581 = vmatpush1.bf16.msra.mxu0 %v560
  %582 = vmatprep.subr.bf16.mxu0 0
  %583 = vmatpush1.bf16.msra.mxu0 %v561
  %584 = vmatprep.subr.bf16.mxu0 0
  %585 = vmatpush1.bf16.msra.mxu0 %v562
  %586 = vmatprep.subr.bf16.mxu0 0
  %587 = vmatpush1.bf16.msra.mxu0 %v563
  %588 = vmatprep.subr.bf16.mxu0 0
  %589 = vmatpush1.bf16.msra.mxu0 0
  %590 = vmatprep.subr.bf16.mxu0 0
  %591 = vmatpush1.bf16.msra.mxu0 0
  %592 = vmatprep.subr.bf16.mxu0 0
  %593 = vmatpush1.bf16.msra.mxu0 0
  %594 = vmatprep.subr.bf16.mxu0 0
  %595 = vmatpush1.bf16.msra.mxu0 0
  %596 = vmatprep.subr.bf16.mxu0 0
  %597 = vmatpush1.bf16.msra.mxu0 0
  %598 = vmatprep.subr.bf16.mxu0 0
  %599 = vmatpush1.bf16.msra.mxu0 0
  %600 = vmatprep.subr.bf16.mxu0 0
  %601 = vmatpush1.bf16.msra.mxu0 0
  %602 = vmatprep.subr.bf16.mxu0 0
  %603 = vmatpush1.bf16.msra.mxu0 0
  %604 = vmatprep.mubr.bf16.mxu0 0
  %605 = vmatmul.mubr.bf16.gmra.mrb[0].mxu0 %v500
  %v606 = vpop.f32.mrb[0].mxu0
  %v607 = vadd.f32 %v522, %v606
  %v608 = vpop.f32.mrb[0].mxu0
  %v609 = vpop.f32.mrb[0].mxu0
  %v610 = vpop.f32.mrb[0].mxu0
  %611 = vdwg.mxu0
  %612 = vst [vmem:[%s7] sm:$0xff] %v607
  // Predicated region
  $region30: #{net_forward.5} parent=0 // pred_check
    _
  $region31: #{net_forward.5} parent=0 // pred_check_branch
    %614 = sbr.rel (0) target = $region33
  $region32: #{net_forward.5} parent=0 // pred_region
    _
  $region33: #{net_forward.5} parent=0 // pred_fallthru
    _
  // Predicated region
  $region34: #{net_forward.5} parent=0 // pred_check
    _
  $region35: #{net_forward.5} parent=0 // pred_check_branch
    %616 = sbr.rel (0) target = $region37
  $region36: #{net_forward.5} parent=0 // pred_region
    _
  $region37: #{net_forward.5} parent=0 // pred_fallthru
    _

</llo_original>
